<compile_context>
chip_gen: v7x
topology: tpu7x:2x2x1
jax: 0.10.0
libtpu: 0.0.40
codegen_flags: <defaults>
</compile_context>

<pallas_src>
import math

import jax
import jax.numpy as jnp
from jax.experimental import pallas as pl
from jax.experimental.pallas import tpu as pltpu

# ----- PyTorch3D default constants ------------------------------------------
MESH_VIEWS = 14
FOV_DEG = 60.0
ZNEAR, ZFAR = 1.0, 100.0
AMBIENT, DIFFUSE, SPECULAR = 0.5, 0.3, 0.2   # PointLights defaults
SHININESS = 64                                # Materials default (power of two)

_FOCAL = 1.0 / math.tan(math.radians(FOV_DEG) / 2.0)
_F1 = ZFAR / (ZFAR - ZNEAR)
_F2 = -(ZFAR * ZNEAR) / (ZFAR - ZNEAR)


# ----- Pallas kernel ---------------------------------------------------------
def _make_render_kernel(views_per_block):
    def render_kernel(geom_ref, R_ref, aux_ref, screen_ref, color_ref):
        """One grid step == one 14-view block x one vertex-row tile.

        geom_ref   : VMEM (6, RT, 128)      planar x, y, z, nx, ny, nz
        R_ref      : SMEM (V*9,)            row-major world->view rotations
        aux_ref    : SMEM (V*9,)            per view [T(3), cam_center_world(3), light(3)]
        screen_ref : VMEM (VB, 3, RT, 128)  planes: x_ndc, y_ndc, z_ndc   (f32)
        color_ref  : VMEM (VB, RT, 128)     shaded grayscale Phong color  (bf16)
        """
        blk = pl.program_id(0)

        vx = geom_ref[0]; vy = geom_ref[1]; vz = geom_ref[2]
        nx = geom_ref[3]; ny = geom_ref[4]; nz = geom_ref[5]

        # View-independent work hoisted out of the per-view loop.
        inv_nn = jax.lax.rsqrt(nx * nx + ny * ny + nz * nz + 1e-12)
        nxu = nx * inv_nn; nyu = ny * inv_nn; nzu = nz * inv_nn

        # Static unroll over the 14-view block. Per-view live sets are small
        # (each view streams straight into its output planes); if a bundle dump
        # ever shows vreg spills, switch to lax.fori_loop(..., unroll=True).
        for i in range(views_per_block):
            base = (blk * views_per_block + i) * 9
            r00 = R_ref[base + 0]; r01 = R_ref[base + 1]; r02 = R_ref[base + 2]
            r10 = R_ref[base + 3]; r11 = R_ref[base + 4]; r12 = R_ref[base + 5]
            r20 = R_ref[base + 6]; r21 = R_ref[base + 7]; r22 = R_ref[base + 8]
            tx = aux_ref[base + 0]; ty = aux_ref[base + 1]; tz = aux_ref[base + 2]
            cx = aux_ref[base + 3]; cy = aux_ref[base + 4]; cz = aux_ref[base + 5]
            lx = aux_ref[base + 6]; ly = aux_ref[base + 7]; lz = aux_ref[base + 8]

            # world -> view (PyTorch3D row-vector convention: X_view = X_world @ R + T)
            xv = vx * r00 + vy * r10 + vz * r20 + tx
            yv = vx * r01 + vy * r11 + vz * r21 + ty
            zv = vx * r02 + vy * r12 + vz * r22 + tz

            # FoV perspective projection -> NDC (fov=60, aspect=1, znear=1, zfar=100).
            # Padded vertices sit at the world origin so z_view = dist = 3 > 0 always.
            fz = _FOCAL * pl.reciprocal(zv, approx=True)   # EUP slot, essentially free
            x_ndc = xv * fz
            y_ndc = yv * fz
            z_ndc = _F1 + _F2 / zv                         # exact divide: depth ordering

            # ---- per-vertex Phong shading in world space (SoftPhongShader) ----
            # direction from surface point to the point light
            dlx = lx - vx; dly = ly - vy; dlz = lz - vz
            inv_ln = jax.lax.rsqrt(dlx * dlx + dly * dly + dlz * dlz + 1e-12)
            dlx = dlx * inv_ln; dly = dly * inv_ln; dlz = dlz * inv_ln
            ndl = nxu * dlx + nyu * dly + nzu * dlz

            # direction from surface point to camera center (world)
            dvx = cx - vx; dvy = cy - vy; dvz = cz - vz
            inv_vn = jax.lax.rsqrt(dvx * dvx + dvy * dvy + dvz * dvz + 1e-12)
            dvx = dvx * inv_vn; dvy = dvy * inv_vn; dvz = dvz * inv_vn

            # specular: r.v with r = 2*(n.l)*n - l  ==  2*(n.l)*(n.v) - (l.v)
            ndv = nxu * dvx + nyu * dvy + nzu * dvz
            ldv = dlx * dvx + dly * dvy + dlz * dvz
            cos_spec = jnp.maximum(2.0 * ndl * ndv - ldv, 0.0)
            a = jnp.where(ndl > 0.0, cos_spec, 0.0)   # PyTorch3D masks by N.L > 0
            for _ in range(6):                         # cos^64 by repeated squaring
                a = a * a

            # white texture & white material colors -> identical value in R, G, B
            color = AMBIENT + DIFFUSE * jnp.maximum(ndl, 0.0) + SPECULAR * a

            # Direct full-plane stores: 3x f32 screen planes + 1x bf16 color plane.
            screen_ref[i, 0] = x_ndc
            screen_ref[i, 1] = y_ndc
            screen_ref[i, 2] = z_ndc
            color_ref[i] = color.astype(jnp.bfloat16)

    return render_kernel


# ----- JAX glue --------------------------------------------------------------
def _normalize(x, eps=1e-6):
    return x / jnp.maximum(jnp.linalg.norm(x, axis=-1, keepdims=True), eps)


def look_at_view_transform(dist, elev_deg, azim_deg):
    """JAX port of pytorch3d.renderer.look_at_view_transform (at=origin, up=+y)."""
    elev = jnp.deg2rad(elev_deg)
    azim = jnp.deg2rad(azim_deg)
    x = dist * jnp.cos(elev) * jnp.sin(azim)
    y = dist * jnp.sin(elev)
    z = dist * jnp.cos(elev) * jnp.cos(azim)
    cam = jnp.stack([x, y, z], axis=-1)                       # (V, 3) camera centers
    at = jnp.zeros_like(cam)
    up = jnp.broadcast_to(jnp.array([0.0, 1.0, 0.0], jnp.float32), cam.shape)

    z_axis = _normalize(at - cam)
    x_axis = jnp.cross(up, z_axis)
    degenerate = jnp.linalg.norm(x_axis, axis=-1, keepdims=True) < 5e-3
    x_axis = jnp.where(
        degenerate,
        jnp.broadcast_to(jnp.array([1.0, 0.0, 0.0], jnp.float32), x_axis.shape),
        x_axis)
    x_axis = _normalize(x_axis)
    y_axis = _normalize(jnp.cross(z_axis, x_axis))
    R = jnp.stack([x_axis, y_axis, z_axis], axis=-1)          # columns = camera axes
    T = -jnp.einsum("vij,vj->vi", jnp.transpose(R, (0, 2, 1)), cam)
    return R, T, cam


def build_view_params(batch_size):
    """elev/azim/light tables exactly as in projection.forward."""
    elev = jnp.tile(jnp.array([10.0, 10.0, 10.0, 10.0, 90.0, -90.0,
                               45, 45, 45, 45, 15, 15, 15, 15], jnp.float32), batch_size)
    azim = jnp.tile(jnp.array([0.0, 90.0, 180.0, 270.0, 0.0, 0.0,
                               45, 135, 225, 315, 45, 135, 225, 315], jnp.float32), batch_size)
    lights = jnp.tile(jnp.array([[0.0, 0.0, 3.0], [3.0, 0.0, 0], [0.0, 0.0, -3.0],
                                 [-3.0, 0.0, 0], [0.0, 3.0, 0.0], [0.0, -3.0, 0],
                                 [1, 1, 1], [1, 1, -1], [-1, 1, -1], [-1, 1, 1],
                                 [2, 0, 2], [2, 0, -2], [-2, 0, -2], [-2, 0, 2]],
                                jnp.float32), (batch_size, 1))
    R, T, cam = look_at_view_transform(3.0, elev, azim)
    return R, T, cam, lights


def projection_forward(verts, normals, batch_size, resolution=16):
    """Mirrors projection.forward: builds the 14*batch_size cameras/lights and runs
    the per-view vertex transform + Phong shading in a Pallas kernel.

    Returns planar, lane-dense outputs (no post-kernel transpose traffic):
      screen_planes : (V, 3, Rp, 128) f32   planes x_ndc, y_ndc, z_ndc
      color_plane   : (V, Rp, 128)    bf16  shaded grayscale Phong color (G=B=R, alpha=1)
    """
    R, T, cam, lights = build_view_params(batch_size)
    V = R.shape[0]                                            # == batch_size * MESH_VIEWS
    VB = MESH_VIEWS                                           # views fused per grid step
    num_blocks = V // VB                                      # == batch_size

    # Coordinate-planar, vreg-dense geometry layout: x/y/z/nx/ny/nz each a dense
    # (Rp, 128) plane.  Rows padded to a multiple of 16 (bf16 native sublane tile)
    # and tiled in chunks of RP_TILE rows along a second grid axis so VMEM stays
    # bounded for large meshes.  Padded vertices sit at the world origin, so
    # z_view = dist = 3 > 0 and the rsqrt epsilons keep them finite.
    N = verts.shape[0]
    rows = max(16, -(-(-(-N // 128)) // 16) * 16)             # ceil(N/128) rounded up to mult of 16
    RP_TILE = min(128, rows)
    num_row_tiles = -(-rows // RP_TILE)
    Rp = num_row_tiles * RP_TILE
    Ntot = Rp * 128

    vt = jnp.zeros((3, Ntot), jnp.float32).at[:, :N].set(verts.T).reshape(3, Rp, 128)
    nt = jnp.zeros((3, Ntot), jnp.float32).at[:, :N].set(normals.T).reshape(3, Rp, 128)
    geom = jnp.concatenate([vt, nt], axis=0)                  # (6, Rp, 128)

    # Flat 1-D scalar tables -> SMEM pads only to next pow2 (not [32,128] words).
    R_flat = R.reshape(V * 9).astype(jnp.float32)             # (V*9,)
    aux_flat = jnp.concatenate([T, cam, lights], axis=-1).reshape(V * 9).astype(jnp.float32)

    # VMEM per step (double-buffered), RP_TILE=128:
    #   geometry 2*6*128*128*4B = 0.75 MiB, screen 2*14*3*128*128*4B = 5.25 MiB,
    #   color 2*14*128*128*2B = 0.875 MiB  ->  ~7 MiB + temps: fits v5e's 16 MiB
    #   scoped default and v7x's 64 MiB physical VMEM without raising limits.
    screen_planes, color_plane = pl.pallas_call(
        _make_render_kernel(VB),
        out_shape=(
            jax.ShapeDtypeStruct((V, 3, Rp, 128), jnp.float32),
            jax.ShapeDtypeStruct((V, Rp, 128), jnp.bfloat16),
        ),
        grid=(num_blocks, num_row_tiles),
        in_specs=[
            pl.BlockSpec((6, RP_TILE, 128), lambda b, r: (0, r, 0)),   # geometry row tile
            pl.BlockSpec(memory_space=pltpu.MemorySpace.SMEM),         # R_flat   (V*9,)
            pl.BlockSpec(memory_space=pltpu.MemorySpace.SMEM),         # aux_flat (V*9,)
        ],
        out_specs=(
            pl.BlockSpec((VB, 3, RP_TILE, 128), lambda b, r: (b, 0, r, 0)),
            pl.BlockSpec((VB, RP_TILE, 128), lambda b, r: (b, r, 0)),
        ),
        compiler_params=pltpu.CompilerParams(
            dimension_semantics=("parallel", "parallel")),
    )(geom, R_flat, aux_flat)

    # TODO(synk): MeshRasterizer (per-pixel triangle coverage) + softmax RGB blending
    # into a (V, resolution, resolution, 4) image grid has no clean Pallas equivalent.
    return screen_planes, color_plane


def extract_vertex_attrs(screen_planes, color_plane, num_verts):
    """Test-only helper: densify planar kernel outputs into (V,N,3) screen coords and
    (V,N,4) RGBA vertex colors.  NOT used on the hot path (extra HBM passes)."""
    V, _, Rp, L = screen_planes.shape
    screen = jnp.transpose(
        screen_planes.reshape(V, 3, Rp * L)[:, :, :num_verts], (0, 2, 1))
    c = color_plane.astype(jnp.float32).reshape(V, Rp * L)[:, :num_verts]
    colors = jnp.stack([c, c, c, jnp.ones_like(c)], axis=-1)
    return screen, colors


# ----- pure-JAX reference for verification -----------------------------------
def _reference(verts, normals, R, T, cam, lights):
    xv = jnp.einsum("nj,vjk->vnk", verts, R,
                    precision=jax.lax.Precision.HIGHEST) + T[:, None, :]   # (V,N,3)
    inv_z = 1.0 / xv[..., 2]
    screen = jnp.stack([_FOCAL * xv[..., 0] * inv_z,
                        _FOCAL * xv[..., 1] * inv_z,
                        _F1 + _F2 * inv_z], axis=-1)

    n = verts * 0.0 + normals
    n = n / jnp.linalg.norm(n, axis=-1, keepdims=True)
    l = lights[:, None, :] - verts[None, :, :]
    l = l / jnp.linalg.norm(l, axis=-1, keepdims=True)
    v = cam[:, None, :] - verts[None, :, :]
    v = v / jnp.linalg.norm(v, axis=-1, keepdims=True)
    ndl = jnp.sum(n[None] * l, -1)
    refl = 2.0 * ndl[..., None] * n[None] - l
    cos_spec = jnp.maximum(jnp.sum(refl * v, -1), 0.0)
    spec = jnp.where(ndl > 0.0, cos_spec, 0.0) ** SHININESS
    color = AMBIENT + DIFFUSE * jnp.maximum(ndl, 0.0) + SPECULAR * spec
    colors = jnp.stack([color, color, color, jnp.ones_like(color)], axis=-1)
    return screen, colors


if __name__ == "__main__":
    batch_size = 2
    num_verts = 240
    resolution = 16

    key = jax.random.PRNGKey(0)
    pts = jax.random.normal(key, (num_verts, 3), dtype=jnp.float32)
    pts = pts / jnp.linalg.norm(pts, axis=-1, keepdims=True)   # unit-sphere "mesh"
    verts = pts
    normals = pts                                              # outward normals

    screen_planes, color_plane = projection_forward(verts, normals, batch_size, resolution)
    jax.block_until_ready(screen_planes)
    jax.block_until_ready(color_plane)

    V = batch_size * MESH_VIEWS
    screen, colors = extract_vertex_attrs(screen_planes, color_plane, num_verts)
    assert screen.shape == (V, num_verts, 3)
    assert colors.shape == (V, num_verts, 4)
    assert bool(jnp.all(jnp.isfinite(screen))) and bool(jnp.all(jnp.isfinite(colors)))

    # Correctness spot-check against a pure-JAX reference (tolerances cover the
    # approx reciprocal on x/y, hardware rsqrt, and the bf16 color store).
    R, T, cam, lights = build_view_params(batch_size)
    ref_screen, ref_colors = _reference(verts, normals, R, T, cam, lights)
    err_s = float(jnp.max(jnp.abs(screen - ref_screen)))
    err_c = float(jnp.max(jnp.abs(colors - ref_colors)))
    assert err_s < 2e-2, f"screen mismatch: {err_s}"
    assert err_c < 8e-2, f"color mismatch: {err_c}"

    print("KERNEL_OK")
</pallas_src>

<mosaic_0001>
module attributes {stable_mosaic.version = 11 : i64} {
  func.func @render_kernel(%arg0: i32, %arg1: i32, %arg2: memref<6x16x128xf32, #tpu.memory_space<vmem>>, %arg3: memref<252xf32, #tpu.memory_space<smem>>, %arg4: memref<252xf32, #tpu.memory_space<smem>>, %arg5: memref<14x3x16x128xf32, #tpu.memory_space<vmem>>, %arg6: memref<14x16x128xbf16, #tpu.memory_space<vmem>>) attributes {dimension_semantics = [#tpu.dimension_semantics<parallel>, #tpu.dimension_semantics<parallel>], iteration_bounds = array<i64: 2, 1>, scalar_prefetch = 0 : i64, scratch_operands = 0 : i64, tpu.core_type = #tpu.core_type<tc>, window_params = [{transform_indices = @transform_0, window_bounds = array<i64: 6, 16, 128>}, {transform_indices = @transform_1, window_bounds = array<i64: 252>}, {transform_indices = @transform_2, window_bounds = array<i64: 252>}, {transform_indices = @transform_3, window_bounds = array<i64: 14, 3, 16, 128>}, {transform_indices = @transform_4, window_bounds = array<i64: 14, 16, 128>}]} {
    %c0 = arith.constant 0 : index
    %c0_0 = arith.constant 0 : index
    %c0_1 = arith.constant 0 : index
    %0 = vector.load %arg2[%c0, %c0_0, %c0_1] : memref<6x16x128xf32, #tpu.memory_space<vmem>>, vector<1x16x128xf32>
    %1 = vector.shape_cast %0 : vector<1x16x128xf32> to vector<16x128xf32>
    %c1 = arith.constant 1 : index
    %c0_2 = arith.constant 0 : index
    %c0_3 = arith.constant 0 : index
    %2 = vector.load %arg2[%c1, %c0_2, %c0_3] : memref<6x16x128xf32, #tpu.memory_space<vmem>>, vector<1x16x128xf32>
    %3 = vector.shape_cast %2 : vector<1x16x128xf32> to vector<16x128xf32>
    %c2 = arith.constant 2 : index
    %c0_4 = arith.constant 0 : index
    %c0_5 = arith.constant 0 : index
    %4 = vector.load %arg2[%c2, %c0_4, %c0_5] : memref<6x16x128xf32, #tpu.memory_space<vmem>>, vector<1x16x128xf32>
    %5 = vector.shape_cast %4 : vector<1x16x128xf32> to vector<16x128xf32>
    %c3 = arith.constant 3 : index
    %c0_6 = arith.constant 0 : index
    %c0_7 = arith.constant 0 : index
    %6 = vector.load %arg2[%c3, %c0_6, %c0_7] : memref<6x16x128xf32, #tpu.memory_space<vmem>>, vector<1x16x128xf32>
    %7 = vector.shape_cast %6 : vector<1x16x128xf32> to vector<16x128xf32>
    %c4 = arith.constant 4 : index
    %c0_8 = arith.constant 0 : index
    %c0_9 = arith.constant 0 : index
    %8 = vector.load %arg2[%c4, %c0_8, %c0_9] : memref<6x16x128xf32, #tpu.memory_space<vmem>>, vector<1x16x128xf32>
    %9 = vector.shape_cast %8 : vector<1x16x128xf32> to vector<16x128xf32>
    %c5 = arith.constant 5 : index
    %c0_10 = arith.constant 0 : index
    %c0_11 = arith.constant 0 : index
    %10 = vector.load %arg2[%c5, %c0_10, %c0_11] : memref<6x16x128xf32, #tpu.memory_space<vmem>>, vector<1x16x128xf32>
    %11 = vector.shape_cast %10 : vector<1x16x128xf32> to vector<16x128xf32>
    %12 = arith.mulf %7, %7 : vector<16x128xf32>
    %13 = arith.mulf %9, %9 : vector<16x128xf32>
    %14 = arith.addf %12, %13 : vector<16x128xf32>
    %15 = arith.mulf %11, %11 : vector<16x128xf32>
    %16 = arith.addf %14, %15 : vector<16x128xf32>
    %cst = arith.constant 9.99999996E-13 : f32
    %17 = vector.broadcast %cst : f32 to vector<16x128xf32>
    %18 = arith.addf %16, %17 : vector<16x128xf32>
    %19 = math.rsqrt %18 : vector<16x128xf32>
    %20 = arith.mulf %7, %19 : vector<16x128xf32>
    %21 = arith.mulf %9, %19 : vector<16x128xf32>
    %22 = arith.mulf %11, %19 : vector<16x128xf32>
    %c14_i32 = arith.constant 14 : i32
    %23 = arith.muli %arg0, %c14_i32 : i32
    %c0_i32 = arith.constant 0 : i32
    %24 = arith.addi %23, %c0_i32 : i32
    %c9_i32 = arith.constant 9 : i32
    %25 = arith.muli %24, %c9_i32 : i32
    %c0_i32_12 = arith.constant 0 : i32
    %26 = arith.addi %25, %c0_i32_12 : i32
    %27 = arith.index_cast %26 : i32 to index
    %28 = memref.load %arg3[%27] : memref<252xf32, #tpu.memory_space<smem>>
    %c1_i32 = arith.constant 1 : i32
    %29 = arith.addi %25, %c1_i32 : i32
    %30 = arith.index_cast %29 : i32 to index
    %31 = memref.load %arg3[%30] : memref<252xf32, #tpu.memory_space<smem>>
    %c2_i32 = arith.constant 2 : i32
    %32 = arith.addi %25, %c2_i32 : i32
    %33 = arith.index_cast %32 : i32 to index
    %34 = memref.load %arg3[%33] : memref<252xf32, #tpu.memory_space<smem>>
    %c3_i32 = arith.constant 3 : i32
    %35 = arith.addi %25, %c3_i32 : i32
    %36 = arith.index_cast %35 : i32 to index
    %37 = memref.load %arg3[%36] : memref<252xf32, #tpu.memory_space<smem>>
    %c4_i32 = arith.constant 4 : i32
    %38 = arith.addi %25, %c4_i32 : i32
    %39 = arith.index_cast %38 : i32 to index
    %40 = memref.load %arg3[%39] : memref<252xf32, #tpu.memory_space<smem>>
    %c5_i32 = arith.constant 5 : i32
    %41 = arith.addi %25, %c5_i32 : i32
    %42 = arith.index_cast %41 : i32 to index
    %43 = memref.load %arg3[%42] : memref<252xf32, #tpu.memory_space<smem>>
    %c6_i32 = arith.constant 6 : i32
    %44 = arith.addi %25, %c6_i32 : i32
    %45 = arith.index_cast %44 : i32 to index
    %46 = memref.load %arg3[%45] : memref<252xf32, #tpu.memory_space<smem>>
    %c7_i32 = arith.constant 7 : i32
    %47 = arith.addi %25, %c7_i32 : i32
    %48 = arith.index_cast %47 : i32 to index
    %49 = memref.load %arg3[%48] : memref<252xf32, #tpu.memory_space<smem>>
    %c8_i32 = arith.constant 8 : i32
    %50 = arith.addi %25, %c8_i32 : i32
    %51 = arith.index_cast %50 : i32 to index
    %52 = memref.load %arg3[%51] : memref<252xf32, #tpu.memory_space<smem>>
    %c0_i32_13 = arith.constant 0 : i32
    %53 = arith.addi %25, %c0_i32_13 : i32
    %54 = arith.index_cast %53 : i32 to index
    %55 = memref.load %arg4[%54] : memref<252xf32, #tpu.memory_space<smem>>
    %c1_i32_14 = arith.constant 1 : i32
    %56 = arith.addi %25, %c1_i32_14 : i32
    %57 = arith.index_cast %56 : i32 to index
    %58 = memref.load %arg4[%57] : memref<252xf32, #tpu.memory_space<smem>>
    %c2_i32_15 = arith.constant 2 : i32
    %59 = arith.addi %25, %c2_i32_15 : i32
    %60 = arith.index_cast %59 : i32 to index
    %61 = memref.load %arg4[%60] : memref<252xf32, #tpu.memory_space<smem>>
    %c3_i32_16 = arith.constant 3 : i32
    %62 = arith.addi %25, %c3_i32_16 : i32
    %63 = arith.index_cast %62 : i32 to index
    %64 = memref.load %arg4[%63] : memref<252xf32, #tpu.memory_space<smem>>
    %c4_i32_17 = arith.constant 4 : i32
    %65 = arith.addi %25, %c4_i32_17 : i32
    %66 = arith.index_cast %65 : i32 to index
    %67 = memref.load %arg4[%66] : memref<252xf32, #tpu.memory_space<smem>>
    %c5_i32_18 = arith.constant 5 : i32
    %68 = arith.addi %25, %c5_i32_18 : i32
    %69 = arith.index_cast %68 : i32 to index
    %70 = memref.load %arg4[%69] : memref<252xf32, #tpu.memory_space<smem>>
    %c6_i32_19 = arith.constant 6 : i32
    %71 = arith.addi %25, %c6_i32_19 : i32
    %72 = arith.index_cast %71 : i32 to index
    %73 = memref.load %arg4[%72] : memref<252xf32, #tpu.memory_space<smem>>
    %c7_i32_20 = arith.constant 7 : i32
    %74 = arith.addi %25, %c7_i32_20 : i32
    %75 = arith.index_cast %74 : i32 to index
    %76 = memref.load %arg4[%75] : memref<252xf32, #tpu.memory_space<smem>>
    %c8_i32_21 = arith.constant 8 : i32
    %77 = arith.addi %25, %c8_i32_21 : i32
    %78 = arith.index_cast %77 : i32 to index
    %79 = memref.load %arg4[%78] : memref<252xf32, #tpu.memory_space<smem>>
    %80 = vector.broadcast %28 : f32 to vector<16x128xf32>
    %81 = arith.mulf %1, %80 : vector<16x128xf32>
    %82 = vector.broadcast %37 : f32 to vector<16x128xf32>
    %83 = arith.mulf %3, %82 : vector<16x128xf32>
    %84 = arith.addf %81, %83 : vector<16x128xf32>
    %85 = vector.broadcast %46 : f32 to vector<16x128xf32>
    %86 = arith.mulf %5, %85 : vector<16x128xf32>
    %87 = arith.addf %84, %86 : vector<16x128xf32>
    %88 = vector.broadcast %55 : f32 to vector<16x128xf32>
    %89 = arith.addf %87, %88 : vector<16x128xf32>
    %90 = vector.broadcast %31 : f32 to vector<16x128xf32>
    %91 = arith.mulf %1, %90 : vector<16x128xf32>
    %92 = vector.broadcast %40 : f32 to vector<16x128xf32>
    %93 = arith.mulf %3, %92 : vector<16x128xf32>
    %94 = arith.addf %91, %93 : vector<16x128xf32>
    %95 = vector.broadcast %49 : f32 to vector<16x128xf32>
    %96 = arith.mulf %5, %95 : vector<16x128xf32>
    %97 = arith.addf %94, %96 : vector<16x128xf32>
    %98 = vector.broadcast %58 : f32 to vector<16x128xf32>
    %99 = arith.addf %97, %98 : vector<16x128xf32>
    %100 = vector.broadcast %34 : f32 to vector<16x128xf32>
    %101 = arith.mulf %1, %100 : vector<16x128xf32>
    %102 = vector.broadcast %43 : f32 to vector<16x128xf32>
    %103 = arith.mulf %3, %102 : vector<16x128xf32>
    %104 = arith.addf %101, %103 : vector<16x128xf32>
    %105 = vector.broadcast %52 : f32 to vector<16x128xf32>
    %106 = arith.mulf %5, %105 : vector<16x128xf32>
    %107 = arith.addf %104, %106 : vector<16x128xf32>
    %108 = vector.broadcast %61 : f32 to vector<16x128xf32>
    %109 = arith.addf %107, %108 : vector<16x128xf32>
    %110 = tpu.reciprocal %109 {approx = true} : vector<16x128xf32> -> vector<16x128xf32>
    %cst_22 = arith.constant 1.73205078 : f32
    %111 = vector.broadcast %cst_22 : f32 to vector<16x128xf32>
    %112 = arith.mulf %111, %110 : vector<16x128xf32>
    %113 = arith.mulf %89, %112 : vector<16x128xf32>
    %114 = arith.mulf %99, %112 : vector<16x128xf32>
    %cst_23 = arith.constant -1.01010096 : f32
    %115 = vector.broadcast %cst_23 : f32 to vector<16x128xf32>
    %116 = arith.divf %115, %109 : vector<16x128xf32>
    %cst_24 = arith.constant 1.01010096 : f32
    %117 = vector.broadcast %cst_24 : f32 to vector<16x128xf32>
    %118 = arith.addf %117, %116 : vector<16x128xf32>
    %119 = vector.broadcast %73 : f32 to vector<16x128xf32>
    %120 = arith.subf %119, %1 : vector<16x128xf32>
    %121 = vector.broadcast %76 : f32 to vector<16x128xf32>
    %122 = arith.subf %121, %3 : vector<16x128xf32>
    %123 = vector.broadcast %79 : f32 to vector<16x128xf32>
    %124 = arith.subf %123, %5 : vector<16x128xf32>
    %125 = arith.mulf %120, %120 : vector<16x128xf32>
    %126 = arith.mulf %122, %122 : vector<16x128xf32>
    %127 = arith.addf %125, %126 : vector<16x128xf32>
    %128 = arith.mulf %124, %124 : vector<16x128xf32>
    %129 = arith.addf %127, %128 : vector<16x128xf32>
    %cst_25 = arith.constant 9.99999996E-13 : f32
    %130 = vector.broadcast %cst_25 : f32 to vector<16x128xf32>
    %131 = arith.addf %129, %130 : vector<16x128xf32>
    %132 = math.rsqrt %131 : vector<16x128xf32>
    %133 = arith.mulf %120, %132 : vector<16x128xf32>
    %134 = arith.mulf %122, %132 : vector<16x128xf32>
    %135 = arith.mulf %124, %132 : vector<16x128xf32>
    %136 = arith.mulf %20, %133 : vector<16x128xf32>
    %137 = arith.mulf %21, %134 : vector<16x128xf32>
    %138 = arith.addf %136, %137 : vector<16x128xf32>
    %139 = arith.mulf %22, %135 : vector<16x128xf32>
    %140 = arith.addf %138, %139 : vector<16x128xf32>
    %141 = vector.broadcast %64 : f32 to vector<16x128xf32>
    %142 = arith.subf %141, %1 : vector<16x128xf32>
    %143 = vector.broadcast %67 : f32 to vector<16x128xf32>
    %144 = arith.subf %143, %3 : vector<16x128xf32>
    %145 = vector.broadcast %70 : f32 to vector<16x128xf32>
    %146 = arith.subf %145, %5 : vector<16x128xf32>
    %147 = arith.mulf %142, %142 : vector<16x128xf32>
    %148 = arith.mulf %144, %144 : vector<16x128xf32>
    %149 = arith.addf %147, %148 : vector<16x128xf32>
    %150 = arith.mulf %146, %146 : vector<16x128xf32>
    %151 = arith.addf %149, %150 : vector<16x128xf32>
    %cst_26 = arith.constant 9.99999996E-13 : f32
    %152 = vector.broadcast %cst_26 : f32 to vector<16x128xf32>
    %153 = arith.addf %151, %152 : vector<16x128xf32>
    %154 = math.rsqrt %153 : vector<16x128xf32>
    %155 = arith.mulf %142, %154 : vector<16x128xf32>
    %156 = arith.mulf %144, %154 : vector<16x128xf32>
    %157 = arith.mulf %146, %154 : vector<16x128xf32>
    %158 = arith.mulf %20, %155 : vector<16x128xf32>
    %159 = arith.mulf %21, %156 : vector<16x128xf32>
    %160 = arith.addf %158, %159 : vector<16x128xf32>
    %161 = arith.mulf %22, %157 : vector<16x128xf32>
    %162 = arith.addf %160, %161 : vector<16x128xf32>
    %163 = arith.mulf %133, %155 : vector<16x128xf32>
    %164 = arith.mulf %134, %156 : vector<16x128xf32>
    %165 = arith.addf %163, %164 : vector<16x128xf32>
    %166 = arith.mulf %135, %157 : vector<16x128xf32>
    %167 = arith.addf %165, %166 : vector<16x128xf32>
    %cst_27 = arith.constant 2.000000e+00 : f32
    %168 = vector.broadcast %cst_27 : f32 to vector<16x128xf32>
    %169 = arith.mulf %168, %140 : vector<16x128xf32>
    %170 = arith.mulf %169, %162 : vector<16x128xf32>
    %171 = arith.subf %170, %167 : vector<16x128xf32>
    %cst_28 = arith.constant 0.000000e+00 : f32
    %172 = vector.broadcast %cst_28 : f32 to vector<16x128xf32>
    %173 = arith.maximumf %171, %172 : vector<16x128xf32>
    %cst_29 = arith.constant 0.000000e+00 : f32
    %174 = vector.broadcast %cst_29 : f32 to vector<16x128xf32>
    %175 = arith.cmpf ogt, %140, %174 : vector<16x128xf32>
    %cst_30 = arith.constant 0.000000e+00 : f32
    %176 = vector.broadcast %cst_30 : f32 to vector<16x128xf32>
    %177 = arith.select %175, %173, %176 : vector<16x128xi1>, vector<16x128xf32>
    %178 = arith.mulf %177, %177 : vector<16x128xf32>
    %179 = arith.mulf %178, %178 : vector<16x128xf32>
    %180 = arith.mulf %179, %179 : vector<16x128xf32>
    %181 = arith.mulf %180, %180 : vector<16x128xf32>
    %182 = arith.mulf %181, %181 : vector<16x128xf32>
    %183 = arith.mulf %182, %182 : vector<16x128xf32>
    %cst_31 = arith.constant 0.000000e+00 : f32
    %184 = vector.broadcast %cst_31 : f32 to vector<16x128xf32>
    %185 = arith.maximumf %140, %184 : vector<16x128xf32>
    %cst_32 = arith.constant 3.000000e-01 : f32
    %186 = vector.broadcast %cst_32 : f32 to vector<16x128xf32>
    %187 = arith.mulf %186, %185 : vector<16x128xf32>
    %cst_33 = arith.constant 5.000000e-01 : f32
    %188 = vector.broadcast %cst_33 : f32 to vector<16x128xf32>
    %189 = arith.addf %188, %187 : vector<16x128xf32>
    %cst_34 = arith.constant 2.000000e-01 : f32
    %190 = vector.broadcast %cst_34 : f32 to vector<16x128xf32>
    %191 = arith.mulf %190, %183 : vector<16x128xf32>
    %192 = arith.addf %189, %191 : vector<16x128xf32>
    %c0_35 = arith.constant 0 : index
    %c0_36 = arith.constant 0 : index
    %c0_37 = arith.constant 0 : index
    %c0_38 = arith.constant 0 : index
    %193 = vector.load %arg5[%c0_35, %c0_36, %c0_37, %c0_38] : memref<14x3x16x128xf32, #tpu.memory_space<vmem>>, vector<1x1x16x128xf32>
    %194 = vector.shape_cast %193 : vector<1x1x16x128xf32> to vector<16x128xf32>
    %195 = vector.shape_cast %113 : vector<16x128xf32> to vector<1x1x16x128xf32>
    tpu.vector_store %arg5[%c0_35, %c0_36, %c0_37, %c0_38], %195 {strides = array<i32>} : memref<14x3x16x128xf32, #tpu.memory_space<vmem>>, vector<1x1x16x128xf32>,
    %c0_39 = arith.constant 0 : index
    %c1_40 = arith.constant 1 : index
    %c0_41 = arith.constant 0 : index
    %c0_42 = arith.constant 0 : index
    %196 = vector.load %arg5[%c0_39, %c1_40, %c0_41, %c0_42] : memref<14x3x16x128xf32, #tpu.memory_space<vmem>>, vector<1x1x16x128xf32>
    %197 = vector.shape_cast %196 : vector<1x1x16x128xf32> to vector<16x128xf32>
    %198 = vector.shape_cast %114 : vector<16x128xf32> to vector<1x1x16x128xf32>
    tpu.vector_store %arg5[%c0_39, %c1_40, %c0_41, %c0_42], %198 {strides = array<i32>} : memref<14x3x16x128xf32, #tpu.memory_space<vmem>>, vector<1x1x16x128xf32>,
    %c0_43 = arith.constant 0 : index
    %c2_44 = arith.constant 2 : index
    %c0_45 = arith.constant 0 : index
    %c0_46 = arith.constant 0 : index
    %199 = vector.load %arg5[%c0_43, %c2_44, %c0_45, %c0_46] : memref<14x3x16x128xf32, #tpu.memory_space<vmem>>, vector<1x1x16x128xf32>
    %200 = vector.shape_cast %199 : vector<1x1x16x128xf32> to vector<16x128xf32>
    %201 = vector.shape_cast %118 : vector<16x128xf32> to vector<1x1x16x128xf32>
    tpu.vector_store %arg5[%c0_43, %c2_44, %c0_45, %c0_46], %201 {strides = array<i32>} : memref<14x3x16x128xf32, #tpu.memory_space<vmem>>, vector<1x1x16x128xf32>,
    %202 = arith.truncf %192 : vector<16x128xf32> to vector<16x128xbf16>
    %c0_47 = arith.constant 0 : index
    %c0_48 = arith.constant 0 : index
    %c0_49 = arith.constant 0 : index
    %203 = vector.load %arg6[%c0_47, %c0_48, %c0_49] : memref<14x16x128xbf16, #tpu.memory_space<vmem>>, vector<1x16x128xbf16>
    %204 = vector.shape_cast %203 : vector<1x16x128xbf16> to vector<16x128xbf16>
    %205 = vector.shape_cast %202 : vector<16x128xbf16> to vector<1x16x128xbf16>
    tpu.vector_store %arg6[%c0_47, %c0_48, %c0_49], %205 {strides = array<i32>} : memref<14x16x128xbf16, #tpu.memory_space<vmem>>, vector<1x16x128xbf16>,
    %c14_i32_50 = arith.constant 14 : i32
    %206 = arith.muli %arg0, %c14_i32_50 : i32
    %c1_i32_51 = arith.constant 1 : i32
    %207 = arith.addi %206, %c1_i32_51 : i32
    %c9_i32_52 = arith.constant 9 : i32
    %208 = arith.muli %207, %c9_i32_52 : i32
    %c0_i32_53 = arith.constant 0 : i32
    %209 = arith.addi %208, %c0_i32_53 : i32
    %210 = arith.index_cast %209 : i32 to index
    %211 = memref.load %arg3[%210] : memref<252xf32, #tpu.memory_space<smem>>
    %c1_i32_54 = arith.constant 1 : i32
    %212 = arith.addi %208, %c1_i32_54 : i32
    %213 = arith.index_cast %212 : i32 to index
    %214 = memref.load %arg3[%213] : memref<252xf32, #tpu.memory_space<smem>>
    %c2_i32_55 = arith.constant 2 : i32
    %215 = arith.addi %208, %c2_i32_55 : i32
    %216 = arith.index_cast %215 : i32 to index
    %217 = memref.load %arg3[%216] : memref<252xf32, #tpu.memory_space<smem>>
    %c3_i32_56 = arith.constant 3 : i32
    %218 = arith.addi %208, %c3_i32_56 : i32
    %219 = arith.index_cast %218 : i32 to index
    %220 = memref.load %arg3[%219] : memref<252xf32, #tpu.memory_space<smem>>
    %c4_i32_57 = arith.constant 4 : i32
    %221 = arith.addi %208, %c4_i32_57 : i32
    %222 = arith.index_cast %221 : i32 to index
    %223 = memref.load %arg3[%222] : memref<252xf32, #tpu.memory_space<smem>>
    %c5_i32_58 = arith.constant 5 : i32
    %224 = arith.addi %208, %c5_i32_58 : i32
    %225 = arith.index_cast %224 : i32 to index
    %226 = memref.load %arg3[%225] : memref<252xf32, #tpu.memory_space<smem>>
    %c6_i32_59 = arith.constant 6 : i32
    %227 = arith.addi %208, %c6_i32_59 : i32
    %228 = arith.index_cast %227 : i32 to index
    %229 = memref.load %arg3[%228] : memref<252xf32, #tpu.memory_space<smem>>
    %c7_i32_60 = arith.constant 7 : i32
    %230 = arith.addi %208, %c7_i32_60 : i32
    %231 = arith.index_cast %230 : i32 to index
    %232 = memref.load %arg3[%231] : memref<252xf32, #tpu.memory_space<smem>>
    %c8_i32_61 = arith.constant 8 : i32
    %233 = arith.addi %208, %c8_i32_61 : i32
    %234 = arith.index_cast %233 : i32 to index
    %235 = memref.load %arg3[%234] : memref<252xf32, #tpu.memory_space<smem>>
    %c0_i32_62 = arith.constant 0 : i32
    %236 = arith.addi %208, %c0_i32_62 : i32
    %237 = arith.index_cast %236 : i32 to index
    %238 = memref.load %arg4[%237] : memref<252xf32, #tpu.memory_space<smem>>
    %c1_i32_63 = arith.constant 1 : i32
    %239 = arith.addi %208, %c1_i32_63 : i32
    %240 = arith.index_cast %239 : i32 to index
    %241 = memref.load %arg4[%240] : memref<252xf32, #tpu.memory_space<smem>>
    %c2_i32_64 = arith.constant 2 : i32
    %242 = arith.addi %208, %c2_i32_64 : i32
    %243 = arith.index_cast %242 : i32 to index
    %244 = memref.load %arg4[%243] : memref<252xf32, #tpu.memory_space<smem>>
    %c3_i32_65 = arith.constant 3 : i32
    %245 = arith.addi %208, %c3_i32_65 : i32
    %246 = arith.index_cast %245 : i32 to index
    %247 = memref.load %arg4[%246] : memref<252xf32, #tpu.memory_space<smem>>
    %c4_i32_66 = arith.constant 4 : i32
    %248 = arith.addi %208, %c4_i32_66 : i32
    %249 = arith.index_cast %248 : i32 to index
    %250 = memref.load %arg4[%249] : memref<252xf32, #tpu.memory_space<smem>>
    %c5_i32_67 = arith.constant 5 : i32
    %251 = arith.addi %208, %c5_i32_67 : i32
    %252 = arith.index_cast %251 : i32 to index
    %253 = memref.load %arg4[%252] : memref<252xf32, #tpu.memory_space<smem>>
    %c6_i32_68 = arith.constant 6 : i32
    %254 = arith.addi %208, %c6_i32_68 : i32
    %255 = arith.index_cast %254 : i32 to index
    %256 = memref.load %arg4[%255] : memref<252xf32, #tpu.memory_space<smem>>
    %c7_i32_69 = arith.constant 7 : i32
    %257 = arith.addi %208, %c7_i32_69 : i32
    %258 = arith.index_cast %257 : i32 to index
    %259 = memref.load %arg4[%258] : memref<252xf32, #tpu.memory_space<smem>>
    %c8_i32_70 = arith.constant 8 : i32
    %260 = arith.addi %208, %c8_i32_70 : i32
    %261 = arith.index_cast %260 : i32 to index
    %262 = memref.load %arg4[%261] : memref<252xf32, #tpu.memory_space<smem>>
    %263 = vector.broadcast %211 : f32 to vector<16x128xf32>
    %264 = arith.mulf %1, %263 : vector<16x128xf32>
    %265 = vector.broadcast %220 : f32 to vector<16x128xf32>
    %266 = arith.mulf %3, %265 : vector<16x128xf32>
    %267 = arith.addf %264, %266 : vector<16x128xf32>
    %268 = vector.broadcast %229 : f32 to vector<16x128xf32>
    %269 = arith.mulf %5, %268 : vector<16x128xf32>
    %270 = arith.addf %267, %269 : vector<16x128xf32>
    %271 = vector.broadcast %238 : f32 to vector<16x128xf32>
    %272 = arith.addf %270, %271 : vector<16x128xf32>
    %273 = vector.broadcast %214 : f32 to vector<16x128xf32>
    %274 = arith.mulf %1, %273 : vector<16x128xf32>
    %275 = vector.broadcast %223 : f32 to vector<16x128xf32>
    %276 = arith.mulf %3, %275 : vector<16x128xf32>
    %277 = arith.addf %274, %276 : vector<16x128xf32>
    %278 = vector.broadcast %232 : f32 to vector<16x128xf32>
    %279 = arith.mulf %5, %278 : vector<16x128xf32>
    %280 = arith.addf %277, %279 : vector<16x128xf32>
    %281 = vector.broadcast %241 : f32 to vector<16x128xf32>
    %282 = arith.addf %280, %281 : vector<16x128xf32>
    %283 = vector.broadcast %217 : f32 to vector<16x128xf32>
    %284 = arith.mulf %1, %283 : vector<16x128xf32>
    %285 = vector.broadcast %226 : f32 to vector<16x128xf32>
    %286 = arith.mulf %3, %285 : vector<16x128xf32>
    %287 = arith.addf %284, %286 : vector<16x128xf32>
    %288 = vector.broadcast %235 : f32 to vector<16x128xf32>
    %289 = arith.mulf %5, %288 : vector<16x128xf32>
    %290 = arith.addf %287, %289 : vector<16x128xf32>
    %291 = vector.broadcast %244 : f32 to vector<16x128xf32>
    %292 = arith.addf %290, %291 : vector<16x128xf32>
    %293 = tpu.reciprocal %292 {approx = true} : vector<16x128xf32> -> vector<16x128xf32>
    %cst_71 = arith.constant 1.73205078 : f32
    %294 = vector.broadcast %cst_71 : f32 to vector<16x128xf32>
    %295 = arith.mulf %294, %293 : vector<16x128xf32>
    %296 = arith.mulf %272, %295 : vector<16x128xf32>
    %297 = arith.mulf %282, %295 : vector<16x128xf32>
    %cst_72 = arith.constant -1.01010096 : f32
    %298 = vector.broadcast %cst_72 : f32 to vector<16x128xf32>
    %299 = arith.divf %298, %292 : vector<16x128xf32>
    %cst_73 = arith.constant 1.01010096 : f32
    %300 = vector.broadcast %cst_73 : f32 to vector<16x128xf32>
    %301 = arith.addf %300, %299 : vector<16x128xf32>
    %302 = vector.broadcast %256 : f32 to vector<16x128xf32>
    %303 = arith.subf %302, %1 : vector<16x128xf32>
    %304 = vector.broadcast %259 : f32 to vector<16x128xf32>
    %305 = arith.subf %304, %3 : vector<16x128xf32>
    %306 = vector.broadcast %262 : f32 to vector<16x128xf32>
    %307 = arith.subf %306, %5 : vector<16x128xf32>
    %308 = arith.mulf %303, %303 : vector<16x128xf32>
    %309 = arith.mulf %305, %305 : vector<16x128xf32>
    %310 = arith.addf %308, %309 : vector<16x128xf32>
    %311 = arith.mulf %307, %307 : vector<16x128xf32>
    %312 = arith.addf %310, %311 : vector<16x128xf32>
    %cst_74 = arith.constant 9.99999996E-13 : f32
    %313 = vector.broadcast %cst_74 : f32 to vector<16x128xf32>
    %314 = arith.addf %312, %313 : vector<16x128xf32>
    %315 = math.rsqrt %314 : vector<16x128xf32>
    %316 = arith.mulf %303, %315 : vector<16x128xf32>
    %317 = arith.mulf %305, %315 : vector<16x128xf32>
    %318 = arith.mulf %307, %315 : vector<16x128xf32>
    %319 = arith.mulf %20, %316 : vector<16x128xf32>
    %320 = arith.mulf %21, %317 : vector<16x128xf32>
    %321 = arith.addf %319, %320 : vector<16x128xf32>
    %322 = arith.mulf %22, %318 : vector<16x128xf32>
    %323 = arith.addf %321, %322 : vector<16x128xf32>
    %324 = vector.broadcast %247 : f32 to vector<16x128xf32>
    %325 = arith.subf %324, %1 : vector<16x128xf32>
    %326 = vector.broadcast %250 : f32 to vector<16x128xf32>
    %327 = arith.subf %326, %3 : vector<16x128xf32>
    %328 = vector.broadcast %253 : f32 to vector<16x128xf32>
    %329 = arith.subf %328, %5 : vector<16x128xf32>
    %330 = arith.mulf %325, %325 : vector<16x128xf32>
    %331 = arith.mulf %327, %327 : vector<16x128xf32>
    %332 = arith.addf %330, %331 : vector<16x128xf32>
    %333 = arith.mulf %329, %329 : vector<16x128xf32>
    %334 = arith.addf %332, %333 : vector<16x128xf32>
    %cst_75 = arith.constant 9.99999996E-13 : f32
    %335 = vector.broadcast %cst_75 : f32 to vector<16x128xf32>
    %336 = arith.addf %334, %335 : vector<16x128xf32>
    %337 = math.rsqrt %336 : vector<16x128xf32>
    %338 = arith.mulf %325, %337 : vector<16x128xf32>
    %339 = arith.mulf %327, %337 : vector<16x128xf32>
    %340 = arith.mulf %329, %337 : vector<16x128xf32>
    %341 = arith.mulf %20, %338 : vector<16x128xf32>
    %342 = arith.mulf %21, %339 : vector<16x128xf32>
    %343 = arith.addf %341, %342 : vector<16x128xf32>
    %344 = arith.mulf %22, %340 : vector<16x128xf32>
    %345 = arith.addf %343, %344 : vector<16x128xf32>
    %346 = arith.mulf %316, %338 : vector<16x128xf32>
    %347 = arith.mulf %317, %339 : vector<16x128xf32>
    %348 = arith.addf %346, %347 : vector<16x128xf32>
    %349 = arith.mulf %318, %340 : vector<16x128xf32>
    %350 = arith.addf %348, %349 : vector<16x128xf32>
    %cst_76 = arith.constant 2.000000e+00 : f32
    %351 = vector.broadcast %cst_76 : f32 to vector<16x128xf32>
    %352 = arith.mulf %351, %323 : vector<16x128xf32>
    %353 = arith.mulf %352, %345 : vector<16x128xf32>
    %354 = arith.subf %353, %350 : vector<16x128xf32>
    %cst_77 = arith.constant 0.000000e+00 : f32
    %355 = vector.broadcast %cst_77 : f32 to vector<16x128xf32>
    %356 = arith.maximumf %354, %355 : vector<16x128xf32>
    %cst_78 = arith.constant 0.000000e+00 : f32
    %357 = vector.broadcast %cst_78 : f32 to vector<16x128xf32>
    %358 = arith.cmpf ogt, %323, %357 : vector<16x128xf32>
    %cst_79 = arith.constant 0.000000e+00 : f32
    %359 = vector.broadcast %cst_79 : f32 to vector<16x128xf32>
    %360 = arith.select %358, %356, %359 : vector<16x128xi1>, vector<16x128xf32>
    %361 = arith.mulf %360, %360 : vector<16x128xf32>
    %362 = arith.mulf %361, %361 : vector<16x128xf32>
    %363 = arith.mulf %362, %362 : vector<16x128xf32>
    %364 = arith.mulf %363, %363 : vector<16x128xf32>
    %365 = arith.mulf %364, %364 : vector<16x128xf32>
    %366 = arith.mulf %365, %365 : vector<16x128xf32>
    %cst_80 = arith.constant 0.000000e+00 : f32
    %367 = vector.broadcast %cst_80 : f32 to vector<16x128xf32>
    %368 = arith.maximumf %323, %367 : vector<16x128xf32>
    %cst_81 = arith.constant 3.000000e-01 : f32
    %369 = vector.broadcast %cst_81 : f32 to vector<16x128xf32>
    %370 = arith.mulf %369, %368 : vector<16x128xf32>
    %cst_82 = arith.constant 5.000000e-01 : f32
    %371 = vector.broadcast %cst_82 : f32 to vector<16x128xf32>
    %372 = arith.addf %371, %370 : vector<16x128xf32>
    %cst_83 = arith.constant 2.000000e-01 : f32
    %373 = vector.broadcast %cst_83 : f32 to vector<16x128xf32>
    %374 = arith.mulf %373, %366 : vector<16x128xf32>
    %375 = arith.addf %372, %374 : vector<16x128xf32>
    %c1_84 = arith.constant 1 : index
    %c0_85 = arith.constant 0 : index
    %c0_86 = arith.constant 0 : index
    %c0_87 = arith.constant 0 : index
    %376 = vector.load %arg5[%c1_84, %c0_85, %c0_86, %c0_87] : memref<14x3x16x128xf32, #tpu.memory_space<vmem>>, vector<1x1x16x128xf32>
    %377 = vector.shape_cast %376 : vector<1x1x16x128xf32> to vector<16x128xf32>
    %378 = vector.shape_cast %296 : vector<16x128xf32> to vector<1x1x16x128xf32>
    tpu.vector_store %arg5[%c1_84, %c0_85, %c0_86, %c0_87], %378 {strides = array<i32>} : memref<14x3x16x128xf32, #tpu.memory_space<vmem>>, vector<1x1x16x128xf32>,
    %c1_88 = arith.constant 1 : index
    %c1_89 = arith.constant 1 : index
    %c0_90 = arith.constant 0 : index
    %c0_91 = arith.constant 0 : index
    %379 = vector.load %arg5[%c1_88, %c1_89, %c0_90, %c0_91] : memref<14x3x16x128xf32, #tpu.memory_space<vmem>>, vector<1x1x16x128xf32>
    %380 = vector.shape_cast %379 : vector<1x1x16x128xf32> to vector<16x128xf32>
    %381 = vector.shape_cast %297 : vector<16x128xf32> to vector<1x1x16x128xf32>
    tpu.vector_store %arg5[%c1_88, %c1_89, %c0_90, %c0_91], %381 {strides = array<i32>} : memref<14x3x16x128xf32, #tpu.memory_space<vmem>>, vector<1x1x16x128xf32>,
    %c1_92 = arith.constant 1 : index
    %c2_93 = arith.constant 2 : index
    %c0_94 = arith.constant 0 : index
    %c0_95 = arith.constant 0 : index
    %382 = vector.load %arg5[%c1_92, %c2_93, %c0_94, %c0_95] : memref<14x3x16x128xf32, #tpu.memory_space<vmem>>, vector<1x1x16x128xf32>
    %383 = vector.shape_cast %382 : vector<1x1x16x128xf32> to vector<16x128xf32>
    %384 = vector.shape_cast %301 : vector<16x128xf32> to vector<1x1x16x128xf32>
    tpu.vector_store %arg5[%c1_92, %c2_93, %c0_94, %c0_95], %384 {strides = array<i32>} : memref<14x3x16x128xf32, #tpu.memory_space<vmem>>, vector<1x1x16x128xf32>,
    %385 = arith.truncf %375 : vector<16x128xf32> to vector<16x128xbf16>
    %c1_96 = arith.constant 1 : index
    %c0_97 = arith.constant 0 : index
    %c0_98 = arith.constant 0 : index
    %386 = vector.load %arg6[%c1_96, %c0_97, %c0_98] : memref<14x16x128xbf16, #tpu.memory_space<vmem>>, vector<1x16x128xbf16>
    %387 = vector.shape_cast %386 : vector<1x16x128xbf16> to vector<16x128xbf16>
    %388 = vector.shape_cast %385 : vector<16x128xbf16> to vector<1x16x128xbf16>
    tpu.vector_store %arg6[%c1_96, %c0_97, %c0_98], %388 {strides = array<i32>} : memref<14x16x128xbf16, #tpu.memory_space<vmem>>, vector<1x16x128xbf16>,
    %c14_i32_99 = arith.constant 14 : i32
    %389 = arith.muli %arg0, %c14_i32_99 : i32
    %c2_i32_100 = arith.constant 2 : i32
    %390 = arith.addi %389, %c2_i32_100 : i32
    %c9_i32_101 = arith.constant 9 : i32
    %391 = arith.muli %390, %c9_i32_101 : i32
    %c0_i32_102 = arith.constant 0 : i32
    %392 = arith.addi %391, %c0_i32_102 : i32
    %393 = arith.index_cast %392 : i32 to index
    %394 = memref.load %arg3[%393] : memref<252xf32, #tpu.memory_space<smem>>
    %c1_i32_103 = arith.constant 1 : i32
    %395 = arith.addi %391, %c1_i32_103 : i32
    %396 = arith.index_cast %395 : i32 to index
    %397 = memref.load %arg3[%396] : memref<252xf32, #tpu.memory_space<smem>>
    %c2_i32_104 = arith.constant 2 : i32
    %398 = arith.addi %391, %c2_i32_104 : i32
    %399 = arith.index_cast %398 : i32 to index
    %400 = memref.load %arg3[%399] : memref<252xf32, #tpu.memory_space<smem>>
    %c3_i32_105 = arith.constant 3 : i32
    %401 = arith.addi %391, %c3_i32_105 : i32
    %402 = arith.index_cast %401 : i32 to index
    %403 = memref.load %arg3[%402] : memref<252xf32, #tpu.memory_space<smem>>
    %c4_i32_106 = arith.constant 4 : i32
    %404 = arith.addi %391, %c4_i32_106 : i32
    %405 = arith.index_cast %404 : i32 to index
    %406 = memref.load %arg3[%405] : memref<252xf32, #tpu.memory_space<smem>>
    %c5_i32_107 = arith.constant 5 : i32
    %407 = arith.addi %391, %c5_i32_107 : i32
    %408 = arith.index_cast %407 : i32 to index
    %409 = memref.load %arg3[%408] : memref<252xf32, #tpu.memory_space<smem>>
    %c6_i32_108 = arith.constant 6 : i32
    %410 = arith.addi %391, %c6_i32_108 : i32
    %411 = arith.index_cast %410 : i32 to index
    %412 = memref.load %arg3[%411] : memref<252xf32, #tpu.memory_space<smem>>
    %c7_i32_109 = arith.constant 7 : i32
    %413 = arith.addi %391, %c7_i32_109 : i32
    %414 = arith.index_cast %413 : i32 to index
    %415 = memref.load %arg3[%414] : memref<252xf32, #tpu.memory_space<smem>>
    %c8_i32_110 = arith.constant 8 : i32
    %416 = arith.addi %391, %c8_i32_110 : i32
    %417 = arith.index_cast %416 : i32 to index
    %418 = memref.load %arg3[%417] : memref<252xf32, #tpu.memory_space<smem>>
    %c0_i32_111 = arith.constant 0 : i32
    %419 = arith.addi %391, %c0_i32_111 : i32
    %420 = arith.index_cast %419 : i32 to index
    %421 = memref.load %arg4[%420] : memref<252xf32, #tpu.memory_space<smem>>
    %c1_i32_112 = arith.constant 1 : i32
    %422 = arith.addi %391, %c1_i32_112 : i32
    %423 = arith.index_cast %422 : i32 to index
    %424 = memref.load %arg4[%423] : memref<252xf32, #tpu.memory_space<smem>>
    %c2_i32_113 = arith.constant 2 : i32
    %425 = arith.addi %391, %c2_i32_113 : i32
    %426 = arith.index_cast %425 : i32 to index
    %427 = memref.load %arg4[%426] : memref<252xf32, #tpu.memory_space<smem>>
    %c3_i32_114 = arith.constant 3 : i32
    %428 = arith.addi %391, %c3_i32_114 : i32
    %429 = arith.index_cast %428 : i32 to index
    %430 = memref.load %arg4[%429] : memref<252xf32, #tpu.memory_space<smem>>
    %c4_i32_115 = arith.constant 4 : i32
    %431 = arith.addi %391, %c4_i32_115 : i32
    %432 = arith.index_cast %431 : i32 to index
    %433 = memref.load %arg4[%432] : memref<252xf32, #tpu.memory_space<smem>>
    %c5_i32_116 = arith.constant 5 : i32
    %434 = arith.addi %391, %c5_i32_116 : i32
    %435 = arith.index_cast %434 : i32 to index
    %436 = memref.load %arg4[%435] : memref<252xf32, #tpu.memory_space<smem>>
    %c6_i32_117 = arith.constant 6 : i32
    %437 = arith.addi %391, %c6_i32_117 : i32
    %438 = arith.index_cast %437 : i32 to index
    %439 = memref.load %arg4[%438] : memref<252xf32, #tpu.memory_space<smem>>
    %c7_i32_118 = arith.constant 7 : i32
    %440 = arith.addi %391, %c7_i32_118 : i32
    %441 = arith.index_cast %440 : i32 to index
    %442 = memref.load %arg4[%441] : memref<252xf32, #tpu.memory_space<smem>>
    %c8_i32_119 = arith.constant 8 : i32
    %443 = arith.addi %391, %c8_i32_119 : i32
    %444 = arith.index_cast %443 : i32 to index
    %445 = memref.load %arg4[%444] : memref<252xf32, #tpu.memory_space<smem>>
    %446 = vector.broadcast %394 : f32 to vector<16x128xf32>
    %447 = arith.mulf %1, %446 : vector<16x128xf32>
    %448 = vector.broadcast %403 : f32 to vector<16x128xf32>
    %449 = arith.mulf %3, %448 : vector<16x128xf32>
    %450 = arith.addf %447, %449 : vector<16x128xf32>
    %451 = vector.broadcast %412 : f32 to vector<16x128xf32>
    %452 = arith.mulf %5, %451 : vector<16x128xf32>
    %453 = arith.addf %450, %452 : vector<16x128xf32>
    %454 = vector.broadcast %421 : f32 to vector<16x128xf32>
    %455 = arith.addf %453, %454 : vector<16x128xf32>
    %456 = vector.broadcast %397 : f32 to vector<16x128xf32>
    %457 = arith.mulf %1, %456 : vector<16x128xf32>
    %458 = vector.broadcast %406 : f32 to vector<16x128xf32>
    %459 = arith.mulf %3, %458 : vector<16x128xf32>
    %460 = arith.addf %457, %459 : vector<16x128xf32>
    %461 = vector.broadcast %415 : f32 to vector<16x128xf32>
    %462 = arith.mulf %5, %461 : vector<16x128xf32>
    %463 = arith.addf %460, %462 : vector<16x128xf32>
    %464 = vector.broadcast %424 : f32 to vector<16x128xf32>
    %465 = arith.addf %463, %464 : vector<16x128xf32>
    %466 = vector.broadcast %400 : f32 to vector<16x128xf32>
    %467 = arith.mulf %1, %466 : vector<16x128xf32>
    %468 = vector.broadcast %409 : f32 to vector<16x128xf32>
    %469 = arith.mulf %3, %468 : vector<16x128xf32>
    %470 = arith.addf %467, %469 : vector<16x128xf32>
    %471 = vector.broadcast %418 : f32 to vector<16x128xf32>
    %472 = arith.mulf %5, %471 : vector<16x128xf32>
    %473 = arith.addf %470, %472 : vector<16x128xf32>
    %474 = vector.broadcast %427 : f32 to vector<16x128xf32>
    %475 = arith.addf %473, %474 : vector<16x128xf32>
    %476 = tpu.reciprocal %475 {approx = true} : vector<16x128xf32> -> vector<16x128xf32>
    %cst_120 = arith.constant 1.73205078 : f32
    %477 = vector.broadcast %cst_120 : f32 to vector<16x128xf32>
    %478 = arith.mulf %477, %476 : vector<16x128xf32>
    %479 = arith.mulf %455, %478 : vector<16x128xf32>
    %480 = arith.mulf %465, %478 : vector<16x128xf32>
    %cst_121 = arith.constant -1.01010096 : f32
    %481 = vector.broadcast %cst_121 : f32 to vector<16x128xf32>
    %482 = arith.divf %481, %475 : vector<16x128xf32>
    %cst_122 = arith.constant 1.01010096 : f32
    %483 = vector.broadcast %cst_122 : f32 to vector<16x128xf32>
    %484 = arith.addf %483, %482 : vector<16x128xf32>
    %485 = vector.broadcast %439 : f32 to vector<16x128xf32>
    %486 = arith.subf %485, %1 : vector<16x128xf32>
    %487 = vector.broadcast %442 : f32 to vector<16x128xf32>
    %488 = arith.subf %487, %3 : vector<16x128xf32>
    %489 = vector.broadcast %445 : f32 to vector<16x128xf32>
    %490 = arith.subf %489, %5 : vector<16x128xf32>
    %491 = arith.mulf %486, %486 : vector<16x128xf32>
    %492 = arith.mulf %488, %488 : vector<16x128xf32>
    %493 = arith.addf %491, %492 : vector<16x128xf32>
    %494 = arith.mulf %490, %490 : vector<16x128xf32>
    %495 = arith.addf %493, %494 : vector<16x128xf32>
    %cst_123 = arith.constant 9.99999996E-13 : f32
    %496 = vector.broadcast %cst_123 : f32 to vector<16x128xf32>
    %497 = arith.addf %495, %496 : vector<16x128xf32>
    %498 = math.rsqrt %497 : vector<16x128xf32>
    %499 = arith.mulf %486, %498 : vector<16x128xf32>
    %500 = arith.mulf %488, %498 : vector<16x128xf32>
    %501 = arith.mulf %490, %498 : vector<16x128xf32>
    %502 = arith.mulf %20, %499 : vector<16x128xf32>
    %503 = arith.mulf %21, %500 : vector<16x128xf32>
    %504 = arith.addf %502, %503 : vector<16x128xf32>
    %505 = arith.mulf %22, %501 : vector<16x128xf32>
    %506 = arith.addf %504, %505 : vector<16x128xf32>
    %507 = vector.broadcast %430 : f32 to vector<16x128xf32>
    %508 = arith.subf %507, %1 : vector<16x128xf32>
    %509 = vector.broadcast %433 : f32 to vector<16x128xf32>
    %510 = arith.subf %509, %3 : vector<16x128xf32>
    %511 = vector.broadcast %436 : f32 to vector<16x128xf32>
    %512 = arith.subf %511, %5 : vector<16x128xf32>
    %513 = arith.mulf %508, %508 : vector<16x128xf32>
    %514 = arith.mulf %510, %510 : vector<16x128xf32>
    %515 = arith.addf %513, %514 : vector<16x128xf32>
    %516 = arith.mulf %512, %512 : vector<16x128xf32>
    %517 = arith.addf %515, %516 : vector<16x128xf32>
    %cst_124 = arith.constant 9.99999996E-13 : f32
    %518 = vector.broadcast %cst_124 : f32 to vector<16x128xf32>
    %519 = arith.addf %517, %518 : vector<16x128xf32>
    %520 = math.rsqrt %519 : vector<16x128xf32>
    %521 = arith.mulf %508, %520 : vector<16x128xf32>
    %522 = arith.mulf %510, %520 : vector<16x128xf32>
    %523 = arith.mulf %512, %520 : vector<16x128xf32>
    %524 = arith.mulf %20, %521 : vector<16x128xf32>
    %525 = arith.mulf %21, %522 : vector<16x128xf32>
    %526 = arith.addf %524, %525 : vector<16x128xf32>
    %527 = arith.mulf %22, %523 : vector<16x128xf32>
    %528 = arith.addf %526, %527 : vector<16x128xf32>
    %529 = arith.mulf %499, %521 : vector<16x128xf32>
    %530 = arith.mulf %500, %522 : vector<16x128xf32>
    %531 = arith.addf %529, %530 : vector<16x128xf32>
    %532 = arith.mulf %501, %523 : vector<16x128xf32>
    %533 = arith.addf %531, %532 : vector<16x128xf32>
    %cst_125 = arith.constant 2.000000e+00 : f32
    %534 = vector.broadcast %cst_125 : f32 to vector<16x128xf32>
    %535 = arith.mulf %534, %506 : vector<16x128xf32>
    %536 = arith.mulf %535, %528 : vector<16x128xf32>
    %537 = arith.subf %536, %533 : vector<16x128xf32>
    %cst_126 = arith.constant 0.000000e+00 : f32
    %538 = vector.broadcast %cst_126 : f32 to vector<16x128xf32>
    %539 = arith.maximumf %537, %538 : vector<16x128xf32>
    %cst_127 = arith.constant 0.000000e+00 : f32
    %540 = vector.broadcast %cst_127 : f32 to vector<16x128xf32>
    %541 = arith.cmpf ogt, %506, %540 : vector<16x128xf32>
    %cst_128 = arith.constant 0.000000e+00 : f32
    %542 = vector.broadcast %cst_128 : f32 to vector<16x128xf32>
    %543 = arith.select %541, %539, %542 : vector<16x128xi1>, vector<16x128xf32>
    %544 = arith.mulf %543, %543 : vector<16x128xf32>
    %545 = arith.mulf %544, %544 : vector<16x128xf32>
    %546 = arith.mulf %545, %545 : vector<16x128xf32>
    %547 = arith.mulf %546, %546 : vector<16x128xf32>
    %548 = arith.mulf %547, %547 : vector<16x128xf32>
    %549 = arith.mulf %548, %548 : vector<16x128xf32>
    %cst_129 = arith.constant 0.000000e+00 : f32
    %550 = vector.broadcast %cst_129 : f32 to vector<16x128xf32>
    %551 = arith.maximumf %506, %550 : vector<16x128xf32>
    %cst_130 = arith.constant 3.000000e-01 : f32
    %552 = vector.broadcast %cst_130 : f32 to vector<16x128xf32>
    %553 = arith.mulf %552, %551 : vector<16x128xf32>
    %cst_131 = arith.constant 5.000000e-01 : f32
    %554 = vector.broadcast %cst_131 : f32 to vector<16x128xf32>
    %555 = arith.addf %554, %553 : vector<16x128xf32>
    %cst_132 = arith.constant 2.000000e-01 : f32
    %556 = vector.broadcast %cst_132 : f32 to vector<16x128xf32>
    %557 = arith.mulf %556, %549 : vector<16x128xf32>
    %558 = arith.addf %555, %557 : vector<16x128xf32>
    %c2_133 = arith.constant 2 : index
    %c0_134 = arith.constant 0 : index
    %c0_135 = arith.constant 0 : index
    %c0_136 = arith.constant 0 : index
    %559 = vector.load %arg5[%c2_133, %c0_134, %c0_135, %c0_136] : memref<14x3x16x128xf32, #tpu.memory_space<vmem>>, vector<1x1x16x128xf32>
    %560 = vector.shape_cast %559 : vector<1x1x16x128xf32> to vector<16x128xf32>
    %561 = vector.shape_cast %479 : vector<16x128xf32> to vector<1x1x16x128xf32>
    tpu.vector_store %arg5[%c2_133, %c0_134, %c0_135, %c0_136], %561 {strides = array<i32>} : memref<14x3x16x128xf32, #tpu.memory_space<vmem>>, vector<1x1x16x128xf32>,
    %c2_137 = arith.constant 2 : index
    %c1_138 = arith.constant 1 : index
    %c0_139 = arith.constant 0 : index
    %c0_140 = arith.constant 0 : index
    %562 = vector.load %arg5[%c2_137, %c1_138, %c0_139, %c0_140] : memref<14x3x16x128xf32, #tpu.memory_space<vmem>>, vector<1x1x16x128xf32>
    %563 = vector.shape_cast %562 : vector<1x1x16x128xf32> to vector<16x128xf32>
    %564 = vector.shape_cast %480 : vector<16x128xf32> to vector<1x1x16x128xf32>
    tpu.vector_store %arg5[%c2_137, %c1_138, %c0_139, %c0_140], %564 {strides = array<i32>} : memref<14x3x16x128xf32, #tpu.memory_space<vmem>>, vector<1x1x16x128xf32>,
    %c2_141 = arith.constant 2 : index
    %c2_142 = arith.constant 2 : index
    %c0_143 = arith.constant 0 : index
    %c0_144 = arith.constant 0 : index
    %565 = vector.load %arg5[%c2_141, %c2_142, %c0_143, %c0_144] : memref<14x3x16x128xf32, #tpu.memory_space<vmem>>, vector<1x1x16x128xf32>
    %566 = vector.shape_cast %565 : vector<1x1x16x128xf32> to vector<16x128xf32>
    %567 = vector.shape_cast %484 : vector<16x128xf32> to vector<1x1x16x128xf32>
    tpu.vector_store %arg5[%c2_141, %c2_142, %c0_143, %c0_144], %567 {strides = array<i32>} : memref<14x3x16x128xf32, #tpu.memory_space<vmem>>, vector<1x1x16x128xf32>,
    %568 = arith.truncf %558 : vector<16x128xf32> to vector<16x128xbf16>
    %c2_145 = arith.constant 2 : index
    %c0_146 = arith.constant 0 : index
    %c0_147 = arith.constant 0 : index
    %569 = vector.load %arg6[%c2_145, %c0_146, %c0_147] : memref<14x16x128xbf16, #tpu.memory_space<vmem>>, vector<1x16x128xbf16>
    %570 = vector.shape_cast %569 : vector<1x16x128xbf16> to vector<16x128xbf16>
    %571 = vector.shape_cast %568 : vector<16x128xbf16> to vector<1x16x128xbf16>
    tpu.vector_store %arg6[%c2_145, %c0_146, %c0_147], %571 {strides = array<i32>} : memref<14x16x128xbf16, #tpu.memory_space<vmem>>, vector<1x16x128xbf16>,
    %c14_i32_148 = arith.constant 14 : i32
    %572 = arith.muli %arg0, %c14_i32_148 : i32
    %c3_i32_149 = arith.constant 3 : i32
    %573 = arith.addi %572, %c3_i32_149 : i32
    %c9_i32_150 = arith.constant 9 : i32
    %574 = arith.muli %573, %c9_i32_150 : i32
    %c0_i32_151 = arith.constant 0 : i32
    %575 = arith.addi %574, %c0_i32_151 : i32
    %576 = arith.index_cast %575 : i32 to index
    %577 = memref.load %arg3[%576] : memref<252xf32, #tpu.memory_space<smem>>
    %c1_i32_152 = arith.constant 1 : i32
    %578 = arith.addi %574, %c1_i32_152 : i32
    %579 = arith.index_cast %578 : i32 to index
    %580 = memref.load %arg3[%579] : memref<252xf32, #tpu.memory_space<smem>>
    %c2_i32_153 = arith.constant 2 : i32
    %581 = arith.addi %574, %c2_i32_153 : i32
    %582 = arith.index_cast %581 : i32 to index
    %583 = memref.load %arg3[%582] : memref<252xf32, #tpu.memory_space<smem>>
    %c3_i32_154 = arith.constant 3 : i32
    %584 = arith.addi %574, %c3_i32_154 : i32
    %585 = arith.index_cast %584 : i32 to index
    %586 = memref.load %arg3[%585] : memref<252xf32, #tpu.memory_space<smem>>
    %c4_i32_155 = arith.constant 4 : i32
    %587 = arith.addi %574, %c4_i32_155 : i32
    %588 = arith.index_cast %587 : i32 to index
    %589 = memref.load %arg3[%588] : memref<252xf32, #tpu.memory_space<smem>>
    %c5_i32_156 = arith.constant 5 : i32
    %590 = arith.addi %574, %c5_i32_156 : i32
    %591 = arith.index_cast %590 : i32 to index
    %592 = memref.load %arg3[%591] : memref<252xf32, #tpu.memory_space<smem>>
    %c6_i32_157 = arith.constant 6 : i32
    %593 = arith.addi %574, %c6_i32_157 : i32
    %594 = arith.index_cast %593 : i32 to index
    %595 = memref.load %arg3[%594] : memref<252xf32, #tpu.memory_space<smem>>
    %c7_i32_158 = arith.constant 7 : i32
    %596 = arith.addi %574, %c7_i32_158 : i32
    %597 = arith.index_cast %596 : i32 to index
    %598 = memref.load %arg3[%597] : memref<252xf32, #tpu.memory_space<smem>>
    %c8_i32_159 = arith.constant 8 : i32
    %599 = arith.addi %574, %c8_i32_159 : i32
    %600 = arith.index_cast %599 : i32 to index
    %601 = memref.load %arg3[%600] : memref<252xf32, #tpu.memory_space<smem>>
    %c0_i32_160 = arith.constant 0 : i32
    %602 = arith.addi %574, %c0_i32_160 : i32
    %603 = arith.index_cast %602 : i32 to index
    %604 = memref.load %arg4[%603] : memref<252xf32, #tpu.memory_space<smem>>
    %c1_i32_161 = arith.constant 1 : i32
    %605 = arith.addi %574, %c1_i32_161 : i32
    %606 = arith.index_cast %605 : i32 to index
    %607 = memref.load %arg4[%606] : memref<252xf32, #tpu.memory_space<smem>>
    %c2_i32_162 = arith.constant 2 : i32
    %608 = arith.addi %574, %c2_i32_162 : i32
    %609 = arith.index_cast %608 : i32 to index
    %610 = memref.load %arg4[%609] : memref<252xf32, #tpu.memory_space<smem>>
    %c3_i32_163 = arith.constant 3 : i32
    %611 = arith.addi %574, %c3_i32_163 : i32
    %612 = arith.index_cast %611 : i32 to index
    %613 = memref.load %arg4[%612] : memref<252xf32, #tpu.memory_space<smem>>
    %c4_i32_164 = arith.constant 4 : i32
    %614 = arith.addi %574, %c4_i32_164 : i32
    %615 = arith.index_cast %614 : i32 to index
    %616 = memref.load %arg4[%615] : memref<252xf32, #tpu.memory_space<smem>>
    %c5_i32_165 = arith.constant 5 : i32
    %617 = arith.addi %574, %c5_i32_165 : i32
    %618 = arith.index_cast %617 : i32 to index
    %619 = memref.load %arg4[%618] : memref<252xf32, #tpu.memory_space<smem>>
    %c6_i32_166 = arith.constant 6 : i32
    %620 = arith.addi %574, %c6_i32_166 : i32
    %621 = arith.index_cast %620 : i32 to index
    %622 = memref.load %arg4[%621] : memref<252xf32, #tpu.memory_space<smem>>
    %c7_i32_167 = arith.constant 7 : i32
    %623 = arith.addi %574, %c7_i32_167 : i32
    %624 = arith.index_cast %623 : i32 to index
    %625 = memref.load %arg4[%624] : memref<252xf32, #tpu.memory_space<smem>>
    %c8_i32_168 = arith.constant 8 : i32
    %626 = arith.addi %574, %c8_i32_168 : i32
    %627 = arith.index_cast %626 : i32 to index
    %628 = memref.load %arg4[%627] : memref<252xf32, #tpu.memory_space<smem>>
    %629 = vector.broadcast %577 : f32 to vector<16x128xf32>
    %630 = arith.mulf %1, %629 : vector<16x128xf32>
    %631 = vector.broadcast %586 : f32 to vector<16x128xf32>
    %632 = arith.mulf %3, %631 : vector<16x128xf32>
    %633 = arith.addf %630, %632 : vector<16x128xf32>
    %634 = vector.broadcast %595 : f32 to vector<16x128xf32>
    %635 = arith.mulf %5, %634 : vector<16x128xf32>
    %636 = arith.addf %633, %635 : vector<16x128xf32>
    %637 = vector.broadcast %604 : f32 to vector<16x128xf32>
    %638 = arith.addf %636, %637 : vector<16x128xf32>
    %639 = vector.broadcast %580 : f32 to vector<16x128xf32>
    %640 = arith.mulf %1, %639 : vector<16x128xf32>
    %641 = vector.broadcast %589 : f32 to vector<16x128xf32>
    %642 = arith.mulf %3, %641 : vector<16x128xf32>
    %643 = arith.addf %640, %642 : vector<16x128xf32>
    %644 = vector.broadcast %598 : f32 to vector<16x128xf32>
    %645 = arith.mulf %5, %644 : vector<16x128xf32>
    %646 = arith.addf %643, %645 : vector<16x128xf32>
    %647 = vector.broadcast %607 : f32 to vector<16x128xf32>
    %648 = arith.addf %646, %647 : vector<16x128xf32>
    %649 = vector.broadcast %583 : f32 to vector<16x128xf32>
    %650 = arith.mulf %1, %649 : vector<16x128xf32>
    %651 = vector.broadcast %592 : f32 to vector<16x128xf32>
    %652 = arith.mulf %3, %651 : vector<16x128xf32>
    %653 = arith.addf %650, %652 : vector<16x128xf32>
    %654 = vector.broadcast %601 : f32 to vector<16x128xf32>
    %655 = arith.mulf %5, %654 : vector<16x128xf32>
    %656 = arith.addf %653, %655 : vector<16x128xf32>
    %657 = vector.broadcast %610 : f32 to vector<16x128xf32>
    %658 = arith.addf %656, %657 : vector<16x128xf32>
    %659 = tpu.reciprocal %658 {approx = true} : vector<16x128xf32> -> vector<16x128xf32>
    %cst_169 = arith.constant 1.73205078 : f32
    %660 = vector.broadcast %cst_169 : f32 to vector<16x128xf32>
    %661 = arith.mulf %660, %659 : vector<16x128xf32>
    %662 = arith.mulf %638, %661 : vector<16x128xf32>
    %663 = arith.mulf %648, %661 : vector<16x128xf32>
    %cst_170 = arith.constant -1.01010096 : f32
    %664 = vector.broadcast %cst_170 : f32 to vector<16x128xf32>
    %665 = arith.divf %664, %658 : vector<16x128xf32>
    %cst_171 = arith.constant 1.01010096 : f32
    %666 = vector.broadcast %cst_171 : f32 to vector<16x128xf32>
    %667 = arith.addf %666, %665 : vector<16x128xf32>
    %668 = vector.broadcast %622 : f32 to vector<16x128xf32>
    %669 = arith.subf %668, %1 : vector<16x128xf32>
    %670 = vector.broadcast %625 : f32 to vector<16x128xf32>
    %671 = arith.subf %670, %3 : vector<16x128xf32>
    %672 = vector.broadcast %628 : f32 to vector<16x128xf32>
    %673 = arith.subf %672, %5 : vector<16x128xf32>
    %674 = arith.mulf %669, %669 : vector<16x128xf32>
    %675 = arith.mulf %671, %671 : vector<16x128xf32>
    %676 = arith.addf %674, %675 : vector<16x128xf32>
    %677 = arith.mulf %673, %673 : vector<16x128xf32>
    %678 = arith.addf %676, %677 : vector<16x128xf32>
    %cst_172 = arith.constant 9.99999996E-13 : f32
    %679 = vector.broadcast %cst_172 : f32 to vector<16x128xf32>
    %680 = arith.addf %678, %679 : vector<16x128xf32>
    %681 = math.rsqrt %680 : vector<16x128xf32>
    %682 = arith.mulf %669, %681 : vector<16x128xf32>
    %683 = arith.mulf %671, %681 : vector<16x128xf32>
    %684 = arith.mulf %673, %681 : vector<16x128xf32>
    %685 = arith.mulf %20, %682 : vector<16x128xf32>
    %686 = arith.mulf %21, %683 : vector<16x128xf32>
    %687 = arith.addf %685, %686 : vector<16x128xf32>
    %688 = arith.mulf %22, %684 : vector<16x128xf32>
    %689 = arith.addf %687, %688 : vector<16x128xf32>
    %690 = vector.broadcast %613 : f32 to vector<16x128xf32>
    %691 = arith.subf %690, %1 : vector<16x128xf32>
    %692 = vector.broadcast %616 : f32 to vector<16x128xf32>
    %693 = arith.subf %692, %3 : vector<16x128xf32>
    %694 = vector.broadcast %619 : f32 to vector<16x128xf32>
    %695 = arith.subf %694, %5 : vector<16x128xf32>
    %696 = arith.mulf %691, %691 : vector<16x128xf32>
    %697 = arith.mulf %693, %693 : vector<16x128xf32>
    %698 = arith.addf %696, %697 : vector<16x128xf32>
    %699 = arith.mulf %695, %695 : vector<16x128xf32>
    %700 = arith.addf %698, %699 : vector<16x128xf32>
    %cst_173 = arith.constant 9.99999996E-13 : f32
    %701 = vector.broadcast %cst_173 : f32 to vector<16x128xf32>
    %702 = arith.addf %700, %701 : vector<16x128xf32>
    %703 = math.rsqrt %702 : vector<16x128xf32>
    %704 = arith.mulf %691, %703 : vector<16x128xf32>
    %705 = arith.mulf %693, %703 : vector<16x128xf32>
    %706 = arith.mulf %695, %703 : vector<16x128xf32>
    %707 = arith.mulf %20, %704 : vector<16x128xf32>
    %708 = arith.mulf %21, %705 : vector<16x128xf32>
    %709 = arith.addf %707, %708 : vector<16x128xf32>
    %710 = arith.mulf %22, %706 : vector<16x128xf32>
    %711 = arith.addf %709, %710 : vector<16x128xf32>
    %712 = arith.mulf %682, %704 : vector<16x128xf32>
    %713 = arith.mulf %683, %705 : vector<16x128xf32>
    %714 = arith.addf %712, %713 : vector<16x128xf32>
    %715 = arith.mulf %684, %706 : vector<16x128xf32>
    %716 = arith.addf %714, %715 : vector<16x128xf32>
    %cst_174 = arith.constant 2.000000e+00 : f32
    %717 = vector.broadcast %cst_174 : f32 to vector<16x128xf32>
    %718 = arith.mulf %717, %689 : vector<16x128xf32>
    %719 = arith.mulf %718, %711 : vector<16x128xf32>
    %720 = arith.subf %719, %716 : vector<16x128xf32>
    %cst_175 = arith.constant 0.000000e+00 : f32
    %721 = vector.broadcast %cst_175 : f32 to vector<16x128xf32>
    %722 = arith.maximumf %720, %721 : vector<16x128xf32>
    %cst_176 = arith.constant 0.000000e+00 : f32
    %723 = vector.broadcast %cst_176 : f32 to vector<16x128xf32>
    %724 = arith.cmpf ogt, %689, %723 : vector<16x128xf32>
    %cst_177 = arith.constant 0.000000e+00 : f32
    %725 = vector.broadcast %cst_177 : f32 to vector<16x128xf32>
    %726 = arith.select %724, %722, %725 : vector<16x128xi1>, vector<16x128xf32>
    %727 = arith.mulf %726, %726 : vector<16x128xf32>
    %728 = arith.mulf %727, %727 : vector<16x128xf32>
    %729 = arith.mulf %728, %728 : vector<16x128xf32>
    %730 = arith.mulf %729, %729 : vector<16x128xf32>
    %731 = arith.mulf %730, %730 : vector<16x128xf32>
    %732 = arith.mulf %731, %731 : vector<16x128xf32>
    %cst_178 = arith.constant 0.000000e+00 : f32
    %733 = vector.broadcast %cst_178 : f32 to vector<16x128xf32>
    %734 = arith.maximumf %689, %733 : vector<16x128xf32>
    %cst_179 = arith.constant 3.000000e-01 : f32
    %735 = vector.broadcast %cst_179 : f32 to vector<16x128xf32>
    %736 = arith.mulf %735, %734 : vector<16x128xf32>
    %cst_180 = arith.constant 5.000000e-01 : f32
    %737 = vector.broadcast %cst_180 : f32 to vector<16x128xf32>
    %738 = arith.addf %737, %736 : vector<16x128xf32>
    %cst_181 = arith.constant 2.000000e-01 : f32
    %739 = vector.broadcast %cst_181 : f32 to vector<16x128xf32>
    %740 = arith.mulf %739, %732 : vector<16x128xf32>
    %741 = arith.addf %738, %740 : vector<16x128xf32>
    %c3_182 = arith.constant 3 : index
    %c0_183 = arith.constant 0 : index
    %c0_184 = arith.constant 0 : index
    %c0_185 = arith.constant 0 : index
    %742 = vector.load %arg5[%c3_182, %c0_183, %c0_184, %c0_185] : memref<14x3x16x128xf32, #tpu.memory_space<vmem>>, vector<1x1x16x128xf32>
    %743 = vector.shape_cast %742 : vector<1x1x16x128xf32> to vector<16x128xf32>
    %744 = vector.shape_cast %662 : vector<16x128xf32> to vector<1x1x16x128xf32>
    tpu.vector_store %arg5[%c3_182, %c0_183, %c0_184, %c0_185], %744 {strides = array<i32>} : memref<14x3x16x128xf32, #tpu.memory_space<vmem>>, vector<1x1x16x128xf32>,
    %c3_186 = arith.constant 3 : index
    %c1_187 = arith.constant 1 : index
    %c0_188 = arith.constant 0 : index
    %c0_189 = arith.constant 0 : index
    %745 = vector.load %arg5[%c3_186, %c1_187, %c0_188, %c0_189] : memref<14x3x16x128xf32, #tpu.memory_space<vmem>>, vector<1x1x16x128xf32>
    %746 = vector.shape_cast %745 : vector<1x1x16x128xf32> to vector<16x128xf32>
    %747 = vector.shape_cast %663 : vector<16x128xf32> to vector<1x1x16x128xf32>
    tpu.vector_store %arg5[%c3_186, %c1_187, %c0_188, %c0_189], %747 {strides = array<i32>} : memref<14x3x16x128xf32, #tpu.memory_space<vmem>>, vector<1x1x16x128xf32>,
    %c3_190 = arith.constant 3 : index
    %c2_191 = arith.constant 2 : index
    %c0_192 = arith.constant 0 : index
    %c0_193 = arith.constant 0 : index
    %748 = vector.load %arg5[%c3_190, %c2_191, %c0_192, %c0_193] : memref<14x3x16x128xf32, #tpu.memory_space<vmem>>, vector<1x1x16x128xf32>
    %749 = vector.shape_cast %748 : vector<1x1x16x128xf32> to vector<16x128xf32>
    %750 = vector.shape_cast %667 : vector<16x128xf32> to vector<1x1x16x128xf32>
    tpu.vector_store %arg5[%c3_190, %c2_191, %c0_192, %c0_193], %750 {strides = array<i32>} : memref<14x3x16x128xf32, #tpu.memory_space<vmem>>, vector<1x1x16x128xf32>,
    %751 = arith.truncf %741 : vector<16x128xf32> to vector<16x128xbf16>
    %c3_194 = arith.constant 3 : index
    %c0_195 = arith.constant 0 : index
    %c0_196 = arith.constant 0 : index
    %752 = vector.load %arg6[%c3_194, %c0_195, %c0_196] : memref<14x16x128xbf16, #tpu.memory_space<vmem>>, vector<1x16x128xbf16>
    %753 = vector.shape_cast %752 : vector<1x16x128xbf16> to vector<16x128xbf16>
    %754 = vector.shape_cast %751 : vector<16x128xbf16> to vector<1x16x128xbf16>
    tpu.vector_store %arg6[%c3_194, %c0_195, %c0_196], %754 {strides = array<i32>} : memref<14x16x128xbf16, #tpu.memory_space<vmem>>, vector<1x16x128xbf16>,
    %c14_i32_197 = arith.constant 14 : i32
    %755 = arith.muli %arg0, %c14_i32_197 : i32
    %c4_i32_198 = arith.constant 4 : i32
    %756 = arith.addi %755, %c4_i32_198 : i32
    %c9_i32_199 = arith.constant 9 : i32
    %757 = arith.muli %756, %c9_i32_199 : i32
    %c0_i32_200 = arith.constant 0 : i32
    %758 = arith.addi %757, %c0_i32_200 : i32
    %759 = arith.index_cast %758 : i32 to index
    %760 = memref.load %arg3[%759] : memref<252xf32, #tpu.memory_space<smem>>
    %c1_i32_201 = arith.constant 1 : i32
    %761 = arith.addi %757, %c1_i32_201 : i32
    %762 = arith.index_cast %761 : i32 to index
    %763 = memref.load %arg3[%762] : memref<252xf32, #tpu.memory_space<smem>>
    %c2_i32_202 = arith.constant 2 : i32
    %764 = arith.addi %757, %c2_i32_202 : i32
    %765 = arith.index_cast %764 : i32 to index
    %766 = memref.load %arg3[%765] : memref<252xf32, #tpu.memory_space<smem>>
    %c3_i32_203 = arith.constant 3 : i32
    %767 = arith.addi %757, %c3_i32_203 : i32
    %768 = arith.index_cast %767 : i32 to index
    %769 = memref.load %arg3[%768] : memref<252xf32, #tpu.memory_space<smem>>
    %c4_i32_204 = arith.constant 4 : i32
    %770 = arith.addi %757, %c4_i32_204 : i32
    %771 = arith.index_cast %770 : i32 to index
    %772 = memref.load %arg3[%771] : memref<252xf32, #tpu.memory_space<smem>>
    %c5_i32_205 = arith.constant 5 : i32
    %773 = arith.addi %757, %c5_i32_205 : i32
    %774 = arith.index_cast %773 : i32 to index
    %775 = memref.load %arg3[%774] : memref<252xf32, #tpu.memory_space<smem>>
    %c6_i32_206 = arith.constant 6 : i32
    %776 = arith.addi %757, %c6_i32_206 : i32
    %777 = arith.index_cast %776 : i32 to index
    %778 = memref.load %arg3[%777] : memref<252xf32, #tpu.memory_space<smem>>
    %c7_i32_207 = arith.constant 7 : i32
    %779 = arith.addi %757, %c7_i32_207 : i32
    %780 = arith.index_cast %779 : i32 to index
    %781 = memref.load %arg3[%780] : memref<252xf32, #tpu.memory_space<smem>>
    %c8_i32_208 = arith.constant 8 : i32
    %782 = arith.addi %757, %c8_i32_208 : i32
    %783 = arith.index_cast %782 : i32 to index
    %784 = memref.load %arg3[%783] : memref<252xf32, #tpu.memory_space<smem>>
    %c0_i32_209 = arith.constant 0 : i32
    %785 = arith.addi %757, %c0_i32_209 : i32
    %786 = arith.index_cast %785 : i32 to index
    %787 = memref.load %arg4[%786] : memref<252xf32, #tpu.memory_space<smem>>
    %c1_i32_210 = arith.constant 1 : i32
    %788 = arith.addi %757, %c1_i32_210 : i32
    %789 = arith.index_cast %788 : i32 to index
    %790 = memref.load %arg4[%789] : memref<252xf32, #tpu.memory_space<smem>>
    %c2_i32_211 = arith.constant 2 : i32
    %791 = arith.addi %757, %c2_i32_211 : i32
    %792 = arith.index_cast %791 : i32 to index
    %793 = memref.load %arg4[%792] : memref<252xf32, #tpu.memory_space<smem>>
    %c3_i32_212 = arith.constant 3 : i32
    %794 = arith.addi %757, %c3_i32_212 : i32
    %795 = arith.index_cast %794 : i32 to index
    %796 = memref.load %arg4[%795] : memref<252xf32, #tpu.memory_space<smem>>
    %c4_i32_213 = arith.constant 4 : i32
    %797 = arith.addi %757, %c4_i32_213 : i32
    %798 = arith.index_cast %797 : i32 to index
    %799 = memref.load %arg4[%798] : memref<252xf32, #tpu.memory_space<smem>>
    %c5_i32_214 = arith.constant 5 : i32
    %800 = arith.addi %757, %c5_i32_214 : i32
    %801 = arith.index_cast %800 : i32 to index
    %802 = memref.load %arg4[%801] : memref<252xf32, #tpu.memory_space<smem>>
    %c6_i32_215 = arith.constant 6 : i32
    %803 = arith.addi %757, %c6_i32_215 : i32
    %804 = arith.index_cast %803 : i32 to index
    %805 = memref.load %arg4[%804] : memref<252xf32, #tpu.memory_space<smem>>
    %c7_i32_216 = arith.constant 7 : i32
    %806 = arith.addi %757, %c7_i32_216 : i32
    %807 = arith.index_cast %806 : i32 to index
    %808 = memref.load %arg4[%807] : memref<252xf32, #tpu.memory_space<smem>>
    %c8_i32_217 = arith.constant 8 : i32
    %809 = arith.addi %757, %c8_i32_217 : i32
    %810 = arith.index_cast %809 : i32 to index
    %811 = memref.load %arg4[%810] : memref<252xf32, #tpu.memory_space<smem>>
    %812 = vector.broadcast %760 : f32 to vector<16x128xf32>
    %813 = arith.mulf %1, %812 : vector<16x128xf32>
    %814 = vector.broadcast %769 : f32 to vector<16x128xf32>
    %815 = arith.mulf %3, %814 : vector<16x128xf32>
    %816 = arith.addf %813, %815 : vector<16x128xf32>
    %817 = vector.broadcast %778 : f32 to vector<16x128xf32>
    %818 = arith.mulf %5, %817 : vector<16x128xf32>
    %819 = arith.addf %816, %818 : vector<16x128xf32>
    %820 = vector.broadcast %787 : f32 to vector<16x128xf32>
    %821 = arith.addf %819, %820 : vector<16x128xf32>
    %822 = vector.broadcast %763 : f32 to vector<16x128xf32>
    %823 = arith.mulf %1, %822 : vector<16x128xf32>
    %824 = vector.broadcast %772 : f32 to vector<16x128xf32>
    %825 = arith.mulf %3, %824 : vector<16x128xf32>
    %826 = arith.addf %823, %825 : vector<16x128xf32>
    %827 = vector.broadcast %781 : f32 to vector<16x128xf32>
    %828 = arith.mulf %5, %827 : vector<16x128xf32>
    %829 = arith.addf %826, %828 : vector<16x128xf32>
    %830 = vector.broadcast %790 : f32 to vector<16x128xf32>
    %831 = arith.addf %829, %830 : vector<16x128xf32>
    %832 = vector.broadcast %766 : f32 to vector<16x128xf32>
    %833 = arith.mulf %1, %832 : vector<16x128xf32>
    %834 = vector.broadcast %775 : f32 to vector<16x128xf32>
    %835 = arith.mulf %3, %834 : vector<16x128xf32>
    %836 = arith.addf %833, %835 : vector<16x128xf32>
    %837 = vector.broadcast %784 : f32 to vector<16x128xf32>
    %838 = arith.mulf %5, %837 : vector<16x128xf32>
    %839 = arith.addf %836, %838 : vector<16x128xf32>
    %840 = vector.broadcast %793 : f32 to vector<16x128xf32>
    %841 = arith.addf %839, %840 : vector<16x128xf32>
    %842 = tpu.reciprocal %841 {approx = true} : vector<16x128xf32> -> vector<16x128xf32>
    %cst_218 = arith.constant 1.73205078 : f32
    %843 = vector.broadcast %cst_218 : f32 to vector<16x128xf32>
    %844 = arith.mulf %843, %842 : vector<16x128xf32>
    %845 = arith.mulf %821, %844 : vector<16x128xf32>
    %846 = arith.mulf %831, %844 : vector<16x128xf32>
    %cst_219 = arith.constant -1.01010096 : f32
    %847 = vector.broadcast %cst_219 : f32 to vector<16x128xf32>
    %848 = arith.divf %847, %841 : vector<16x128xf32>
    %cst_220 = arith.constant 1.01010096 : f32
    %849 = vector.broadcast %cst_220 : f32 to vector<16x128xf32>
    %850 = arith.addf %849, %848 : vector<16x128xf32>
    %851 = vector.broadcast %805 : f32 to vector<16x128xf32>
    %852 = arith.subf %851, %1 : vector<16x128xf32>
    %853 = vector.broadcast %808 : f32 to vector<16x128xf32>
    %854 = arith.subf %853, %3 : vector<16x128xf32>
    %855 = vector.broadcast %811 : f32 to vector<16x128xf32>
    %856 = arith.subf %855, %5 : vector<16x128xf32>
    %857 = arith.mulf %852, %852 : vector<16x128xf32>
    %858 = arith.mulf %854, %854 : vector<16x128xf32>
    %859 = arith.addf %857, %858 : vector<16x128xf32>
    %860 = arith.mulf %856, %856 : vector<16x128xf32>
    %861 = arith.addf %859, %860 : vector<16x128xf32>
    %cst_221 = arith.constant 9.99999996E-13 : f32
    %862 = vector.broadcast %cst_221 : f32 to vector<16x128xf32>
    %863 = arith.addf %861, %862 : vector<16x128xf32>
    %864 = math.rsqrt %863 : vector<16x128xf32>
    %865 = arith.mulf %852, %864 : vector<16x128xf32>
    %866 = arith.mulf %854, %864 : vector<16x128xf32>
    %867 = arith.mulf %856, %864 : vector<16x128xf32>
    %868 = arith.mulf %20, %865 : vector<16x128xf32>
    %869 = arith.mulf %21, %866 : vector<16x128xf32>
    %870 = arith.addf %868, %869 : vector<16x128xf32>
    %871 = arith.mulf %22, %867 : vector<16x128xf32>
    %872 = arith.addf %870, %871 : vector<16x128xf32>
    %873 = vector.broadcast %796 : f32 to vector<16x128xf32>
    %874 = arith.subf %873, %1 : vector<16x128xf32>
    %875 = vector.broadcast %799 : f32 to vector<16x128xf32>
    %876 = arith.subf %875, %3 : vector<16x128xf32>
    %877 = vector.broadcast %802 : f32 to vector<16x128xf32>
    %878 = arith.subf %877, %5 : vector<16x128xf32>
    %879 = arith.mulf %874, %874 : vector<16x128xf32>
    %880 = arith.mulf %876, %876 : vector<16x128xf32>
    %881 = arith.addf %879, %880 : vector<16x128xf32>
    %882 = arith.mulf %878, %878 : vector<16x128xf32>
    %883 = arith.addf %881, %882 : vector<16x128xf32>
    %cst_222 = arith.constant 9.99999996E-13 : f32
    %884 = vector.broadcast %cst_222 : f32 to vector<16x128xf32>
    %885 = arith.addf %883, %884 : vector<16x128xf32>
    %886 = math.rsqrt %885 : vector<16x128xf32>
    %887 = arith.mulf %874, %886 : vector<16x128xf32>
    %888 = arith.mulf %876, %886 : vector<16x128xf32>
    %889 = arith.mulf %878, %886 : vector<16x128xf32>
    %890 = arith.mulf %20, %887 : vector<16x128xf32>
    %891 = arith.mulf %21, %888 : vector<16x128xf32>
    %892 = arith.addf %890, %891 : vector<16x128xf32>
    %893 = arith.mulf %22, %889 : vector<16x128xf32>
    %894 = arith.addf %892, %893 : vector<16x128xf32>
    %895 = arith.mulf %865, %887 : vector<16x128xf32>
    %896 = arith.mulf %866, %888 : vector<16x128xf32>
    %897 = arith.addf %895, %896 : vector<16x128xf32>
    %898 = arith.mulf %867, %889 : vector<16x128xf32>
    %899 = arith.addf %897, %898 : vector<16x128xf32>
    %cst_223 = arith.constant 2.000000e+00 : f32
    %900 = vector.broadcast %cst_223 : f32 to vector<16x128xf32>
    %901 = arith.mulf %900, %872 : vector<16x128xf32>
    %902 = arith.mulf %901, %894 : vector<16x128xf32>
    %903 = arith.subf %902, %899 : vector<16x128xf32>
    %cst_224 = arith.constant 0.000000e+00 : f32
    %904 = vector.broadcast %cst_224 : f32 to vector<16x128xf32>
    %905 = arith.maximumf %903, %904 : vector<16x128xf32>
    %cst_225 = arith.constant 0.000000e+00 : f32
    %906 = vector.broadcast %cst_225 : f32 to vector<16x128xf32>
    %907 = arith.cmpf ogt, %872, %906 : vector<16x128xf32>
    %cst_226 = arith.constant 0.000000e+00 : f32
    %908 = vector.broadcast %cst_226 : f32 to vector<16x128xf32>
    %909 = arith.select %907, %905, %908 : vector<16x128xi1>, vector<16x128xf32>
    %910 = arith.mulf %909, %909 : vector<16x128xf32>
    %911 = arith.mulf %910, %910 : vector<16x128xf32>
    %912 = arith.mulf %911, %911 : vector<16x128xf32>
    %913 = arith.mulf %912, %912 : vector<16x128xf32>
    %914 = arith.mulf %913, %913 : vector<16x128xf32>
    %915 = arith.mulf %914, %914 : vector<16x128xf32>
    %cst_227 = arith.constant 0.000000e+00 : f32
    %916 = vector.broadcast %cst_227 : f32 to vector<16x128xf32>
    %917 = arith.maximumf %872, %916 : vector<16x128xf32>
    %cst_228 = arith.constant 3.000000e-01 : f32
    %918 = vector.broadcast %cst_228 : f32 to vector<16x128xf32>
    %919 = arith.mulf %918, %917 : vector<16x128xf32>
    %cst_229 = arith.constant 5.000000e-01 : f32
    %920 = vector.broadcast %cst_229 : f32 to vector<16x128xf32>
    %921 = arith.addf %920, %919 : vector<16x128xf32>
    %cst_230 = arith.constant 2.000000e-01 : f32
    %922 = vector.broadcast %cst_230 : f32 to vector<16x128xf32>
    %923 = arith.mulf %922, %915 : vector<16x128xf32>
    %924 = arith.addf %921, %923 : vector<16x128xf32>
    %c4_231 = arith.constant 4 : index
    %c0_232 = arith.constant 0 : index
    %c0_233 = arith.constant 0 : index
    %c0_234 = arith.constant 0 : index
    %925 = vector.load %arg5[%c4_231, %c0_232, %c0_233, %c0_234] : memref<14x3x16x128xf32, #tpu.memory_space<vmem>>, vector<1x1x16x128xf32>
    %926 = vector.shape_cast %925 : vector<1x1x16x128xf32> to vector<16x128xf32>
    %927 = vector.shape_cast %845 : vector<16x128xf32> to vector<1x1x16x128xf32>
    tpu.vector_store %arg5[%c4_231, %c0_232, %c0_233, %c0_234], %927 {strides = array<i32>} : memref<14x3x16x128xf32, #tpu.memory_space<vmem>>, vector<1x1x16x128xf32>,
    %c4_235 = arith.constant 4 : index
    %c1_236 = arith.constant 1 : index
    %c0_237 = arith.constant 0 : index
    %c0_238 = arith.constant 0 : index
    %928 = vector.load %arg5[%c4_235, %c1_236, %c0_237, %c0_238] : memref<14x3x16x128xf32, #tpu.memory_space<vmem>>, vector<1x1x16x128xf32>
    %929 = vector.shape_cast %928 : vector<1x1x16x128xf32> to vector<16x128xf32>
    %930 = vector.shape_cast %846 : vector<16x128xf32> to vector<1x1x16x128xf32>
    tpu.vector_store %arg5[%c4_235, %c1_236, %c0_237, %c0_238], %930 {strides = array<i32>} : memref<14x3x16x128xf32, #tpu.memory_space<vmem>>, vector<1x1x16x128xf32>,
    %c4_239 = arith.constant 4 : index
    %c2_240 = arith.constant 2 : index
    %c0_241 = arith.constant 0 : index
    %c0_242 = arith.constant 0 : index
    %931 = vector.load %arg5[%c4_239, %c2_240, %c0_241, %c0_242] : memref<14x3x16x128xf32, #tpu.memory_space<vmem>>, vector<1x1x16x128xf32>
    %932 = vector.shape_cast %931 : vector<1x1x16x128xf32> to vector<16x128xf32>
    %933 = vector.shape_cast %850 : vector<16x128xf32> to vector<1x1x16x128xf32>
    tpu.vector_store %arg5[%c4_239, %c2_240, %c0_241, %c0_242], %933 {strides = array<i32>} : memref<14x3x16x128xf32, #tpu.memory_space<vmem>>, vector<1x1x16x128xf32>,
    %934 = arith.truncf %924 : vector<16x128xf32> to vector<16x128xbf16>
    %c4_243 = arith.constant 4 : index
    %c0_244 = arith.constant 0 : index
    %c0_245 = arith.constant 0 : index
    %935 = vector.load %arg6[%c4_243, %c0_244, %c0_245] : memref<14x16x128xbf16, #tpu.memory_space<vmem>>, vector<1x16x128xbf16>
    %936 = vector.shape_cast %935 : vector<1x16x128xbf16> to vector<16x128xbf16>
    %937 = vector.shape_cast %934 : vector<16x128xbf16> to vector<1x16x128xbf16>
    tpu.vector_store %arg6[%c4_243, %c0_244, %c0_245], %937 {strides = array<i32>} : memref<14x16x128xbf16, #tpu.memory_space<vmem>>, vector<1x16x128xbf16>,
    %c14_i32_246 = arith.constant 14 : i32
    %938 = arith.muli %arg0, %c14_i32_246 : i32
    %c5_i32_247 = arith.constant 5 : i32
    %939 = arith.addi %938, %c5_i32_247 : i32
    %c9_i32_248 = arith.constant 9 : i32
    %940 = arith.muli %939, %c9_i32_248 : i32
    %c0_i32_249 = arith.constant 0 : i32
    %941 = arith.addi %940, %c0_i32_249 : i32
    %942 = arith.index_cast %941 : i32 to index
    %943 = memref.load %arg3[%942] : memref<252xf32, #tpu.memory_space<smem>>
    %c1_i32_250 = arith.constant 1 : i32
    %944 = arith.addi %940, %c1_i32_250 : i32
    %945 = arith.index_cast %944 : i32 to index
    %946 = memref.load %arg3[%945] : memref<252xf32, #tpu.memory_space<smem>>
    %c2_i32_251 = arith.constant 2 : i32
    %947 = arith.addi %940, %c2_i32_251 : i32
    %948 = arith.index_cast %947 : i32 to index
    %949 = memref.load %arg3[%948] : memref<252xf32, #tpu.memory_space<smem>>
    %c3_i32_252 = arith.constant 3 : i32
    %950 = arith.addi %940, %c3_i32_252 : i32
    %951 = arith.index_cast %950 : i32 to index
    %952 = memref.load %arg3[%951] : memref<252xf32, #tpu.memory_space<smem>>
    %c4_i32_253 = arith.constant 4 : i32
    %953 = arith.addi %940, %c4_i32_253 : i32
    %954 = arith.index_cast %953 : i32 to index
    %955 = memref.load %arg3[%954] : memref<252xf32, #tpu.memory_space<smem>>
    %c5_i32_254 = arith.constant 5 : i32
    %956 = arith.addi %940, %c5_i32_254 : i32
    %957 = arith.index_cast %956 : i32 to index
    %958 = memref.load %arg3[%957] : memref<252xf32, #tpu.memory_space<smem>>
    %c6_i32_255 = arith.constant 6 : i32
    %959 = arith.addi %940, %c6_i32_255 : i32
    %960 = arith.index_cast %959 : i32 to index
    %961 = memref.load %arg3[%960] : memref<252xf32, #tpu.memory_space<smem>>
    %c7_i32_256 = arith.constant 7 : i32
    %962 = arith.addi %940, %c7_i32_256 : i32
    %963 = arith.index_cast %962 : i32 to index
    %964 = memref.load %arg3[%963] : memref<252xf32, #tpu.memory_space<smem>>
    %c8_i32_257 = arith.constant 8 : i32
    %965 = arith.addi %940, %c8_i32_257 : i32
    %966 = arith.index_cast %965 : i32 to index
    %967 = memref.load %arg3[%966] : memref<252xf32, #tpu.memory_space<smem>>
    %c0_i32_258 = arith.constant 0 : i32
    %968 = arith.addi %940, %c0_i32_258 : i32
    %969 = arith.index_cast %968 : i32 to index
    %970 = memref.load %arg4[%969] : memref<252xf32, #tpu.memory_space<smem>>
    %c1_i32_259 = arith.constant 1 : i32
    %971 = arith.addi %940, %c1_i32_259 : i32
    %972 = arith.index_cast %971 : i32 to index
    %973 = memref.load %arg4[%972] : memref<252xf32, #tpu.memory_space<smem>>
    %c2_i32_260 = arith.constant 2 : i32
    %974 = arith.addi %940, %c2_i32_260 : i32
    %975 = arith.index_cast %974 : i32 to index
    %976 = memref.load %arg4[%975] : memref<252xf32, #tpu.memory_space<smem>>
    %c3_i32_261 = arith.constant 3 : i32
    %977 = arith.addi %940, %c3_i32_261 : i32
    %978 = arith.index_cast %977 : i32 to index
    %979 = memref.load %arg4[%978] : memref<252xf32, #tpu.memory_space<smem>>
    %c4_i32_262 = arith.constant 4 : i32
    %980 = arith.addi %940, %c4_i32_262 : i32
    %981 = arith.index_cast %980 : i32 to index
    %982 = memref.load %arg4[%981] : memref<252xf32, #tpu.memory_space<smem>>
    %c5_i32_263 = arith.constant 5 : i32
    %983 = arith.addi %940, %c5_i32_263 : i32
    %984 = arith.index_cast %983 : i32 to index
    %985 = memref.load %arg4[%984] : memref<252xf32, #tpu.memory_space<smem>>
    %c6_i32_264 = arith.constant 6 : i32
    %986 = arith.addi %940, %c6_i32_264 : i32
    %987 = arith.index_cast %986 : i32 to index
    %988 = memref.load %arg4[%987] : memref<252xf32, #tpu.memory_space<smem>>
    %c7_i32_265 = arith.constant 7 : i32
    %989 = arith.addi %940, %c7_i32_265 : i32
    %990 = arith.index_cast %989 : i32 to index
    %991 = memref.load %arg4[%990] : memref<252xf32, #tpu.memory_space<smem>>
    %c8_i32_266 = arith.constant 8 : i32
    %992 = arith.addi %940, %c8_i32_266 : i32
    %993 = arith.index_cast %992 : i32 to index
    %994 = memref.load %arg4[%993] : memref<252xf32, #tpu.memory_space<smem>>
    %995 = vector.broadcast %943 : f32 to vector<16x128xf32>
    %996 = arith.mulf %1, %995 : vector<16x128xf32>
    %997 = vector.broadcast %952 : f32 to vector<16x128xf32>
    %998 = arith.mulf %3, %997 : vector<16x128xf32>
    %999 = arith.addf %996, %998 : vector<16x128xf32>
    %1000 = vector.broadcast %961 : f32 to vector<16x128xf32>
    %1001 = arith.mulf %5, %1000 : vector<16x128xf32>
    %1002 = arith.addf %999, %1001 : vector<16x128xf32>
    %1003 = vector.broadcast %970 : f32 to vector<16x128xf32>
    %1004 = arith.addf %1002, %1003 : vector<16x128xf32>
    %1005 = vector.broadcast %946 : f32 to vector<16x128xf32>
    %1006 = arith.mulf %1, %1005 : vector<16x128xf32>
    %1007 = vector.broadcast %955 : f32 to vector<16x128xf32>
    %1008 = arith.mulf %3, %1007 : vector<16x128xf32>
    %1009 = arith.addf %1006, %1008 : vector<16x128xf32>
    %1010 = vector.broadcast %964 : f32 to vector<16x128xf32>
    %1011 = arith.mulf %5, %1010 : vector<16x128xf32>
    %1012 = arith.addf %1009, %1011 : vector<16x128xf32>
    %1013 = vector.broadcast %973 : f32 to vector<16x128xf32>
    %1014 = arith.addf %1012, %1013 : vector<16x128xf32>
    %1015 = vector.broadcast %949 : f32 to vector<16x128xf32>
    %1016 = arith.mulf %1, %1015 : vector<16x128xf32>
    %1017 = vector.broadcast %958 : f32 to vector<16x128xf32>
    %1018 = arith.mulf %3, %1017 : vector<16x128xf32>
    %1019 = arith.addf %1016, %1018 : vector<16x128xf32>
    %1020 = vector.broadcast %967 : f32 to vector<16x128xf32>
    %1021 = arith.mulf %5, %1020 : vector<16x128xf32>
    %1022 = arith.addf %1019, %1021 : vector<16x128xf32>
    %1023 = vector.broadcast %976 : f32 to vector<16x128xf32>
    %1024 = arith.addf %1022, %1023 : vector<16x128xf32>
    %1025 = tpu.reciprocal %1024 {approx = true} : vector<16x128xf32> -> vector<16x128xf32>
    %cst_267 = arith.constant 1.73205078 : f32
    %1026 = vector.broadcast %cst_267 : f32 to vector<16x128xf32>
    %1027 = arith.mulf %1026, %1025 : vector<16x128xf32>
    %1028 = arith.mulf %1004, %1027 : vector<16x128xf32>
    %1029 = arith.mulf %1014, %1027 : vector<16x128xf32>
    %cst_268 = arith.constant -1.01010096 : f32
    %1030 = vector.broadcast %cst_268 : f32 to vector<16x128xf32>
    %1031 = arith.divf %1030, %1024 : vector<16x128xf32>
    %cst_269 = arith.constant 1.01010096 : f32
    %1032 = vector.broadcast %cst_269 : f32 to vector<16x128xf32>
    %1033 = arith.addf %1032, %1031 : vector<16x128xf32>
    %1034 = vector.broadcast %988 : f32 to vector<16x128xf32>
    %1035 = arith.subf %1034, %1 : vector<16x128xf32>
    %1036 = vector.broadcast %991 : f32 to vector<16x128xf32>
    %1037 = arith.subf %1036, %3 : vector<16x128xf32>
    %1038 = vector.broadcast %994 : f32 to vector<16x128xf32>
    %1039 = arith.subf %1038, %5 : vector<16x128xf32>
    %1040 = arith.mulf %1035, %1035 : vector<16x128xf32>
    %1041 = arith.mulf %1037, %1037 : vector<16x128xf32>
    %1042 = arith.addf %1040, %1041 : vector<16x128xf32>
    %1043 = arith.mulf %1039, %1039 : vector<16x128xf32>
    %1044 = arith.addf %1042, %1043 : vector<16x128xf32>
    %cst_270 = arith.constant 9.99999996E-13 : f32
    %1045 = vector.broadcast %cst_270 : f32 to vector<16x128xf32>
    %1046 = arith.addf %1044, %1045 : vector<16x128xf32>
    %1047 = math.rsqrt %1046 : vector<16x128xf32>
    %1048 = arith.mulf %1035, %1047 : vector<16x128xf32>
    %1049 = arith.mulf %1037, %1047 : vector<16x128xf32>
    %1050 = arith.mulf %1039, %1047 : vector<16x128xf32>
    %1051 = arith.mulf %20, %1048 : vector<16x128xf32>
    %1052 = arith.mulf %21, %1049 : vector<16x128xf32>
    %1053 = arith.addf %1051, %1052 : vector<16x128xf32>
    %1054 = arith.mulf %22, %1050 : vector<16x128xf32>
    %1055 = arith.addf %1053, %1054 : vector<16x128xf32>
    %1056 = vector.broadcast %979 : f32 to vector<16x128xf32>
    %1057 = arith.subf %1056, %1 : vector<16x128xf32>
    %1058 = vector.broadcast %982 : f32 to vector<16x128xf32>
    %1059 = arith.subf %1058, %3 : vector<16x128xf32>
    %1060 = vector.broadcast %985 : f32 to vector<16x128xf32>
    %1061 = arith.subf %1060, %5 : vector<16x128xf32>
    %1062 = arith.mulf %1057, %1057 : vector<16x128xf32>
    %1063 = arith.mulf %1059, %1059 : vector<16x128xf32>
    %1064 = arith.addf %1062, %1063 : vector<16x128xf32>
    %1065 = arith.mulf %1061, %1061 : vector<16x128xf32>
    %1066 = arith.addf %1064, %1065 : vector<16x128xf32>
    %cst_271 = arith.constant 9.99999996E-13 : f32
    %1067 = vector.broadcast %cst_271 : f32 to vector<16x128xf32>
    %1068 = arith.addf %1066, %1067 : vector<16x128xf32>
    %1069 = math.rsqrt %1068 : vector<16x128xf32>
    %1070 = arith.mulf %1057, %1069 : vector<16x128xf32>
    %1071 = arith.mulf %1059, %1069 : vector<16x128xf32>
    %1072 = arith.mulf %1061, %1069 : vector<16x128xf32>
    %1073 = arith.mulf %20, %1070 : vector<16x128xf32>
    %1074 = arith.mulf %21, %1071 : vector<16x128xf32>
    %1075 = arith.addf %1073, %1074 : vector<16x128xf32>
    %1076 = arith.mulf %22, %1072 : vector<16x128xf32>
    %1077 = arith.addf %1075, %1076 : vector<16x128xf32>
    %1078 = arith.mulf %1048, %1070 : vector<16x128xf32>
    %1079 = arith.mulf %1049, %1071 : vector<16x128xf32>
    %1080 = arith.addf %1078, %1079 : vector<16x128xf32>
    %1081 = arith.mulf %1050, %1072 : vector<16x128xf32>
    %1082 = arith.addf %1080, %1081 : vector<16x128xf32>
    %cst_272 = arith.constant 2.000000e+00 : f32
    %1083 = vector.broadcast %cst_272 : f32 to vector<16x128xf32>
    %1084 = arith.mulf %1083, %1055 : vector<16x128xf32>
    %1085 = arith.mulf %1084, %1077 : vector<16x128xf32>
    %1086 = arith.subf %1085, %1082 : vector<16x128xf32>
    %cst_273 = arith.constant 0.000000e+00 : f32
    %1087 = vector.broadcast %cst_273 : f32 to vector<16x128xf32>
    %1088 = arith.maximumf %1086, %1087 : vector<16x128xf32>
    %cst_274 = arith.constant 0.000000e+00 : f32
    %1089 = vector.broadcast %cst_274 : f32 to vector<16x128xf32>
    %1090 = arith.cmpf ogt, %1055, %1089 : vector<16x128xf32>
    %cst_275 = arith.constant 0.000000e+00 : f32
    %1091 = vector.broadcast %cst_275 : f32 to vector<16x128xf32>
    %1092 = arith.select %1090, %1088, %1091 : vector<16x128xi1>, vector<16x128xf32>
    %1093 = arith.mulf %1092, %1092 : vector<16x128xf32>
    %1094 = arith.mulf %1093, %1093 : vector<16x128xf32>
    %1095 = arith.mulf %1094, %1094 : vector<16x128xf32>
    %1096 = arith.mulf %1095, %1095 : vector<16x128xf32>
    %1097 = arith.mulf %1096, %1096 : vector<16x128xf32>
    %1098 = arith.mulf %1097, %1097 : vector<16x128xf32>
    %cst_276 = arith.constant 0.000000e+00 : f32
    %1099 = vector.broadcast %cst_276 : f32 to vector<16x128xf32>
    %1100 = arith.maximumf %1055, %1099 : vector<16x128xf32>
    %cst_277 = arith.constant 3.000000e-01 : f32
    %1101 = vector.broadcast %cst_277 : f32 to vector<16x128xf32>
    %1102 = arith.mulf %1101, %1100 : vector<16x128xf32>
    %cst_278 = arith.constant 5.000000e-01 : f32
    %1103 = vector.broadcast %cst_278 : f32 to vector<16x128xf32>
    %1104 = arith.addf %1103, %1102 : vector<16x128xf32>
    %cst_279 = arith.constant 2.000000e-01 : f32
    %1105 = vector.broadcast %cst_279 : f32 to vector<16x128xf32>
    %1106 = arith.mulf %1105, %1098 : vector<16x128xf32>
    %1107 = arith.addf %1104, %1106 : vector<16x128xf32>
    %c5_280 = arith.constant 5 : index
    %c0_281 = arith.constant 0 : index
    %c0_282 = arith.constant 0 : index
    %c0_283 = arith.constant 0 : index
    %1108 = vector.load %arg5[%c5_280, %c0_281, %c0_282, %c0_283] : memref<14x3x16x128xf32, #tpu.memory_space<vmem>>, vector<1x1x16x128xf32>
    %1109 = vector.shape_cast %1108 : vector<1x1x16x128xf32> to vector<16x128xf32>
    %1110 = vector.shape_cast %1028 : vector<16x128xf32> to vector<1x1x16x128xf32>
    tpu.vector_store %arg5[%c5_280, %c0_281, %c0_282, %c0_283], %1110 {strides = array<i32>} : memref<14x3x16x128xf32, #tpu.memory_space<vmem>>, vector<1x1x16x128xf32>,
    %c5_284 = arith.constant 5 : index
    %c1_285 = arith.constant 1 : index
    %c0_286 = arith.constant 0 : index
    %c0_287 = arith.constant 0 : index
    %1111 = vector.load %arg5[%c5_284, %c1_285, %c0_286, %c0_287] : memref<14x3x16x128xf32, #tpu.memory_space<vmem>>, vector<1x1x16x128xf32>
    %1112 = vector.shape_cast %1111 : vector<1x1x16x128xf32> to vector<16x128xf32>
    %1113 = vector.shape_cast %1029 : vector<16x128xf32> to vector<1x1x16x128xf32>
    tpu.vector_store %arg5[%c5_284, %c1_285, %c0_286, %c0_287], %1113 {strides = array<i32>} : memref<14x3x16x128xf32, #tpu.memory_space<vmem>>, vector<1x1x16x128xf32>,
    %c5_288 = arith.constant 5 : index
    %c2_289 = arith.constant 2 : index
    %c0_290 = arith.constant 0 : index
    %c0_291 = arith.constant 0 : index
    %1114 = vector.load %arg5[%c5_288, %c2_289, %c0_290, %c0_291] : memref<14x3x16x128xf32, #tpu.memory_space<vmem>>, vector<1x1x16x128xf32>
    %1115 = vector.shape_cast %1114 : vector<1x1x16x128xf32> to vector<16x128xf32>
    %1116 = vector.shape_cast %1033 : vector<16x128xf32> to vector<1x1x16x128xf32>
    tpu.vector_store %arg5[%c5_288, %c2_289, %c0_290, %c0_291], %1116 {strides = array<i32>} : memref<14x3x16x128xf32, #tpu.memory_space<vmem>>, vector<1x1x16x128xf32>,
    %1117 = arith.truncf %1107 : vector<16x128xf32> to vector<16x128xbf16>
    %c5_292 = arith.constant 5 : index
    %c0_293 = arith.constant 0 : index
    %c0_294 = arith.constant 0 : index
    %1118 = vector.load %arg6[%c5_292, %c0_293, %c0_294] : memref<14x16x128xbf16, #tpu.memory_space<vmem>>, vector<1x16x128xbf16>
    %1119 = vector.shape_cast %1118 : vector<1x16x128xbf16> to vector<16x128xbf16>
    %1120 = vector.shape_cast %1117 : vector<16x128xbf16> to vector<1x16x128xbf16>
    tpu.vector_store %arg6[%c5_292, %c0_293, %c0_294], %1120 {strides = array<i32>} : memref<14x16x128xbf16, #tpu.memory_space<vmem>>, vector<1x16x128xbf16>,
    %c14_i32_295 = arith.constant 14 : i32
    %1121 = arith.muli %arg0, %c14_i32_295 : i32
    %c6_i32_296 = arith.constant 6 : i32
    %1122 = arith.addi %1121, %c6_i32_296 : i32
    %c9_i32_297 = arith.constant 9 : i32
    %1123 = arith.muli %1122, %c9_i32_297 : i32
    %c0_i32_298 = arith.constant 0 : i32
    %1124 = arith.addi %1123, %c0_i32_298 : i32
    %1125 = arith.index_cast %1124 : i32 to index
    %1126 = memref.load %arg3[%1125] : memref<252xf32, #tpu.memory_space<smem>>
    %c1_i32_299 = arith.constant 1 : i32
    %1127 = arith.addi %1123, %c1_i32_299 : i32
    %1128 = arith.index_cast %1127 : i32 to index
    %1129 = memref.load %arg3[%1128] : memref<252xf32, #tpu.memory_space<smem>>
    %c2_i32_300 = arith.constant 2 : i32
    %1130 = arith.addi %1123, %c2_i32_300 : i32
    %1131 = arith.index_cast %1130 : i32 to index
    %1132 = memref.load %arg3[%1131] : memref<252xf32, #tpu.memory_space<smem>>
    %c3_i32_301 = arith.constant 3 : i32
    %1133 = arith.addi %1123, %c3_i32_301 : i32
    %1134 = arith.index_cast %1133 : i32 to index
    %1135 = memref.load %arg3[%1134] : memref<252xf32, #tpu.memory_space<smem>>
    %c4_i32_302 = arith.constant 4 : i32
    %1136 = arith.addi %1123, %c4_i32_302 : i32
    %1137 = arith.index_cast %1136 : i32 to index
    %1138 = memref.load %arg3[%1137] : memref<252xf32, #tpu.memory_space<smem>>
    %c5_i32_303 = arith.constant 5 : i32
    %1139 = arith.addi %1123, %c5_i32_303 : i32
    %1140 = arith.index_cast %1139 : i32 to index
    %1141 = memref.load %arg3[%1140] : memref<252xf32, #tpu.memory_space<smem>>
    %c6_i32_304 = arith.constant 6 : i32
    %1142 = arith.addi %1123, %c6_i32_304 : i32
    %1143 = arith.index_cast %1142 : i32 to index
    %1144 = memref.load %arg3[%1143] : memref<252xf32, #tpu.memory_space<smem>>
    %c7_i32_305 = arith.constant 7 : i32
    %1145 = arith.addi %1123, %c7_i32_305 : i32
    %1146 = arith.index_cast %1145 : i32 to index
    %1147 = memref.load %arg3[%1146] : memref<252xf32, #tpu.memory_space<smem>>
    %c8_i32_306 = arith.constant 8 : i32
    %1148 = arith.addi %1123, %c8_i32_306 : i32
    %1149 = arith.index_cast %1148 : i32 to index
    %1150 = memref.load %arg3[%1149] : memref<252xf32, #tpu.memory_space<smem>>
    %c0_i32_307 = arith.constant 0 : i32
    %1151 = arith.addi %1123, %c0_i32_307 : i32
    %1152 = arith.index_cast %1151 : i32 to index
    %1153 = memref.load %arg4[%1152] : memref<252xf32, #tpu.memory_space<smem>>
    %c1_i32_308 = arith.constant 1 : i32
    %1154 = arith.addi %1123, %c1_i32_308 : i32
    %1155 = arith.index_cast %1154 : i32 to index
    %1156 = memref.load %arg4[%1155] : memref<252xf32, #tpu.memory_space<smem>>
    %c2_i32_309 = arith.constant 2 : i32
    %1157 = arith.addi %1123, %c2_i32_309 : i32
    %1158 = arith.index_cast %1157 : i32 to index
    %1159 = memref.load %arg4[%1158] : memref<252xf32, #tpu.memory_space<smem>>
    %c3_i32_310 = arith.constant 3 : i32
    %1160 = arith.addi %1123, %c3_i32_310 : i32
    %1161 = arith.index_cast %1160 : i32 to index
    %1162 = memref.load %arg4[%1161] : memref<252xf32, #tpu.memory_space<smem>>
    %c4_i32_311 = arith.constant 4 : i32
    %1163 = arith.addi %1123, %c4_i32_311 : i32
    %1164 = arith.index_cast %1163 : i32 to index
    %1165 = memref.load %arg4[%1164] : memref<252xf32, #tpu.memory_space<smem>>
    %c5_i32_312 = arith.constant 5 : i32
    %1166 = arith.addi %1123, %c5_i32_312 : i32
    %1167 = arith.index_cast %1166 : i32 to index
    %1168 = memref.load %arg4[%1167] : memref<252xf32, #tpu.memory_space<smem>>
    %c6_i32_313 = arith.constant 6 : i32
    %1169 = arith.addi %1123, %c6_i32_313 : i32
    %1170 = arith.index_cast %1169 : i32 to index
    %1171 = memref.load %arg4[%1170] : memref<252xf32, #tpu.memory_space<smem>>
    %c7_i32_314 = arith.constant 7 : i32
    %1172 = arith.addi %1123, %c7_i32_314 : i32
    %1173 = arith.index_cast %1172 : i32 to index
    %1174 = memref.load %arg4[%1173] : memref<252xf32, #tpu.memory_space<smem>>
    %c8_i32_315 = arith.constant 8 : i32
    %1175 = arith.addi %1123, %c8_i32_315 : i32
    %1176 = arith.index_cast %1175 : i32 to index
    %1177 = memref.load %arg4[%1176] : memref<252xf32, #tpu.memory_space<smem>>
    %1178 = vector.broadcast %1126 : f32 to vector<16x128xf32>
    %1179 = arith.mulf %1, %1178 : vector<16x128xf32>
    %1180 = vector.broadcast %1135 : f32 to vector<16x128xf32>
    %1181 = arith.mulf %3, %1180 : vector<16x128xf32>
    %1182 = arith.addf %1179, %1181 : vector<16x128xf32>
    %1183 = vector.broadcast %1144 : f32 to vector<16x128xf32>
    %1184 = arith.mulf %5, %1183 : vector<16x128xf32>
    %1185 = arith.addf %1182, %1184 : vector<16x128xf32>
    %1186 = vector.broadcast %1153 : f32 to vector<16x128xf32>
    %1187 = arith.addf %1185, %1186 : vector<16x128xf32>
    %1188 = vector.broadcast %1129 : f32 to vector<16x128xf32>
    %1189 = arith.mulf %1, %1188 : vector<16x128xf32>
    %1190 = vector.broadcast %1138 : f32 to vector<16x128xf32>
    %1191 = arith.mulf %3, %1190 : vector<16x128xf32>
    %1192 = arith.addf %1189, %1191 : vector<16x128xf32>
    %1193 = vector.broadcast %1147 : f32 to vector<16x128xf32>
    %1194 = arith.mulf %5, %1193 : vector<16x128xf32>
    %1195 = arith.addf %1192, %1194 : vector<16x128xf32>
    %1196 = vector.broadcast %1156 : f32 to vector<16x128xf32>
    %1197 = arith.addf %1195, %1196 : vector<16x128xf32>
    %1198 = vector.broadcast %1132 : f32 to vector<16x128xf32>
    %1199 = arith.mulf %1, %1198 : vector<16x128xf32>
    %1200 = vector.broadcast %1141 : f32 to vector<16x128xf32>
    %1201 = arith.mulf %3, %1200 : vector<16x128xf32>
    %1202 = arith.addf %1199, %1201 : vector<16x128xf32>
    %1203 = vector.broadcast %1150 : f32 to vector<16x128xf32>
    %1204 = arith.mulf %5, %1203 : vector<16x128xf32>
    %1205 = arith.addf %1202, %1204 : vector<16x128xf32>
    %1206 = vector.broadcast %1159 : f32 to vector<16x128xf32>
    %1207 = arith.addf %1205, %1206 : vector<16x128xf32>
    %1208 = tpu.reciprocal %1207 {approx = true} : vector<16x128xf32> -> vector<16x128xf32>
    %cst_316 = arith.constant 1.73205078 : f32
    %1209 = vector.broadcast %cst_316 : f32 to vector<16x128xf32>
    %1210 = arith.mulf %1209, %1208 : vector<16x128xf32>
    %1211 = arith.mulf %1187, %1210 : vector<16x128xf32>
    %1212 = arith.mulf %1197, %1210 : vector<16x128xf32>
    %cst_317 = arith.constant -1.01010096 : f32
    %1213 = vector.broadcast %cst_317 : f32 to vector<16x128xf32>
    %1214 = arith.divf %1213, %1207 : vector<16x128xf32>
    %cst_318 = arith.constant 1.01010096 : f32
    %1215 = vector.broadcast %cst_318 : f32 to vector<16x128xf32>
    %1216 = arith.addf %1215, %1214 : vector<16x128xf32>
    %1217 = vector.broadcast %1171 : f32 to vector<16x128xf32>
    %1218 = arith.subf %1217, %1 : vector<16x128xf32>
    %1219 = vector.broadcast %1174 : f32 to vector<16x128xf32>
    %1220 = arith.subf %1219, %3 : vector<16x128xf32>
    %1221 = vector.broadcast %1177 : f32 to vector<16x128xf32>
    %1222 = arith.subf %1221, %5 : vector<16x128xf32>
    %1223 = arith.mulf %1218, %1218 : vector<16x128xf32>
    %1224 = arith.mulf %1220, %1220 : vector<16x128xf32>
    %1225 = arith.addf %1223, %1224 : vector<16x128xf32>
    %1226 = arith.mulf %1222, %1222 : vector<16x128xf32>
    %1227 = arith.addf %1225, %1226 : vector<16x128xf32>
    %cst_319 = arith.constant 9.99999996E-13 : f32
    %1228 = vector.broadcast %cst_319 : f32 to vector<16x128xf32>
    %1229 = arith.addf %1227, %1228 : vector<16x128xf32>
    %1230 = math.rsqrt %1229 : vector<16x128xf32>
    %1231 = arith.mulf %1218, %1230 : vector<16x128xf32>
    %1232 = arith.mulf %1220, %1230 : vector<16x128xf32>
    %1233 = arith.mulf %1222, %1230 : vector<16x128xf32>
    %1234 = arith.mulf %20, %1231 : vector<16x128xf32>
    %1235 = arith.mulf %21, %1232 : vector<16x128xf32>
    %1236 = arith.addf %1234, %1235 : vector<16x128xf32>
    %1237 = arith.mulf %22, %1233 : vector<16x128xf32>
    %1238 = arith.addf %1236, %1237 : vector<16x128xf32>
    %1239 = vector.broadcast %1162 : f32 to vector<16x128xf32>
    %1240 = arith.subf %1239, %1 : vector<16x128xf32>
    %1241 = vector.broadcast %1165 : f32 to vector<16x128xf32>
    %1242 = arith.subf %1241, %3 : vector<16x128xf32>
    %1243 = vector.broadcast %1168 : f32 to vector<16x128xf32>
    %1244 = arith.subf %1243, %5 : vector<16x128xf32>
    %1245 = arith.mulf %1240, %1240 : vector<16x128xf32>
    %1246 = arith.mulf %1242, %1242 : vector<16x128xf32>
    %1247 = arith.addf %1245, %1246 : vector<16x128xf32>
    %1248 = arith.mulf %1244, %1244 : vector<16x128xf32>
    %1249 = arith.addf %1247, %1248 : vector<16x128xf32>
    %cst_320 = arith.constant 9.99999996E-13 : f32
    %1250 = vector.broadcast %cst_320 : f32 to vector<16x128xf32>
    %1251 = arith.addf %1249, %1250 : vector<16x128xf32>
    %1252 = math.rsqrt %1251 : vector<16x128xf32>
    %1253 = arith.mulf %1240, %1252 : vector<16x128xf32>
    %1254 = arith.mulf %1242, %1252 : vector<16x128xf32>
    %1255 = arith.mulf %1244, %1252 : vector<16x128xf32>
    %1256 = arith.mulf %20, %1253 : vector<16x128xf32>
    %1257 = arith.mulf %21, %1254 : vector<16x128xf32>
    %1258 = arith.addf %1256, %1257 : vector<16x128xf32>
    %1259 = arith.mulf %22, %1255 : vector<16x128xf32>
    %1260 = arith.addf %1258, %1259 : vector<16x128xf32>
    %1261 = arith.mulf %1231, %1253 : vector<16x128xf32>
    %1262 = arith.mulf %1232, %1254 : vector<16x128xf32>
    %1263 = arith.addf %1261, %1262 : vector<16x128xf32>
    %1264 = arith.mulf %1233, %1255 : vector<16x128xf32>
    %1265 = arith.addf %1263, %1264 : vector<16x128xf32>
    %cst_321 = arith.constant 2.000000e+00 : f32
    %1266 = vector.broadcast %cst_321 : f32 to vector<16x128xf32>
    %1267 = arith.mulf %1266, %1238 : vector<16x128xf32>
    %1268 = arith.mulf %1267, %1260 : vector<16x128xf32>
    %1269 = arith.subf %1268, %1265 : vector<16x128xf32>
    %cst_322 = arith.constant 0.000000e+00 : f32
    %1270 = vector.broadcast %cst_322 : f32 to vector<16x128xf32>
    %1271 = arith.maximumf %1269, %1270 : vector<16x128xf32>
    %cst_323 = arith.constant 0.000000e+00 : f32
    %1272 = vector.broadcast %cst_323 : f32 to vector<16x128xf32>
    %1273 = arith.cmpf ogt, %1238, %1272 : vector<16x128xf32>
    %cst_324 = arith.constant 0.000000e+00 : f32
    %1274 = vector.broadcast %cst_324 : f32 to vector<16x128xf32>
    %1275 = arith.select %1273, %1271, %1274 : vector<16x128xi1>, vector<16x128xf32>
    %1276 = arith.mulf %1275, %1275 : vector<16x128xf32>
    %1277 = arith.mulf %1276, %1276 : vector<16x128xf32>
    %1278 = arith.mulf %1277, %1277 : vector<16x128xf32>
    %1279 = arith.mulf %1278, %1278 : vector<16x128xf32>
    %1280 = arith.mulf %1279, %1279 : vector<16x128xf32>
    %1281 = arith.mulf %1280, %1280 : vector<16x128xf32>
    %cst_325 = arith.constant 0.000000e+00 : f32
    %1282 = vector.broadcast %cst_325 : f32 to vector<16x128xf32>
    %1283 = arith.maximumf %1238, %1282 : vector<16x128xf32>
    %cst_326 = arith.constant 3.000000e-01 : f32
    %1284 = vector.broadcast %cst_326 : f32 to vector<16x128xf32>
    %1285 = arith.mulf %1284, %1283 : vector<16x128xf32>
    %cst_327 = arith.constant 5.000000e-01 : f32
    %1286 = vector.broadcast %cst_327 : f32 to vector<16x128xf32>
    %1287 = arith.addf %1286, %1285 : vector<16x128xf32>
    %cst_328 = arith.constant 2.000000e-01 : f32
    %1288 = vector.broadcast %cst_328 : f32 to vector<16x128xf32>
    %1289 = arith.mulf %1288, %1281 : vector<16x128xf32>
    %1290 = arith.addf %1287, %1289 : vector<16x128xf32>
    %c6 = arith.constant 6 : index
    %c0_329 = arith.constant 0 : index
    %c0_330 = arith.constant 0 : index
    %c0_331 = arith.constant 0 : index
    %1291 = vector.load %arg5[%c6, %c0_329, %c0_330, %c0_331] : memref<14x3x16x128xf32, #tpu.memory_space<vmem>>, vector<1x1x16x128xf32>
    %1292 = vector.shape_cast %1291 : vector<1x1x16x128xf32> to vector<16x128xf32>
    %1293 = vector.shape_cast %1211 : vector<16x128xf32> to vector<1x1x16x128xf32>
    tpu.vector_store %arg5[%c6, %c0_329, %c0_330, %c0_331], %1293 {strides = array<i32>} : memref<14x3x16x128xf32, #tpu.memory_space<vmem>>, vector<1x1x16x128xf32>,
    %c6_332 = arith.constant 6 : index
    %c1_333 = arith.constant 1 : index
    %c0_334 = arith.constant 0 : index
    %c0_335 = arith.constant 0 : index
    %1294 = vector.load %arg5[%c6_332, %c1_333, %c0_334, %c0_335] : memref<14x3x16x128xf32, #tpu.memory_space<vmem>>, vector<1x1x16x128xf32>
    %1295 = vector.shape_cast %1294 : vector<1x1x16x128xf32> to vector<16x128xf32>
    %1296 = vector.shape_cast %1212 : vector<16x128xf32> to vector<1x1x16x128xf32>
    tpu.vector_store %arg5[%c6_332, %c1_333, %c0_334, %c0_335], %1296 {strides = array<i32>} : memref<14x3x16x128xf32, #tpu.memory_space<vmem>>, vector<1x1x16x128xf32>,
    %c6_336 = arith.constant 6 : index
    %c2_337 = arith.constant 2 : index
    %c0_338 = arith.constant 0 : index
    %c0_339 = arith.constant 0 : index
    %1297 = vector.load %arg5[%c6_336, %c2_337, %c0_338, %c0_339] : memref<14x3x16x128xf32, #tpu.memory_space<vmem>>, vector<1x1x16x128xf32>
    %1298 = vector.shape_cast %1297 : vector<1x1x16x128xf32> to vector<16x128xf32>
    %1299 = vector.shape_cast %1216 : vector<16x128xf32> to vector<1x1x16x128xf32>
    tpu.vector_store %arg5[%c6_336, %c2_337, %c0_338, %c0_339], %1299 {strides = array<i32>} : memref<14x3x16x128xf32, #tpu.memory_space<vmem>>, vector<1x1x16x128xf32>,
    %1300 = arith.truncf %1290 : vector<16x128xf32> to vector<16x128xbf16>
    %c6_340 = arith.constant 6 : index
    %c0_341 = arith.constant 0 : index
    %c0_342 = arith.constant 0 : index
    %1301 = vector.load %arg6[%c6_340, %c0_341, %c0_342] : memref<14x16x128xbf16, #tpu.memory_space<vmem>>, vector<1x16x128xbf16>
    %1302 = vector.shape_cast %1301 : vector<1x16x128xbf16> to vector<16x128xbf16>
    %1303 = vector.shape_cast %1300 : vector<16x128xbf16> to vector<1x16x128xbf16>
    tpu.vector_store %arg6[%c6_340, %c0_341, %c0_342], %1303 {strides = array<i32>} : memref<14x16x128xbf16, #tpu.memory_space<vmem>>, vector<1x16x128xbf16>,
    %c14_i32_343 = arith.constant 14 : i32
    %1304 = arith.muli %arg0, %c14_i32_343 : i32
    %c7_i32_344 = arith.constant 7 : i32
    %1305 = arith.addi %1304, %c7_i32_344 : i32
    %c9_i32_345 = arith.constant 9 : i32
    %1306 = arith.muli %1305, %c9_i32_345 : i32
    %c0_i32_346 = arith.constant 0 : i32
    %1307 = arith.addi %1306, %c0_i32_346 : i32
    %1308 = arith.index_cast %1307 : i32 to index
    %1309 = memref.load %arg3[%1308] : memref<252xf32, #tpu.memory_space<smem>>
    %c1_i32_347 = arith.constant 1 : i32
    %1310 = arith.addi %1306, %c1_i32_347 : i32
    %1311 = arith.index_cast %1310 : i32 to index
    %1312 = memref.load %arg3[%1311] : memref<252xf32, #tpu.memory_space<smem>>
    %c2_i32_348 = arith.constant 2 : i32
    %1313 = arith.addi %1306, %c2_i32_348 : i32
    %1314 = arith.index_cast %1313 : i32 to index
    %1315 = memref.load %arg3[%1314] : memref<252xf32, #tpu.memory_space<smem>>
    %c3_i32_349 = arith.constant 3 : i32
    %1316 = arith.addi %1306, %c3_i32_349 : i32
    %1317 = arith.index_cast %1316 : i32 to index
    %1318 = memref.load %arg3[%1317] : memref<252xf32, #tpu.memory_space<smem>>
    %c4_i32_350 = arith.constant 4 : i32
    %1319 = arith.addi %1306, %c4_i32_350 : i32
    %1320 = arith.index_cast %1319 : i32 to index
    %1321 = memref.load %arg3[%1320] : memref<252xf32, #tpu.memory_space<smem>>
    %c5_i32_351 = arith.constant 5 : i32
    %1322 = arith.addi %1306, %c5_i32_351 : i32
    %1323 = arith.index_cast %1322 : i32 to index
    %1324 = memref.load %arg3[%1323] : memref<252xf32, #tpu.memory_space<smem>>
    %c6_i32_352 = arith.constant 6 : i32
    %1325 = arith.addi %1306, %c6_i32_352 : i32
    %1326 = arith.index_cast %1325 : i32 to index
    %1327 = memref.load %arg3[%1326] : memref<252xf32, #tpu.memory_space<smem>>
    %c7_i32_353 = arith.constant 7 : i32
    %1328 = arith.addi %1306, %c7_i32_353 : i32
    %1329 = arith.index_cast %1328 : i32 to index
    %1330 = memref.load %arg3[%1329] : memref<252xf32, #tpu.memory_space<smem>>
    %c8_i32_354 = arith.constant 8 : i32
    %1331 = arith.addi %1306, %c8_i32_354 : i32
    %1332 = arith.index_cast %1331 : i32 to index
    %1333 = memref.load %arg3[%1332] : memref<252xf32, #tpu.memory_space<smem>>
    %c0_i32_355 = arith.constant 0 : i32
    %1334 = arith.addi %1306, %c0_i32_355 : i32
    %1335 = arith.index_cast %1334 : i32 to index
    %1336 = memref.load %arg4[%1335] : memref<252xf32, #tpu.memory_space<smem>>
    %c1_i32_356 = arith.constant 1 : i32
    %1337 = arith.addi %1306, %c1_i32_356 : i32
    %1338 = arith.index_cast %1337 : i32 to index
    %1339 = memref.load %arg4[%1338] : memref<252xf32, #tpu.memory_space<smem>>
    %c2_i32_357 = arith.constant 2 : i32
    %1340 = arith.addi %1306, %c2_i32_357 : i32
    %1341 = arith.index_cast %1340 : i32 to index
    %1342 = memref.load %arg4[%1341] : memref<252xf32, #tpu.memory_space<smem>>
    %c3_i32_358 = arith.constant 3 : i32
    %1343 = arith.addi %1306, %c3_i32_358 : i32
    %1344 = arith.index_cast %1343 : i32 to index
    %1345 = memref.load %arg4[%1344] : memref<252xf32, #tpu.memory_space<smem>>
    %c4_i32_359 = arith.constant 4 : i32
    %1346 = arith.addi %1306, %c4_i32_359 : i32
    %1347 = arith.index_cast %1346 : i32 to index
    %1348 = memref.load %arg4[%1347] : memref<252xf32, #tpu.memory_space<smem>>
    %c5_i32_360 = arith.constant 5 : i32
    %1349 = arith.addi %1306, %c5_i32_360 : i32
    %1350 = arith.index_cast %1349 : i32 to index
    %1351 = memref.load %arg4[%1350] : memref<252xf32, #tpu.memory_space<smem>>
    %c6_i32_361 = arith.constant 6 : i32
    %1352 = arith.addi %1306, %c6_i32_361 : i32
    %1353 = arith.index_cast %1352 : i32 to index
    %1354 = memref.load %arg4[%1353] : memref<252xf32, #tpu.memory_space<smem>>
    %c7_i32_362 = arith.constant 7 : i32
    %1355 = arith.addi %1306, %c7_i32_362 : i32
    %1356 = arith.index_cast %1355 : i32 to index
    %1357 = memref.load %arg4[%1356] : memref<252xf32, #tpu.memory_space<smem>>
    %c8_i32_363 = arith.constant 8 : i32
    %1358 = arith.addi %1306, %c8_i32_363 : i32
    %1359 = arith.index_cast %1358 : i32 to index
    %1360 = memref.load %arg4[%1359] : memref<252xf32, #tpu.memory_space<smem>>
    %1361 = vector.broadcast %1309 : f32 to vector<16x128xf32>
    %1362 = arith.mulf %1, %1361 : vector<16x128xf32>
    %1363 = vector.broadcast %1318 : f32 to vector<16x128xf32>
    %1364 = arith.mulf %3, %1363 : vector<16x128xf32>
    %1365 = arith.addf %1362, %1364 : vector<16x128xf32>
    %1366 = vector.broadcast %1327 : f32 to vector<16x128xf32>
    %1367 = arith.mulf %5, %1366 : vector<16x128xf32>
    %1368 = arith.addf %1365, %1367 : vector<16x128xf32>
    %1369 = vector.broadcast %1336 : f32 to vector<16x128xf32>
    %1370 = arith.addf %1368, %1369 : vector<16x128xf32>
    %1371 = vector.broadcast %1312 : f32 to vector<16x128xf32>
    %1372 = arith.mulf %1, %1371 : vector<16x128xf32>
    %1373 = vector.broadcast %1321 : f32 to vector<16x128xf32>
    %1374 = arith.mulf %3, %1373 : vector<16x128xf32>
    %1375 = arith.addf %1372, %1374 : vector<16x128xf32>
    %1376 = vector.broadcast %1330 : f32 to vector<16x128xf32>
    %1377 = arith.mulf %5, %1376 : vector<16x128xf32>
    %1378 = arith.addf %1375, %1377 : vector<16x128xf32>
    %1379 = vector.broadcast %1339 : f32 to vector<16x128xf32>
    %1380 = arith.addf %1378, %1379 : vector<16x128xf32>
    %1381 = vector.broadcast %1315 : f32 to vector<16x128xf32>
    %1382 = arith.mulf %1, %1381 : vector<16x128xf32>
    %1383 = vector.broadcast %1324 : f32 to vector<16x128xf32>
    %1384 = arith.mulf %3, %1383 : vector<16x128xf32>
    %1385 = arith.addf %1382, %1384 : vector<16x128xf32>
    %1386 = vector.broadcast %1333 : f32 to vector<16x128xf32>
    %1387 = arith.mulf %5, %1386 : vector<16x128xf32>
    %1388 = arith.addf %1385, %1387 : vector<16x128xf32>
    %1389 = vector.broadcast %1342 : f32 to vector<16x128xf32>
    %1390 = arith.addf %1388, %1389 : vector<16x128xf32>
    %1391 = tpu.reciprocal %1390 {approx = true} : vector<16x128xf32> -> vector<16x128xf32>
    %cst_364 = arith.constant 1.73205078 : f32
    %1392 = vector.broadcast %cst_364 : f32 to vector<16x128xf32>
    %1393 = arith.mulf %1392, %1391 : vector<16x128xf32>
    %1394 = arith.mulf %1370, %1393 : vector<16x128xf32>
    %1395 = arith.mulf %1380, %1393 : vector<16x128xf32>
    %cst_365 = arith.constant -1.01010096 : f32
    %1396 = vector.broadcast %cst_365 : f32 to vector<16x128xf32>
    %1397 = arith.divf %1396, %1390 : vector<16x128xf32>
    %cst_366 = arith.constant 1.01010096 : f32
    %1398 = vector.broadcast %cst_366 : f32 to vector<16x128xf32>
    %1399 = arith.addf %1398, %1397 : vector<16x128xf32>
    %1400 = vector.broadcast %1354 : f32 to vector<16x128xf32>
    %1401 = arith.subf %1400, %1 : vector<16x128xf32>
    %1402 = vector.broadcast %1357 : f32 to vector<16x128xf32>
    %1403 = arith.subf %1402, %3 : vector<16x128xf32>
    %1404 = vector.broadcast %1360 : f32 to vector<16x128xf32>
    %1405 = arith.subf %1404, %5 : vector<16x128xf32>
    %1406 = arith.mulf %1401, %1401 : vector<16x128xf32>
    %1407 = arith.mulf %1403, %1403 : vector<16x128xf32>
    %1408 = arith.addf %1406, %1407 : vector<16x128xf32>
    %1409 = arith.mulf %1405, %1405 : vector<16x128xf32>
    %1410 = arith.addf %1408, %1409 : vector<16x128xf32>
    %cst_367 = arith.constant 9.99999996E-13 : f32
    %1411 = vector.broadcast %cst_367 : f32 to vector<16x128xf32>
    %1412 = arith.addf %1410, %1411 : vector<16x128xf32>
    %1413 = math.rsqrt %1412 : vector<16x128xf32>
    %1414 = arith.mulf %1401, %1413 : vector<16x128xf32>
    %1415 = arith.mulf %1403, %1413 : vector<16x128xf32>
    %1416 = arith.mulf %1405, %1413 : vector<16x128xf32>
    %1417 = arith.mulf %20, %1414 : vector<16x128xf32>
    %1418 = arith.mulf %21, %1415 : vector<16x128xf32>
    %1419 = arith.addf %1417, %1418 : vector<16x128xf32>
    %1420 = arith.mulf %22, %1416 : vector<16x128xf32>
    %1421 = arith.addf %1419, %1420 : vector<16x128xf32>
    %1422 = vector.broadcast %1345 : f32 to vector<16x128xf32>
    %1423 = arith.subf %1422, %1 : vector<16x128xf32>
    %1424 = vector.broadcast %1348 : f32 to vector<16x128xf32>
    %1425 = arith.subf %1424, %3 : vector<16x128xf32>
    %1426 = vector.broadcast %1351 : f32 to vector<16x128xf32>
    %1427 = arith.subf %1426, %5 : vector<16x128xf32>
    %1428 = arith.mulf %1423, %1423 : vector<16x128xf32>
    %1429 = arith.mulf %1425, %1425 : vector<16x128xf32>
    %1430 = arith.addf %1428, %1429 : vector<16x128xf32>
    %1431 = arith.mulf %1427, %1427 : vector<16x128xf32>
    %1432 = arith.addf %1430, %1431 : vector<16x128xf32>
    %cst_368 = arith.constant 9.99999996E-13 : f32
    %1433 = vector.broadcast %cst_368 : f32 to vector<16x128xf32>
    %1434 = arith.addf %1432, %1433 : vector<16x128xf32>
    %1435 = math.rsqrt %1434 : vector<16x128xf32>
    %1436 = arith.mulf %1423, %1435 : vector<16x128xf32>
    %1437 = arith.mulf %1425, %1435 : vector<16x128xf32>
    %1438 = arith.mulf %1427, %1435 : vector<16x128xf32>
    %1439 = arith.mulf %20, %1436 : vector<16x128xf32>
    %1440 = arith.mulf %21, %1437 : vector<16x128xf32>
    %1441 = arith.addf %1439, %1440 : vector<16x128xf32>
    %1442 = arith.mulf %22, %1438 : vector<16x128xf32>
    %1443 = arith.addf %1441, %1442 : vector<16x128xf32>
    %1444 = arith.mulf %1414, %1436 : vector<16x128xf32>
    %1445 = arith.mulf %1415, %1437 : vector<16x128xf32>
    %1446 = arith.addf %1444, %1445 : vector<16x128xf32>
    %1447 = arith.mulf %1416, %1438 : vector<16x128xf32>
    %1448 = arith.addf %1446, %1447 : vector<16x128xf32>
    %cst_369 = arith.constant 2.000000e+00 : f32
    %1449 = vector.broadcast %cst_369 : f32 to vector<16x128xf32>
    %1450 = arith.mulf %1449, %1421 : vector<16x128xf32>
    %1451 = arith.mulf %1450, %1443 : vector<16x128xf32>
    %1452 = arith.subf %1451, %1448 : vector<16x128xf32>
    %cst_370 = arith.constant 0.000000e+00 : f32
    %1453 = vector.broadcast %cst_370 : f32 to vector<16x128xf32>
    %1454 = arith.maximumf %1452, %1453 : vector<16x128xf32>
    %cst_371 = arith.constant 0.000000e+00 : f32
    %1455 = vector.broadcast %cst_371 : f32 to vector<16x128xf32>
    %1456 = arith.cmpf ogt, %1421, %1455 : vector<16x128xf32>
    %cst_372 = arith.constant 0.000000e+00 : f32
    %1457 = vector.broadcast %cst_372 : f32 to vector<16x128xf32>
    %1458 = arith.select %1456, %1454, %1457 : vector<16x128xi1>, vector<16x128xf32>
    %1459 = arith.mulf %1458, %1458 : vector<16x128xf32>
    %1460 = arith.mulf %1459, %1459 : vector<16x128xf32>
    %1461 = arith.mulf %1460, %1460 : vector<16x128xf32>
    %1462 = arith.mulf %1461, %1461 : vector<16x128xf32>
    %1463 = arith.mulf %1462, %1462 : vector<16x128xf32>
    %1464 = arith.mulf %1463, %1463 : vector<16x128xf32>
    %cst_373 = arith.constant 0.000000e+00 : f32
    %1465 = vector.broadcast %cst_373 : f32 to vector<16x128xf32>
    %1466 = arith.maximumf %1421, %1465 : vector<16x128xf32>
    %cst_374 = arith.constant 3.000000e-01 : f32
    %1467 = vector.broadcast %cst_374 : f32 to vector<16x128xf32>
    %1468 = arith.mulf %1467, %1466 : vector<16x128xf32>
    %cst_375 = arith.constant 5.000000e-01 : f32
    %1469 = vector.broadcast %cst_375 : f32 to vector<16x128xf32>
    %1470 = arith.addf %1469, %1468 : vector<16x128xf32>
    %cst_376 = arith.constant 2.000000e-01 : f32
    %1471 = vector.broadcast %cst_376 : f32 to vector<16x128xf32>
    %1472 = arith.mulf %1471, %1464 : vector<16x128xf32>
    %1473 = arith.addf %1470, %1472 : vector<16x128xf32>
    %c7 = arith.constant 7 : index
    %c0_377 = arith.constant 0 : index
    %c0_378 = arith.constant 0 : index
    %c0_379 = arith.constant 0 : index
    %1474 = vector.load %arg5[%c7, %c0_377, %c0_378, %c0_379] : memref<14x3x16x128xf32, #tpu.memory_space<vmem>>, vector<1x1x16x128xf32>
    %1475 = vector.shape_cast %1474 : vector<1x1x16x128xf32> to vector<16x128xf32>
    %1476 = vector.shape_cast %1394 : vector<16x128xf32> to vector<1x1x16x128xf32>
    tpu.vector_store %arg5[%c7, %c0_377, %c0_378, %c0_379], %1476 {strides = array<i32>} : memref<14x3x16x128xf32, #tpu.memory_space<vmem>>, vector<1x1x16x128xf32>,
    %c7_380 = arith.constant 7 : index
    %c1_381 = arith.constant 1 : index
    %c0_382 = arith.constant 0 : index
    %c0_383 = arith.constant 0 : index
    %1477 = vector.load %arg5[%c7_380, %c1_381, %c0_382, %c0_383] : memref<14x3x16x128xf32, #tpu.memory_space<vmem>>, vector<1x1x16x128xf32>
    %1478 = vector.shape_cast %1477 : vector<1x1x16x128xf32> to vector<16x128xf32>
    %1479 = vector.shape_cast %1395 : vector<16x128xf32> to vector<1x1x16x128xf32>
    tpu.vector_store %arg5[%c7_380, %c1_381, %c0_382, %c0_383], %1479 {strides = array<i32>} : memref<14x3x16x128xf32, #tpu.memory_space<vmem>>, vector<1x1x16x128xf32>,
    %c7_384 = arith.constant 7 : index
    %c2_385 = arith.constant 2 : index
    %c0_386 = arith.constant 0 : index
    %c0_387 = arith.constant 0 : index
    %1480 = vector.load %arg5[%c7_384, %c2_385, %c0_386, %c0_387] : memref<14x3x16x128xf32, #tpu.memory_space<vmem>>, vector<1x1x16x128xf32>
    %1481 = vector.shape_cast %1480 : vector<1x1x16x128xf32> to vector<16x128xf32>
    %1482 = vector.shape_cast %1399 : vector<16x128xf32> to vector<1x1x16x128xf32>
    tpu.vector_store %arg5[%c7_384, %c2_385, %c0_386, %c0_387], %1482 {strides = array<i32>} : memref<14x3x16x128xf32, #tpu.memory_space<vmem>>, vector<1x1x16x128xf32>,
    %1483 = arith.truncf %1473 : vector<16x128xf32> to vector<16x128xbf16>
    %c7_388 = arith.constant 7 : index
    %c0_389 = arith.constant 0 : index
    %c0_390 = arith.constant 0 : index
    %1484 = vector.load %arg6[%c7_388, %c0_389, %c0_390] : memref<14x16x128xbf16, #tpu.memory_space<vmem>>, vector<1x16x128xbf16>
    %1485 = vector.shape_cast %1484 : vector<1x16x128xbf16> to vector<16x128xbf16>
    %1486 = vector.shape_cast %1483 : vector<16x128xbf16> to vector<1x16x128xbf16>
    tpu.vector_store %arg6[%c7_388, %c0_389, %c0_390], %1486 {strides = array<i32>} : memref<14x16x128xbf16, #tpu.memory_space<vmem>>, vector<1x16x128xbf16>,
    %c14_i32_391 = arith.constant 14 : i32
    %1487 = arith.muli %arg0, %c14_i32_391 : i32
    %c8_i32_392 = arith.constant 8 : i32
    %1488 = arith.addi %1487, %c8_i32_392 : i32
    %c9_i32_393 = arith.constant 9 : i32
    %1489 = arith.muli %1488, %c9_i32_393 : i32
    %c0_i32_394 = arith.constant 0 : i32
    %1490 = arith.addi %1489, %c0_i32_394 : i32
    %1491 = arith.index_cast %1490 : i32 to index
    %1492 = memref.load %arg3[%1491] : memref<252xf32, #tpu.memory_space<smem>>
    %c1_i32_395 = arith.constant 1 : i32
    %1493 = arith.addi %1489, %c1_i32_395 : i32
    %1494 = arith.index_cast %1493 : i32 to index
    %1495 = memref.load %arg3[%1494] : memref<252xf32, #tpu.memory_space<smem>>
    %c2_i32_396 = arith.constant 2 : i32
    %1496 = arith.addi %1489, %c2_i32_396 : i32
    %1497 = arith.index_cast %1496 : i32 to index
    %1498 = memref.load %arg3[%1497] : memref<252xf32, #tpu.memory_space<smem>>
    %c3_i32_397 = arith.constant 3 : i32
    %1499 = arith.addi %1489, %c3_i32_397 : i32
    %1500 = arith.index_cast %1499 : i32 to index
    %1501 = memref.load %arg3[%1500] : memref<252xf32, #tpu.memory_space<smem>>
    %c4_i32_398 = arith.constant 4 : i32
    %1502 = arith.addi %1489, %c4_i32_398 : i32
    %1503 = arith.index_cast %1502 : i32 to index
    %1504 = memref.load %arg3[%1503] : memref<252xf32, #tpu.memory_space<smem>>
    %c5_i32_399 = arith.constant 5 : i32
    %1505 = arith.addi %1489, %c5_i32_399 : i32
    %1506 = arith.index_cast %1505 : i32 to index
    %1507 = memref.load %arg3[%1506] : memref<252xf32, #tpu.memory_space<smem>>
    %c6_i32_400 = arith.constant 6 : i32
    %1508 = arith.addi %1489, %c6_i32_400 : i32
    %1509 = arith.index_cast %1508 : i32 to index
    %1510 = memref.load %arg3[%1509] : memref<252xf32, #tpu.memory_space<smem>>
    %c7_i32_401 = arith.constant 7 : i32
    %1511 = arith.addi %1489, %c7_i32_401 : i32
    %1512 = arith.index_cast %1511 : i32 to index
    %1513 = memref.load %arg3[%1512] : memref<252xf32, #tpu.memory_space<smem>>
    %c8_i32_402 = arith.constant 8 : i32
    %1514 = arith.addi %1489, %c8_i32_402 : i32
    %1515 = arith.index_cast %1514 : i32 to index
    %1516 = memref.load %arg3[%1515] : memref<252xf32, #tpu.memory_space<smem>>
    %c0_i32_403 = arith.constant 0 : i32
    %1517 = arith.addi %1489, %c0_i32_403 : i32
    %1518 = arith.index_cast %1517 : i32 to index
    %1519 = memref.load %arg4[%1518] : memref<252xf32, #tpu.memory_space<smem>>
    %c1_i32_404 = arith.constant 1 : i32
    %1520 = arith.addi %1489, %c1_i32_404 : i32
    %1521 = arith.index_cast %1520 : i32 to index
    %1522 = memref.load %arg4[%1521] : memref<252xf32, #tpu.memory_space<smem>>
    %c2_i32_405 = arith.constant 2 : i32
    %1523 = arith.addi %1489, %c2_i32_405 : i32
    %1524 = arith.index_cast %1523 : i32 to index
    %1525 = memref.load %arg4[%1524] : memref<252xf32, #tpu.memory_space<smem>>
    %c3_i32_406 = arith.constant 3 : i32
    %1526 = arith.addi %1489, %c3_i32_406 : i32
    %1527 = arith.index_cast %1526 : i32 to index
    %1528 = memref.load %arg4[%1527] : memref<252xf32, #tpu.memory_space<smem>>
    %c4_i32_407 = arith.constant 4 : i32
    %1529 = arith.addi %1489, %c4_i32_407 : i32
    %1530 = arith.index_cast %1529 : i32 to index
    %1531 = memref.load %arg4[%1530] : memref<252xf32, #tpu.memory_space<smem>>
    %c5_i32_408 = arith.constant 5 : i32
    %1532 = arith.addi %1489, %c5_i32_408 : i32
    %1533 = arith.index_cast %1532 : i32 to index
    %1534 = memref.load %arg4[%1533] : memref<252xf32, #tpu.memory_space<smem>>
    %c6_i32_409 = arith.constant 6 : i32
    %1535 = arith.addi %1489, %c6_i32_409 : i32
    %1536 = arith.index_cast %1535 : i32 to index
    %1537 = memref.load %arg4[%1536] : memref<252xf32, #tpu.memory_space<smem>>
    %c7_i32_410 = arith.constant 7 : i32
    %1538 = arith.addi %1489, %c7_i32_410 : i32
    %1539 = arith.index_cast %1538 : i32 to index
    %1540 = memref.load %arg4[%1539] : memref<252xf32, #tpu.memory_space<smem>>
    %c8_i32_411 = arith.constant 8 : i32
    %1541 = arith.addi %1489, %c8_i32_411 : i32
    %1542 = arith.index_cast %1541 : i32 to index
    %1543 = memref.load %arg4[%1542] : memref<252xf32, #tpu.memory_space<smem>>
    %1544 = vector.broadcast %1492 : f32 to vector<16x128xf32>
    %1545 = arith.mulf %1, %1544 : vector<16x128xf32>
    %1546 = vector.broadcast %1501 : f32 to vector<16x128xf32>
    %1547 = arith.mulf %3, %1546 : vector<16x128xf32>
    %1548 = arith.addf %1545, %1547 : vector<16x128xf32>
    %1549 = vector.broadcast %1510 : f32 to vector<16x128xf32>
    %1550 = arith.mulf %5, %1549 : vector<16x128xf32>
    %1551 = arith.addf %1548, %1550 : vector<16x128xf32>
    %1552 = vector.broadcast %1519 : f32 to vector<16x128xf32>
    %1553 = arith.addf %1551, %1552 : vector<16x128xf32>
    %1554 = vector.broadcast %1495 : f32 to vector<16x128xf32>
    %1555 = arith.mulf %1, %1554 : vector<16x128xf32>
    %1556 = vector.broadcast %1504 : f32 to vector<16x128xf32>
    %1557 = arith.mulf %3, %1556 : vector<16x128xf32>
    %1558 = arith.addf %1555, %1557 : vector<16x128xf32>
    %1559 = vector.broadcast %1513 : f32 to vector<16x128xf32>
    %1560 = arith.mulf %5, %1559 : vector<16x128xf32>
    %1561 = arith.addf %1558, %1560 : vector<16x128xf32>
    %1562 = vector.broadcast %1522 : f32 to vector<16x128xf32>
    %1563 = arith.addf %1561, %1562 : vector<16x128xf32>
    %1564 = vector.broadcast %1498 : f32 to vector<16x128xf32>
    %1565 = arith.mulf %1, %1564 : vector<16x128xf32>
    %1566 = vector.broadcast %1507 : f32 to vector<16x128xf32>
    %1567 = arith.mulf %3, %1566 : vector<16x128xf32>
    %1568 = arith.addf %1565, %1567 : vector<16x128xf32>
    %1569 = vector.broadcast %1516 : f32 to vector<16x128xf32>
    %1570 = arith.mulf %5, %1569 : vector<16x128xf32>
    %1571 = arith.addf %1568, %1570 : vector<16x128xf32>
    %1572 = vector.broadcast %1525 : f32 to vector<16x128xf32>
    %1573 = arith.addf %1571, %1572 : vector<16x128xf32>
    %1574 = tpu.reciprocal %1573 {approx = true} : vector<16x128xf32> -> vector<16x128xf32>
    %cst_412 = arith.constant 1.73205078 : f32
    %1575 = vector.broadcast %cst_412 : f32 to vector<16x128xf32>
    %1576 = arith.mulf %1575, %1574 : vector<16x128xf32>
    %1577 = arith.mulf %1553, %1576 : vector<16x128xf32>
    %1578 = arith.mulf %1563, %1576 : vector<16x128xf32>
    %cst_413 = arith.constant -1.01010096 : f32
    %1579 = vector.broadcast %cst_413 : f32 to vector<16x128xf32>
    %1580 = arith.divf %1579, %1573 : vector<16x128xf32>
    %cst_414 = arith.constant 1.01010096 : f32
    %1581 = vector.broadcast %cst_414 : f32 to vector<16x128xf32>
    %1582 = arith.addf %1581, %1580 : vector<16x128xf32>
    %1583 = vector.broadcast %1537 : f32 to vector<16x128xf32>
    %1584 = arith.subf %1583, %1 : vector<16x128xf32>
    %1585 = vector.broadcast %1540 : f32 to vector<16x128xf32>
    %1586 = arith.subf %1585, %3 : vector<16x128xf32>
    %1587 = vector.broadcast %1543 : f32 to vector<16x128xf32>
    %1588 = arith.subf %1587, %5 : vector<16x128xf32>
    %1589 = arith.mulf %1584, %1584 : vector<16x128xf32>
    %1590 = arith.mulf %1586, %1586 : vector<16x128xf32>
    %1591 = arith.addf %1589, %1590 : vector<16x128xf32>
    %1592 = arith.mulf %1588, %1588 : vector<16x128xf32>
    %1593 = arith.addf %1591, %1592 : vector<16x128xf32>
    %cst_415 = arith.constant 9.99999996E-13 : f32
    %1594 = vector.broadcast %cst_415 : f32 to vector<16x128xf32>
    %1595 = arith.addf %1593, %1594 : vector<16x128xf32>
    %1596 = math.rsqrt %1595 : vector<16x128xf32>
    %1597 = arith.mulf %1584, %1596 : vector<16x128xf32>
    %1598 = arith.mulf %1586, %1596 : vector<16x128xf32>
    %1599 = arith.mulf %1588, %1596 : vector<16x128xf32>
    %1600 = arith.mulf %20, %1597 : vector<16x128xf32>
    %1601 = arith.mulf %21, %1598 : vector<16x128xf32>
    %1602 = arith.addf %1600, %1601 : vector<16x128xf32>
    %1603 = arith.mulf %22, %1599 : vector<16x128xf32>
    %1604 = arith.addf %1602, %1603 : vector<16x128xf32>
    %1605 = vector.broadcast %1528 : f32 to vector<16x128xf32>
    %1606 = arith.subf %1605, %1 : vector<16x128xf32>
    %1607 = vector.broadcast %1531 : f32 to vector<16x128xf32>
    %1608 = arith.subf %1607, %3 : vector<16x128xf32>
    %1609 = vector.broadcast %1534 : f32 to vector<16x128xf32>
    %1610 = arith.subf %1609, %5 : vector<16x128xf32>
    %1611 = arith.mulf %1606, %1606 : vector<16x128xf32>
    %1612 = arith.mulf %1608, %1608 : vector<16x128xf32>
    %1613 = arith.addf %1611, %1612 : vector<16x128xf32>
    %1614 = arith.mulf %1610, %1610 : vector<16x128xf32>
    %1615 = arith.addf %1613, %1614 : vector<16x128xf32>
    %cst_416 = arith.constant 9.99999996E-13 : f32
    %1616 = vector.broadcast %cst_416 : f32 to vector<16x128xf32>
    %1617 = arith.addf %1615, %1616 : vector<16x128xf32>
    %1618 = math.rsqrt %1617 : vector<16x128xf32>
    %1619 = arith.mulf %1606, %1618 : vector<16x128xf32>
    %1620 = arith.mulf %1608, %1618 : vector<16x128xf32>
    %1621 = arith.mulf %1610, %1618 : vector<16x128xf32>
    %1622 = arith.mulf %20, %1619 : vector<16x128xf32>
    %1623 = arith.mulf %21, %1620 : vector<16x128xf32>
    %1624 = arith.addf %1622, %1623 : vector<16x128xf32>
    %1625 = arith.mulf %22, %1621 : vector<16x128xf32>
    %1626 = arith.addf %1624, %1625 : vector<16x128xf32>
    %1627 = arith.mulf %1597, %1619 : vector<16x128xf32>
    %1628 = arith.mulf %1598, %1620 : vector<16x128xf32>
    %1629 = arith.addf %1627, %1628 : vector<16x128xf32>
    %1630 = arith.mulf %1599, %1621 : vector<16x128xf32>
    %1631 = arith.addf %1629, %1630 : vector<16x128xf32>
    %cst_417 = arith.constant 2.000000e+00 : f32
    %1632 = vector.broadcast %cst_417 : f32 to vector<16x128xf32>
    %1633 = arith.mulf %1632, %1604 : vector<16x128xf32>
    %1634 = arith.mulf %1633, %1626 : vector<16x128xf32>
    %1635 = arith.subf %1634, %1631 : vector<16x128xf32>
    %cst_418 = arith.constant 0.000000e+00 : f32
    %1636 = vector.broadcast %cst_418 : f32 to vector<16x128xf32>
    %1637 = arith.maximumf %1635, %1636 : vector<16x128xf32>
    %cst_419 = arith.constant 0.000000e+00 : f32
    %1638 = vector.broadcast %cst_419 : f32 to vector<16x128xf32>
    %1639 = arith.cmpf ogt, %1604, %1638 : vector<16x128xf32>
    %cst_420 = arith.constant 0.000000e+00 : f32
    %1640 = vector.broadcast %cst_420 : f32 to vector<16x128xf32>
    %1641 = arith.select %1639, %1637, %1640 : vector<16x128xi1>, vector<16x128xf32>
    %1642 = arith.mulf %1641, %1641 : vector<16x128xf32>
    %1643 = arith.mulf %1642, %1642 : vector<16x128xf32>
    %1644 = arith.mulf %1643, %1643 : vector<16x128xf32>
    %1645 = arith.mulf %1644, %1644 : vector<16x128xf32>
    %1646 = arith.mulf %1645, %1645 : vector<16x128xf32>
    %1647 = arith.mulf %1646, %1646 : vector<16x128xf32>
    %cst_421 = arith.constant 0.000000e+00 : f32
    %1648 = vector.broadcast %cst_421 : f32 to vector<16x128xf32>
    %1649 = arith.maximumf %1604, %1648 : vector<16x128xf32>
    %cst_422 = arith.constant 3.000000e-01 : f32
    %1650 = vector.broadcast %cst_422 : f32 to vector<16x128xf32>
    %1651 = arith.mulf %1650, %1649 : vector<16x128xf32>
    %cst_423 = arith.constant 5.000000e-01 : f32
    %1652 = vector.broadcast %cst_423 : f32 to vector<16x128xf32>
    %1653 = arith.addf %1652, %1651 : vector<16x128xf32>
    %cst_424 = arith.constant 2.000000e-01 : f32
    %1654 = vector.broadcast %cst_424 : f32 to vector<16x128xf32>
    %1655 = arith.mulf %1654, %1647 : vector<16x128xf32>
    %1656 = arith.addf %1653, %1655 : vector<16x128xf32>
    %c8 = arith.constant 8 : index
    %c0_425 = arith.constant 0 : index
    %c0_426 = arith.constant 0 : index
    %c0_427 = arith.constant 0 : index
    %1657 = vector.load %arg5[%c8, %c0_425, %c0_426, %c0_427] : memref<14x3x16x128xf32, #tpu.memory_space<vmem>>, vector<1x1x16x128xf32>
    %1658 = vector.shape_cast %1657 : vector<1x1x16x128xf32> to vector<16x128xf32>
    %1659 = vector.shape_cast %1577 : vector<16x128xf32> to vector<1x1x16x128xf32>
    tpu.vector_store %arg5[%c8, %c0_425, %c0_426, %c0_427], %1659 {strides = array<i32>} : memref<14x3x16x128xf32, #tpu.memory_space<vmem>>, vector<1x1x16x128xf32>,
    %c8_428 = arith.constant 8 : index
    %c1_429 = arith.constant 1 : index
    %c0_430 = arith.constant 0 : index
    %c0_431 = arith.constant 0 : index
    %1660 = vector.load %arg5[%c8_428, %c1_429, %c0_430, %c0_431] : memref<14x3x16x128xf32, #tpu.memory_space<vmem>>, vector<1x1x16x128xf32>
    %1661 = vector.shape_cast %1660 : vector<1x1x16x128xf32> to vector<16x128xf32>
    %1662 = vector.shape_cast %1578 : vector<16x128xf32> to vector<1x1x16x128xf32>
    tpu.vector_store %arg5[%c8_428, %c1_429, %c0_430, %c0_431], %1662 {strides = array<i32>} : memref<14x3x16x128xf32, #tpu.memory_space<vmem>>, vector<1x1x16x128xf32>,
    %c8_432 = arith.constant 8 : index
    %c2_433 = arith.constant 2 : index
    %c0_434 = arith.constant 0 : index
    %c0_435 = arith.constant 0 : index
    %1663 = vector.load %arg5[%c8_432, %c2_433, %c0_434, %c0_435] : memref<14x3x16x128xf32, #tpu.memory_space<vmem>>, vector<1x1x16x128xf32>
    %1664 = vector.shape_cast %1663 : vector<1x1x16x128xf32> to vector<16x128xf32>
    %1665 = vector.shape_cast %1582 : vector<16x128xf32> to vector<1x1x16x128xf32>
    tpu.vector_store %arg5[%c8_432, %c2_433, %c0_434, %c0_435], %1665 {strides = array<i32>} : memref<14x3x16x128xf32, #tpu.memory_space<vmem>>, vector<1x1x16x128xf32>,
    %1666 = arith.truncf %1656 : vector<16x128xf32> to vector<16x128xbf16>
    %c8_436 = arith.constant 8 : index
    %c0_437 = arith.constant 0 : index
    %c0_438 = arith.constant 0 : index
    %1667 = vector.load %arg6[%c8_436, %c0_437, %c0_438] : memref<14x16x128xbf16, #tpu.memory_space<vmem>>, vector<1x16x128xbf16>
    %1668 = vector.shape_cast %1667 : vector<1x16x128xbf16> to vector<16x128xbf16>
    %1669 = vector.shape_cast %1666 : vector<16x128xbf16> to vector<1x16x128xbf16>
    tpu.vector_store %arg6[%c8_436, %c0_437, %c0_438], %1669 {strides = array<i32>} : memref<14x16x128xbf16, #tpu.memory_space<vmem>>, vector<1x16x128xbf16>,
    %c14_i32_439 = arith.constant 14 : i32
    %1670 = arith.muli %arg0, %c14_i32_439 : i32
    %c9_i32_440 = arith.constant 9 : i32
    %1671 = arith.addi %1670, %c9_i32_440 : i32
    %c9_i32_441 = arith.constant 9 : i32
    %1672 = arith.muli %1671, %c9_i32_441 : i32
    %c0_i32_442 = arith.constant 0 : i32
    %1673 = arith.addi %1672, %c0_i32_442 : i32
    %1674 = arith.index_cast %1673 : i32 to index
    %1675 = memref.load %arg3[%1674] : memref<252xf32, #tpu.memory_space<smem>>
    %c1_i32_443 = arith.constant 1 : i32
    %1676 = arith.addi %1672, %c1_i32_443 : i32
    %1677 = arith.index_cast %1676 : i32 to index
    %1678 = memref.load %arg3[%1677] : memref<252xf32, #tpu.memory_space<smem>>
    %c2_i32_444 = arith.constant 2 : i32
    %1679 = arith.addi %1672, %c2_i32_444 : i32
    %1680 = arith.index_cast %1679 : i32 to index
    %1681 = memref.load %arg3[%1680] : memref<252xf32, #tpu.memory_space<smem>>
    %c3_i32_445 = arith.constant 3 : i32
    %1682 = arith.addi %1672, %c3_i32_445 : i32
    %1683 = arith.index_cast %1682 : i32 to index
    %1684 = memref.load %arg3[%1683] : memref<252xf32, #tpu.memory_space<smem>>
    %c4_i32_446 = arith.constant 4 : i32
    %1685 = arith.addi %1672, %c4_i32_446 : i32
    %1686 = arith.index_cast %1685 : i32 to index
    %1687 = memref.load %arg3[%1686] : memref<252xf32, #tpu.memory_space<smem>>
    %c5_i32_447 = arith.constant 5 : i32
    %1688 = arith.addi %1672, %c5_i32_447 : i32
    %1689 = arith.index_cast %1688 : i32 to index
    %1690 = memref.load %arg3[%1689] : memref<252xf32, #tpu.memory_space<smem>>
    %c6_i32_448 = arith.constant 6 : i32
    %1691 = arith.addi %1672, %c6_i32_448 : i32
    %1692 = arith.index_cast %1691 : i32 to index
    %1693 = memref.load %arg3[%1692] : memref<252xf32, #tpu.memory_space<smem>>
    %c7_i32_449 = arith.constant 7 : i32
    %1694 = arith.addi %1672, %c7_i32_449 : i32
    %1695 = arith.index_cast %1694 : i32 to index
    %1696 = memref.load %arg3[%1695] : memref<252xf32, #tpu.memory_space<smem>>
    %c8_i32_450 = arith.constant 8 : i32
    %1697 = arith.addi %1672, %c8_i32_450 : i32
    %1698 = arith.index_cast %1697 : i32 to index
    %1699 = memref.load %arg3[%1698] : memref<252xf32, #tpu.memory_space<smem>>
    %c0_i32_451 = arith.constant 0 : i32
    %1700 = arith.addi %1672, %c0_i32_451 : i32
    %1701 = arith.index_cast %1700 : i32 to index
    %1702 = memref.load %arg4[%1701] : memref<252xf32, #tpu.memory_space<smem>>
    %c1_i32_452 = arith.constant 1 : i32
    %1703 = arith.addi %1672, %c1_i32_452 : i32
    %1704 = arith.index_cast %1703 : i32 to index
    %1705 = memref.load %arg4[%1704] : memref<252xf32, #tpu.memory_space<smem>>
    %c2_i32_453 = arith.constant 2 : i32
    %1706 = arith.addi %1672, %c2_i32_453 : i32
    %1707 = arith.index_cast %1706 : i32 to index
    %1708 = memref.load %arg4[%1707] : memref<252xf32, #tpu.memory_space<smem>>
    %c3_i32_454 = arith.constant 3 : i32
    %1709 = arith.addi %1672, %c3_i32_454 : i32
    %1710 = arith.index_cast %1709 : i32 to index
    %1711 = memref.load %arg4[%1710] : memref<252xf32, #tpu.memory_space<smem>>
    %c4_i32_455 = arith.constant 4 : i32
    %1712 = arith.addi %1672, %c4_i32_455 : i32
    %1713 = arith.index_cast %1712 : i32 to index
    %1714 = memref.load %arg4[%1713] : memref<252xf32, #tpu.memory_space<smem>>
    %c5_i32_456 = arith.constant 5 : i32
    %1715 = arith.addi %1672, %c5_i32_456 : i32
    %1716 = arith.index_cast %1715 : i32 to index
    %1717 = memref.load %arg4[%1716] : memref<252xf32, #tpu.memory_space<smem>>
    %c6_i32_457 = arith.constant 6 : i32
    %1718 = arith.addi %1672, %c6_i32_457 : i32
    %1719 = arith.index_cast %1718 : i32 to index
    %1720 = memref.load %arg4[%1719] : memref<252xf32, #tpu.memory_space<smem>>
    %c7_i32_458 = arith.constant 7 : i32
    %1721 = arith.addi %1672, %c7_i32_458 : i32
    %1722 = arith.index_cast %1721 : i32 to index
    %1723 = memref.load %arg4[%1722] : memref<252xf32, #tpu.memory_space<smem>>
    %c8_i32_459 = arith.constant 8 : i32
    %1724 = arith.addi %1672, %c8_i32_459 : i32
    %1725 = arith.index_cast %1724 : i32 to index
    %1726 = memref.load %arg4[%1725] : memref<252xf32, #tpu.memory_space<smem>>
    %1727 = vector.broadcast %1675 : f32 to vector<16x128xf32>
    %1728 = arith.mulf %1, %1727 : vector<16x128xf32>
    %1729 = vector.broadcast %1684 : f32 to vector<16x128xf32>
    %1730 = arith.mulf %3, %1729 : vector<16x128xf32>
    %1731 = arith.addf %1728, %1730 : vector<16x128xf32>
    %1732 = vector.broadcast %1693 : f32 to vector<16x128xf32>
    %1733 = arith.mulf %5, %1732 : vector<16x128xf32>
    %1734 = arith.addf %1731, %1733 : vector<16x128xf32>
    %1735 = vector.broadcast %1702 : f32 to vector<16x128xf32>
    %1736 = arith.addf %1734, %1735 : vector<16x128xf32>
    %1737 = vector.broadcast %1678 : f32 to vector<16x128xf32>
    %1738 = arith.mulf %1, %1737 : vector<16x128xf32>
    %1739 = vector.broadcast %1687 : f32 to vector<16x128xf32>
    %1740 = arith.mulf %3, %1739 : vector<16x128xf32>
    %1741 = arith.addf %1738, %1740 : vector<16x128xf32>
    %1742 = vector.broadcast %1696 : f32 to vector<16x128xf32>
    %1743 = arith.mulf %5, %1742 : vector<16x128xf32>
    %1744 = arith.addf %1741, %1743 : vector<16x128xf32>
    %1745 = vector.broadcast %1705 : f32 to vector<16x128xf32>
    %1746 = arith.addf %1744, %1745 : vector<16x128xf32>
    %1747 = vector.broadcast %1681 : f32 to vector<16x128xf32>
    %1748 = arith.mulf %1, %1747 : vector<16x128xf32>
    %1749 = vector.broadcast %1690 : f32 to vector<16x128xf32>
    %1750 = arith.mulf %3, %1749 : vector<16x128xf32>
    %1751 = arith.addf %1748, %1750 : vector<16x128xf32>
    %1752 = vector.broadcast %1699 : f32 to vector<16x128xf32>
    %1753 = arith.mulf %5, %1752 : vector<16x128xf32>
    %1754 = arith.addf %1751, %1753 : vector<16x128xf32>
    %1755 = vector.broadcast %1708 : f32 to vector<16x128xf32>
    %1756 = arith.addf %1754, %1755 : vector<16x128xf32>
    %1757 = tpu.reciprocal %1756 {approx = true} : vector<16x128xf32> -> vector<16x128xf32>
    %cst_460 = arith.constant 1.73205078 : f32
    %1758 = vector.broadcast %cst_460 : f32 to vector<16x128xf32>
    %1759 = arith.mulf %1758, %1757 : vector<16x128xf32>
    %1760 = arith.mulf %1736, %1759 : vector<16x128xf32>
    %1761 = arith.mulf %1746, %1759 : vector<16x128xf32>
    %cst_461 = arith.constant -1.01010096 : f32
    %1762 = vector.broadcast %cst_461 : f32 to vector<16x128xf32>
    %1763 = arith.divf %1762, %1756 : vector<16x128xf32>
    %cst_462 = arith.constant 1.01010096 : f32
    %1764 = vector.broadcast %cst_462 : f32 to vector<16x128xf32>
    %1765 = arith.addf %1764, %1763 : vector<16x128xf32>
    %1766 = vector.broadcast %1720 : f32 to vector<16x128xf32>
    %1767 = arith.subf %1766, %1 : vector<16x128xf32>
    %1768 = vector.broadcast %1723 : f32 to vector<16x128xf32>
    %1769 = arith.subf %1768, %3 : vector<16x128xf32>
    %1770 = vector.broadcast %1726 : f32 to vector<16x128xf32>
    %1771 = arith.subf %1770, %5 : vector<16x128xf32>
    %1772 = arith.mulf %1767, %1767 : vector<16x128xf32>
    %1773 = arith.mulf %1769, %1769 : vector<16x128xf32>
    %1774 = arith.addf %1772, %1773 : vector<16x128xf32>
    %1775 = arith.mulf %1771, %1771 : vector<16x128xf32>
    %1776 = arith.addf %1774, %1775 : vector<16x128xf32>
    %cst_463 = arith.constant 9.99999996E-13 : f32
    %1777 = vector.broadcast %cst_463 : f32 to vector<16x128xf32>
    %1778 = arith.addf %1776, %1777 : vector<16x128xf32>
    %1779 = math.rsqrt %1778 : vector<16x128xf32>
    %1780 = arith.mulf %1767, %1779 : vector<16x128xf32>
    %1781 = arith.mulf %1769, %1779 : vector<16x128xf32>
    %1782 = arith.mulf %1771, %1779 : vector<16x128xf32>
    %1783 = arith.mulf %20, %1780 : vector<16x128xf32>
    %1784 = arith.mulf %21, %1781 : vector<16x128xf32>
    %1785 = arith.addf %1783, %1784 : vector<16x128xf32>
    %1786 = arith.mulf %22, %1782 : vector<16x128xf32>
    %1787 = arith.addf %1785, %1786 : vector<16x128xf32>
    %1788 = vector.broadcast %1711 : f32 to vector<16x128xf32>
    %1789 = arith.subf %1788, %1 : vector<16x128xf32>
    %1790 = vector.broadcast %1714 : f32 to vector<16x128xf32>
    %1791 = arith.subf %1790, %3 : vector<16x128xf32>
    %1792 = vector.broadcast %1717 : f32 to vector<16x128xf32>
    %1793 = arith.subf %1792, %5 : vector<16x128xf32>
    %1794 = arith.mulf %1789, %1789 : vector<16x128xf32>
    %1795 = arith.mulf %1791, %1791 : vector<16x128xf32>
    %1796 = arith.addf %1794, %1795 : vector<16x128xf32>
    %1797 = arith.mulf %1793, %1793 : vector<16x128xf32>
    %1798 = arith.addf %1796, %1797 : vector<16x128xf32>
    %cst_464 = arith.constant 9.99999996E-13 : f32
    %1799 = vector.broadcast %cst_464 : f32 to vector<16x128xf32>
    %1800 = arith.addf %1798, %1799 : vector<16x128xf32>
    %1801 = math.rsqrt %1800 : vector<16x128xf32>
    %1802 = arith.mulf %1789, %1801 : vector<16x128xf32>
    %1803 = arith.mulf %1791, %1801 : vector<16x128xf32>
    %1804 = arith.mulf %1793, %1801 : vector<16x128xf32>
    %1805 = arith.mulf %20, %1802 : vector<16x128xf32>
    %1806 = arith.mulf %21, %1803 : vector<16x128xf32>
    %1807 = arith.addf %1805, %1806 : vector<16x128xf32>
    %1808 = arith.mulf %22, %1804 : vector<16x128xf32>
    %1809 = arith.addf %1807, %1808 : vector<16x128xf32>
    %1810 = arith.mulf %1780, %1802 : vector<16x128xf32>
    %1811 = arith.mulf %1781, %1803 : vector<16x128xf32>
    %1812 = arith.addf %1810, %1811 : vector<16x128xf32>
    %1813 = arith.mulf %1782, %1804 : vector<16x128xf32>
    %1814 = arith.addf %1812, %1813 : vector<16x128xf32>
    %cst_465 = arith.constant 2.000000e+00 : f32
    %1815 = vector.broadcast %cst_465 : f32 to vector<16x128xf32>
    %1816 = arith.mulf %1815, %1787 : vector<16x128xf32>
    %1817 = arith.mulf %1816, %1809 : vector<16x128xf32>
    %1818 = arith.subf %1817, %1814 : vector<16x128xf32>
    %cst_466 = arith.constant 0.000000e+00 : f32
    %1819 = vector.broadcast %cst_466 : f32 to vector<16x128xf32>
    %1820 = arith.maximumf %1818, %1819 : vector<16x128xf32>
    %cst_467 = arith.constant 0.000000e+00 : f32
    %1821 = vector.broadcast %cst_467 : f32 to vector<16x128xf32>
    %1822 = arith.cmpf ogt, %1787, %1821 : vector<16x128xf32>
    %cst_468 = arith.constant 0.000000e+00 : f32
    %1823 = vector.broadcast %cst_468 : f32 to vector<16x128xf32>
    %1824 = arith.select %1822, %1820, %1823 : vector<16x128xi1>, vector<16x128xf32>
    %1825 = arith.mulf %1824, %1824 : vector<16x128xf32>
    %1826 = arith.mulf %1825, %1825 : vector<16x128xf32>
    %1827 = arith.mulf %1826, %1826 : vector<16x128xf32>
    %1828 = arith.mulf %1827, %1827 : vector<16x128xf32>
    %1829 = arith.mulf %1828, %1828 : vector<16x128xf32>
    %1830 = arith.mulf %1829, %1829 : vector<16x128xf32>
    %cst_469 = arith.constant 0.000000e+00 : f32
    %1831 = vector.broadcast %cst_469 : f32 to vector<16x128xf32>
    %1832 = arith.maximumf %1787, %1831 : vector<16x128xf32>
    %cst_470 = arith.constant 3.000000e-01 : f32
    %1833 = vector.broadcast %cst_470 : f32 to vector<16x128xf32>
    %1834 = arith.mulf %1833, %1832 : vector<16x128xf32>
    %cst_471 = arith.constant 5.000000e-01 : f32
    %1835 = vector.broadcast %cst_471 : f32 to vector<16x128xf32>
    %1836 = arith.addf %1835, %1834 : vector<16x128xf32>
    %cst_472 = arith.constant 2.000000e-01 : f32
    %1837 = vector.broadcast %cst_472 : f32 to vector<16x128xf32>
    %1838 = arith.mulf %1837, %1830 : vector<16x128xf32>
    %1839 = arith.addf %1836, %1838 : vector<16x128xf32>
    %c9 = arith.constant 9 : index
    %c0_473 = arith.constant 0 : index
    %c0_474 = arith.constant 0 : index
    %c0_475 = arith.constant 0 : index
    %1840 = vector.load %arg5[%c9, %c0_473, %c0_474, %c0_475] : memref<14x3x16x128xf32, #tpu.memory_space<vmem>>, vector<1x1x16x128xf32>
    %1841 = vector.shape_cast %1840 : vector<1x1x16x128xf32> to vector<16x128xf32>
    %1842 = vector.shape_cast %1760 : vector<16x128xf32> to vector<1x1x16x128xf32>
    tpu.vector_store %arg5[%c9, %c0_473, %c0_474, %c0_475], %1842 {strides = array<i32>} : memref<14x3x16x128xf32, #tpu.memory_space<vmem>>, vector<1x1x16x128xf32>,
    %c9_476 = arith.constant 9 : index
    %c1_477 = arith.constant 1 : index
    %c0_478 = arith.constant 0 : index
    %c0_479 = arith.constant 0 : index
    %1843 = vector.load %arg5[%c9_476, %c1_477, %c0_478, %c0_479] : memref<14x3x16x128xf32, #tpu.memory_space<vmem>>, vector<1x1x16x128xf32>
    %1844 = vector.shape_cast %1843 : vector<1x1x16x128xf32> to vector<16x128xf32>
    %1845 = vector.shape_cast %1761 : vector<16x128xf32> to vector<1x1x16x128xf32>
    tpu.vector_store %arg5[%c9_476, %c1_477, %c0_478, %c0_479], %1845 {strides = array<i32>} : memref<14x3x16x128xf32, #tpu.memory_space<vmem>>, vector<1x1x16x128xf32>,
    %c9_480 = arith.constant 9 : index
    %c2_481 = arith.constant 2 : index
    %c0_482 = arith.constant 0 : index
    %c0_483 = arith.constant 0 : index
    %1846 = vector.load %arg5[%c9_480, %c2_481, %c0_482, %c0_483] : memref<14x3x16x128xf32, #tpu.memory_space<vmem>>, vector<1x1x16x128xf32>
    %1847 = vector.shape_cast %1846 : vector<1x1x16x128xf32> to vector<16x128xf32>
    %1848 = vector.shape_cast %1765 : vector<16x128xf32> to vector<1x1x16x128xf32>
    tpu.vector_store %arg5[%c9_480, %c2_481, %c0_482, %c0_483], %1848 {strides = array<i32>} : memref<14x3x16x128xf32, #tpu.memory_space<vmem>>, vector<1x1x16x128xf32>,
    %1849 = arith.truncf %1839 : vector<16x128xf32> to vector<16x128xbf16>
    %c9_484 = arith.constant 9 : index
    %c0_485 = arith.constant 0 : index
    %c0_486 = arith.constant 0 : index
    %1850 = vector.load %arg6[%c9_484, %c0_485, %c0_486] : memref<14x16x128xbf16, #tpu.memory_space<vmem>>, vector<1x16x128xbf16>
    %1851 = vector.shape_cast %1850 : vector<1x16x128xbf16> to vector<16x128xbf16>
    %1852 = vector.shape_cast %1849 : vector<16x128xbf16> to vector<1x16x128xbf16>
    tpu.vector_store %arg6[%c9_484, %c0_485, %c0_486], %1852 {strides = array<i32>} : memref<14x16x128xbf16, #tpu.memory_space<vmem>>, vector<1x16x128xbf16>,
    %c14_i32_487 = arith.constant 14 : i32
    %1853 = arith.muli %arg0, %c14_i32_487 : i32
    %c10_i32 = arith.constant 10 : i32
    %1854 = arith.addi %1853, %c10_i32 : i32
    %c9_i32_488 = arith.constant 9 : i32
    %1855 = arith.muli %1854, %c9_i32_488 : i32
    %c0_i32_489 = arith.constant 0 : i32
    %1856 = arith.addi %1855, %c0_i32_489 : i32
    %1857 = arith.index_cast %1856 : i32 to index
    %1858 = memref.load %arg3[%1857] : memref<252xf32, #tpu.memory_space<smem>>
    %c1_i32_490 = arith.constant 1 : i32
    %1859 = arith.addi %1855, %c1_i32_490 : i32
    %1860 = arith.index_cast %1859 : i32 to index
    %1861 = memref.load %arg3[%1860] : memref<252xf32, #tpu.memory_space<smem>>
    %c2_i32_491 = arith.constant 2 : i32
    %1862 = arith.addi %1855, %c2_i32_491 : i32
    %1863 = arith.index_cast %1862 : i32 to index
    %1864 = memref.load %arg3[%1863] : memref<252xf32, #tpu.memory_space<smem>>
    %c3_i32_492 = arith.constant 3 : i32
    %1865 = arith.addi %1855, %c3_i32_492 : i32
    %1866 = arith.index_cast %1865 : i32 to index
    %1867 = memref.load %arg3[%1866] : memref<252xf32, #tpu.memory_space<smem>>
    %c4_i32_493 = arith.constant 4 : i32
    %1868 = arith.addi %1855, %c4_i32_493 : i32
    %1869 = arith.index_cast %1868 : i32 to index
    %1870 = memref.load %arg3[%1869] : memref<252xf32, #tpu.memory_space<smem>>
    %c5_i32_494 = arith.constant 5 : i32
    %1871 = arith.addi %1855, %c5_i32_494 : i32
    %1872 = arith.index_cast %1871 : i32 to index
    %1873 = memref.load %arg3[%1872] : memref<252xf32, #tpu.memory_space<smem>>
    %c6_i32_495 = arith.constant 6 : i32
    %1874 = arith.addi %1855, %c6_i32_495 : i32
    %1875 = arith.index_cast %1874 : i32 to index
    %1876 = memref.load %arg3[%1875] : memref<252xf32, #tpu.memory_space<smem>>
    %c7_i32_496 = arith.constant 7 : i32
    %1877 = arith.addi %1855, %c7_i32_496 : i32
    %1878 = arith.index_cast %1877 : i32 to index
    %1879 = memref.load %arg3[%1878] : memref<252xf32, #tpu.memory_space<smem>>
    %c8_i32_497 = arith.constant 8 : i32
    %1880 = arith.addi %1855, %c8_i32_497 : i32
    %1881 = arith.index_cast %1880 : i32 to index
    %1882 = memref.load %arg3[%1881] : memref<252xf32, #tpu.memory_space<smem>>
    %c0_i32_498 = arith.constant 0 : i32
    %1883 = arith.addi %1855, %c0_i32_498 : i32
    %1884 = arith.index_cast %1883 : i32 to index
    %1885 = memref.load %arg4[%1884] : memref<252xf32, #tpu.memory_space<smem>>
    %c1_i32_499 = arith.constant 1 : i32
    %1886 = arith.addi %1855, %c1_i32_499 : i32
    %1887 = arith.index_cast %1886 : i32 to index
    %1888 = memref.load %arg4[%1887] : memref<252xf32, #tpu.memory_space<smem>>
    %c2_i32_500 = arith.constant 2 : i32
    %1889 = arith.addi %1855, %c2_i32_500 : i32
    %1890 = arith.index_cast %1889 : i32 to index
    %1891 = memref.load %arg4[%1890] : memref<252xf32, #tpu.memory_space<smem>>
    %c3_i32_501 = arith.constant 3 : i32
    %1892 = arith.addi %1855, %c3_i32_501 : i32
    %1893 = arith.index_cast %1892 : i32 to index
    %1894 = memref.load %arg4[%1893] : memref<252xf32, #tpu.memory_space<smem>>
    %c4_i32_502 = arith.constant 4 : i32
    %1895 = arith.addi %1855, %c4_i32_502 : i32
    %1896 = arith.index_cast %1895 : i32 to index
    %1897 = memref.load %arg4[%1896] : memref<252xf32, #tpu.memory_space<smem>>
    %c5_i32_503 = arith.constant 5 : i32
    %1898 = arith.addi %1855, %c5_i32_503 : i32
    %1899 = arith.index_cast %1898 : i32 to index
    %1900 = memref.load %arg4[%1899] : memref<252xf32, #tpu.memory_space<smem>>
    %c6_i32_504 = arith.constant 6 : i32
    %1901 = arith.addi %1855, %c6_i32_504 : i32
    %1902 = arith.index_cast %1901 : i32 to index
    %1903 = memref.load %arg4[%1902] : memref<252xf32, #tpu.memory_space<smem>>
    %c7_i32_505 = arith.constant 7 : i32
    %1904 = arith.addi %1855, %c7_i32_505 : i32
    %1905 = arith.index_cast %1904 : i32 to index
    %1906 = memref.load %arg4[%1905] : memref<252xf32, #tpu.memory_space<smem>>
    %c8_i32_506 = arith.constant 8 : i32
    %1907 = arith.addi %1855, %c8_i32_506 : i32
    %1908 = arith.index_cast %1907 : i32 to index
    %1909 = memref.load %arg4[%1908] : memref<252xf32, #tpu.memory_space<smem>>
    %1910 = vector.broadcast %1858 : f32 to vector<16x128xf32>
    %1911 = arith.mulf %1, %1910 : vector<16x128xf32>
    %1912 = vector.broadcast %1867 : f32 to vector<16x128xf32>
    %1913 = arith.mulf %3, %1912 : vector<16x128xf32>
    %1914 = arith.addf %1911, %1913 : vector<16x128xf32>
    %1915 = vector.broadcast %1876 : f32 to vector<16x128xf32>
    %1916 = arith.mulf %5, %1915 : vector<16x128xf32>
    %1917 = arith.addf %1914, %1916 : vector<16x128xf32>
    %1918 = vector.broadcast %1885 : f32 to vector<16x128xf32>
    %1919 = arith.addf %1917, %1918 : vector<16x128xf32>
    %1920 = vector.broadcast %1861 : f32 to vector<16x128xf32>
    %1921 = arith.mulf %1, %1920 : vector<16x128xf32>
    %1922 = vector.broadcast %1870 : f32 to vector<16x128xf32>
    %1923 = arith.mulf %3, %1922 : vector<16x128xf32>
    %1924 = arith.addf %1921, %1923 : vector<16x128xf32>
    %1925 = vector.broadcast %1879 : f32 to vector<16x128xf32>
    %1926 = arith.mulf %5, %1925 : vector<16x128xf32>
    %1927 = arith.addf %1924, %1926 : vector<16x128xf32>
    %1928 = vector.broadcast %1888 : f32 to vector<16x128xf32>
    %1929 = arith.addf %1927, %1928 : vector<16x128xf32>
    %1930 = vector.broadcast %1864 : f32 to vector<16x128xf32>
    %1931 = arith.mulf %1, %1930 : vector<16x128xf32>
    %1932 = vector.broadcast %1873 : f32 to vector<16x128xf32>
    %1933 = arith.mulf %3, %1932 : vector<16x128xf32>
    %1934 = arith.addf %1931, %1933 : vector<16x128xf32>
    %1935 = vector.broadcast %1882 : f32 to vector<16x128xf32>
    %1936 = arith.mulf %5, %1935 : vector<16x128xf32>
    %1937 = arith.addf %1934, %1936 : vector<16x128xf32>
    %1938 = vector.broadcast %1891 : f32 to vector<16x128xf32>
    %1939 = arith.addf %1937, %1938 : vector<16x128xf32>
    %1940 = tpu.reciprocal %1939 {approx = true} : vector<16x128xf32> -> vector<16x128xf32>
    %cst_507 = arith.constant 1.73205078 : f32
    %1941 = vector.broadcast %cst_507 : f32 to vector<16x128xf32>
    %1942 = arith.mulf %1941, %1940 : vector<16x128xf32>
    %1943 = arith.mulf %1919, %1942 : vector<16x128xf32>
    %1944 = arith.mulf %1929, %1942 : vector<16x128xf32>
    %cst_508 = arith.constant -1.01010096 : f32
    %1945 = vector.broadcast %cst_508 : f32 to vector<16x128xf32>
    %1946 = arith.divf %1945, %1939 : vector<16x128xf32>
    %cst_509 = arith.constant 1.01010096 : f32
    %1947 = vector.broadcast %cst_509 : f32 to vector<16x128xf32>
    %1948 = arith.addf %1947, %1946 : vector<16x128xf32>
    %1949 = vector.broadcast %1903 : f32 to vector<16x128xf32>
    %1950 = arith.subf %1949, %1 : vector<16x128xf32>
    %1951 = vector.broadcast %1906 : f32 to vector<16x128xf32>
    %1952 = arith.subf %1951, %3 : vector<16x128xf32>
    %1953 = vector.broadcast %1909 : f32 to vector<16x128xf32>
    %1954 = arith.subf %1953, %5 : vector<16x128xf32>
    %1955 = arith.mulf %1950, %1950 : vector<16x128xf32>
    %1956 = arith.mulf %1952, %1952 : vector<16x128xf32>
    %1957 = arith.addf %1955, %1956 : vector<16x128xf32>
    %1958 = arith.mulf %1954, %1954 : vector<16x128xf32>
    %1959 = arith.addf %1957, %1958 : vector<16x128xf32>
    %cst_510 = arith.constant 9.99999996E-13 : f32
    %1960 = vector.broadcast %cst_510 : f32 to vector<16x128xf32>
    %1961 = arith.addf %1959, %1960 : vector<16x128xf32>
    %1962 = math.rsqrt %1961 : vector<16x128xf32>
    %1963 = arith.mulf %1950, %1962 : vector<16x128xf32>
    %1964 = arith.mulf %1952, %1962 : vector<16x128xf32>
    %1965 = arith.mulf %1954, %1962 : vector<16x128xf32>
    %1966 = arith.mulf %20, %1963 : vector<16x128xf32>
    %1967 = arith.mulf %21, %1964 : vector<16x128xf32>
    %1968 = arith.addf %1966, %1967 : vector<16x128xf32>
    %1969 = arith.mulf %22, %1965 : vector<16x128xf32>
    %1970 = arith.addf %1968, %1969 : vector<16x128xf32>
    %1971 = vector.broadcast %1894 : f32 to vector<16x128xf32>
    %1972 = arith.subf %1971, %1 : vector<16x128xf32>
    %1973 = vector.broadcast %1897 : f32 to vector<16x128xf32>
    %1974 = arith.subf %1973, %3 : vector<16x128xf32>
    %1975 = vector.broadcast %1900 : f32 to vector<16x128xf32>
    %1976 = arith.subf %1975, %5 : vector<16x128xf32>
    %1977 = arith.mulf %1972, %1972 : vector<16x128xf32>
    %1978 = arith.mulf %1974, %1974 : vector<16x128xf32>
    %1979 = arith.addf %1977, %1978 : vector<16x128xf32>
    %1980 = arith.mulf %1976, %1976 : vector<16x128xf32>
    %1981 = arith.addf %1979, %1980 : vector<16x128xf32>
    %cst_511 = arith.constant 9.99999996E-13 : f32
    %1982 = vector.broadcast %cst_511 : f32 to vector<16x128xf32>
    %1983 = arith.addf %1981, %1982 : vector<16x128xf32>
    %1984 = math.rsqrt %1983 : vector<16x128xf32>
    %1985 = arith.mulf %1972, %1984 : vector<16x128xf32>
    %1986 = arith.mulf %1974, %1984 : vector<16x128xf32>
    %1987 = arith.mulf %1976, %1984 : vector<16x128xf32>
    %1988 = arith.mulf %20, %1985 : vector<16x128xf32>
    %1989 = arith.mulf %21, %1986 : vector<16x128xf32>
    %1990 = arith.addf %1988, %1989 : vector<16x128xf32>
    %1991 = arith.mulf %22, %1987 : vector<16x128xf32>
    %1992 = arith.addf %1990, %1991 : vector<16x128xf32>
    %1993 = arith.mulf %1963, %1985 : vector<16x128xf32>
    %1994 = arith.mulf %1964, %1986 : vector<16x128xf32>
    %1995 = arith.addf %1993, %1994 : vector<16x128xf32>
    %1996 = arith.mulf %1965, %1987 : vector<16x128xf32>
    %1997 = arith.addf %1995, %1996 : vector<16x128xf32>
    %cst_512 = arith.constant 2.000000e+00 : f32
    %1998 = vector.broadcast %cst_512 : f32 to vector<16x128xf32>
    %1999 = arith.mulf %1998, %1970 : vector<16x128xf32>
    %2000 = arith.mulf %1999, %1992 : vector<16x128xf32>
    %2001 = arith.subf %2000, %1997 : vector<16x128xf32>
    %cst_513 = arith.constant 0.000000e+00 : f32
    %2002 = vector.broadcast %cst_513 : f32 to vector<16x128xf32>
    %2003 = arith.maximumf %2001, %2002 : vector<16x128xf32>
    %cst_514 = arith.constant 0.000000e+00 : f32
    %2004 = vector.broadcast %cst_514 : f32 to vector<16x128xf32>
    %2005 = arith.cmpf ogt, %1970, %2004 : vector<16x128xf32>
    %cst_515 = arith.constant 0.000000e+00 : f32
    %2006 = vector.broadcast %cst_515 : f32 to vector<16x128xf32>
    %2007 = arith.select %2005, %2003, %2006 : vector<16x128xi1>, vector<16x128xf32>
    %2008 = arith.mulf %2007, %2007 : vector<16x128xf32>
    %2009 = arith.mulf %2008, %2008 : vector<16x128xf32>
    %2010 = arith.mulf %2009, %2009 : vector<16x128xf32>
    %2011 = arith.mulf %2010, %2010 : vector<16x128xf32>
    %2012 = arith.mulf %2011, %2011 : vector<16x128xf32>
    %2013 = arith.mulf %2012, %2012 : vector<16x128xf32>
    %cst_516 = arith.constant 0.000000e+00 : f32
    %2014 = vector.broadcast %cst_516 : f32 to vector<16x128xf32>
    %2015 = arith.maximumf %1970, %2014 : vector<16x128xf32>
    %cst_517 = arith.constant 3.000000e-01 : f32
    %2016 = vector.broadcast %cst_517 : f32 to vector<16x128xf32>
    %2017 = arith.mulf %2016, %2015 : vector<16x128xf32>
    %cst_518 = arith.constant 5.000000e-01 : f32
    %2018 = vector.broadcast %cst_518 : f32 to vector<16x128xf32>
    %2019 = arith.addf %2018, %2017 : vector<16x128xf32>
    %cst_519 = arith.constant 2.000000e-01 : f32
    %2020 = vector.broadcast %cst_519 : f32 to vector<16x128xf32>
    %2021 = arith.mulf %2020, %2013 : vector<16x128xf32>
    %2022 = arith.addf %2019, %2021 : vector<16x128xf32>
    %c10 = arith.constant 10 : index
    %c0_520 = arith.constant 0 : index
    %c0_521 = arith.constant 0 : index
    %c0_522 = arith.constant 0 : index
    %2023 = vector.load %arg5[%c10, %c0_520, %c0_521, %c0_522] : memref<14x3x16x128xf32, #tpu.memory_space<vmem>>, vector<1x1x16x128xf32>
    %2024 = vector.shape_cast %2023 : vector<1x1x16x128xf32> to vector<16x128xf32>
    %2025 = vector.shape_cast %1943 : vector<16x128xf32> to vector<1x1x16x128xf32>
    tpu.vector_store %arg5[%c10, %c0_520, %c0_521, %c0_522], %2025 {strides = array<i32>} : memref<14x3x16x128xf32, #tpu.memory_space<vmem>>, vector<1x1x16x128xf32>,
    %c10_523 = arith.constant 10 : index
    %c1_524 = arith.constant 1 : index
    %c0_525 = arith.constant 0 : index
    %c0_526 = arith.constant 0 : index
    %2026 = vector.load %arg5[%c10_523, %c1_524, %c0_525, %c0_526] : memref<14x3x16x128xf32, #tpu.memory_space<vmem>>, vector<1x1x16x128xf32>
    %2027 = vector.shape_cast %2026 : vector<1x1x16x128xf32> to vector<16x128xf32>
    %2028 = vector.shape_cast %1944 : vector<16x128xf32> to vector<1x1x16x128xf32>
    tpu.vector_store %arg5[%c10_523, %c1_524, %c0_525, %c0_526], %2028 {strides = array<i32>} : memref<14x3x16x128xf32, #tpu.memory_space<vmem>>, vector<1x1x16x128xf32>,
    %c10_527 = arith.constant 10 : index
    %c2_528 = arith.constant 2 : index
    %c0_529 = arith.constant 0 : index
    %c0_530 = arith.constant 0 : index
    %2029 = vector.load %arg5[%c10_527, %c2_528, %c0_529, %c0_530] : memref<14x3x16x128xf32, #tpu.memory_space<vmem>>, vector<1x1x16x128xf32>
    %2030 = vector.shape_cast %2029 : vector<1x1x16x128xf32> to vector<16x128xf32>
    %2031 = vector.shape_cast %1948 : vector<16x128xf32> to vector<1x1x16x128xf32>
    tpu.vector_store %arg5[%c10_527, %c2_528, %c0_529, %c0_530], %2031 {strides = array<i32>} : memref<14x3x16x128xf32, #tpu.memory_space<vmem>>, vector<1x1x16x128xf32>,
    %2032 = arith.truncf %2022 : vector<16x128xf32> to vector<16x128xbf16>
    %c10_531 = arith.constant 10 : index
    %c0_532 = arith.constant 0 : index
    %c0_533 = arith.constant 0 : index
    %2033 = vector.load %arg6[%c10_531, %c0_532, %c0_533] : memref<14x16x128xbf16, #tpu.memory_space<vmem>>, vector<1x16x128xbf16>
    %2034 = vector.shape_cast %2033 : vector<1x16x128xbf16> to vector<16x128xbf16>
    %2035 = vector.shape_cast %2032 : vector<16x128xbf16> to vector<1x16x128xbf16>
    tpu.vector_store %arg6[%c10_531, %c0_532, %c0_533], %2035 {strides = array<i32>} : memref<14x16x128xbf16, #tpu.memory_space<vmem>>, vector<1x16x128xbf16>,
    %c14_i32_534 = arith.constant 14 : i32
    %2036 = arith.muli %arg0, %c14_i32_534 : i32
    %c11_i32 = arith.constant 11 : i32
    %2037 = arith.addi %2036, %c11_i32 : i32
    %c9_i32_535 = arith.constant 9 : i32
    %2038 = arith.muli %2037, %c9_i32_535 : i32
    %c0_i32_536 = arith.constant 0 : i32
    %2039 = arith.addi %2038, %c0_i32_536 : i32
    %2040 = arith.index_cast %2039 : i32 to index
    %2041 = memref.load %arg3[%2040] : memref<252xf32, #tpu.memory_space<smem>>
    %c1_i32_537 = arith.constant 1 : i32
    %2042 = arith.addi %2038, %c1_i32_537 : i32
    %2043 = arith.index_cast %2042 : i32 to index
    %2044 = memref.load %arg3[%2043] : memref<252xf32, #tpu.memory_space<smem>>
    %c2_i32_538 = arith.constant 2 : i32
    %2045 = arith.addi %2038, %c2_i32_538 : i32
    %2046 = arith.index_cast %2045 : i32 to index
    %2047 = memref.load %arg3[%2046] : memref<252xf32, #tpu.memory_space<smem>>
    %c3_i32_539 = arith.constant 3 : i32
    %2048 = arith.addi %2038, %c3_i32_539 : i32
    %2049 = arith.index_cast %2048 : i32 to index
    %2050 = memref.load %arg3[%2049] : memref<252xf32, #tpu.memory_space<smem>>
    %c4_i32_540 = arith.constant 4 : i32
    %2051 = arith.addi %2038, %c4_i32_540 : i32
    %2052 = arith.index_cast %2051 : i32 to index
    %2053 = memref.load %arg3[%2052] : memref<252xf32, #tpu.memory_space<smem>>
    %c5_i32_541 = arith.constant 5 : i32
    %2054 = arith.addi %2038, %c5_i32_541 : i32
    %2055 = arith.index_cast %2054 : i32 to index
    %2056 = memref.load %arg3[%2055] : memref<252xf32, #tpu.memory_space<smem>>
    %c6_i32_542 = arith.constant 6 : i32
    %2057 = arith.addi %2038, %c6_i32_542 : i32
    %2058 = arith.index_cast %2057 : i32 to index
    %2059 = memref.load %arg3[%2058] : memref<252xf32, #tpu.memory_space<smem>>
    %c7_i32_543 = arith.constant 7 : i32
    %2060 = arith.addi %2038, %c7_i32_543 : i32
    %2061 = arith.index_cast %2060 : i32 to index
    %2062 = memref.load %arg3[%2061] : memref<252xf32, #tpu.memory_space<smem>>
    %c8_i32_544 = arith.constant 8 : i32
    %2063 = arith.addi %2038, %c8_i32_544 : i32
    %2064 = arith.index_cast %2063 : i32 to index
    %2065 = memref.load %arg3[%2064] : memref<252xf32, #tpu.memory_space<smem>>
    %c0_i32_545 = arith.constant 0 : i32
    %2066 = arith.addi %2038, %c0_i32_545 : i32
    %2067 = arith.index_cast %2066 : i32 to index
    %2068 = memref.load %arg4[%2067] : memref<252xf32, #tpu.memory_space<smem>>
    %c1_i32_546 = arith.constant 1 : i32
    %2069 = arith.addi %2038, %c1_i32_546 : i32
    %2070 = arith.index_cast %2069 : i32 to index
    %2071 = memref.load %arg4[%2070] : memref<252xf32, #tpu.memory_space<smem>>
    %c2_i32_547 = arith.constant 2 : i32
    %2072 = arith.addi %2038, %c2_i32_547 : i32
    %2073 = arith.index_cast %2072 : i32 to index
    %2074 = memref.load %arg4[%2073] : memref<252xf32, #tpu.memory_space<smem>>
    %c3_i32_548 = arith.constant 3 : i32
    %2075 = arith.addi %2038, %c3_i32_548 : i32
    %2076 = arith.index_cast %2075 : i32 to index
    %2077 = memref.load %arg4[%2076] : memref<252xf32, #tpu.memory_space<smem>>
    %c4_i32_549 = arith.constant 4 : i32
    %2078 = arith.addi %2038, %c4_i32_549 : i32
    %2079 = arith.index_cast %2078 : i32 to index
    %2080 = memref.load %arg4[%2079] : memref<252xf32, #tpu.memory_space<smem>>
    %c5_i32_550 = arith.constant 5 : i32
    %2081 = arith.addi %2038, %c5_i32_550 : i32
    %2082 = arith.index_cast %2081 : i32 to index
    %2083 = memref.load %arg4[%2082] : memref<252xf32, #tpu.memory_space<smem>>
    %c6_i32_551 = arith.constant 6 : i32
    %2084 = arith.addi %2038, %c6_i32_551 : i32
    %2085 = arith.index_cast %2084 : i32 to index
    %2086 = memref.load %arg4[%2085] : memref<252xf32, #tpu.memory_space<smem>>
    %c7_i32_552 = arith.constant 7 : i32
    %2087 = arith.addi %2038, %c7_i32_552 : i32
    %2088 = arith.index_cast %2087 : i32 to index
    %2089 = memref.load %arg4[%2088] : memref<252xf32, #tpu.memory_space<smem>>
    %c8_i32_553 = arith.constant 8 : i32
    %2090 = arith.addi %2038, %c8_i32_553 : i32
    %2091 = arith.index_cast %2090 : i32 to index
    %2092 = memref.load %arg4[%2091] : memref<252xf32, #tpu.memory_space<smem>>
    %2093 = vector.broadcast %2041 : f32 to vector<16x128xf32>
    %2094 = arith.mulf %1, %2093 : vector<16x128xf32>
    %2095 = vector.broadcast %2050 : f32 to vector<16x128xf32>
    %2096 = arith.mulf %3, %2095 : vector<16x128xf32>
    %2097 = arith.addf %2094, %2096 : vector<16x128xf32>
    %2098 = vector.broadcast %2059 : f32 to vector<16x128xf32>
    %2099 = arith.mulf %5, %2098 : vector<16x128xf32>
    %2100 = arith.addf %2097, %2099 : vector<16x128xf32>
    %2101 = vector.broadcast %2068 : f32 to vector<16x128xf32>
    %2102 = arith.addf %2100, %2101 : vector<16x128xf32>
    %2103 = vector.broadcast %2044 : f32 to vector<16x128xf32>
    %2104 = arith.mulf %1, %2103 : vector<16x128xf32>
    %2105 = vector.broadcast %2053 : f32 to vector<16x128xf32>
    %2106 = arith.mulf %3, %2105 : vector<16x128xf32>
    %2107 = arith.addf %2104, %2106 : vector<16x128xf32>
    %2108 = vector.broadcast %2062 : f32 to vector<16x128xf32>
    %2109 = arith.mulf %5, %2108 : vector<16x128xf32>
    %2110 = arith.addf %2107, %2109 : vector<16x128xf32>
    %2111 = vector.broadcast %2071 : f32 to vector<16x128xf32>
    %2112 = arith.addf %2110, %2111 : vector<16x128xf32>
    %2113 = vector.broadcast %2047 : f32 to vector<16x128xf32>
    %2114 = arith.mulf %1, %2113 : vector<16x128xf32>
    %2115 = vector.broadcast %2056 : f32 to vector<16x128xf32>
    %2116 = arith.mulf %3, %2115 : vector<16x128xf32>
    %2117 = arith.addf %2114, %2116 : vector<16x128xf32>
    %2118 = vector.broadcast %2065 : f32 to vector<16x128xf32>
    %2119 = arith.mulf %5, %2118 : vector<16x128xf32>
    %2120 = arith.addf %2117, %2119 : vector<16x128xf32>
    %2121 = vector.broadcast %2074 : f32 to vector<16x128xf32>
    %2122 = arith.addf %2120, %2121 : vector<16x128xf32>
    %2123 = tpu.reciprocal %2122 {approx = true} : vector<16x128xf32> -> vector<16x128xf32>
    %cst_554 = arith.constant 1.73205078 : f32
    %2124 = vector.broadcast %cst_554 : f32 to vector<16x128xf32>
    %2125 = arith.mulf %2124, %2123 : vector<16x128xf32>
    %2126 = arith.mulf %2102, %2125 : vector<16x128xf32>
    %2127 = arith.mulf %2112, %2125 : vector<16x128xf32>
    %cst_555 = arith.constant -1.01010096 : f32
    %2128 = vector.broadcast %cst_555 : f32 to vector<16x128xf32>
    %2129 = arith.divf %2128, %2122 : vector<16x128xf32>
    %cst_556 = arith.constant 1.01010096 : f32
    %2130 = vector.broadcast %cst_556 : f32 to vector<16x128xf32>
    %2131 = arith.addf %2130, %2129 : vector<16x128xf32>
    %2132 = vector.broadcast %2086 : f32 to vector<16x128xf32>
    %2133 = arith.subf %2132, %1 : vector<16x128xf32>
    %2134 = vector.broadcast %2089 : f32 to vector<16x128xf32>
    %2135 = arith.subf %2134, %3 : vector<16x128xf32>
    %2136 = vector.broadcast %2092 : f32 to vector<16x128xf32>
    %2137 = arith.subf %2136, %5 : vector<16x128xf32>
    %2138 = arith.mulf %2133, %2133 : vector<16x128xf32>
    %2139 = arith.mulf %2135, %2135 : vector<16x128xf32>
    %2140 = arith.addf %2138, %2139 : vector<16x128xf32>
    %2141 = arith.mulf %2137, %2137 : vector<16x128xf32>
    %2142 = arith.addf %2140, %2141 : vector<16x128xf32>
    %cst_557 = arith.constant 9.99999996E-13 : f32
    %2143 = vector.broadcast %cst_557 : f32 to vector<16x128xf32>
    %2144 = arith.addf %2142, %2143 : vector<16x128xf32>
    %2145 = math.rsqrt %2144 : vector<16x128xf32>
    %2146 = arith.mulf %2133, %2145 : vector<16x128xf32>
    %2147 = arith.mulf %2135, %2145 : vector<16x128xf32>
    %2148 = arith.mulf %2137, %2145 : vector<16x128xf32>
    %2149 = arith.mulf %20, %2146 : vector<16x128xf32>
    %2150 = arith.mulf %21, %2147 : vector<16x128xf32>
    %2151 = arith.addf %2149, %2150 : vector<16x128xf32>
    %2152 = arith.mulf %22, %2148 : vector<16x128xf32>
    %2153 = arith.addf %2151, %2152 : vector<16x128xf32>
    %2154 = vector.broadcast %2077 : f32 to vector<16x128xf32>
    %2155 = arith.subf %2154, %1 : vector<16x128xf32>
    %2156 = vector.broadcast %2080 : f32 to vector<16x128xf32>
    %2157 = arith.subf %2156, %3 : vector<16x128xf32>
    %2158 = vector.broadcast %2083 : f32 to vector<16x128xf32>
    %2159 = arith.subf %2158, %5 : vector<16x128xf32>
    %2160 = arith.mulf %2155, %2155 : vector<16x128xf32>
    %2161 = arith.mulf %2157, %2157 : vector<16x128xf32>
    %2162 = arith.addf %2160, %2161 : vector<16x128xf32>
    %2163 = arith.mulf %2159, %2159 : vector<16x128xf32>
    %2164 = arith.addf %2162, %2163 : vector<16x128xf32>
    %cst_558 = arith.constant 9.99999996E-13 : f32
    %2165 = vector.broadcast %cst_558 : f32 to vector<16x128xf32>
    %2166 = arith.addf %2164, %2165 : vector<16x128xf32>
    %2167 = math.rsqrt %2166 : vector<16x128xf32>
    %2168 = arith.mulf %2155, %2167 : vector<16x128xf32>
    %2169 = arith.mulf %2157, %2167 : vector<16x128xf32>
    %2170 = arith.mulf %2159, %2167 : vector<16x128xf32>
    %2171 = arith.mulf %20, %2168 : vector<16x128xf32>
    %2172 = arith.mulf %21, %2169 : vector<16x128xf32>
    %2173 = arith.addf %2171, %2172 : vector<16x128xf32>
    %2174 = arith.mulf %22, %2170 : vector<16x128xf32>
    %2175 = arith.addf %2173, %2174 : vector<16x128xf32>
    %2176 = arith.mulf %2146, %2168 : vector<16x128xf32>
    %2177 = arith.mulf %2147, %2169 : vector<16x128xf32>
    %2178 = arith.addf %2176, %2177 : vector<16x128xf32>
    %2179 = arith.mulf %2148, %2170 : vector<16x128xf32>
    %2180 = arith.addf %2178, %2179 : vector<16x128xf32>
    %cst_559 = arith.constant 2.000000e+00 : f32
    %2181 = vector.broadcast %cst_559 : f32 to vector<16x128xf32>
    %2182 = arith.mulf %2181, %2153 : vector<16x128xf32>
    %2183 = arith.mulf %2182, %2175 : vector<16x128xf32>
    %2184 = arith.subf %2183, %2180 : vector<16x128xf32>
    %cst_560 = arith.constant 0.000000e+00 : f32
    %2185 = vector.broadcast %cst_560 : f32 to vector<16x128xf32>
    %2186 = arith.maximumf %2184, %2185 : vector<16x128xf32>
    %cst_561 = arith.constant 0.000000e+00 : f32
    %2187 = vector.broadcast %cst_561 : f32 to vector<16x128xf32>
    %2188 = arith.cmpf ogt, %2153, %2187 : vector<16x128xf32>
    %cst_562 = arith.constant 0.000000e+00 : f32
    %2189 = vector.broadcast %cst_562 : f32 to vector<16x128xf32>
    %2190 = arith.select %2188, %2186, %2189 : vector<16x128xi1>, vector<16x128xf32>
    %2191 = arith.mulf %2190, %2190 : vector<16x128xf32>
    %2192 = arith.mulf %2191, %2191 : vector<16x128xf32>
    %2193 = arith.mulf %2192, %2192 : vector<16x128xf32>
    %2194 = arith.mulf %2193, %2193 : vector<16x128xf32>
    %2195 = arith.mulf %2194, %2194 : vector<16x128xf32>
    %2196 = arith.mulf %2195, %2195 : vector<16x128xf32>
    %cst_563 = arith.constant 0.000000e+00 : f32
    %2197 = vector.broadcast %cst_563 : f32 to vector<16x128xf32>
    %2198 = arith.maximumf %2153, %2197 : vector<16x128xf32>
    %cst_564 = arith.constant 3.000000e-01 : f32
    %2199 = vector.broadcast %cst_564 : f32 to vector<16x128xf32>
    %2200 = arith.mulf %2199, %2198 : vector<16x128xf32>
    %cst_565 = arith.constant 5.000000e-01 : f32
    %2201 = vector.broadcast %cst_565 : f32 to vector<16x128xf32>
    %2202 = arith.addf %2201, %2200 : vector<16x128xf32>
    %cst_566 = arith.constant 2.000000e-01 : f32
    %2203 = vector.broadcast %cst_566 : f32 to vector<16x128xf32>
    %2204 = arith.mulf %2203, %2196 : vector<16x128xf32>
    %2205 = arith.addf %2202, %2204 : vector<16x128xf32>
    %c11 = arith.constant 11 : index
    %c0_567 = arith.constant 0 : index
    %c0_568 = arith.constant 0 : index
    %c0_569 = arith.constant 0 : index
    %2206 = vector.load %arg5[%c11, %c0_567, %c0_568, %c0_569] : memref<14x3x16x128xf32, #tpu.memory_space<vmem>>, vector<1x1x16x128xf32>
    %2207 = vector.shape_cast %2206 : vector<1x1x16x128xf32> to vector<16x128xf32>
    %2208 = vector.shape_cast %2126 : vector<16x128xf32> to vector<1x1x16x128xf32>
    tpu.vector_store %arg5[%c11, %c0_567, %c0_568, %c0_569], %2208 {strides = array<i32>} : memref<14x3x16x128xf32, #tpu.memory_space<vmem>>, vector<1x1x16x128xf32>,
    %c11_570 = arith.constant 11 : index
    %c1_571 = arith.constant 1 : index
    %c0_572 = arith.constant 0 : index
    %c0_573 = arith.constant 0 : index
    %2209 = vector.load %arg5[%c11_570, %c1_571, %c0_572, %c0_573] : memref<14x3x16x128xf32, #tpu.memory_space<vmem>>, vector<1x1x16x128xf32>
    %2210 = vector.shape_cast %2209 : vector<1x1x16x128xf32> to vector<16x128xf32>
    %2211 = vector.shape_cast %2127 : vector<16x128xf32> to vector<1x1x16x128xf32>
    tpu.vector_store %arg5[%c11_570, %c1_571, %c0_572, %c0_573], %2211 {strides = array<i32>} : memref<14x3x16x128xf32, #tpu.memory_space<vmem>>, vector<1x1x16x128xf32>,
    %c11_574 = arith.constant 11 : index
    %c2_575 = arith.constant 2 : index
    %c0_576 = arith.constant 0 : index
    %c0_577 = arith.constant 0 : index
    %2212 = vector.load %arg5[%c11_574, %c2_575, %c0_576, %c0_577] : memref<14x3x16x128xf32, #tpu.memory_space<vmem>>, vector<1x1x16x128xf32>
    %2213 = vector.shape_cast %2212 : vector<1x1x16x128xf32> to vector<16x128xf32>
    %2214 = vector.shape_cast %2131 : vector<16x128xf32> to vector<1x1x16x128xf32>
    tpu.vector_store %arg5[%c11_574, %c2_575, %c0_576, %c0_577], %2214 {strides = array<i32>} : memref<14x3x16x128xf32, #tpu.memory_space<vmem>>, vector<1x1x16x128xf32>,
    %2215 = arith.truncf %2205 : vector<16x128xf32> to vector<16x128xbf16>
    %c11_578 = arith.constant 11 : index
    %c0_579 = arith.constant 0 : index
    %c0_580 = arith.constant 0 : index
    %2216 = vector.load %arg6[%c11_578, %c0_579, %c0_580] : memref<14x16x128xbf16, #tpu.memory_space<vmem>>, vector<1x16x128xbf16>
    %2217 = vector.shape_cast %2216 : vector<1x16x128xbf16> to vector<16x128xbf16>
    %2218 = vector.shape_cast %2215 : vector<16x128xbf16> to vector<1x16x128xbf16>
    tpu.vector_store %arg6[%c11_578, %c0_579, %c0_580], %2218 {strides = array<i32>} : memref<14x16x128xbf16, #tpu.memory_space<vmem>>, vector<1x16x128xbf16>,
    %c14_i32_581 = arith.constant 14 : i32
    %2219 = arith.muli %arg0, %c14_i32_581 : i32
    %c12_i32 = arith.constant 12 : i32
    %2220 = arith.addi %2219, %c12_i32 : i32
    %c9_i32_582 = arith.constant 9 : i32
    %2221 = arith.muli %2220, %c9_i32_582 : i32
    %c0_i32_583 = arith.constant 0 : i32
    %2222 = arith.addi %2221, %c0_i32_583 : i32
    %2223 = arith.index_cast %2222 : i32 to index
    %2224 = memref.load %arg3[%2223] : memref<252xf32, #tpu.memory_space<smem>>
    %c1_i32_584 = arith.constant 1 : i32
    %2225 = arith.addi %2221, %c1_i32_584 : i32
    %2226 = arith.index_cast %2225 : i32 to index
    %2227 = memref.load %arg3[%2226] : memref<252xf32, #tpu.memory_space<smem>>
    %c2_i32_585 = arith.constant 2 : i32
    %2228 = arith.addi %2221, %c2_i32_585 : i32
    %2229 = arith.index_cast %2228 : i32 to index
    %2230 = memref.load %arg3[%2229] : memref<252xf32, #tpu.memory_space<smem>>
    %c3_i32_586 = arith.constant 3 : i32
    %2231 = arith.addi %2221, %c3_i32_586 : i32
    %2232 = arith.index_cast %2231 : i32 to index
    %2233 = memref.load %arg3[%2232] : memref<252xf32, #tpu.memory_space<smem>>
    %c4_i32_587 = arith.constant 4 : i32
    %2234 = arith.addi %2221, %c4_i32_587 : i32
    %2235 = arith.index_cast %2234 : i32 to index
    %2236 = memref.load %arg3[%2235] : memref<252xf32, #tpu.memory_space<smem>>
    %c5_i32_588 = arith.constant 5 : i32
    %2237 = arith.addi %2221, %c5_i32_588 : i32
    %2238 = arith.index_cast %2237 : i32 to index
    %2239 = memref.load %arg3[%2238] : memref<252xf32, #tpu.memory_space<smem>>
    %c6_i32_589 = arith.constant 6 : i32
    %2240 = arith.addi %2221, %c6_i32_589 : i32
    %2241 = arith.index_cast %2240 : i32 to index
    %2242 = memref.load %arg3[%2241] : memref<252xf32, #tpu.memory_space<smem>>
    %c7_i32_590 = arith.constant 7 : i32
    %2243 = arith.addi %2221, %c7_i32_590 : i32
    %2244 = arith.index_cast %2243 : i32 to index
    %2245 = memref.load %arg3[%2244] : memref<252xf32, #tpu.memory_space<smem>>
    %c8_i32_591 = arith.constant 8 : i32
    %2246 = arith.addi %2221, %c8_i32_591 : i32
    %2247 = arith.index_cast %2246 : i32 to index
    %2248 = memref.load %arg3[%2247] : memref<252xf32, #tpu.memory_space<smem>>
    %c0_i32_592 = arith.constant 0 : i32
    %2249 = arith.addi %2221, %c0_i32_592 : i32
    %2250 = arith.index_cast %2249 : i32 to index
    %2251 = memref.load %arg4[%2250] : memref<252xf32, #tpu.memory_space<smem>>
    %c1_i32_593 = arith.constant 1 : i32
    %2252 = arith.addi %2221, %c1_i32_593 : i32
    %2253 = arith.index_cast %2252 : i32 to index
    %2254 = memref.load %arg4[%2253] : memref<252xf32, #tpu.memory_space<smem>>
    %c2_i32_594 = arith.constant 2 : i32
    %2255 = arith.addi %2221, %c2_i32_594 : i32
    %2256 = arith.index_cast %2255 : i32 to index
    %2257 = memref.load %arg4[%2256] : memref<252xf32, #tpu.memory_space<smem>>
    %c3_i32_595 = arith.constant 3 : i32
    %2258 = arith.addi %2221, %c3_i32_595 : i32
    %2259 = arith.index_cast %2258 : i32 to index
    %2260 = memref.load %arg4[%2259] : memref<252xf32, #tpu.memory_space<smem>>
    %c4_i32_596 = arith.constant 4 : i32
    %2261 = arith.addi %2221, %c4_i32_596 : i32
    %2262 = arith.index_cast %2261 : i32 to index
    %2263 = memref.load %arg4[%2262] : memref<252xf32, #tpu.memory_space<smem>>
    %c5_i32_597 = arith.constant 5 : i32
    %2264 = arith.addi %2221, %c5_i32_597 : i32
    %2265 = arith.index_cast %2264 : i32 to index
    %2266 = memref.load %arg4[%2265] : memref<252xf32, #tpu.memory_space<smem>>
    %c6_i32_598 = arith.constant 6 : i32
    %2267 = arith.addi %2221, %c6_i32_598 : i32
    %2268 = arith.index_cast %2267 : i32 to index
    %2269 = memref.load %arg4[%2268] : memref<252xf32, #tpu.memory_space<smem>>
    %c7_i32_599 = arith.constant 7 : i32
    %2270 = arith.addi %2221, %c7_i32_599 : i32
    %2271 = arith.index_cast %2270 : i32 to index
    %2272 = memref.load %arg4[%2271] : memref<252xf32, #tpu.memory_space<smem>>
    %c8_i32_600 = arith.constant 8 : i32
    %2273 = arith.addi %2221, %c8_i32_600 : i32
    %2274 = arith.index_cast %2273 : i32 to index
    %2275 = memref.load %arg4[%2274] : memref<252xf32, #tpu.memory_space<smem>>
    %2276 = vector.broadcast %2224 : f32 to vector<16x128xf32>
    %2277 = arith.mulf %1, %2276 : vector<16x128xf32>
    %2278 = vector.broadcast %2233 : f32 to vector<16x128xf32>
    %2279 = arith.mulf %3, %2278 : vector<16x128xf32>
    %2280 = arith.addf %2277, %2279 : vector<16x128xf32>
    %2281 = vector.broadcast %2242 : f32 to vector<16x128xf32>
    %2282 = arith.mulf %5, %2281 : vector<16x128xf32>
    %2283 = arith.addf %2280, %2282 : vector<16x128xf32>
    %2284 = vector.broadcast %2251 : f32 to vector<16x128xf32>
    %2285 = arith.addf %2283, %2284 : vector<16x128xf32>
    %2286 = vector.broadcast %2227 : f32 to vector<16x128xf32>
    %2287 = arith.mulf %1, %2286 : vector<16x128xf32>
    %2288 = vector.broadcast %2236 : f32 to vector<16x128xf32>
    %2289 = arith.mulf %3, %2288 : vector<16x128xf32>
    %2290 = arith.addf %2287, %2289 : vector<16x128xf32>
    %2291 = vector.broadcast %2245 : f32 to vector<16x128xf32>
    %2292 = arith.mulf %5, %2291 : vector<16x128xf32>
    %2293 = arith.addf %2290, %2292 : vector<16x128xf32>
    %2294 = vector.broadcast %2254 : f32 to vector<16x128xf32>
    %2295 = arith.addf %2293, %2294 : vector<16x128xf32>
    %2296 = vector.broadcast %2230 : f32 to vector<16x128xf32>
    %2297 = arith.mulf %1, %2296 : vector<16x128xf32>
    %2298 = vector.broadcast %2239 : f32 to vector<16x128xf32>
    %2299 = arith.mulf %3, %2298 : vector<16x128xf32>
    %2300 = arith.addf %2297, %2299 : vector<16x128xf32>
    %2301 = vector.broadcast %2248 : f32 to vector<16x128xf32>
    %2302 = arith.mulf %5, %2301 : vector<16x128xf32>
    %2303 = arith.addf %2300, %2302 : vector<16x128xf32>
    %2304 = vector.broadcast %2257 : f32 to vector<16x128xf32>
    %2305 = arith.addf %2303, %2304 : vector<16x128xf32>
    %2306 = tpu.reciprocal %2305 {approx = true} : vector<16x128xf32> -> vector<16x128xf32>
    %cst_601 = arith.constant 1.73205078 : f32
    %2307 = vector.broadcast %cst_601 : f32 to vector<16x128xf32>
    %2308 = arith.mulf %2307, %2306 : vector<16x128xf32>
    %2309 = arith.mulf %2285, %2308 : vector<16x128xf32>
    %2310 = arith.mulf %2295, %2308 : vector<16x128xf32>
    %cst_602 = arith.constant -1.01010096 : f32
    %2311 = vector.broadcast %cst_602 : f32 to vector<16x128xf32>
    %2312 = arith.divf %2311, %2305 : vector<16x128xf32>
    %cst_603 = arith.constant 1.01010096 : f32
    %2313 = vector.broadcast %cst_603 : f32 to vector<16x128xf32>
    %2314 = arith.addf %2313, %2312 : vector<16x128xf32>
    %2315 = vector.broadcast %2269 : f32 to vector<16x128xf32>
    %2316 = arith.subf %2315, %1 : vector<16x128xf32>
    %2317 = vector.broadcast %2272 : f32 to vector<16x128xf32>
    %2318 = arith.subf %2317, %3 : vector<16x128xf32>
    %2319 = vector.broadcast %2275 : f32 to vector<16x128xf32>
    %2320 = arith.subf %2319, %5 : vector<16x128xf32>
    %2321 = arith.mulf %2316, %2316 : vector<16x128xf32>
    %2322 = arith.mulf %2318, %2318 : vector<16x128xf32>
    %2323 = arith.addf %2321, %2322 : vector<16x128xf32>
    %2324 = arith.mulf %2320, %2320 : vector<16x128xf32>
    %2325 = arith.addf %2323, %2324 : vector<16x128xf32>
    %cst_604 = arith.constant 9.99999996E-13 : f32
    %2326 = vector.broadcast %cst_604 : f32 to vector<16x128xf32>
    %2327 = arith.addf %2325, %2326 : vector<16x128xf32>
    %2328 = math.rsqrt %2327 : vector<16x128xf32>
    %2329 = arith.mulf %2316, %2328 : vector<16x128xf32>
    %2330 = arith.mulf %2318, %2328 : vector<16x128xf32>
    %2331 = arith.mulf %2320, %2328 : vector<16x128xf32>
    %2332 = arith.mulf %20, %2329 : vector<16x128xf32>
    %2333 = arith.mulf %21, %2330 : vector<16x128xf32>
    %2334 = arith.addf %2332, %2333 : vector<16x128xf32>
    %2335 = arith.mulf %22, %2331 : vector<16x128xf32>
    %2336 = arith.addf %2334, %2335 : vector<16x128xf32>
    %2337 = vector.broadcast %2260 : f32 to vector<16x128xf32>
    %2338 = arith.subf %2337, %1 : vector<16x128xf32>
    %2339 = vector.broadcast %2263 : f32 to vector<16x128xf32>
    %2340 = arith.subf %2339, %3 : vector<16x128xf32>
    %2341 = vector.broadcast %2266 : f32 to vector<16x128xf32>
    %2342 = arith.subf %2341, %5 : vector<16x128xf32>
    %2343 = arith.mulf %2338, %2338 : vector<16x128xf32>
    %2344 = arith.mulf %2340, %2340 : vector<16x128xf32>
    %2345 = arith.addf %2343, %2344 : vector<16x128xf32>
    %2346 = arith.mulf %2342, %2342 : vector<16x128xf32>
    %2347 = arith.addf %2345, %2346 : vector<16x128xf32>
    %cst_605 = arith.constant 9.99999996E-13 : f32
    %2348 = vector.broadcast %cst_605 : f32 to vector<16x128xf32>
    %2349 = arith.addf %2347, %2348 : vector<16x128xf32>
    %2350 = math.rsqrt %2349 : vector<16x128xf32>
    %2351 = arith.mulf %2338, %2350 : vector<16x128xf32>
    %2352 = arith.mulf %2340, %2350 : vector<16x128xf32>
    %2353 = arith.mulf %2342, %2350 : vector<16x128xf32>
    %2354 = arith.mulf %20, %2351 : vector<16x128xf32>
    %2355 = arith.mulf %21, %2352 : vector<16x128xf32>
    %2356 = arith.addf %2354, %2355 : vector<16x128xf32>
    %2357 = arith.mulf %22, %2353 : vector<16x128xf32>
    %2358 = arith.addf %2356, %2357 : vector<16x128xf32>
    %2359 = arith.mulf %2329, %2351 : vector<16x128xf32>
    %2360 = arith.mulf %2330, %2352 : vector<16x128xf32>
    %2361 = arith.addf %2359, %2360 : vector<16x128xf32>
    %2362 = arith.mulf %2331, %2353 : vector<16x128xf32>
    %2363 = arith.addf %2361, %2362 : vector<16x128xf32>
    %cst_606 = arith.constant 2.000000e+00 : f32
    %2364 = vector.broadcast %cst_606 : f32 to vector<16x128xf32>
    %2365 = arith.mulf %2364, %2336 : vector<16x128xf32>
    %2366 = arith.mulf %2365, %2358 : vector<16x128xf32>
    %2367 = arith.subf %2366, %2363 : vector<16x128xf32>
    %cst_607 = arith.constant 0.000000e+00 : f32
    %2368 = vector.broadcast %cst_607 : f32 to vector<16x128xf32>
    %2369 = arith.maximumf %2367, %2368 : vector<16x128xf32>
    %cst_608 = arith.constant 0.000000e+00 : f32
    %2370 = vector.broadcast %cst_608 : f32 to vector<16x128xf32>
    %2371 = arith.cmpf ogt, %2336, %2370 : vector<16x128xf32>
    %cst_609 = arith.constant 0.000000e+00 : f32
    %2372 = vector.broadcast %cst_609 : f32 to vector<16x128xf32>
    %2373 = arith.select %2371, %2369, %2372 : vector<16x128xi1>, vector<16x128xf32>
    %2374 = arith.mulf %2373, %2373 : vector<16x128xf32>
    %2375 = arith.mulf %2374, %2374 : vector<16x128xf32>
    %2376 = arith.mulf %2375, %2375 : vector<16x128xf32>
    %2377 = arith.mulf %2376, %2376 : vector<16x128xf32>
    %2378 = arith.mulf %2377, %2377 : vector<16x128xf32>
    %2379 = arith.mulf %2378, %2378 : vector<16x128xf32>
    %cst_610 = arith.constant 0.000000e+00 : f32
    %2380 = vector.broadcast %cst_610 : f32 to vector<16x128xf32>
    %2381 = arith.maximumf %2336, %2380 : vector<16x128xf32>
    %cst_611 = arith.constant 3.000000e-01 : f32
    %2382 = vector.broadcast %cst_611 : f32 to vector<16x128xf32>
    %2383 = arith.mulf %2382, %2381 : vector<16x128xf32>
    %cst_612 = arith.constant 5.000000e-01 : f32
    %2384 = vector.broadcast %cst_612 : f32 to vector<16x128xf32>
    %2385 = arith.addf %2384, %2383 : vector<16x128xf32>
    %cst_613 = arith.constant 2.000000e-01 : f32
    %2386 = vector.broadcast %cst_613 : f32 to vector<16x128xf32>
    %2387 = arith.mulf %2386, %2379 : vector<16x128xf32>
    %2388 = arith.addf %2385, %2387 : vector<16x128xf32>
    %c12 = arith.constant 12 : index
    %c0_614 = arith.constant 0 : index
    %c0_615 = arith.constant 0 : index
    %c0_616 = arith.constant 0 : index
    %2389 = vector.load %arg5[%c12, %c0_614, %c0_615, %c0_616] : memref<14x3x16x128xf32, #tpu.memory_space<vmem>>, vector<1x1x16x128xf32>
    %2390 = vector.shape_cast %2389 : vector<1x1x16x128xf32> to vector<16x128xf32>
    %2391 = vector.shape_cast %2309 : vector<16x128xf32> to vector<1x1x16x128xf32>
    tpu.vector_store %arg5[%c12, %c0_614, %c0_615, %c0_616], %2391 {strides = array<i32>} : memref<14x3x16x128xf32, #tpu.memory_space<vmem>>, vector<1x1x16x128xf32>,
    %c12_617 = arith.constant 12 : index
    %c1_618 = arith.constant 1 : index
    %c0_619 = arith.constant 0 : index
    %c0_620 = arith.constant 0 : index
    %2392 = vector.load %arg5[%c12_617, %c1_618, %c0_619, %c0_620] : memref<14x3x16x128xf32, #tpu.memory_space<vmem>>, vector<1x1x16x128xf32>
    %2393 = vector.shape_cast %2392 : vector<1x1x16x128xf32> to vector<16x128xf32>
    %2394 = vector.shape_cast %2310 : vector<16x128xf32> to vector<1x1x16x128xf32>
    tpu.vector_store %arg5[%c12_617, %c1_618, %c0_619, %c0_620], %2394 {strides = array<i32>} : memref<14x3x16x128xf32, #tpu.memory_space<vmem>>, vector<1x1x16x128xf32>,
    %c12_621 = arith.constant 12 : index
    %c2_622 = arith.constant 2 : index
    %c0_623 = arith.constant 0 : index
    %c0_624 = arith.constant 0 : index
    %2395 = vector.load %arg5[%c12_621, %c2_622, %c0_623, %c0_624] : memref<14x3x16x128xf32, #tpu.memory_space<vmem>>, vector<1x1x16x128xf32>
    %2396 = vector.shape_cast %2395 : vector<1x1x16x128xf32> to vector<16x128xf32>
    %2397 = vector.shape_cast %2314 : vector<16x128xf32> to vector<1x1x16x128xf32>
    tpu.vector_store %arg5[%c12_621, %c2_622, %c0_623, %c0_624], %2397 {strides = array<i32>} : memref<14x3x16x128xf32, #tpu.memory_space<vmem>>, vector<1x1x16x128xf32>,
    %2398 = arith.truncf %2388 : vector<16x128xf32> to vector<16x128xbf16>
    %c12_625 = arith.constant 12 : index
    %c0_626 = arith.constant 0 : index
    %c0_627 = arith.constant 0 : index
    %2399 = vector.load %arg6[%c12_625, %c0_626, %c0_627] : memref<14x16x128xbf16, #tpu.memory_space<vmem>>, vector<1x16x128xbf16>
    %2400 = vector.shape_cast %2399 : vector<1x16x128xbf16> to vector<16x128xbf16>
    %2401 = vector.shape_cast %2398 : vector<16x128xbf16> to vector<1x16x128xbf16>
    tpu.vector_store %arg6[%c12_625, %c0_626, %c0_627], %2401 {strides = array<i32>} : memref<14x16x128xbf16, #tpu.memory_space<vmem>>, vector<1x16x128xbf16>,
    %c14_i32_628 = arith.constant 14 : i32
    %2402 = arith.muli %arg0, %c14_i32_628 : i32
    %c13_i32 = arith.constant 13 : i32
    %2403 = arith.addi %2402, %c13_i32 : i32
    %c9_i32_629 = arith.constant 9 : i32
    %2404 = arith.muli %2403, %c9_i32_629 : i32
    %c0_i32_630 = arith.constant 0 : i32
    %2405 = arith.addi %2404, %c0_i32_630 : i32
    %2406 = arith.index_cast %2405 : i32 to index
    %2407 = memref.load %arg3[%2406] : memref<252xf32, #tpu.memory_space<smem>>
    %c1_i32_631 = arith.constant 1 : i32
    %2408 = arith.addi %2404, %c1_i32_631 : i32
    %2409 = arith.index_cast %2408 : i32 to index
    %2410 = memref.load %arg3[%2409] : memref<252xf32, #tpu.memory_space<smem>>
    %c2_i32_632 = arith.constant 2 : i32
    %2411 = arith.addi %2404, %c2_i32_632 : i32
    %2412 = arith.index_cast %2411 : i32 to index
    %2413 = memref.load %arg3[%2412] : memref<252xf32, #tpu.memory_space<smem>>
    %c3_i32_633 = arith.constant 3 : i32
    %2414 = arith.addi %2404, %c3_i32_633 : i32
    %2415 = arith.index_cast %2414 : i32 to index
    %2416 = memref.load %arg3[%2415] : memref<252xf32, #tpu.memory_space<smem>>
    %c4_i32_634 = arith.constant 4 : i32
    %2417 = arith.addi %2404, %c4_i32_634 : i32
    %2418 = arith.index_cast %2417 : i32 to index
    %2419 = memref.load %arg3[%2418] : memref<252xf32, #tpu.memory_space<smem>>
    %c5_i32_635 = arith.constant 5 : i32
    %2420 = arith.addi %2404, %c5_i32_635 : i32
    %2421 = arith.index_cast %2420 : i32 to index
    %2422 = memref.load %arg3[%2421] : memref<252xf32, #tpu.memory_space<smem>>
    %c6_i32_636 = arith.constant 6 : i32
    %2423 = arith.addi %2404, %c6_i32_636 : i32
    %2424 = arith.index_cast %2423 : i32 to index
    %2425 = memref.load %arg3[%2424] : memref<252xf32, #tpu.memory_space<smem>>
    %c7_i32_637 = arith.constant 7 : i32
    %2426 = arith.addi %2404, %c7_i32_637 : i32
    %2427 = arith.index_cast %2426 : i32 to index
    %2428 = memref.load %arg3[%2427] : memref<252xf32, #tpu.memory_space<smem>>
    %c8_i32_638 = arith.constant 8 : i32
    %2429 = arith.addi %2404, %c8_i32_638 : i32
    %2430 = arith.index_cast %2429 : i32 to index
    %2431 = memref.load %arg3[%2430] : memref<252xf32, #tpu.memory_space<smem>>
    %c0_i32_639 = arith.constant 0 : i32
    %2432 = arith.addi %2404, %c0_i32_639 : i32
    %2433 = arith.index_cast %2432 : i32 to index
    %2434 = memref.load %arg4[%2433] : memref<252xf32, #tpu.memory_space<smem>>
    %c1_i32_640 = arith.constant 1 : i32
    %2435 = arith.addi %2404, %c1_i32_640 : i32
    %2436 = arith.index_cast %2435 : i32 to index
    %2437 = memref.load %arg4[%2436] : memref<252xf32, #tpu.memory_space<smem>>
    %c2_i32_641 = arith.constant 2 : i32
    %2438 = arith.addi %2404, %c2_i32_641 : i32
    %2439 = arith.index_cast %2438 : i32 to index
    %2440 = memref.load %arg4[%2439] : memref<252xf32, #tpu.memory_space<smem>>
    %c3_i32_642 = arith.constant 3 : i32
    %2441 = arith.addi %2404, %c3_i32_642 : i32
    %2442 = arith.index_cast %2441 : i32 to index
    %2443 = memref.load %arg4[%2442] : memref<252xf32, #tpu.memory_space<smem>>
    %c4_i32_643 = arith.constant 4 : i32
    %2444 = arith.addi %2404, %c4_i32_643 : i32
    %2445 = arith.index_cast %2444 : i32 to index
    %2446 = memref.load %arg4[%2445] : memref<252xf32, #tpu.memory_space<smem>>
    %c5_i32_644 = arith.constant 5 : i32
    %2447 = arith.addi %2404, %c5_i32_644 : i32
    %2448 = arith.index_cast %2447 : i32 to index
    %2449 = memref.load %arg4[%2448] : memref<252xf32, #tpu.memory_space<smem>>
    %c6_i32_645 = arith.constant 6 : i32
    %2450 = arith.addi %2404, %c6_i32_645 : i32
    %2451 = arith.index_cast %2450 : i32 to index
    %2452 = memref.load %arg4[%2451] : memref<252xf32, #tpu.memory_space<smem>>
    %c7_i32_646 = arith.constant 7 : i32
    %2453 = arith.addi %2404, %c7_i32_646 : i32
    %2454 = arith.index_cast %2453 : i32 to index
    %2455 = memref.load %arg4[%2454] : memref<252xf32, #tpu.memory_space<smem>>
    %c8_i32_647 = arith.constant 8 : i32
    %2456 = arith.addi %2404, %c8_i32_647 : i32
    %2457 = arith.index_cast %2456 : i32 to index
    %2458 = memref.load %arg4[%2457] : memref<252xf32, #tpu.memory_space<smem>>
    %2459 = vector.broadcast %2407 : f32 to vector<16x128xf32>
    %2460 = arith.mulf %1, %2459 : vector<16x128xf32>
    %2461 = vector.broadcast %2416 : f32 to vector<16x128xf32>
    %2462 = arith.mulf %3, %2461 : vector<16x128xf32>
    %2463 = arith.addf %2460, %2462 : vector<16x128xf32>
    %2464 = vector.broadcast %2425 : f32 to vector<16x128xf32>
    %2465 = arith.mulf %5, %2464 : vector<16x128xf32>
    %2466 = arith.addf %2463, %2465 : vector<16x128xf32>
    %2467 = vector.broadcast %2434 : f32 to vector<16x128xf32>
    %2468 = arith.addf %2466, %2467 : vector<16x128xf32>
    %2469 = vector.broadcast %2410 : f32 to vector<16x128xf32>
    %2470 = arith.mulf %1, %2469 : vector<16x128xf32>
    %2471 = vector.broadcast %2419 : f32 to vector<16x128xf32>
    %2472 = arith.mulf %3, %2471 : vector<16x128xf32>
    %2473 = arith.addf %2470, %2472 : vector<16x128xf32>
    %2474 = vector.broadcast %2428 : f32 to vector<16x128xf32>
    %2475 = arith.mulf %5, %2474 : vector<16x128xf32>
    %2476 = arith.addf %2473, %2475 : vector<16x128xf32>
    %2477 = vector.broadcast %2437 : f32 to vector<16x128xf32>
    %2478 = arith.addf %2476, %2477 : vector<16x128xf32>
    %2479 = vector.broadcast %2413 : f32 to vector<16x128xf32>
    %2480 = arith.mulf %1, %2479 : vector<16x128xf32>
    %2481 = vector.broadcast %2422 : f32 to vector<16x128xf32>
    %2482 = arith.mulf %3, %2481 : vector<16x128xf32>
    %2483 = arith.addf %2480, %2482 : vector<16x128xf32>
    %2484 = vector.broadcast %2431 : f32 to vector<16x128xf32>
    %2485 = arith.mulf %5, %2484 : vector<16x128xf32>
    %2486 = arith.addf %2483, %2485 : vector<16x128xf32>
    %2487 = vector.broadcast %2440 : f32 to vector<16x128xf32>
    %2488 = arith.addf %2486, %2487 : vector<16x128xf32>
    %2489 = tpu.reciprocal %2488 {approx = true} : vector<16x128xf32> -> vector<16x128xf32>
    %cst_648 = arith.constant 1.73205078 : f32
    %2490 = vector.broadcast %cst_648 : f32 to vector<16x128xf32>
    %2491 = arith.mulf %2490, %2489 : vector<16x128xf32>
    %2492 = arith.mulf %2468, %2491 : vector<16x128xf32>
    %2493 = arith.mulf %2478, %2491 : vector<16x128xf32>
    %cst_649 = arith.constant -1.01010096 : f32
    %2494 = vector.broadcast %cst_649 : f32 to vector<16x128xf32>
    %2495 = arith.divf %2494, %2488 : vector<16x128xf32>
    %cst_650 = arith.constant 1.01010096 : f32
    %2496 = vector.broadcast %cst_650 : f32 to vector<16x128xf32>
    %2497 = arith.addf %2496, %2495 : vector<16x128xf32>
    %2498 = vector.broadcast %2452 : f32 to vector<16x128xf32>
    %2499 = arith.subf %2498, %1 : vector<16x128xf32>
    %2500 = vector.broadcast %2455 : f32 to vector<16x128xf32>
    %2501 = arith.subf %2500, %3 : vector<16x128xf32>
    %2502 = vector.broadcast %2458 : f32 to vector<16x128xf32>
    %2503 = arith.subf %2502, %5 : vector<16x128xf32>
    %2504 = arith.mulf %2499, %2499 : vector<16x128xf32>
    %2505 = arith.mulf %2501, %2501 : vector<16x128xf32>
    %2506 = arith.addf %2504, %2505 : vector<16x128xf32>
    %2507 = arith.mulf %2503, %2503 : vector<16x128xf32>
    %2508 = arith.addf %2506, %2507 : vector<16x128xf32>
    %cst_651 = arith.constant 9.99999996E-13 : f32
    %2509 = vector.broadcast %cst_651 : f32 to vector<16x128xf32>
    %2510 = arith.addf %2508, %2509 : vector<16x128xf32>
    %2511 = math.rsqrt %2510 : vector<16x128xf32>
    %2512 = arith.mulf %2499, %2511 : vector<16x128xf32>
    %2513 = arith.mulf %2501, %2511 : vector<16x128xf32>
    %2514 = arith.mulf %2503, %2511 : vector<16x128xf32>
    %2515 = arith.mulf %20, %2512 : vector<16x128xf32>
    %2516 = arith.mulf %21, %2513 : vector<16x128xf32>
    %2517 = arith.addf %2515, %2516 : vector<16x128xf32>
    %2518 = arith.mulf %22, %2514 : vector<16x128xf32>
    %2519 = arith.addf %2517, %2518 : vector<16x128xf32>
    %2520 = vector.broadcast %2443 : f32 to vector<16x128xf32>
    %2521 = arith.subf %2520, %1 : vector<16x128xf32>
    %2522 = vector.broadcast %2446 : f32 to vector<16x128xf32>
    %2523 = arith.subf %2522, %3 : vector<16x128xf32>
    %2524 = vector.broadcast %2449 : f32 to vector<16x128xf32>
    %2525 = arith.subf %2524, %5 : vector<16x128xf32>
    %2526 = arith.mulf %2521, %2521 : vector<16x128xf32>
    %2527 = arith.mulf %2523, %2523 : vector<16x128xf32>
    %2528 = arith.addf %2526, %2527 : vector<16x128xf32>
    %2529 = arith.mulf %2525, %2525 : vector<16x128xf32>
    %2530 = arith.addf %2528, %2529 : vector<16x128xf32>
    %cst_652 = arith.constant 9.99999996E-13 : f32
    %2531 = vector.broadcast %cst_652 : f32 to vector<16x128xf32>
    %2532 = arith.addf %2530, %2531 : vector<16x128xf32>
    %2533 = math.rsqrt %2532 : vector<16x128xf32>
    %2534 = arith.mulf %2521, %2533 : vector<16x128xf32>
    %2535 = arith.mulf %2523, %2533 : vector<16x128xf32>
    %2536 = arith.mulf %2525, %2533 : vector<16x128xf32>
    %2537 = arith.mulf %20, %2534 : vector<16x128xf32>
    %2538 = arith.mulf %21, %2535 : vector<16x128xf32>
    %2539 = arith.addf %2537, %2538 : vector<16x128xf32>
    %2540 = arith.mulf %22, %2536 : vector<16x128xf32>
    %2541 = arith.addf %2539, %2540 : vector<16x128xf32>
    %2542 = arith.mulf %2512, %2534 : vector<16x128xf32>
    %2543 = arith.mulf %2513, %2535 : vector<16x128xf32>
    %2544 = arith.addf %2542, %2543 : vector<16x128xf32>
    %2545 = arith.mulf %2514, %2536 : vector<16x128xf32>
    %2546 = arith.addf %2544, %2545 : vector<16x128xf32>
    %cst_653 = arith.constant 2.000000e+00 : f32
    %2547 = vector.broadcast %cst_653 : f32 to vector<16x128xf32>
    %2548 = arith.mulf %2547, %2519 : vector<16x128xf32>
    %2549 = arith.mulf %2548, %2541 : vector<16x128xf32>
    %2550 = arith.subf %2549, %2546 : vector<16x128xf32>
    %cst_654 = arith.constant 0.000000e+00 : f32
    %2551 = vector.broadcast %cst_654 : f32 to vector<16x128xf32>
    %2552 = arith.maximumf %2550, %2551 : vector<16x128xf32>
    %cst_655 = arith.constant 0.000000e+00 : f32
    %2553 = vector.broadcast %cst_655 : f32 to vector<16x128xf32>
    %2554 = arith.cmpf ogt, %2519, %2553 : vector<16x128xf32>
    %cst_656 = arith.constant 0.000000e+00 : f32
    %2555 = vector.broadcast %cst_656 : f32 to vector<16x128xf32>
    %2556 = arith.select %2554, %2552, %2555 : vector<16x128xi1>, vector<16x128xf32>
    %2557 = arith.mulf %2556, %2556 : vector<16x128xf32>
    %2558 = arith.mulf %2557, %2557 : vector<16x128xf32>
    %2559 = arith.mulf %2558, %2558 : vector<16x128xf32>
    %2560 = arith.mulf %2559, %2559 : vector<16x128xf32>
    %2561 = arith.mulf %2560, %2560 : vector<16x128xf32>
    %2562 = arith.mulf %2561, %2561 : vector<16x128xf32>
    %cst_657 = arith.constant 0.000000e+00 : f32
    %2563 = vector.broadcast %cst_657 : f32 to vector<16x128xf32>
    %2564 = arith.maximumf %2519, %2563 : vector<16x128xf32>
    %cst_658 = arith.constant 3.000000e-01 : f32
    %2565 = vector.broadcast %cst_658 : f32 to vector<16x128xf32>
    %2566 = arith.mulf %2565, %2564 : vector<16x128xf32>
    %cst_659 = arith.constant 5.000000e-01 : f32
    %2567 = vector.broadcast %cst_659 : f32 to vector<16x128xf32>
    %2568 = arith.addf %2567, %2566 : vector<16x128xf32>
    %cst_660 = arith.constant 2.000000e-01 : f32
    %2569 = vector.broadcast %cst_660 : f32 to vector<16x128xf32>
    %2570 = arith.mulf %2569, %2562 : vector<16x128xf32>
    %2571 = arith.addf %2568, %2570 : vector<16x128xf32>
    %c13 = arith.constant 13 : index
    %c0_661 = arith.constant 0 : index
    %c0_662 = arith.constant 0 : index
    %c0_663 = arith.constant 0 : index
    %2572 = vector.load %arg5[%c13, %c0_661, %c0_662, %c0_663] : memref<14x3x16x128xf32, #tpu.memory_space<vmem>>, vector<1x1x16x128xf32>
    %2573 = vector.shape_cast %2572 : vector<1x1x16x128xf32> to vector<16x128xf32>
    %2574 = vector.shape_cast %2492 : vector<16x128xf32> to vector<1x1x16x128xf32>
    tpu.vector_store %arg5[%c13, %c0_661, %c0_662, %c0_663], %2574 {strides = array<i32>} : memref<14x3x16x128xf32, #tpu.memory_space<vmem>>, vector<1x1x16x128xf32>,
    %c13_664 = arith.constant 13 : index
    %c1_665 = arith.constant 1 : index
    %c0_666 = arith.constant 0 : index
    %c0_667 = arith.constant 0 : index
    %2575 = vector.load %arg5[%c13_664, %c1_665, %c0_666, %c0_667] : memref<14x3x16x128xf32, #tpu.memory_space<vmem>>, vector<1x1x16x128xf32>
    %2576 = vector.shape_cast %2575 : vector<1x1x16x128xf32> to vector<16x128xf32>
    %2577 = vector.shape_cast %2493 : vector<16x128xf32> to vector<1x1x16x128xf32>
    tpu.vector_store %arg5[%c13_664, %c1_665, %c0_666, %c0_667], %2577 {strides = array<i32>} : memref<14x3x16x128xf32, #tpu.memory_space<vmem>>, vector<1x1x16x128xf32>,
    %c13_668 = arith.constant 13 : index
    %c2_669 = arith.constant 2 : index
    %c0_670 = arith.constant 0 : index
    %c0_671 = arith.constant 0 : index
    %2578 = vector.load %arg5[%c13_668, %c2_669, %c0_670, %c0_671] : memref<14x3x16x128xf32, #tpu.memory_space<vmem>>, vector<1x1x16x128xf32>
    %2579 = vector.shape_cast %2578 : vector<1x1x16x128xf32> to vector<16x128xf32>
    %2580 = vector.shape_cast %2497 : vector<16x128xf32> to vector<1x1x16x128xf32>
    tpu.vector_store %arg5[%c13_668, %c2_669, %c0_670, %c0_671], %2580 {strides = array<i32>} : memref<14x3x16x128xf32, #tpu.memory_space<vmem>>, vector<1x1x16x128xf32>,
    %2581 = arith.truncf %2571 : vector<16x128xf32> to vector<16x128xbf16>
    %c13_672 = arith.constant 13 : index
    %c0_673 = arith.constant 0 : index
    %c0_674 = arith.constant 0 : index
    %2582 = vector.load %arg6[%c13_672, %c0_673, %c0_674] : memref<14x16x128xbf16, #tpu.memory_space<vmem>>, vector<1x16x128xbf16>
    %2583 = vector.shape_cast %2582 : vector<1x16x128xbf16> to vector<16x128xbf16>
    %2584 = vector.shape_cast %2581 : vector<16x128xbf16> to vector<1x16x128xbf16>
    tpu.vector_store %arg6[%c13_672, %c0_673, %c0_674], %2584 {strides = array<i32>} : memref<14x16x128xbf16, #tpu.memory_space<vmem>>, vector<1x16x128xbf16>,
    return
  }
  func.func @transform_0(%arg0: i32, %arg1: i32) -> (i32, i32, i32) {
    %c0_i32 = arith.constant 0 : i32
    %c0_i32_0 = arith.constant 0 : i32
    %c0_i32_1 = arith.constant 0 : i32
    return %c0_i32, %arg1, %c0_i32_0 : i32, i32, i32
  }
  func.func @transform_1(%arg0: i32, %arg1: i32) -> i32 {
    %c0_i32 = arith.constant 0 : i32
    %c0_i32_0 = arith.constant 0 : i32
    return %c0_i32 : i32
  }
  func.func @transform_2(%arg0: i32, %arg1: i32) -> i32 {
    %c0_i32 = arith.constant 0 : i32
    %c0_i32_0 = arith.constant 0 : i32
    return %c0_i32 : i32
  }
  func.func @transform_3(%arg0: i32, %arg1: i32) -> (i32, i32, i32, i32) {
    %c0_i32 = arith.constant 0 : i32
    %c0_i32_0 = arith.constant 0 : i32
    %c0_i32_1 = arith.constant 0 : i32
    return %arg0, %c0_i32, %arg1, %c0_i32_0 : i32, i32, i32, i32
  }
  func.func @transform_4(%arg0: i32, %arg1: i32) -> (i32, i32, i32) {
    %c0_i32 = arith.constant 0 : i32
    %c0_i32_0 = arith.constant 0 : i32
    return %arg0, %arg1, %c0_i32 : i32, i32, i32
  }
}

</mosaic_0001>

<llo_original>
// kernel: tpu_custom_call.1
$region0: #{tpu_custom_call.1}
  #allocation0 [shape = 'u32[]', space=smem, size = 0x4, offset = 0x4, fixed_abs, tag = 'smem constant byte address 0x4 - core index']
  #allocation1 [shape = 'u32[144,128]{1,0:T(1,128)}', space=vmem, size = 0x12000, scoped, tag = 'internal scratch']
  %s0 = inlined_call_operand.hbm [shape: f32[6,16,128], index: 0, kind: input, shape index: {}]
  %s1 = inlined_call_operand.vmem [shape: f32[252], index: 1, kind: input, shape index: {}]
  %s2 = inlined_call_operand.vmem [shape: f32[252], index: 2, kind: input, shape index: {}]
  %s3 = inlined_call_operand.hbm [shape: f32[28,3,16,128], index: 3, kind: output, shape index: {0}]
  %s4 = inlined_call_operand.hbm [shape: bf16[28,16,128], index: 4, kind: output, shape index: {1}]
  %5 = xla_tuple %s3, %s4
  %s6 = sld [smem:[#allocation0]]
  $region65: #{tpu_custom_call.1} parent=0
    _
  %s8 = ssub.s32 1, %s6
  %s9 = scalar_select 0, %s8, %s6
  $region1: #{tpu_custom_call.1} parent=0
    #allocation2 [shape = 'u8[49152]{0}', space=vmem, size = 0xc000, scoped, tag = 'input window, operand 0, single buffered']
    #allocation3 [shape = 's32[2]{0}', space=sflag, size = 0x8, scoped, tag = 'scoped memory for tpu_custom_call.1']
    #allocation4 [shape = 's32[2]{0}', space=sflag, size = 0x8, scoped, tag = 'scoped memory for tpu_custom_call.1']
    #allocation5 [shape = 's32[2]{0}', space=sflag, size = 0x8, scoped, tag = 'scoped memory for tpu_custom_call.1']
    #allocation6 [shape = 'u8[1024]{0}', space=smem, size = 0x400, scoped, tag = 'input window, operand 1, single buffered']
    #allocation7 [shape = 'u8[1024]{0}', space=smem, size = 0x400, scoped, tag = 'input window, operand 2, single buffered']
    #allocation8 [shape = 's32[1]{0}', space=sflag, size = 0x4, scoped, tag = 'scoped memory for tpu_custom_call.1']
    #allocation9 [shape = 'u8[688128]{0}', space=vmem, size = 0xa8000, scoped, tag = 'output window, operand 0']
    #allocation10 [shape = 'u8[114688]{0}', space=vmem, size = 0x1c000, scoped, tag = 'output window, operand 1']
    #allocation11 [shape = 's32[2]{0}', space=sflag, size = 0x8, scoped, tag = 'scoped memory for tpu_custom_call.1']
    %10 = vsyncpa [#allocation3], 0
    %11 = vsyncpa [#allocation5], 0
    %12 = vsyncpa [#allocation8], 0
    %13 = vsyncpa [#allocation4], 0
    %s14 = scalar_lea.sflag [#allocation4], 1
    %15 = vsyncpa %s14, 0
    %16 = vsyncpa [#allocation11], 0
    %s17 = scalar_lea.sflag [#allocation11], 1
    %18 = vsyncpa %s17, 0
    loop: start=0, step=1, limit=4
    $region2: #{tpu_custom_call.1} parent=1 // loop_pre_header
      _
    $region3: #{tpu_custom_call.1} parent=1 // loop_header
      %s20 = sphi 0, %s24
      %p21 = scmp.ge.s32.totalorder %s20, 4
      %s27 = sphi 0, %s39
      %s28 = sphi 0, %s35
      %s29 = sphi 0, %s27
      %s30 = sphi 0, %s28
      %s31 = sphi 0, %s29
      %s32 = sphi 0, %s30
      %s42 = sphi 0, %s44
      %s45 = sphi 0, %s42
      %s46 = sphi 0, %s45
      %s62 = sphi 0, %s46
      %s66 = sphi 0, %s66
      %s68 = sphi 0, %s66
      %s69 = sphi 0, %s68
      %s83 = sphi 0, %s69
      %s87 = sphi 0, %s87
      %s89 = sphi 0, %s87
      %s90 = sphi 0, %s89
      %s104 = sphi 0, %s90
      %s112 = sphi 0, %s114
      %s115 = sphi 0, %s112
      %s116 = sphi 0, %s115
      %s132 = sphi 0, %s116
      %s140 = sphi 0, %s142
      %s143 = sphi 0, %s140
      %s144 = sphi 0, %s143
      %s160 = sphi 0, %s144
    $region4: #{tpu_custom_call.1} parent=1 // loop_header_branch
      %23 = sbr.rel (%p21) target = $region8
    $region5: #{tpu_custom_call.1} parent=1 // loop_body
      %s25 = ssub.s32 %s20, 1
      %s26 = ssub.s32 %s20, 2
      %s33 = sadd.s32 1, %s28
      %p34 = scmp.ge.s32.totalorder %s33, 1
      %s35 = scalar_select %p34, 0, %s33
      %s36 = sadd.s32 1, %s27
      %s37 = scalar_select %p34, %s36, %s27
      %p38 = scmp.ge.s32.totalorder %s37, 2
      %s39 = scalar_select %p38, 0, %s37
      %s40 = ssub.s32 %s28, %s35
      %p41 = scmp.eq.s32.totalorder %s40, 0
      %s43 = sadd.s32 %s42, 1
      %s44 = scalar_select %p41, %s42, %s43
      %p47 = pneg %p41
      %p48 = scmp.eq.s32.totalorder %s20, 1
      %p49 = por %p47, %p48
      %p50 = scmp.ne.s32.totalorder %s42, %s45
      %p51 = scmp.eq.s32.totalorder %s20, 0
      %p52 = por %p50, %p51
      %p53 = scmp.ne.s32.totalorder %s42, %s45
      %p54 = scmp.eq.s32.totalorder %s25, 1
      %p55 = por %p53, %p54
      %p56 = scmp.ne.s32.totalorder %s45, %s46
      %p57 = scmp.eq.s32.totalorder %s25, 0
      %p58 = por %p56, %p57
      %p59 = scmp.ne.s32.totalorder %s45, %s46
      %p60 = scmp.eq.s32.totalorder %s26, 1
      %p61 = por %p59, %p60
      %p63 = scmp.ne.s32.totalorder %s46, %s62
      %p64 = scmp.eq.s32.totalorder %s26, 0
      %p65 = por %p63, %p64
      %s67 = sadd.s32 %s66, 1
      %p70 = scmp.eq.s32.totalorder %s20, 1
      %p71 = scmp.ne.s32.totalorder %s66, %s68
      %p72 = scmp.eq.s32.totalorder %s20, 0
      %p73 = por %p71, %p72
      %p74 = scmp.ne.s32.totalorder %s66, %s68
      %p75 = scmp.eq.s32.totalorder %s25, 1
      %p76 = por %p74, %p75
      %p77 = scmp.ne.s32.totalorder %s68, %s69
      %p78 = scmp.eq.s32.totalorder %s25, 0
      %p79 = por %p77, %p78
      %p80 = scmp.ne.s32.totalorder %s68, %s69
      %p81 = scmp.eq.s32.totalorder %s26, 1
      %p82 = por %p80, %p81
      %p84 = scmp.ne.s32.totalorder %s69, %s83
      %p85 = scmp.eq.s32.totalorder %s26, 0
      %p86 = por %p84, %p85
      %s88 = sadd.s32 %s87, 1
      %p91 = scmp.eq.s32.totalorder %s20, 1
      %p92 = scmp.ne.s32.totalorder %s87, %s89
      %p93 = scmp.eq.s32.totalorder %s20, 0
      %p94 = por %p92, %p93
      %p95 = scmp.ne.s32.totalorder %s87, %s89
      %p96 = scmp.eq.s32.totalorder %s25, 1
      %p97 = por %p95, %p96
      %p98 = scmp.ne.s32.totalorder %s89, %s90
      %p99 = scmp.eq.s32.totalorder %s25, 0
      %p100 = por %p98, %p99
      %p101 = scmp.ne.s32.totalorder %s89, %s90
      %p102 = scmp.eq.s32.totalorder %s26, 1
      %p103 = por %p101, %p102
      %p105 = scmp.ne.s32.totalorder %s90, %s104
      %p106 = scmp.eq.s32.totalorder %s26, 0
      %p107 = por %p105, %p106
      %s108 = ssub.s32 %s27, %s39
      %s109 = ssub.s32 %s28, %s35
      %s110 = sor.u32 %s108, %s109
      %p111 = scmp.eq.s32.totalorder %s110, 0
      %s113 = sadd.s32 %s112, 1
      %s114 = scalar_select %p111, %s112, %s113
      %p117 = pneg %p111
      %p118 = scmp.eq.s32.totalorder %s20, 1
      %p119 = por %p117, %p118
      %p120 = scmp.ne.s32.totalorder %s112, %s115
      %p121 = scmp.eq.s32.totalorder %s20, 0
      %p122 = por %p120, %p121
      %p123 = scmp.ne.s32.totalorder %s112, %s115
      %p124 = scmp.eq.s32.totalorder %s25, 1
      %p125 = por %p123, %p124
      %p126 = scmp.ne.s32.totalorder %s115, %s116
      %p127 = scmp.eq.s32.totalorder %s25, 0
      %p128 = por %p126, %p127
      %p129 = scmp.ne.s32.totalorder %s115, %s116
      %p130 = scmp.eq.s32.totalorder %s26, 1
      %p131 = por %p129, %p130
      %p133 = scmp.ne.s32.totalorder %s116, %s132
      %p134 = scmp.eq.s32.totalorder %s26, 0
      %p135 = por %p133, %p134
      %s136 = ssub.s32 %s27, %s39
      %s137 = ssub.s32 %s28, %s35
      %s138 = sor.u32 %s136, %s137
      %p139 = scmp.eq.s32.totalorder %s138, 0
      %s141 = sadd.s32 %s140, 1
      %s142 = scalar_select %p139, %s140, %s141
      %p145 = pneg %p139
      %p146 = scmp.eq.s32.totalorder %s20, 1
      %p147 = por %p145, %p146
      %p148 = scmp.ne.s32.totalorder %s140, %s143
      %p149 = scmp.eq.s32.totalorder %s20, 0
      %p150 = por %p148, %p149
      %p151 = scmp.ne.s32.totalorder %s140, %s143
      %p152 = scmp.eq.s32.totalorder %s25, 1
      %p153 = por %p151, %p152
      %p154 = scmp.ne.s32.totalorder %s143, %s144
      %p155 = scmp.eq.s32.totalorder %s25, 0
      %p156 = por %p154, %p155
      %p157 = scmp.ne.s32.totalorder %s143, %s144
      %p158 = scmp.eq.s32.totalorder %s26, 1
      %p159 = por %p157, %p158
      %p161 = scmp.ne.s32.totalorder %s144, %s160
      %p162 = scmp.eq.s32.totalorder %s26, 0
      %p163 = por %p161, %p162
      %p164 = scmp.le.s32.totalorder 1, %s20
      %p165 = scmp.lt.s32.totalorder %s20, 3
      %p166 = pnand %p164, %p165
      %p167 = pneg %p166
      // Predicated region
      $region9: #{tpu_custom_call.1} parent=5 // pred_check
        _
      $region10: #{tpu_custom_call.1} parent=5 // pred_check_branch
        %169 = sbr.rel (%p166) target = $region12
      $region11: #{tpu_custom_call.1} parent=5 // pred_region
        %s170 = ssub.s32 %s20, 1
        // Predicated region
        $region13: #{tpu_custom_call.1} parent=11 // pred_check
          %p171 = pneg %p58
        $region14: #{tpu_custom_call.1} parent=11 // pred_check_branch
          %173 = sbr.rel (%p171) target = $region16
        $region15: #{tpu_custom_call.1} parent=11 // pred_region
          %s174 = smul.u32 2, %s30
          %s176 = ssub.s32 1536, 1536
          %177 = vsyncadd [#allocation3], %s176
          %s178 = smul.addr %s174, 128
          %s179 = scalar_lea.hbm %s0, %s178
          %s180 = sshll.u32 [#allocation2], 4
          %s181 = int_to_ptr.vmem [resolvable:$true] %s180
          %186 = dma.hbm_to_vmem [thread:$0]  %s179, 1536, %s181, [#allocation3], 128, 128, 8
        $region16: #{tpu_custom_call.1} parent=11 // pred_fallthru
          _
        // Predicated region
        $region17: #{tpu_custom_call.1} parent=11 // pred_check
          %p187 = pneg %p79
        $region18: #{tpu_custom_call.1} parent=11 // pred_check_branch
          %189 = sbr.rel (%p187) target = $region20
        $region19: #{tpu_custom_call.1} parent=11 // pred_region
          %s191 = ssub.s32 32, 32
          %192 = vsyncadd [#allocation5], %s191
          %s194 = sshll.u32 %s1, 4
          %s195 = int_to_ptr.vmem [resolvable:$true] %s194
          %197 = dma.vmem_to_smem %s195, 32, [#allocation6], [#allocation5]
        $region20: #{tpu_custom_call.1} parent=11 // pred_fallthru
          _
        // Predicated region
        $region21: #{tpu_custom_call.1} parent=11 // pred_check
          %p198 = pneg %p100
        $region22: #{tpu_custom_call.1} parent=11 // pred_check_branch
          %200 = sbr.rel (%p198) target = $region24
        $region23: #{tpu_custom_call.1} parent=11 // pred_region
          %s202 = ssub.s32 32, 32
          %203 = vsyncadd [#allocation8], %s202
          %s205 = sshll.u32 %s2, 4
          %s206 = int_to_ptr.vmem [resolvable:$true] %s205
          %208 = dma.vmem_to_smem %s206, 32, [#allocation7], [#allocation8]
        $region24: #{tpu_custom_call.1} parent=11 // pred_fallthru
          _
      $region12: #{tpu_custom_call.1} parent=5 // pred_fallthru
        _
      %p209 = scmp.lt.s32.totalorder %s20, 2
      // Predicated region
      $region25: #{tpu_custom_call.1} parent=5 // pred_check
        %p210 = pneg %p209
      $region26: #{tpu_custom_call.1} parent=5 // pred_check_branch
        %212 = sbr.rel (%p210) target = $region28
      $region27: #{tpu_custom_call.1} parent=5 // pred_region
        _
      $region28: #{tpu_custom_call.1} parent=5 // pred_fallthru
        _
      %p213 = scmp.le.s32.totalorder 1, %s20
      %p214 = scmp.lt.s32.totalorder %s20, 3
      %p215 = pnand %p213, %p214
      %p216 = pneg %p215
      // Predicated region
      $region29: #{tpu_custom_call.1} parent=5 // pred_check
        _
      $region30: #{tpu_custom_call.1} parent=5 // pred_check_branch
        %218 = sbr.rel (%p215) target = $region32
      $region31: #{tpu_custom_call.1} parent=5 // pred_region
        %s219 = ssub.s32 %s20, 1
        // Predicated region
        $region33: #{tpu_custom_call.1} parent=31 // pred_check
          %p220 = pneg %p58
        $region34: #{tpu_custom_call.1} parent=31 // pred_check_branch
          %222 = sbr.rel (%p220) target = $region36
        $region35: #{tpu_custom_call.1} parent=31 // pred_region
          %223 = dma.done [#allocation3], 1536
        $region36: #{tpu_custom_call.1} parent=31 // pred_fallthru
          _
        // Predicated region
        $region37: #{tpu_custom_call.1} parent=31 // pred_check
          %p224 = pneg %p79
        $region38: #{tpu_custom_call.1} parent=31 // pred_check_branch
          %226 = sbr.rel (%p224) target = $region40
        $region39: #{tpu_custom_call.1} parent=31 // pred_region
          %227 = dma.done [#allocation5], 32
        $region40: #{tpu_custom_call.1} parent=31 // pred_fallthru
          _
        // Predicated region
        $region41: #{tpu_custom_call.1} parent=31 // pred_check
          %p228 = pneg %p100
        $region42: #{tpu_custom_call.1} parent=31 // pred_check_branch
          %230 = sbr.rel (%p228) target = $region44
        $region43: #{tpu_custom_call.1} parent=31 // pred_region
          %231 = dma.done [#allocation8], 32
        $region44: #{tpu_custom_call.1} parent=31 // pred_fallthru
          _
        %232 = sfence
        %p233 = pneg %p58
        %p234 = pneg %p55
        %p235 = pneg %p79
        %p236 = pneg %p76
        %p237 = pneg %p100
        %p238 = pneg %p97
        %p239 = pneg %p128
        %p240 = pneg %p125
        %s241 = sand.u32 %s115, 1
        %s242 = scalar_lea.sflag [#allocation4], %s241
        %s243 = sand.u32 %s115, 1
        %s244 = smul.addr %s243, 672
        %s245 = scalar_lea.vmem [#allocation9], %s244
        %p246 = pneg %p156
        %p247 = pneg %p153
        %s248 = sand.u32 %s143, 1
        %s249 = scalar_lea.sflag [#allocation11], %s248
        %s250 = sand.u32 %s143, 1
        %s251 = smul.addr %s250, 112
        %s252 = scalar_lea.vmem [#allocation10], %s251
        %s253 = smul.u32 2, %s30
        %s254 = smul.u32 14, %s29
        %s255 = smul.u32 2, %s30
        %s256 = smul.u32 14, %s29
        %s257 = smul.u32 2, %s30
        %v258 = vld [vmem:[#allocation2] sm:$0xff]
        %v259 = vld [vmem:[#allocation2 + $0x8] sm:$0xff]
        %s260 = scalar_lea.vmem [#allocation2], 16
        %v261 = vld [vmem:[%s260] sm:$0xff]
        %v262 = vld [vmem:[%s260 + $0x8] sm:$0xff]
        %s263 = scalar_lea.vmem [#allocation2], 32
        %v264 = vld [vmem:[%s263] sm:$0xff]
        %v265 = vld [vmem:[%s263 + $0x8] sm:$0xff]
        %s266 = scalar_lea.vmem [#allocation2], 48
        %v267 = vld [vmem:[%s266] sm:$0xff]
        %v268 = vld [vmem:[%s266 + $0x8] sm:$0xff]
        %s269 = scalar_lea.vmem [#allocation2], 64
        %v270 = vld [vmem:[%s269] sm:$0xff]
        %v271 = vld [vmem:[%s269 + $0x8] sm:$0xff]
        %s272 = scalar_lea.vmem [#allocation2], 80
        %v273 = vld [vmem:[%s272] sm:$0xff]
        %v274 = vld [vmem:[%s272 + $0x8] sm:$0xff]
        %v275 = vmul.f32 %v267, %v267
        %v276 = vmul.f32 %v268, %v268
        %v277 = vmul.f32 %v270, %v270
        %v278 = vmul.f32 %v271, %v271
        %v279 = vadd.f32 %v275, %v277
        %v280 = vadd.f32 %v276, %v278
        %v281 = vmul.f32 %v273, %v273
        %v282 = vmul.f32 %v274, %v274
        %v283 = vadd.f32 %v279, %v281
        %v284 = vadd.f32 %v280, %v282
        %v285 = vadd.f32 %v283, 1e-12
        %v286 = vadd.f32 %v284, 1e-12
        %v287 = vrsqrt.pop %v285
        %v288 = vrsqrt.pop %v286
        %v289 = vmul.f32 %v267, %v287
        %v290 = vmul.f32 %v268, %v288
        %v291 = vmul.f32 %v270, %v287
        %v292 = vmul.f32 %v271, %v288
        %v293 = vmul.f32 %v273, %v287
        %v294 = vmul.f32 %v274, %v288
        %s295 = smul.u32 %s29, 126
        %s296 = sld [smem:[#allocation6 + %s295]]
        %s297 = sadd.s32 %s295, 1
        %s298 = sld [smem:[#allocation6 + %s297]]
        %s299 = sadd.s32 %s295, 2
        %s300 = sld [smem:[#allocation6 + %s299]]
        %s301 = sadd.s32 %s295, 3
        %s302 = sld [smem:[#allocation6 + %s301]]
        %s303 = sadd.s32 %s295, 4
        %s304 = sld [smem:[#allocation6 + %s303]]
        %s305 = sadd.s32 %s295, 5
        %s306 = sld [smem:[#allocation6 + %s305]]
        %s307 = sadd.s32 %s295, 6
        %s308 = sld [smem:[#allocation6 + %s307]]
        %s309 = sadd.s32 %s295, 7
        %s310 = sld [smem:[#allocation6 + %s309]]
        %s311 = sadd.s32 %s295, 8
        %s312 = sld [smem:[#allocation6 + %s311]]
        %s313 = sld [smem:[#allocation7 + %s295]]
        %s314 = sld [smem:[#allocation7 + %s297]]
        %s315 = sld [smem:[#allocation7 + %s299]]
        %s316 = sld [smem:[#allocation7 + %s301]]
        %s317 = sld [smem:[#allocation7 + %s303]]
        %s318 = sld [smem:[#allocation7 + %s305]]
        %s319 = sld [smem:[#allocation7 + %s307]]
        %s320 = sld [smem:[#allocation7 + %s309]]
        %s321 = sld [smem:[#allocation7 + %s311]]
        %v322 = vstv %s296
        %v323 = vmul.f32 %v258, %v322
        %v324 = vmul.f32 %v259, %v322
        %v325 = vstv %s302
        %v326 = vmul.f32 %v261, %v325
        %v327 = vmul.f32 %v262, %v325
        %v328 = vadd.f32 %v323, %v326
        %v329 = vadd.f32 %v324, %v327
        %v330 = vstv %s308
        %v331 = vmul.f32 %v264, %v330
        %v332 = vmul.f32 %v265, %v330
        %v333 = vadd.f32 %v328, %v331
        %v334 = vadd.f32 %v329, %v332
        %v335 = vstv %s313
        %v336 = vadd.f32 %v333, %v335
        %v337 = vadd.f32 %v334, %v335
        %v338 = vstv %s298
        %v339 = vmul.f32 %v258, %v338
        %v340 = vmul.f32 %v259, %v338
        %v341 = vstv %s304
        %v342 = vmul.f32 %v261, %v341
        %v343 = vmul.f32 %v262, %v341
        %v344 = vadd.f32 %v339, %v342
        %v345 = vadd.f32 %v340, %v343
        %v346 = vstv %s310
        %v347 = vmul.f32 %v264, %v346
        %v348 = vmul.f32 %v265, %v346
        %v349 = vadd.f32 %v344, %v347
        %v350 = vadd.f32 %v345, %v348
        %v351 = vstv %s314
        %v352 = vadd.f32 %v349, %v351
        %v353 = vadd.f32 %v350, %v351
        %v354 = vstv %s300
        %v355 = vmul.f32 %v258, %v354
        %v356 = vmul.f32 %v259, %v354
        %v357 = vstv %s306
        %v358 = vmul.f32 %v261, %v357
        %v359 = vmul.f32 %v262, %v357
        %v360 = vadd.f32 %v355, %v358
        %v361 = vadd.f32 %v356, %v359
        %v362 = vstv %s312
        %v363 = vmul.f32 %v264, %v362
        %v364 = vmul.f32 %v265, %v362
        %v365 = vadd.f32 %v360, %v363
        %v366 = vadd.f32 %v361, %v364
        %v367 = vstv %s315
        %v368 = vadd.f32 %v365, %v367
        %v369 = vadd.f32 %v366, %v367
        %v370 = vrcp.pop %v368
        %v371 = vrcp.pop %v369
        %v372 = vmul.f32 %v370, 1.7320508
        %v373 = vmul.f32 %v371, 1.7320508
        %v374 = vmul.f32 %v336, %v372
        %v375 = vmul.f32 %v337, %v373
        %v376 = vmul.f32 %v352, %v372
        %v377 = vmul.f32 %v353, %v373
        %v378 = vrcp.pop %v368
        %v379 = vmul.f32 -1.010101, %v378
        %v380 = vrcp.pop %v369
        %v381 = vmul.f32 -1.010101, %v380
        %v382 = vadd.f32 %v379, 1.010101
        %v383 = vadd.f32 %v381, 1.010101
        %v384 = vstv %s319
        %v385 = vsub.f32 %v384, %v258
        %v386 = vsub.f32 %v384, %v259
        %v387 = vstv %s320
        %v388 = vsub.f32 %v387, %v261
        %v389 = vsub.f32 %v387, %v262
        %v390 = vstv %s321
        %v391 = vsub.f32 %v390, %v264
        %v392 = vsub.f32 %v390, %v265
        %v393 = vmul.f32 %v385, %v385
        %v394 = vmul.f32 %v386, %v386
        %v395 = vmul.f32 %v388, %v388
        %v396 = vmul.f32 %v389, %v389
        %v397 = vadd.f32 %v393, %v395
        %v398 = vadd.f32 %v394, %v396
        %v399 = vmul.f32 %v391, %v391
        %v400 = vmul.f32 %v392, %v392
        %v401 = vadd.f32 %v397, %v399
        %v402 = vadd.f32 %v398, %v400
        %v403 = vadd.f32 %v401, 1e-12
        %v404 = vadd.f32 %v402, 1e-12
        %v405 = vrsqrt.pop %v403
        %v406 = vrsqrt.pop %v404
        %v407 = vmul.f32 %v385, %v405
        %v408 = vmul.f32 %v386, %v406
        %v409 = vmul.f32 %v388, %v405
        %v410 = vmul.f32 %v389, %v406
        %v411 = vmul.f32 %v391, %v405
        %v412 = vmul.f32 %v392, %v406
        %v413 = vmul.f32 %v289, %v407
        %v414 = vmul.f32 %v290, %v408
        %v415 = vmul.f32 %v291, %v409
        %v416 = vmul.f32 %v292, %v410
        %v417 = vadd.f32 %v413, %v415
        %v418 = vadd.f32 %v414, %v416
        %v419 = vmul.f32 %v293, %v411
        %v420 = vmul.f32 %v294, %v412
        %v421 = vadd.f32 %v417, %v419
        %v422 = vadd.f32 %v418, %v420
        %v423 = vstv %s316
        %v424 = vsub.f32 %v423, %v258
        %v425 = vsub.f32 %v423, %v259
        %v426 = vstv %s317
        %v427 = vsub.f32 %v426, %v261
        %v428 = vsub.f32 %v426, %v262
        %v429 = vstv %s318
        %v430 = vsub.f32 %v429, %v264
        %v431 = vsub.f32 %v429, %v265
        %v432 = vmul.f32 %v424, %v424
        %v433 = vmul.f32 %v425, %v425
        %v434 = vmul.f32 %v427, %v427
        %v435 = vmul.f32 %v428, %v428
        %v436 = vadd.f32 %v432, %v434
        %v437 = vadd.f32 %v433, %v435
        %v438 = vmul.f32 %v430, %v430
        %v439 = vmul.f32 %v431, %v431
        %v440 = vadd.f32 %v436, %v438
        %v441 = vadd.f32 %v437, %v439
        %v442 = vadd.f32 %v440, 1e-12
        %v443 = vadd.f32 %v441, 1e-12
        %v444 = vrsqrt.pop %v442
        %v445 = vrsqrt.pop %v443
        %v446 = vmul.f32 %v424, %v444
        %v447 = vmul.f32 %v425, %v445
        %v448 = vmul.f32 %v427, %v444
        %v449 = vmul.f32 %v428, %v445
        %v450 = vmul.f32 %v430, %v444
        %v451 = vmul.f32 %v431, %v445
        %v452 = vmul.f32 %v289, %v446
        %v453 = vmul.f32 %v290, %v447
        %v454 = vmul.f32 %v291, %v448
        %v455 = vmul.f32 %v292, %v449
        %v456 = vadd.f32 %v452, %v454
        %v457 = vadd.f32 %v453, %v455
        %v458 = vmul.f32 %v293, %v450
        %v459 = vmul.f32 %v294, %v451
        %v460 = vadd.f32 %v456, %v458
        %v461 = vadd.f32 %v457, %v459
        %v462 = vmul.f32 %v407, %v446
        %v463 = vmul.f32 %v408, %v447
        %v464 = vmul.f32 %v409, %v448
        %v465 = vmul.f32 %v410, %v449
        %v466 = vadd.f32 %v462, %v464
        %v467 = vadd.f32 %v463, %v465
        %v468 = vmul.f32 %v411, %v450
        %v469 = vmul.f32 %v412, %v451
        %v470 = vadd.f32 %v466, %v468
        %v471 = vadd.f32 %v467, %v469
        %v472 = vmul.f32 %v421, 2.0
        %v473 = vmul.f32 %v422, 2.0
        %v474 = vmul.f32 %v472, %v460
        %v475 = vmul.f32 %v473, %v461
        %v476 = vsub.f32 %v474, %v470
        %v477 = vsub.f32 %v475, %v471
        %v478 = vmax.f32 %v476, 0.0
        %v479 = vmax.f32 %v477, 0.0
        %vm480 = vcmp.gt.f32.partialorder %v421, 0.0
        %vm481 = vcmp.gt.f32.partialorder %v422, 0.0
        %v482 = vsel %vm480, %v478, 0.0
        %v483 = vsel %vm481, %v479, 0.0
        %v484 = vmul.f32 %v482, %v482
        %v485 = vmul.f32 %v483, %v483
        %v486 = vmul.f32 %v484, %v484
        %v487 = vmul.f32 %v485, %v485
        %v488 = vmul.f32 %v486, %v486
        %v489 = vmul.f32 %v487, %v487
        %v490 = vmul.f32 %v488, %v488
        %v491 = vmul.f32 %v489, %v489
        %v492 = vmul.f32 %v490, %v490
        %v493 = vmul.f32 %v491, %v491
        %v494 = vmul.f32 %v492, %v492
        %v495 = vmul.f32 %v493, %v493
        %v496 = vmax.f32 %v421, 0.0
        %v497 = vmax.f32 %v422, 0.0
        %v498 = vmul.f32 %v496, 0.3
        %v499 = vmul.f32 %v497, 0.3
        %v500 = vadd.f32 %v498, 0.5
        %v501 = vadd.f32 %v499, 0.5
        %v502 = vmul.f32 %v494, 0.2
        %v503 = vmul.f32 %v495, 0.2
        %v504 = vadd.f32 %v500, %v502
        %v505 = vadd.f32 %v501, %v503
        %506 = vst [vmem:[%s245] sm:$0xff] %v374
        %507 = vst [vmem:[%s245 + $0x8] sm:$0xff] %v375
        %s508 = scalar_lea.vmem %s245, 16 [#allocation9]
        %509 = vst [vmem:[%s508] sm:$0xff] %v376
        %510 = vst [vmem:[%s508 + $0x8] sm:$0xff] %v377
        %s511 = scalar_lea.vmem %s245, 32 [#allocation9]
        %512 = vst [vmem:[%s511] sm:$0xff] %v382
        %513 = vst [vmem:[%s511 + $0x8] sm:$0xff] %v383
        %v514 = vpack.c.bf16 %v505, %v504
        %v516 = vunpack.c.l.b16 %v514
        %v517 = vunpack.c.h.b16 %v514
        %v518 = vpack.c.b16 %v516, %v516
        %v519 = vpack.c.b16 %v517, %v517
        %522 = vst [vmem:[%s252] sm:$0xf] %v518
        %523 = vst [vmem:[%s252 + $0x4] sm:$0xf] %v519
        %s524 = smul.u32 %s29, 14
        %s525 = sadd.s32 %s524, 1
        %s526 = smul.u32 %s525, 9
        %s527 = sld [smem:[#allocation6 + %s526]]
        %s528 = sadd.s32 %s526, 1
        %s529 = sld [smem:[#allocation6 + %s528]]
        %s530 = sadd.s32 %s526, 2
        %s531 = sld [smem:[#allocation6 + %s530]]
        %s532 = sadd.s32 %s526, 3
        %s533 = sld [smem:[#allocation6 + %s532]]
        %s534 = sadd.s32 %s526, 4
        %s535 = sld [smem:[#allocation6 + %s534]]
        %s536 = sadd.s32 %s526, 5
        %s537 = sld [smem:[#allocation6 + %s536]]
        %s538 = sadd.s32 %s526, 6
        %s539 = sld [smem:[#allocation6 + %s538]]
        %s540 = sadd.s32 %s526, 7
        %s541 = sld [smem:[#allocation6 + %s540]]
        %s542 = sadd.s32 %s526, 8
        %s543 = sld [smem:[#allocation6 + %s542]]
        %s544 = sld [smem:[#allocation7 + %s526]]
        %s545 = sld [smem:[#allocation7 + %s528]]
        %s546 = sld [smem:[#allocation7 + %s530]]
        %s547 = sld [smem:[#allocation7 + %s532]]
        %s548 = sld [smem:[#allocation7 + %s534]]
        %s549 = sld [smem:[#allocation7 + %s536]]
        %s550 = sld [smem:[#allocation7 + %s538]]
        %s551 = sld [smem:[#allocation7 + %s540]]
        %s552 = sld [smem:[#allocation7 + %s542]]
        %v553 = vstv %s527
        %v554 = vmul.f32 %v258, %v553
        %v555 = vmul.f32 %v259, %v553
        %v556 = vstv %s533
        %v557 = vmul.f32 %v261, %v556
        %v558 = vmul.f32 %v262, %v556
        %v559 = vadd.f32 %v554, %v557
        %v560 = vadd.f32 %v555, %v558
        %v561 = vstv %s539
        %v562 = vmul.f32 %v264, %v561
        %v563 = vmul.f32 %v265, %v561
        %v564 = vadd.f32 %v559, %v562
        %v565 = vadd.f32 %v560, %v563
        %v566 = vstv %s544
        %v567 = vadd.f32 %v564, %v566
        %v568 = vadd.f32 %v565, %v566
        %v569 = vstv %s529
        %v570 = vmul.f32 %v258, %v569
        %v571 = vmul.f32 %v259, %v569
        %v572 = vstv %s535
        %v573 = vmul.f32 %v261, %v572
        %v574 = vmul.f32 %v262, %v572
        %v575 = vadd.f32 %v570, %v573
        %v576 = vadd.f32 %v571, %v574
        %v577 = vstv %s541
        %v578 = vmul.f32 %v264, %v577
        %v579 = vmul.f32 %v265, %v577
        %v580 = vadd.f32 %v575, %v578
        %v581 = vadd.f32 %v576, %v579
        %v582 = vstv %s545
        %v583 = vadd.f32 %v580, %v582
        %v584 = vadd.f32 %v581, %v582
        %v585 = vstv %s531
        %v586 = vmul.f32 %v258, %v585
        %v587 = vmul.f32 %v259, %v585
        %v588 = vstv %s537
        %v589 = vmul.f32 %v261, %v588
        %v590 = vmul.f32 %v262, %v588
        %v591 = vadd.f32 %v586, %v589
        %v592 = vadd.f32 %v587, %v590
        %v593 = vstv %s543
        %v594 = vmul.f32 %v264, %v593
        %v595 = vmul.f32 %v265, %v593
        %v596 = vadd.f32 %v591, %v594
        %v597 = vadd.f32 %v592, %v595
        %v598 = vstv %s546
        %v599 = vadd.f32 %v596, %v598
        %v600 = vadd.f32 %v597, %v598
        %v601 = vrcp.pop %v599
        %v602 = vrcp.pop %v600
        %v603 = vmul.f32 %v601, 1.7320508
        %v604 = vmul.f32 %v602, 1.7320508
        %v605 = vmul.f32 %v567, %v603
        %v606 = vmul.f32 %v568, %v604
        %v607 = vmul.f32 %v583, %v603
        %v608 = vmul.f32 %v584, %v604
        %v609 = vrcp.pop %v599
        %v610 = vmul.f32 -1.010101, %v609
        %v611 = vrcp.pop %v600
        %v612 = vmul.f32 -1.010101, %v611
        %v613 = vadd.f32 %v610, 1.010101
        %v614 = vadd.f32 %v612, 1.010101
        %v615 = vstv %s550
        %v616 = vsub.f32 %v615, %v258
        %v617 = vsub.f32 %v615, %v259
        %v618 = vstv %s551
        %v619 = vsub.f32 %v618, %v261
        %v620 = vsub.f32 %v618, %v262
        %v621 = vstv %s552
        %v622 = vsub.f32 %v621, %v264
        %v623 = vsub.f32 %v621, %v265
        %v624 = vmul.f32 %v616, %v616
        %v625 = vmul.f32 %v617, %v617
        %v626 = vmul.f32 %v619, %v619
        %v627 = vmul.f32 %v620, %v620
        %v628 = vadd.f32 %v624, %v626
        %v629 = vadd.f32 %v625, %v627
        %v630 = vmul.f32 %v622, %v622
        %v631 = vmul.f32 %v623, %v623
        %v632 = vadd.f32 %v628, %v630
        %v633 = vadd.f32 %v629, %v631
        %v634 = vadd.f32 %v632, 1e-12
        %v635 = vadd.f32 %v633, 1e-12
        %v636 = vrsqrt.pop %v634
        %v637 = vrsqrt.pop %v635
        %v638 = vmul.f32 %v616, %v636
        %v639 = vmul.f32 %v617, %v637
        %v640 = vmul.f32 %v619, %v636
        %v641 = vmul.f32 %v620, %v637
        %v642 = vmul.f32 %v622, %v636
        %v643 = vmul.f32 %v623, %v637
        %v644 = vmul.f32 %v289, %v638
        %v645 = vmul.f32 %v290, %v639
        %v646 = vmul.f32 %v291, %v640
        %v647 = vmul.f32 %v292, %v641
        %v648 = vadd.f32 %v644, %v646
        %v649 = vadd.f32 %v645, %v647
        %v650 = vmul.f32 %v293, %v642
        %v651 = vmul.f32 %v294, %v643
        %v652 = vadd.f32 %v648, %v650
        %v653 = vadd.f32 %v649, %v651
        %v654 = vstv %s547
        %v655 = vsub.f32 %v654, %v258
        %v656 = vsub.f32 %v654, %v259
        %v657 = vstv %s548
        %v658 = vsub.f32 %v657, %v261
        %v659 = vsub.f32 %v657, %v262
        %v660 = vstv %s549
        %v661 = vsub.f32 %v660, %v264
        %v662 = vsub.f32 %v660, %v265
        %v663 = vmul.f32 %v655, %v655
        %v664 = vmul.f32 %v656, %v656
        %v665 = vmul.f32 %v658, %v658
        %v666 = vmul.f32 %v659, %v659
        %v667 = vadd.f32 %v663, %v665
        %v668 = vadd.f32 %v664, %v666
        %v669 = vmul.f32 %v661, %v661
        %v670 = vmul.f32 %v662, %v662
        %v671 = vadd.f32 %v667, %v669
        %v672 = vadd.f32 %v668, %v670
        %v673 = vadd.f32 %v671, 1e-12
        %v674 = vadd.f32 %v672, 1e-12
        %v675 = vrsqrt.pop %v673
        %v676 = vrsqrt.pop %v674
        %v677 = vmul.f32 %v655, %v675
        %v678 = vmul.f32 %v656, %v676
        %v679 = vmul.f32 %v658, %v675
        %v680 = vmul.f32 %v659, %v676
        %v681 = vmul.f32 %v661, %v675
        %v682 = vmul.f32 %v662, %v676
        %v683 = vmul.f32 %v289, %v677
        %v684 = vmul.f32 %v290, %v678
        %v685 = vmul.f32 %v291, %v679
        %v686 = vmul.f32 %v292, %v680
        %v687 = vadd.f32 %v683, %v685
        %v688 = vadd.f32 %v684, %v686
        %v689 = vmul.f32 %v293, %v681
        %v690 = vmul.f32 %v294, %v682
        %v691 = vadd.f32 %v687, %v689
        %v692 = vadd.f32 %v688, %v690
        %v693 = vmul.f32 %v638, %v677
        %v694 = vmul.f32 %v639, %v678
        %v695 = vmul.f32 %v640, %v679
        %v696 = vmul.f32 %v641, %v680
        %v697 = vadd.f32 %v693, %v695
        %v698 = vadd.f32 %v694, %v696
        %v699 = vmul.f32 %v642, %v681
        %v700 = vmul.f32 %v643, %v682
        %v701 = vadd.f32 %v697, %v699
        %v702 = vadd.f32 %v698, %v700
        %v703 = vmul.f32 %v652, 2.0
        %v704 = vmul.f32 %v653, 2.0
        %v705 = vmul.f32 %v703, %v691
        %v706 = vmul.f32 %v704, %v692
        %v707 = vsub.f32 %v705, %v701
        %v708 = vsub.f32 %v706, %v702
        %v709 = vmax.f32 %v707, 0.0
        %v710 = vmax.f32 %v708, 0.0
        %vm711 = vcmp.gt.f32.partialorder %v652, 0.0
        %vm712 = vcmp.gt.f32.partialorder %v653, 0.0
        %v713 = vsel %vm711, %v709, 0.0
        %v714 = vsel %vm712, %v710, 0.0
        %v715 = vmul.f32 %v713, %v713
        %v716 = vmul.f32 %v714, %v714
        %v717 = vmul.f32 %v715, %v715
        %v718 = vmul.f32 %v716, %v716
        %v719 = vmul.f32 %v717, %v717
        %v720 = vmul.f32 %v718, %v718
        %v721 = vmul.f32 %v719, %v719
        %v722 = vmul.f32 %v720, %v720
        %v723 = vmul.f32 %v721, %v721
        %v724 = vmul.f32 %v722, %v722
        %v725 = vmul.f32 %v723, %v723
        %v726 = vmul.f32 %v724, %v724
        %v727 = vmax.f32 %v652, 0.0
        %v728 = vmax.f32 %v653, 0.0
        %v729 = vmul.f32 %v727, 0.3
        %v730 = vmul.f32 %v728, 0.3
        %v731 = vadd.f32 %v729, 0.5
        %v732 = vadd.f32 %v730, 0.5
        %v733 = vmul.f32 %v725, 0.2
        %v734 = vmul.f32 %v726, 0.2
        %v735 = vadd.f32 %v731, %v733
        %v736 = vadd.f32 %v732, %v734
        %s737 = scalar_lea.vmem %s245, 48 [#allocation9]
        %738 = vst [vmem:[%s737] sm:$0xff] %v605
        %739 = vst [vmem:[%s737 + $0x8] sm:$0xff] %v606
        %s740 = scalar_lea.vmem %s245, 64 [#allocation9]
        %741 = vst [vmem:[%s740] sm:$0xff] %v607
        %742 = vst [vmem:[%s740 + $0x8] sm:$0xff] %v608
        %s743 = scalar_lea.vmem %s245, 80 [#allocation9]
        %744 = vst [vmem:[%s743] sm:$0xff] %v613
        %745 = vst [vmem:[%s743 + $0x8] sm:$0xff] %v614
        %v746 = vpack.c.bf16 %v736, %v735
        %v748 = vunpack.c.l.b16 %v746
        %v749 = vunpack.c.h.b16 %v746
        %v750 = vpack.c.b16 %v748, %v748
        %v751 = vpack.c.b16 %v749, %v749
        %s754 = scalar_lea.vmem %s252, 8 [#allocation10]
        %755 = vst [vmem:[%s754] sm:$0xf] %v750
        %756 = vst [vmem:[%s754 + $0x4] sm:$0xf] %v751
        %s757 = sadd.s32 %s524, 2
        %s758 = smul.u32 %s757, 9
        %s759 = sld [smem:[#allocation6 + %s758]]
        %s760 = sadd.s32 %s758, 1
        %s761 = sld [smem:[#allocation6 + %s760]]
        %s762 = sadd.s32 %s758, 2
        %s763 = sld [smem:[#allocation6 + %s762]]
        %s764 = sadd.s32 %s758, 3
        %s765 = sld [smem:[#allocation6 + %s764]]
        %s766 = sadd.s32 %s758, 4
        %s767 = sld [smem:[#allocation6 + %s766]]
        %s768 = sadd.s32 %s758, 5
        %s769 = sld [smem:[#allocation6 + %s768]]
        %s770 = sadd.s32 %s758, 6
        %s771 = sld [smem:[#allocation6 + %s770]]
        %s772 = sadd.s32 %s758, 7
        %s773 = sld [smem:[#allocation6 + %s772]]
        %s774 = sadd.s32 %s758, 8
        %s775 = sld [smem:[#allocation6 + %s774]]
        %s776 = sld [smem:[#allocation7 + %s758]]
        %s777 = sld [smem:[#allocation7 + %s760]]
        %s778 = sld [smem:[#allocation7 + %s762]]
        %s779 = sld [smem:[#allocation7 + %s764]]
        %s780 = sld [smem:[#allocation7 + %s766]]
        %s781 = sld [smem:[#allocation7 + %s768]]
        %s782 = sld [smem:[#allocation7 + %s770]]
        %s783 = sld [smem:[#allocation7 + %s772]]
        %s784 = sld [smem:[#allocation7 + %s774]]
        %v785 = vstv %s759
        %v786 = vmul.f32 %v258, %v785
        %v787 = vmul.f32 %v259, %v785
        %v788 = vstv %s765
        %v789 = vmul.f32 %v261, %v788
        %v790 = vmul.f32 %v262, %v788
        %v791 = vadd.f32 %v786, %v789
        %v792 = vadd.f32 %v787, %v790
        %v793 = vstv %s771
        %v794 = vmul.f32 %v264, %v793
        %v795 = vmul.f32 %v265, %v793
        %v796 = vadd.f32 %v791, %v794
        %v797 = vadd.f32 %v792, %v795
        %v798 = vstv %s776
        %v799 = vadd.f32 %v796, %v798
        %v800 = vadd.f32 %v797, %v798
        %v801 = vstv %s761
        %v802 = vmul.f32 %v258, %v801
        %v803 = vmul.f32 %v259, %v801
        %v804 = vstv %s767
        %v805 = vmul.f32 %v261, %v804
        %v806 = vmul.f32 %v262, %v804
        %v807 = vadd.f32 %v802, %v805
        %v808 = vadd.f32 %v803, %v806
        %v809 = vstv %s773
        %v810 = vmul.f32 %v264, %v809
        %v811 = vmul.f32 %v265, %v809
        %v812 = vadd.f32 %v807, %v810
        %v813 = vadd.f32 %v808, %v811
        %v814 = vstv %s777
        %v815 = vadd.f32 %v812, %v814
        %v816 = vadd.f32 %v813, %v814
        %v817 = vstv %s763
        %v818 = vmul.f32 %v258, %v817
        %v819 = vmul.f32 %v259, %v817
        %v820 = vstv %s769
        %v821 = vmul.f32 %v261, %v820
        %v822 = vmul.f32 %v262, %v820
        %v823 = vadd.f32 %v818, %v821
        %v824 = vadd.f32 %v819, %v822
        %v825 = vstv %s775
        %v826 = vmul.f32 %v264, %v825
        %v827 = vmul.f32 %v265, %v825
        %v828 = vadd.f32 %v823, %v826
        %v829 = vadd.f32 %v824, %v827
        %v830 = vstv %s778
        %v831 = vadd.f32 %v828, %v830
        %v832 = vadd.f32 %v829, %v830
        %v833 = vrcp.pop %v831
        %v834 = vrcp.pop %v832
        %v835 = vmul.f32 %v833, 1.7320508
        %v836 = vmul.f32 %v834, 1.7320508
        %v837 = vmul.f32 %v799, %v835
        %v838 = vmul.f32 %v800, %v836
        %v839 = vmul.f32 %v815, %v835
        %v840 = vmul.f32 %v816, %v836
        %v841 = vrcp.pop %v831
        %v842 = vmul.f32 -1.010101, %v841
        %v843 = vrcp.pop %v832
        %v844 = vmul.f32 -1.010101, %v843
        %v845 = vadd.f32 %v842, 1.010101
        %v846 = vadd.f32 %v844, 1.010101
        %v847 = vstv %s782
        %v848 = vsub.f32 %v847, %v258
        %v849 = vsub.f32 %v847, %v259
        %v850 = vstv %s783
        %v851 = vsub.f32 %v850, %v261
        %v852 = vsub.f32 %v850, %v262
        %v853 = vstv %s784
        %v854 = vsub.f32 %v853, %v264
        %v855 = vsub.f32 %v853, %v265
        %v856 = vmul.f32 %v848, %v848
        %v857 = vmul.f32 %v849, %v849
        %v858 = vmul.f32 %v851, %v851
        %v859 = vmul.f32 %v852, %v852
        %v860 = vadd.f32 %v856, %v858
        %v861 = vadd.f32 %v857, %v859
        %v862 = vmul.f32 %v854, %v854
        %v863 = vmul.f32 %v855, %v855
        %v864 = vadd.f32 %v860, %v862
        %v865 = vadd.f32 %v861, %v863
        %v866 = vadd.f32 %v864, 1e-12
        %v867 = vadd.f32 %v865, 1e-12
        %v868 = vrsqrt.pop %v866
        %v869 = vrsqrt.pop %v867
        %v870 = vmul.f32 %v848, %v868
        %v871 = vmul.f32 %v849, %v869
        %v872 = vmul.f32 %v851, %v868
        %v873 = vmul.f32 %v852, %v869
        %v874 = vmul.f32 %v854, %v868
        %v875 = vmul.f32 %v855, %v869
        %v876 = vmul.f32 %v289, %v870
        %v877 = vmul.f32 %v290, %v871
        %v878 = vmul.f32 %v291, %v872
        %v879 = vmul.f32 %v292, %v873
        %v880 = vadd.f32 %v876, %v878
        %v881 = vadd.f32 %v877, %v879
        %v882 = vmul.f32 %v293, %v874
        %v883 = vmul.f32 %v294, %v875
        %v884 = vadd.f32 %v880, %v882
        %v885 = vadd.f32 %v881, %v883
        %v886 = vstv %s779
        %v887 = vsub.f32 %v886, %v258
        %v888 = vsub.f32 %v886, %v259
        %v889 = vstv %s780
        %v890 = vsub.f32 %v889, %v261
        %v891 = vsub.f32 %v889, %v262
        %v892 = vstv %s781
        %v893 = vsub.f32 %v892, %v264
        %v894 = vsub.f32 %v892, %v265
        %v895 = vmul.f32 %v887, %v887
        %v896 = vmul.f32 %v888, %v888
        %v897 = vmul.f32 %v890, %v890
        %v898 = vmul.f32 %v891, %v891
        %v899 = vadd.f32 %v895, %v897
        %v900 = vadd.f32 %v896, %v898
        %v901 = vmul.f32 %v893, %v893
        %v902 = vmul.f32 %v894, %v894
        %v903 = vadd.f32 %v899, %v901
        %v904 = vadd.f32 %v900, %v902
        %v905 = vadd.f32 %v903, 1e-12
        %v906 = vadd.f32 %v904, 1e-12
        %v907 = vrsqrt.pop %v905
        %v908 = vrsqrt.pop %v906
        %v909 = vmul.f32 %v887, %v907
        %v910 = vmul.f32 %v888, %v908
        %v911 = vmul.f32 %v890, %v907
        %v912 = vmul.f32 %v891, %v908
        %v913 = vmul.f32 %v893, %v907
        %v914 = vmul.f32 %v894, %v908
        %v915 = vmul.f32 %v289, %v909
        %v916 = vmul.f32 %v290, %v910
        %v917 = vmul.f32 %v291, %v911
        %v918 = vmul.f32 %v292, %v912
        %v919 = vadd.f32 %v915, %v917
        %v920 = vadd.f32 %v916, %v918
        %v921 = vmul.f32 %v293, %v913
        %v922 = vmul.f32 %v294, %v914
        %v923 = vadd.f32 %v919, %v921
        %v924 = vadd.f32 %v920, %v922
        %v925 = vmul.f32 %v870, %v909
        %v926 = vmul.f32 %v871, %v910
        %v927 = vmul.f32 %v872, %v911
        %v928 = vmul.f32 %v873, %v912
        %v929 = vadd.f32 %v925, %v927
        %v930 = vadd.f32 %v926, %v928
        %v931 = vmul.f32 %v874, %v913
        %v932 = vmul.f32 %v875, %v914
        %v933 = vadd.f32 %v929, %v931
        %v934 = vadd.f32 %v930, %v932
        %v935 = vmul.f32 %v884, 2.0
        %v936 = vmul.f32 %v885, 2.0
        %v937 = vmul.f32 %v935, %v923
        %v938 = vmul.f32 %v936, %v924
        %v939 = vsub.f32 %v937, %v933
        %v940 = vsub.f32 %v938, %v934
        %v941 = vmax.f32 %v939, 0.0
        %v942 = vmax.f32 %v940, 0.0
        %vm943 = vcmp.gt.f32.partialorder %v884, 0.0
        %vm944 = vcmp.gt.f32.partialorder %v885, 0.0
        %v945 = vsel %vm943, %v941, 0.0
        %v946 = vsel %vm944, %v942, 0.0
        %v947 = vmul.f32 %v945, %v945
        %v948 = vmul.f32 %v946, %v946
        %v949 = vmul.f32 %v947, %v947
        %v950 = vmul.f32 %v948, %v948
        %v951 = vmul.f32 %v949, %v949
        %v952 = vmul.f32 %v950, %v950
        %v953 = vmul.f32 %v951, %v951
        %v954 = vmul.f32 %v952, %v952
        %v955 = vmul.f32 %v953, %v953
        %v956 = vmul.f32 %v954, %v954
        %v957 = vmul.f32 %v955, %v955
        %v958 = vmul.f32 %v956, %v956
        %v959 = vmax.f32 %v884, 0.0
        %v960 = vmax.f32 %v885, 0.0
        %v961 = vmul.f32 %v959, 0.3
        %v962 = vmul.f32 %v960, 0.3
        %v963 = vadd.f32 %v961, 0.5
        %v964 = vadd.f32 %v962, 0.5
        %v965 = vmul.f32 %v957, 0.2
        %v966 = vmul.f32 %v958, 0.2
        %v967 = vadd.f32 %v963, %v965
        %v968 = vadd.f32 %v964, %v966
        %s969 = scalar_lea.vmem %s245, 96 [#allocation9]
        %970 = vst [vmem:[%s969] sm:$0xff] %v837
        %971 = vst [vmem:[%s969 + $0x8] sm:$0xff] %v838
        %s972 = scalar_lea.vmem %s245, 112 [#allocation9]
        %973 = vst [vmem:[%s972] sm:$0xff] %v839
        %974 = vst [vmem:[%s972 + $0x8] sm:$0xff] %v840
        %s975 = scalar_lea.vmem %s245, 128 [#allocation9]
        %976 = vst [vmem:[%s975] sm:$0xff] %v845
        %977 = vst [vmem:[%s975 + $0x8] sm:$0xff] %v846
        %v978 = vpack.c.bf16 %v968, %v967
        %v980 = vunpack.c.l.b16 %v978
        %v981 = vunpack.c.h.b16 %v978
        %v982 = vpack.c.b16 %v980, %v980
        %v983 = vpack.c.b16 %v981, %v981
        %s986 = scalar_lea.vmem %s252, 16 [#allocation10]
        %987 = vst [vmem:[%s986] sm:$0xf] %v982
        %988 = vst [vmem:[%s986 + $0x4] sm:$0xf] %v983
        %s989 = sadd.s32 %s524, 3
        %s990 = smul.u32 %s989, 9
        %s991 = sld [smem:[#allocation6 + %s990]]
        %s992 = sadd.s32 %s990, 1
        %s993 = sld [smem:[#allocation6 + %s992]]
        %s994 = sadd.s32 %s990, 2
        %s995 = sld [smem:[#allocation6 + %s994]]
        %s996 = sadd.s32 %s990, 3
        %s997 = sld [smem:[#allocation6 + %s996]]
        %s998 = sadd.s32 %s990, 4
        %s999 = sld [smem:[#allocation6 + %s998]]
        %s1000 = sadd.s32 %s990, 5
        %s1001 = sld [smem:[#allocation6 + %s1000]]
        %s1002 = sadd.s32 %s990, 6
        %s1003 = sld [smem:[#allocation6 + %s1002]]
        %s1004 = sadd.s32 %s990, 7
        %s1005 = sld [smem:[#allocation6 + %s1004]]
        %s1006 = sadd.s32 %s990, 8
        %s1007 = sld [smem:[#allocation6 + %s1006]]
        %s1008 = sld [smem:[#allocation7 + %s990]]
        %s1009 = sld [smem:[#allocation7 + %s992]]
        %s1010 = sld [smem:[#allocation7 + %s994]]
        %s1011 = sld [smem:[#allocation7 + %s996]]
        %s1012 = sld [smem:[#allocation7 + %s998]]
        %s1013 = sld [smem:[#allocation7 + %s1000]]
        %s1014 = sld [smem:[#allocation7 + %s1002]]
        %s1015 = sld [smem:[#allocation7 + %s1004]]
        %s1016 = sld [smem:[#allocation7 + %s1006]]
        %v1017 = vstv %s991
        %v1018 = vmul.f32 %v258, %v1017
        %v1019 = vmul.f32 %v259, %v1017
        %v1020 = vstv %s997
        %v1021 = vmul.f32 %v261, %v1020
        %v1022 = vmul.f32 %v262, %v1020
        %v1023 = vadd.f32 %v1018, %v1021
        %v1024 = vadd.f32 %v1019, %v1022
        %v1025 = vstv %s1003
        %v1026 = vmul.f32 %v264, %v1025
        %v1027 = vmul.f32 %v265, %v1025
        %v1028 = vadd.f32 %v1023, %v1026
        %v1029 = vadd.f32 %v1024, %v1027
        %v1030 = vstv %s1008
        %v1031 = vadd.f32 %v1028, %v1030
        %v1032 = vadd.f32 %v1029, %v1030
        %v1033 = vstv %s993
        %v1034 = vmul.f32 %v258, %v1033
        %v1035 = vmul.f32 %v259, %v1033
        %v1036 = vstv %s999
        %v1037 = vmul.f32 %v261, %v1036
        %v1038 = vmul.f32 %v262, %v1036
        %v1039 = vadd.f32 %v1034, %v1037
        %v1040 = vadd.f32 %v1035, %v1038
        %v1041 = vstv %s1005
        %v1042 = vmul.f32 %v264, %v1041
        %v1043 = vmul.f32 %v265, %v1041
        %v1044 = vadd.f32 %v1039, %v1042
        %v1045 = vadd.f32 %v1040, %v1043
        %v1046 = vstv %s1009
        %v1047 = vadd.f32 %v1044, %v1046
        %v1048 = vadd.f32 %v1045, %v1046
        %v1049 = vstv %s995
        %v1050 = vmul.f32 %v258, %v1049
        %v1051 = vmul.f32 %v259, %v1049
        %v1052 = vstv %s1001
        %v1053 = vmul.f32 %v261, %v1052
        %v1054 = vmul.f32 %v262, %v1052
        %v1055 = vadd.f32 %v1050, %v1053
        %v1056 = vadd.f32 %v1051, %v1054
        %v1057 = vstv %s1007
        %v1058 = vmul.f32 %v264, %v1057
        %v1059 = vmul.f32 %v265, %v1057
        %v1060 = vadd.f32 %v1055, %v1058
        %v1061 = vadd.f32 %v1056, %v1059
        %v1062 = vstv %s1010
        %v1063 = vadd.f32 %v1060, %v1062
        %v1064 = vadd.f32 %v1061, %v1062
        %v1065 = vrcp.pop %v1063
        %v1066 = vrcp.pop %v1064
        %v1067 = vmul.f32 %v1065, 1.7320508
        %v1068 = vmul.f32 %v1066, 1.7320508
        %v1069 = vmul.f32 %v1031, %v1067
        %v1070 = vmul.f32 %v1032, %v1068
        %v1071 = vmul.f32 %v1047, %v1067
        %v1072 = vmul.f32 %v1048, %v1068
        %v1073 = vrcp.pop %v1063
        %v1074 = vmul.f32 -1.010101, %v1073
        %v1075 = vrcp.pop %v1064
        %v1076 = vmul.f32 -1.010101, %v1075
        %v1077 = vadd.f32 %v1074, 1.010101
        %v1078 = vadd.f32 %v1076, 1.010101
        %v1079 = vstv %s1014
        %v1080 = vsub.f32 %v1079, %v258
        %v1081 = vsub.f32 %v1079, %v259
        %v1082 = vstv %s1015
        %v1083 = vsub.f32 %v1082, %v261
        %v1084 = vsub.f32 %v1082, %v262
        %v1085 = vstv %s1016
        %v1086 = vsub.f32 %v1085, %v264
        %v1087 = vsub.f32 %v1085, %v265
        %v1088 = vmul.f32 %v1080, %v1080
        %v1089 = vmul.f32 %v1081, %v1081
        %v1090 = vmul.f32 %v1083, %v1083
        %v1091 = vmul.f32 %v1084, %v1084
        %v1092 = vadd.f32 %v1088, %v1090
        %v1093 = vadd.f32 %v1089, %v1091
        %v1094 = vmul.f32 %v1086, %v1086
        %v1095 = vmul.f32 %v1087, %v1087
        %v1096 = vadd.f32 %v1092, %v1094
        %v1097 = vadd.f32 %v1093, %v1095
        %v1098 = vadd.f32 %v1096, 1e-12
        %v1099 = vadd.f32 %v1097, 1e-12
        %v1100 = vrsqrt.pop %v1098
        %v1101 = vrsqrt.pop %v1099
        %v1102 = vmul.f32 %v1080, %v1100
        %v1103 = vmul.f32 %v1081, %v1101
        %v1104 = vmul.f32 %v1083, %v1100
        %v1105 = vmul.f32 %v1084, %v1101
        %v1106 = vmul.f32 %v1086, %v1100
        %v1107 = vmul.f32 %v1087, %v1101
        %v1108 = vmul.f32 %v289, %v1102
        %v1109 = vmul.f32 %v290, %v1103
        %v1110 = vmul.f32 %v291, %v1104
        %v1111 = vmul.f32 %v292, %v1105
        %v1112 = vadd.f32 %v1108, %v1110
        %v1113 = vadd.f32 %v1109, %v1111
        %v1114 = vmul.f32 %v293, %v1106
        %v1115 = vmul.f32 %v294, %v1107
        %v1116 = vadd.f32 %v1112, %v1114
        %v1117 = vadd.f32 %v1113, %v1115
        %v1118 = vstv %s1011
        %v1119 = vsub.f32 %v1118, %v258
        %v1120 = vsub.f32 %v1118, %v259
        %v1121 = vstv %s1012
        %v1122 = vsub.f32 %v1121, %v261
        %v1123 = vsub.f32 %v1121, %v262
        %v1124 = vstv %s1013
        %v1125 = vsub.f32 %v1124, %v264
        %v1126 = vsub.f32 %v1124, %v265
        %v1127 = vmul.f32 %v1119, %v1119
        %v1128 = vmul.f32 %v1120, %v1120
        %v1129 = vmul.f32 %v1122, %v1122
        %v1130 = vmul.f32 %v1123, %v1123
        %v1131 = vadd.f32 %v1127, %v1129
        %v1132 = vadd.f32 %v1128, %v1130
        %v1133 = vmul.f32 %v1125, %v1125
        %v1134 = vmul.f32 %v1126, %v1126
        %v1135 = vadd.f32 %v1131, %v1133
        %v1136 = vadd.f32 %v1132, %v1134
        %v1137 = vadd.f32 %v1135, 1e-12
        %v1138 = vadd.f32 %v1136, 1e-12
        %v1139 = vrsqrt.pop %v1137
        %v1140 = vrsqrt.pop %v1138
        %v1141 = vmul.f32 %v1119, %v1139
        %v1142 = vmul.f32 %v1120, %v1140
        %v1143 = vmul.f32 %v1122, %v1139
        %v1144 = vmul.f32 %v1123, %v1140
        %v1145 = vmul.f32 %v1125, %v1139
        %v1146 = vmul.f32 %v1126, %v1140
        %v1147 = vmul.f32 %v289, %v1141
        %v1148 = vmul.f32 %v290, %v1142
        %v1149 = vmul.f32 %v291, %v1143
        %v1150 = vmul.f32 %v292, %v1144
        %v1151 = vadd.f32 %v1147, %v1149
        %v1152 = vadd.f32 %v1148, %v1150
        %v1153 = vmul.f32 %v293, %v1145
        %v1154 = vmul.f32 %v294, %v1146
        %v1155 = vadd.f32 %v1151, %v1153
        %v1156 = vadd.f32 %v1152, %v1154
        %v1157 = vmul.f32 %v1102, %v1141
        %v1158 = vmul.f32 %v1103, %v1142
        %v1159 = vmul.f32 %v1104, %v1143
        %v1160 = vmul.f32 %v1105, %v1144
        %v1161 = vadd.f32 %v1157, %v1159
        %v1162 = vadd.f32 %v1158, %v1160
        %v1163 = vmul.f32 %v1106, %v1145
        %v1164 = vmul.f32 %v1107, %v1146
        %v1165 = vadd.f32 %v1161, %v1163
        %v1166 = vadd.f32 %v1162, %v1164
        %v1167 = vmul.f32 %v1116, 2.0
        %v1168 = vmul.f32 %v1117, 2.0
        %v1169 = vmul.f32 %v1167, %v1155
        %v1170 = vmul.f32 %v1168, %v1156
        %v1171 = vsub.f32 %v1169, %v1165
        %v1172 = vsub.f32 %v1170, %v1166
        %v1173 = vmax.f32 %v1171, 0.0
        %v1174 = vmax.f32 %v1172, 0.0
        %vm1175 = vcmp.gt.f32.partialorder %v1116, 0.0
        %vm1176 = vcmp.gt.f32.partialorder %v1117, 0.0
        %v1177 = vsel %vm1175, %v1173, 0.0
        %v1178 = vsel %vm1176, %v1174, 0.0
        %v1179 = vmul.f32 %v1177, %v1177
        %v1180 = vmul.f32 %v1178, %v1178
        %v1181 = vmul.f32 %v1179, %v1179
        %v1182 = vmul.f32 %v1180, %v1180
        %v1183 = vmul.f32 %v1181, %v1181
        %v1184 = vmul.f32 %v1182, %v1182
        %v1185 = vmul.f32 %v1183, %v1183
        %v1186 = vmul.f32 %v1184, %v1184
        %v1187 = vmul.f32 %v1185, %v1185
        %v1188 = vmul.f32 %v1186, %v1186
        %v1189 = vmul.f32 %v1187, %v1187
        %v1190 = vmul.f32 %v1188, %v1188
        %v1191 = vmax.f32 %v1116, 0.0
        %v1192 = vmax.f32 %v1117, 0.0
        %v1193 = vmul.f32 %v1191, 0.3
        %v1194 = vmul.f32 %v1192, 0.3
        %v1195 = vadd.f32 %v1193, 0.5
        %v1196 = vadd.f32 %v1194, 0.5
        %v1197 = vmul.f32 %v1189, 0.2
        %v1198 = vmul.f32 %v1190, 0.2
        %v1199 = vadd.f32 %v1195, %v1197
        %v1200 = vadd.f32 %v1196, %v1198
        %s1201 = scalar_lea.vmem %s245, 144 [#allocation9]
        %1202 = vst [vmem:[%s1201] sm:$0xff] %v1069
        %1203 = vst [vmem:[%s1201 + $0x8] sm:$0xff] %v1070
        %s1204 = scalar_lea.vmem %s245, 160 [#allocation9]
        %1205 = vst [vmem:[%s1204] sm:$0xff] %v1071
        %1206 = vst [vmem:[%s1204 + $0x8] sm:$0xff] %v1072
        %s1207 = scalar_lea.vmem %s245, 176 [#allocation9]
        %1208 = vst [vmem:[%s1207] sm:$0xff] %v1077
        %1209 = vst [vmem:[%s1207 + $0x8] sm:$0xff] %v1078
        %v1210 = vpack.c.bf16 %v1200, %v1199
        %v1212 = vunpack.c.l.b16 %v1210
        %v1213 = vunpack.c.h.b16 %v1210
        %v1214 = vpack.c.b16 %v1212, %v1212
        %v1215 = vpack.c.b16 %v1213, %v1213
        %s1218 = scalar_lea.vmem %s252, 24 [#allocation10]
        %1219 = vst [vmem:[%s1218] sm:$0xf] %v1214
        %1220 = vst [vmem:[%s1218 + $0x4] sm:$0xf] %v1215
        %s1221 = sadd.s32 %s524, 4
        %s1222 = smul.u32 %s1221, 9
        %s1223 = sld [smem:[#allocation6 + %s1222]]
        %s1224 = sadd.s32 %s1222, 1
        %s1225 = sld [smem:[#allocation6 + %s1224]]
        %s1226 = sadd.s32 %s1222, 2
        %s1227 = sld [smem:[#allocation6 + %s1226]]
        %s1228 = sadd.s32 %s1222, 3
        %s1229 = sld [smem:[#allocation6 + %s1228]]
        %s1230 = sadd.s32 %s1222, 4
        %s1231 = sld [smem:[#allocation6 + %s1230]]
        %s1232 = sadd.s32 %s1222, 5
        %s1233 = sld [smem:[#allocation6 + %s1232]]
        %s1234 = sadd.s32 %s1222, 6
        %s1235 = sld [smem:[#allocation6 + %s1234]]
        %s1236 = sadd.s32 %s1222, 7
        %s1237 = sld [smem:[#allocation6 + %s1236]]
        %s1238 = sadd.s32 %s1222, 8
        %s1239 = sld [smem:[#allocation6 + %s1238]]
        %s1240 = sld [smem:[#allocation7 + %s1222]]
        %s1241 = sld [smem:[#allocation7 + %s1224]]
        %s1242 = sld [smem:[#allocation7 + %s1226]]
        %s1243 = sld [smem:[#allocation7 + %s1228]]
        %s1244 = sld [smem:[#allocation7 + %s1230]]
        %s1245 = sld [smem:[#allocation7 + %s1232]]
        %s1246 = sld [smem:[#allocation7 + %s1234]]
        %s1247 = sld [smem:[#allocation7 + %s1236]]
        %s1248 = sld [smem:[#allocation7 + %s1238]]
        %v1249 = vstv %s1223
        %v1250 = vmul.f32 %v258, %v1249
        %v1251 = vmul.f32 %v259, %v1249
        %v1252 = vstv %s1229
        %v1253 = vmul.f32 %v261, %v1252
        %v1254 = vmul.f32 %v262, %v1252
        %v1255 = vadd.f32 %v1250, %v1253
        %v1256 = vadd.f32 %v1251, %v1254
        %v1257 = vstv %s1235
        %v1258 = vmul.f32 %v264, %v1257
        %v1259 = vmul.f32 %v265, %v1257
        %v1260 = vadd.f32 %v1255, %v1258
        %v1261 = vadd.f32 %v1256, %v1259
        %v1262 = vstv %s1240
        %v1263 = vadd.f32 %v1260, %v1262
        %v1264 = vadd.f32 %v1261, %v1262
        %v1265 = vstv %s1225
        %v1266 = vmul.f32 %v258, %v1265
        %v1267 = vmul.f32 %v259, %v1265
        %v1268 = vstv %s1231
        %v1269 = vmul.f32 %v261, %v1268
        %v1270 = vmul.f32 %v262, %v1268
        %v1271 = vadd.f32 %v1266, %v1269
        %v1272 = vadd.f32 %v1267, %v1270
        %v1273 = vstv %s1237
        %v1274 = vmul.f32 %v264, %v1273
        %v1275 = vmul.f32 %v265, %v1273
        %v1276 = vadd.f32 %v1271, %v1274
        %v1277 = vadd.f32 %v1272, %v1275
        %v1278 = vstv %s1241
        %v1279 = vadd.f32 %v1276, %v1278
        %v1280 = vadd.f32 %v1277, %v1278
        %v1281 = vstv %s1227
        %v1282 = vmul.f32 %v258, %v1281
        %v1283 = vmul.f32 %v259, %v1281
        %v1284 = vstv %s1233
        %v1285 = vmul.f32 %v261, %v1284
        %v1286 = vmul.f32 %v262, %v1284
        %v1287 = vadd.f32 %v1282, %v1285
        %v1288 = vadd.f32 %v1283, %v1286
        %v1289 = vstv %s1239
        %v1290 = vmul.f32 %v264, %v1289
        %v1291 = vmul.f32 %v265, %v1289
        %v1292 = vadd.f32 %v1287, %v1290
        %v1293 = vadd.f32 %v1288, %v1291
        %v1294 = vstv %s1242
        %v1295 = vadd.f32 %v1292, %v1294
        %v1296 = vadd.f32 %v1293, %v1294
        %v1297 = vrcp.pop %v1295
        %v1298 = vrcp.pop %v1296
        %v1299 = vmul.f32 %v1297, 1.7320508
        %v1300 = vmul.f32 %v1298, 1.7320508
        %v1301 = vmul.f32 %v1263, %v1299
        %v1302 = vmul.f32 %v1264, %v1300
        %v1303 = vmul.f32 %v1279, %v1299
        %v1304 = vmul.f32 %v1280, %v1300
        %v1305 = vrcp.pop %v1295
        %v1306 = vmul.f32 -1.010101, %v1305
        %v1307 = vrcp.pop %v1296
        %v1308 = vmul.f32 -1.010101, %v1307
        %v1309 = vadd.f32 %v1306, 1.010101
        %v1310 = vadd.f32 %v1308, 1.010101
        %v1311 = vstv %s1246
        %v1312 = vsub.f32 %v1311, %v258
        %v1313 = vsub.f32 %v1311, %v259
        %v1314 = vstv %s1247
        %v1315 = vsub.f32 %v1314, %v261
        %v1316 = vsub.f32 %v1314, %v262
        %v1317 = vstv %s1248
        %v1318 = vsub.f32 %v1317, %v264
        %v1319 = vsub.f32 %v1317, %v265
        %v1320 = vmul.f32 %v1312, %v1312
        %v1321 = vmul.f32 %v1313, %v1313
        %v1322 = vmul.f32 %v1315, %v1315
        %v1323 = vmul.f32 %v1316, %v1316
        %v1324 = vadd.f32 %v1320, %v1322
        %v1325 = vadd.f32 %v1321, %v1323
        %v1326 = vmul.f32 %v1318, %v1318
        %v1327 = vmul.f32 %v1319, %v1319
        %v1328 = vadd.f32 %v1324, %v1326
        %v1329 = vadd.f32 %v1325, %v1327
        %v1330 = vadd.f32 %v1328, 1e-12
        %v1331 = vadd.f32 %v1329, 1e-12
        %v1332 = vrsqrt.pop %v1330
        %v1333 = vrsqrt.pop %v1331
        %v1334 = vmul.f32 %v1312, %v1332
        %v1335 = vmul.f32 %v1313, %v1333
        %v1336 = vmul.f32 %v1315, %v1332
        %v1337 = vmul.f32 %v1316, %v1333
        %v1338 = vmul.f32 %v1318, %v1332
        %v1339 = vmul.f32 %v1319, %v1333
        %v1340 = vmul.f32 %v289, %v1334
        %v1341 = vmul.f32 %v290, %v1335
        %v1342 = vmul.f32 %v291, %v1336
        %v1343 = vmul.f32 %v292, %v1337
        %v1344 = vadd.f32 %v1340, %v1342
        %v1345 = vadd.f32 %v1341, %v1343
        %v1346 = vmul.f32 %v293, %v1338
        %v1347 = vmul.f32 %v294, %v1339
        %v1348 = vadd.f32 %v1344, %v1346
        %v1349 = vadd.f32 %v1345, %v1347
        %v1350 = vstv %s1243
        %v1351 = vsub.f32 %v1350, %v258
        %v1352 = vsub.f32 %v1350, %v259
        %v1353 = vstv %s1244
        %v1354 = vsub.f32 %v1353, %v261
        %v1355 = vsub.f32 %v1353, %v262
        %v1356 = vstv %s1245
        %v1357 = vsub.f32 %v1356, %v264
        %v1358 = vsub.f32 %v1356, %v265
        %v1359 = vmul.f32 %v1351, %v1351
        %v1360 = vmul.f32 %v1352, %v1352
        %v1361 = vmul.f32 %v1354, %v1354
        %v1362 = vmul.f32 %v1355, %v1355
        %v1363 = vadd.f32 %v1359, %v1361
        %v1364 = vadd.f32 %v1360, %v1362
        %v1365 = vmul.f32 %v1357, %v1357
        %v1366 = vmul.f32 %v1358, %v1358
        %v1367 = vadd.f32 %v1363, %v1365
        %v1368 = vadd.f32 %v1364, %v1366
        %v1369 = vadd.f32 %v1367, 1e-12
        %v1370 = vadd.f32 %v1368, 1e-12
        %v1371 = vrsqrt.pop %v1369
        %v1372 = vrsqrt.pop %v1370
        %v1373 = vmul.f32 %v1351, %v1371
        %v1374 = vmul.f32 %v1352, %v1372
        %v1375 = vmul.f32 %v1354, %v1371
        %v1376 = vmul.f32 %v1355, %v1372
        %v1377 = vmul.f32 %v1357, %v1371
        %v1378 = vmul.f32 %v1358, %v1372
        %v1379 = vmul.f32 %v289, %v1373
        %v1380 = vmul.f32 %v290, %v1374
        %v1381 = vmul.f32 %v291, %v1375
        %v1382 = vmul.f32 %v292, %v1376
        %v1383 = vadd.f32 %v1379, %v1381
        %v1384 = vadd.f32 %v1380, %v1382
        %v1385 = vmul.f32 %v293, %v1377
        %v1386 = vmul.f32 %v294, %v1378
        %v1387 = vadd.f32 %v1383, %v1385
        %v1388 = vadd.f32 %v1384, %v1386
        %v1389 = vmul.f32 %v1334, %v1373
        %v1390 = vmul.f32 %v1335, %v1374
        %v1391 = vmul.f32 %v1336, %v1375
        %v1392 = vmul.f32 %v1337, %v1376
        %v1393 = vadd.f32 %v1389, %v1391
        %v1394 = vadd.f32 %v1390, %v1392
        %v1395 = vmul.f32 %v1338, %v1377
        %v1396 = vmul.f32 %v1339, %v1378
        %v1397 = vadd.f32 %v1393, %v1395
        %v1398 = vadd.f32 %v1394, %v1396
        %v1399 = vmul.f32 %v1348, 2.0
        %v1400 = vmul.f32 %v1349, 2.0
        %v1401 = vmul.f32 %v1399, %v1387
        %v1402 = vmul.f32 %v1400, %v1388
        %v1403 = vsub.f32 %v1401, %v1397
        %v1404 = vsub.f32 %v1402, %v1398
        %v1405 = vmax.f32 %v1403, 0.0
        %v1406 = vmax.f32 %v1404, 0.0
        %vm1407 = vcmp.gt.f32.partialorder %v1348, 0.0
        %vm1408 = vcmp.gt.f32.partialorder %v1349, 0.0
        %v1409 = vsel %vm1407, %v1405, 0.0
        %v1410 = vsel %vm1408, %v1406, 0.0
        %v1411 = vmul.f32 %v1409, %v1409
        %v1412 = vmul.f32 %v1410, %v1410
        %v1413 = vmul.f32 %v1411, %v1411
        %v1414 = vmul.f32 %v1412, %v1412
        %v1415 = vmul.f32 %v1413, %v1413
        %v1416 = vmul.f32 %v1414, %v1414
        %v1417 = vmul.f32 %v1415, %v1415
        %v1418 = vmul.f32 %v1416, %v1416
        %v1419 = vmul.f32 %v1417, %v1417
        %v1420 = vmul.f32 %v1418, %v1418
        %v1421 = vmul.f32 %v1419, %v1419
        %v1422 = vmul.f32 %v1420, %v1420
        %v1423 = vmax.f32 %v1348, 0.0
        %v1424 = vmax.f32 %v1349, 0.0
        %v1425 = vmul.f32 %v1423, 0.3
        %v1426 = vmul.f32 %v1424, 0.3
        %v1427 = vadd.f32 %v1425, 0.5
        %v1428 = vadd.f32 %v1426, 0.5
        %v1429 = vmul.f32 %v1421, 0.2
        %v1430 = vmul.f32 %v1422, 0.2
        %v1431 = vadd.f32 %v1427, %v1429
        %v1432 = vadd.f32 %v1428, %v1430
        %s1433 = scalar_lea.vmem %s245, 192 [#allocation9]
        %1434 = vst [vmem:[%s1433] sm:$0xff] %v1301
        %1435 = vst [vmem:[%s1433 + $0x8] sm:$0xff] %v1302
        %s1436 = scalar_lea.vmem %s245, 208 [#allocation9]
        %1437 = vst [vmem:[%s1436] sm:$0xff] %v1303
        %1438 = vst [vmem:[%s1436 + $0x8] sm:$0xff] %v1304
        %s1439 = scalar_lea.vmem %s245, 224 [#allocation9]
        %1440 = vst [vmem:[%s1439] sm:$0xff] %v1309
        %1441 = vst [vmem:[%s1439 + $0x8] sm:$0xff] %v1310
        %v1442 = vpack.c.bf16 %v1432, %v1431
        %v1444 = vunpack.c.l.b16 %v1442
        %v1445 = vunpack.c.h.b16 %v1442
        %v1446 = vpack.c.b16 %v1444, %v1444
        %v1447 = vpack.c.b16 %v1445, %v1445
        %s1450 = scalar_lea.vmem %s252, 32 [#allocation10]
        %1451 = vst [vmem:[%s1450] sm:$0xf] %v1446
        %1452 = vst [vmem:[%s1450 + $0x4] sm:$0xf] %v1447
        %s1453 = sadd.s32 %s524, 5
        %s1454 = smul.u32 %s1453, 9
        %s1455 = sld [smem:[#allocation6 + %s1454]]
        %s1456 = sadd.s32 %s1454, 1
        %s1457 = sld [smem:[#allocation6 + %s1456]]
        %s1458 = sadd.s32 %s1454, 2
        %s1459 = sld [smem:[#allocation6 + %s1458]]
        %s1460 = sadd.s32 %s1454, 3
        %s1461 = sld [smem:[#allocation6 + %s1460]]
        %s1462 = sadd.s32 %s1454, 4
        %s1463 = sld [smem:[#allocation6 + %s1462]]
        %s1464 = sadd.s32 %s1454, 5
        %s1465 = sld [smem:[#allocation6 + %s1464]]
        %s1466 = sadd.s32 %s1454, 6
        %s1467 = sld [smem:[#allocation6 + %s1466]]
        %s1468 = sadd.s32 %s1454, 7
        %s1469 = sld [smem:[#allocation6 + %s1468]]
        %s1470 = sadd.s32 %s1454, 8
        %s1471 = sld [smem:[#allocation6 + %s1470]]
        %s1472 = sld [smem:[#allocation7 + %s1454]]
        %s1473 = sld [smem:[#allocation7 + %s1456]]
        %s1474 = sld [smem:[#allocation7 + %s1458]]
        %s1475 = sld [smem:[#allocation7 + %s1460]]
        %s1476 = sld [smem:[#allocation7 + %s1462]]
        %s1477 = sld [smem:[#allocation7 + %s1464]]
        %s1478 = sld [smem:[#allocation7 + %s1466]]
        %s1479 = sld [smem:[#allocation7 + %s1468]]
        %s1480 = sld [smem:[#allocation7 + %s1470]]
        %v1481 = vstv %s1455
        %v1482 = vmul.f32 %v258, %v1481
        %v1483 = vmul.f32 %v259, %v1481
        %v1484 = vstv %s1461
        %v1485 = vmul.f32 %v261, %v1484
        %v1486 = vmul.f32 %v262, %v1484
        %v1487 = vadd.f32 %v1482, %v1485
        %v1488 = vadd.f32 %v1483, %v1486
        %v1489 = vstv %s1467
        %v1490 = vmul.f32 %v264, %v1489
        %v1491 = vmul.f32 %v265, %v1489
        %v1492 = vadd.f32 %v1487, %v1490
        %v1493 = vadd.f32 %v1488, %v1491
        %v1494 = vstv %s1472
        %v1495 = vadd.f32 %v1492, %v1494
        %v1496 = vadd.f32 %v1493, %v1494
        %v1497 = vstv %s1457
        %v1498 = vmul.f32 %v258, %v1497
        %v1499 = vmul.f32 %v259, %v1497
        %v1500 = vstv %s1463
        %v1501 = vmul.f32 %v261, %v1500
        %v1502 = vmul.f32 %v262, %v1500
        %v1503 = vadd.f32 %v1498, %v1501
        %v1504 = vadd.f32 %v1499, %v1502
        %v1505 = vstv %s1469
        %v1506 = vmul.f32 %v264, %v1505
        %v1507 = vmul.f32 %v265, %v1505
        %v1508 = vadd.f32 %v1503, %v1506
        %v1509 = vadd.f32 %v1504, %v1507
        %v1510 = vstv %s1473
        %v1511 = vadd.f32 %v1508, %v1510
        %v1512 = vadd.f32 %v1509, %v1510
        %v1513 = vstv %s1459
        %v1514 = vmul.f32 %v258, %v1513
        %v1515 = vmul.f32 %v259, %v1513
        %v1516 = vstv %s1465
        %v1517 = vmul.f32 %v261, %v1516
        %v1518 = vmul.f32 %v262, %v1516
        %v1519 = vadd.f32 %v1514, %v1517
        %v1520 = vadd.f32 %v1515, %v1518
        %v1521 = vstv %s1471
        %v1522 = vmul.f32 %v264, %v1521
        %v1523 = vmul.f32 %v265, %v1521
        %v1524 = vadd.f32 %v1519, %v1522
        %v1525 = vadd.f32 %v1520, %v1523
        %v1526 = vstv %s1474
        %v1527 = vadd.f32 %v1524, %v1526
        %v1528 = vadd.f32 %v1525, %v1526
        %v1529 = vrcp.pop %v1527
        %v1530 = vrcp.pop %v1528
        %v1531 = vmul.f32 %v1529, 1.7320508
        %v1532 = vmul.f32 %v1530, 1.7320508
        %v1533 = vmul.f32 %v1495, %v1531
        %v1534 = vmul.f32 %v1496, %v1532
        %v1535 = vmul.f32 %v1511, %v1531
        %v1536 = vmul.f32 %v1512, %v1532
        %v1537 = vrcp.pop %v1527
        %v1538 = vmul.f32 -1.010101, %v1537
        %v1539 = vrcp.pop %v1528
        %v1540 = vmul.f32 -1.010101, %v1539
        %v1541 = vadd.f32 %v1538, 1.010101
        %v1542 = vadd.f32 %v1540, 1.010101
        %v1543 = vstv %s1478
        %v1544 = vsub.f32 %v1543, %v258
        %v1545 = vsub.f32 %v1543, %v259
        %v1546 = vstv %s1479
        %v1547 = vsub.f32 %v1546, %v261
        %v1548 = vsub.f32 %v1546, %v262
        %v1549 = vstv %s1480
        %v1550 = vsub.f32 %v1549, %v264
        %v1551 = vsub.f32 %v1549, %v265
        %v1552 = vmul.f32 %v1544, %v1544
        %v1553 = vmul.f32 %v1545, %v1545
        %v1554 = vmul.f32 %v1547, %v1547
        %v1555 = vmul.f32 %v1548, %v1548
        %v1556 = vadd.f32 %v1552, %v1554
        %v1557 = vadd.f32 %v1553, %v1555
        %v1558 = vmul.f32 %v1550, %v1550
        %v1559 = vmul.f32 %v1551, %v1551
        %v1560 = vadd.f32 %v1556, %v1558
        %v1561 = vadd.f32 %v1557, %v1559
        %v1562 = vadd.f32 %v1560, 1e-12
        %v1563 = vadd.f32 %v1561, 1e-12
        %v1564 = vrsqrt.pop %v1562
        %v1565 = vrsqrt.pop %v1563
        %v1566 = vmul.f32 %v1544, %v1564
        %v1567 = vmul.f32 %v1545, %v1565
        %v1568 = vmul.f32 %v1547, %v1564
        %v1569 = vmul.f32 %v1548, %v1565
        %v1570 = vmul.f32 %v1550, %v1564
        %v1571 = vmul.f32 %v1551, %v1565
        %v1572 = vmul.f32 %v289, %v1566
        %v1573 = vmul.f32 %v290, %v1567
        %v1574 = vmul.f32 %v291, %v1568
        %v1575 = vmul.f32 %v292, %v1569
        %v1576 = vadd.f32 %v1572, %v1574
        %v1577 = vadd.f32 %v1573, %v1575
        %v1578 = vmul.f32 %v293, %v1570
        %v1579 = vmul.f32 %v294, %v1571
        %v1580 = vadd.f32 %v1576, %v1578
        %v1581 = vadd.f32 %v1577, %v1579
        %v1582 = vstv %s1475
        %v1583 = vsub.f32 %v1582, %v258
        %v1584 = vsub.f32 %v1582, %v259
        %v1585 = vstv %s1476
        %v1586 = vsub.f32 %v1585, %v261
        %v1587 = vsub.f32 %v1585, %v262
        %v1588 = vstv %s1477
        %v1589 = vsub.f32 %v1588, %v264
        %v1590 = vsub.f32 %v1588, %v265
        %v1591 = vmul.f32 %v1583, %v1583
        %v1592 = vmul.f32 %v1584, %v1584
        %v1593 = vmul.f32 %v1586, %v1586
        %v1594 = vmul.f32 %v1587, %v1587
        %v1595 = vadd.f32 %v1591, %v1593
        %v1596 = vadd.f32 %v1592, %v1594
        %v1597 = vmul.f32 %v1589, %v1589
        %v1598 = vmul.f32 %v1590, %v1590
        %v1599 = vadd.f32 %v1595, %v1597
        %v1600 = vadd.f32 %v1596, %v1598
        %v1601 = vadd.f32 %v1599, 1e-12
        %v1602 = vadd.f32 %v1600, 1e-12
        %v1603 = vrsqrt.pop %v1601
        %v1604 = vrsqrt.pop %v1602
        %v1605 = vmul.f32 %v1583, %v1603
        %v1606 = vmul.f32 %v1584, %v1604
        %v1607 = vmul.f32 %v1586, %v1603
        %v1608 = vmul.f32 %v1587, %v1604
        %v1609 = vmul.f32 %v1589, %v1603
        %v1610 = vmul.f32 %v1590, %v1604
        %v1611 = vmul.f32 %v289, %v1605
        %v1612 = vmul.f32 %v290, %v1606
        %v1613 = vmul.f32 %v291, %v1607
        %v1614 = vmul.f32 %v292, %v1608
        %v1615 = vadd.f32 %v1611, %v1613
        %v1616 = vadd.f32 %v1612, %v1614
        %v1617 = vmul.f32 %v293, %v1609
        %v1618 = vmul.f32 %v294, %v1610
        %v1619 = vadd.f32 %v1615, %v1617
        %v1620 = vadd.f32 %v1616, %v1618
        %v1621 = vmul.f32 %v1566, %v1605
        %v1622 = vmul.f32 %v1567, %v1606
        %v1623 = vmul.f32 %v1568, %v1607
        %v1624 = vmul.f32 %v1569, %v1608
        %v1625 = vadd.f32 %v1621, %v1623
        %v1626 = vadd.f32 %v1622, %v1624
        %v1627 = vmul.f32 %v1570, %v1609
        %v1628 = vmul.f32 %v1571, %v1610
        %v1629 = vadd.f32 %v1625, %v1627
        %v1630 = vadd.f32 %v1626, %v1628
        %v1631 = vmul.f32 %v1580, 2.0
        %v1632 = vmul.f32 %v1581, 2.0
        %v1633 = vmul.f32 %v1631, %v1619
        %v1634 = vmul.f32 %v1632, %v1620
        %v1635 = vsub.f32 %v1633, %v1629
        %v1636 = vsub.f32 %v1634, %v1630
        %v1637 = vmax.f32 %v1635, 0.0
        %v1638 = vmax.f32 %v1636, 0.0
        %vm1639 = vcmp.gt.f32.partialorder %v1580, 0.0
        %vm1640 = vcmp.gt.f32.partialorder %v1581, 0.0
        %v1641 = vsel %vm1639, %v1637, 0.0
        %v1642 = vsel %vm1640, %v1638, 0.0
        %v1643 = vmul.f32 %v1641, %v1641
        %v1644 = vmul.f32 %v1642, %v1642
        %v1645 = vmul.f32 %v1643, %v1643
        %v1646 = vmul.f32 %v1644, %v1644
        %v1647 = vmul.f32 %v1645, %v1645
        %v1648 = vmul.f32 %v1646, %v1646
        %v1649 = vmul.f32 %v1647, %v1647
        %v1650 = vmul.f32 %v1648, %v1648
        %v1651 = vmul.f32 %v1649, %v1649
        %v1652 = vmul.f32 %v1650, %v1650
        %v1653 = vmul.f32 %v1651, %v1651
        %v1654 = vmul.f32 %v1652, %v1652
        %v1655 = vmax.f32 %v1580, 0.0
        %v1656 = vmax.f32 %v1581, 0.0
        %v1657 = vmul.f32 %v1655, 0.3
        %v1658 = vmul.f32 %v1656, 0.3
        %v1659 = vadd.f32 %v1657, 0.5
        %v1660 = vadd.f32 %v1658, 0.5
        %v1661 = vmul.f32 %v1653, 0.2
        %v1662 = vmul.f32 %v1654, 0.2
        %v1663 = vadd.f32 %v1659, %v1661
        %v1664 = vadd.f32 %v1660, %v1662
        %s1665 = scalar_lea.vmem %s245, 240 [#allocation9]
        %1666 = vst [vmem:[%s1665] sm:$0xff] %v1533
        %1667 = vst [vmem:[%s1665 + $0x8] sm:$0xff] %v1534
        %s1668 = scalar_lea.vmem %s245, 256 [#allocation9]
        %1669 = vst [vmem:[%s1668] sm:$0xff] %v1535
        %1670 = vst [vmem:[%s1668 + $0x8] sm:$0xff] %v1536
        %s1671 = scalar_lea.vmem %s245, 272 [#allocation9]
        %1672 = vst [vmem:[%s1671] sm:$0xff] %v1541
        %1673 = vst [vmem:[%s1671 + $0x8] sm:$0xff] %v1542
        %v1674 = vpack.c.bf16 %v1664, %v1663
        %v1676 = vunpack.c.l.b16 %v1674
        %v1677 = vunpack.c.h.b16 %v1674
        %v1678 = vpack.c.b16 %v1676, %v1676
        %v1679 = vpack.c.b16 %v1677, %v1677
        %s1682 = scalar_lea.vmem %s252, 40 [#allocation10]
        %1683 = vst [vmem:[%s1682] sm:$0xf] %v1678
        %1684 = vst [vmem:[%s1682 + $0x4] sm:$0xf] %v1679
        %s1685 = sadd.s32 %s524, 6
        %s1686 = smul.u32 %s1685, 9
        %s1687 = sld [smem:[#allocation6 + %s1686]]
        %s1688 = sadd.s32 %s1686, 1
        %s1689 = sld [smem:[#allocation6 + %s1688]]
        %s1690 = sadd.s32 %s1686, 2
        %s1691 = sld [smem:[#allocation6 + %s1690]]
        %s1692 = sadd.s32 %s1686, 3
        %s1693 = sld [smem:[#allocation6 + %s1692]]
        %s1694 = sadd.s32 %s1686, 4
        %s1695 = sld [smem:[#allocation6 + %s1694]]
        %s1696 = sadd.s32 %s1686, 5
        %s1697 = sld [smem:[#allocation6 + %s1696]]
        %s1698 = sadd.s32 %s1686, 6
        %s1699 = sld [smem:[#allocation6 + %s1698]]
        %s1700 = sadd.s32 %s1686, 7
        %s1701 = sld [smem:[#allocation6 + %s1700]]
        %s1702 = sadd.s32 %s1686, 8
        %s1703 = sld [smem:[#allocation6 + %s1702]]
        %s1704 = sld [smem:[#allocation7 + %s1686]]
        %s1705 = sld [smem:[#allocation7 + %s1688]]
        %s1706 = sld [smem:[#allocation7 + %s1690]]
        %s1707 = sld [smem:[#allocation7 + %s1692]]
        %s1708 = sld [smem:[#allocation7 + %s1694]]
        %s1709 = sld [smem:[#allocation7 + %s1696]]
        %s1710 = sld [smem:[#allocation7 + %s1698]]
        %s1711 = sld [smem:[#allocation7 + %s1700]]
        %s1712 = sld [smem:[#allocation7 + %s1702]]
        %v1713 = vstv %s1687
        %v1714 = vmul.f32 %v258, %v1713
        %v1715 = vmul.f32 %v259, %v1713
        %v1716 = vstv %s1693
        %v1717 = vmul.f32 %v261, %v1716
        %v1718 = vmul.f32 %v262, %v1716
        %v1719 = vadd.f32 %v1714, %v1717
        %v1720 = vadd.f32 %v1715, %v1718
        %v1721 = vstv %s1699
        %v1722 = vmul.f32 %v264, %v1721
        %v1723 = vmul.f32 %v265, %v1721
        %v1724 = vadd.f32 %v1719, %v1722
        %v1725 = vadd.f32 %v1720, %v1723
        %v1726 = vstv %s1704
        %v1727 = vadd.f32 %v1724, %v1726
        %v1728 = vadd.f32 %v1725, %v1726
        %v1729 = vstv %s1689
        %v1730 = vmul.f32 %v258, %v1729
        %v1731 = vmul.f32 %v259, %v1729
        %v1732 = vstv %s1695
        %v1733 = vmul.f32 %v261, %v1732
        %v1734 = vmul.f32 %v262, %v1732
        %v1735 = vadd.f32 %v1730, %v1733
        %v1736 = vadd.f32 %v1731, %v1734
        %v1737 = vstv %s1701
        %v1738 = vmul.f32 %v264, %v1737
        %v1739 = vmul.f32 %v265, %v1737
        %v1740 = vadd.f32 %v1735, %v1738
        %v1741 = vadd.f32 %v1736, %v1739
        %v1742 = vstv %s1705
        %v1743 = vadd.f32 %v1740, %v1742
        %v1744 = vadd.f32 %v1741, %v1742
        %v1745 = vstv %s1691
        %v1746 = vmul.f32 %v258, %v1745
        %v1747 = vmul.f32 %v259, %v1745
        %v1748 = vstv %s1697
        %v1749 = vmul.f32 %v261, %v1748
        %v1750 = vmul.f32 %v262, %v1748
        %v1751 = vadd.f32 %v1746, %v1749
        %v1752 = vadd.f32 %v1747, %v1750
        %v1753 = vstv %s1703
        %v1754 = vmul.f32 %v264, %v1753
        %v1755 = vmul.f32 %v265, %v1753
        %v1756 = vadd.f32 %v1751, %v1754
        %v1757 = vadd.f32 %v1752, %v1755
        %v1758 = vstv %s1706
        %v1759 = vadd.f32 %v1756, %v1758
        %v1760 = vadd.f32 %v1757, %v1758
        %v1761 = vrcp.pop %v1759
        %v1762 = vrcp.pop %v1760
        %v1763 = vmul.f32 %v1761, 1.7320508
        %v1764 = vmul.f32 %v1762, 1.7320508
        %v1765 = vmul.f32 %v1727, %v1763
        %v1766 = vmul.f32 %v1728, %v1764
        %v1767 = vmul.f32 %v1743, %v1763
        %v1768 = vmul.f32 %v1744, %v1764
        %v1769 = vrcp.pop %v1759
        %v1770 = vmul.f32 -1.010101, %v1769
        %v1771 = vrcp.pop %v1760
        %v1772 = vmul.f32 -1.010101, %v1771
        %v1773 = vadd.f32 %v1770, 1.010101
        %v1774 = vadd.f32 %v1772, 1.010101
        %v1775 = vstv %s1710
        %v1776 = vsub.f32 %v1775, %v258
        %v1777 = vsub.f32 %v1775, %v259
        %v1778 = vstv %s1711
        %v1779 = vsub.f32 %v1778, %v261
        %v1780 = vsub.f32 %v1778, %v262
        %v1781 = vstv %s1712
        %v1782 = vsub.f32 %v1781, %v264
        %v1783 = vsub.f32 %v1781, %v265
        %v1784 = vmul.f32 %v1776, %v1776
        %v1785 = vmul.f32 %v1777, %v1777
        %v1786 = vmul.f32 %v1779, %v1779
        %v1787 = vmul.f32 %v1780, %v1780
        %v1788 = vadd.f32 %v1784, %v1786
        %v1789 = vadd.f32 %v1785, %v1787
        %v1790 = vmul.f32 %v1782, %v1782
        %v1791 = vmul.f32 %v1783, %v1783
        %v1792 = vadd.f32 %v1788, %v1790
        %v1793 = vadd.f32 %v1789, %v1791
        %v1794 = vadd.f32 %v1792, 1e-12
        %v1795 = vadd.f32 %v1793, 1e-12
        %v1796 = vrsqrt.pop %v1794
        %v1797 = vrsqrt.pop %v1795
        %v1798 = vmul.f32 %v1776, %v1796
        %v1799 = vmul.f32 %v1777, %v1797
        %v1800 = vmul.f32 %v1779, %v1796
        %v1801 = vmul.f32 %v1780, %v1797
        %v1802 = vmul.f32 %v1782, %v1796
        %v1803 = vmul.f32 %v1783, %v1797
        %v1804 = vmul.f32 %v289, %v1798
        %v1805 = vmul.f32 %v290, %v1799
        %v1806 = vmul.f32 %v291, %v1800
        %v1807 = vmul.f32 %v292, %v1801
        %v1808 = vadd.f32 %v1804, %v1806
        %v1809 = vadd.f32 %v1805, %v1807
        %v1810 = vmul.f32 %v293, %v1802
        %v1811 = vmul.f32 %v294, %v1803
        %v1812 = vadd.f32 %v1808, %v1810
        %v1813 = vadd.f32 %v1809, %v1811
        %v1814 = vstv %s1707
        %v1815 = vsub.f32 %v1814, %v258
        %v1816 = vsub.f32 %v1814, %v259
        %v1817 = vstv %s1708
        %v1818 = vsub.f32 %v1817, %v261
        %v1819 = vsub.f32 %v1817, %v262
        %v1820 = vstv %s1709
        %v1821 = vsub.f32 %v1820, %v264
        %v1822 = vsub.f32 %v1820, %v265
        %v1823 = vmul.f32 %v1815, %v1815
        %v1824 = vmul.f32 %v1816, %v1816
        %v1825 = vmul.f32 %v1818, %v1818
        %v1826 = vmul.f32 %v1819, %v1819
        %v1827 = vadd.f32 %v1823, %v1825
        %v1828 = vadd.f32 %v1824, %v1826
        %v1829 = vmul.f32 %v1821, %v1821
        %v1830 = vmul.f32 %v1822, %v1822
        %v1831 = vadd.f32 %v1827, %v1829
        %v1832 = vadd.f32 %v1828, %v1830
        %v1833 = vadd.f32 %v1831, 1e-12
        %v1834 = vadd.f32 %v1832, 1e-12
        %v1835 = vrsqrt.pop %v1833
        %v1836 = vrsqrt.pop %v1834
        %v1837 = vmul.f32 %v1815, %v1835
        %v1838 = vmul.f32 %v1816, %v1836
        %v1839 = vmul.f32 %v1818, %v1835
        %v1840 = vmul.f32 %v1819, %v1836
        %v1841 = vmul.f32 %v1821, %v1835
        %v1842 = vmul.f32 %v1822, %v1836
        %v1843 = vmul.f32 %v289, %v1837
        %v1844 = vmul.f32 %v290, %v1838
        %v1845 = vmul.f32 %v291, %v1839
        %v1846 = vmul.f32 %v292, %v1840
        %v1847 = vadd.f32 %v1843, %v1845
        %v1848 = vadd.f32 %v1844, %v1846
        %v1849 = vmul.f32 %v293, %v1841
        %v1850 = vmul.f32 %v294, %v1842
        %v1851 = vadd.f32 %v1847, %v1849
        %v1852 = vadd.f32 %v1848, %v1850
        %v1853 = vmul.f32 %v1798, %v1837
        %v1854 = vmul.f32 %v1799, %v1838
        %v1855 = vmul.f32 %v1800, %v1839
        %v1856 = vmul.f32 %v1801, %v1840
        %v1857 = vadd.f32 %v1853, %v1855
        %v1858 = vadd.f32 %v1854, %v1856
        %v1859 = vmul.f32 %v1802, %v1841
        %v1860 = vmul.f32 %v1803, %v1842
        %v1861 = vadd.f32 %v1857, %v1859
        %v1862 = vadd.f32 %v1858, %v1860
        %v1863 = vmul.f32 %v1812, 2.0
        %v1864 = vmul.f32 %v1813, 2.0
        %v1865 = vmul.f32 %v1863, %v1851
        %v1866 = vmul.f32 %v1864, %v1852
        %v1867 = vsub.f32 %v1865, %v1861
        %v1868 = vsub.f32 %v1866, %v1862
        %v1869 = vmax.f32 %v1867, 0.0
        %v1870 = vmax.f32 %v1868, 0.0
        %vm1871 = vcmp.gt.f32.partialorder %v1812, 0.0
        %vm1872 = vcmp.gt.f32.partialorder %v1813, 0.0
        %v1873 = vsel %vm1871, %v1869, 0.0
        %v1874 = vsel %vm1872, %v1870, 0.0
        %v1875 = vmul.f32 %v1873, %v1873
        %v1876 = vmul.f32 %v1874, %v1874
        %v1877 = vmul.f32 %v1875, %v1875
        %v1878 = vmul.f32 %v1876, %v1876
        %v1879 = vmul.f32 %v1877, %v1877
        %v1880 = vmul.f32 %v1878, %v1878
        %v1881 = vmul.f32 %v1879, %v1879
        %v1882 = vmul.f32 %v1880, %v1880
        %v1883 = vmul.f32 %v1881, %v1881
        %v1884 = vmul.f32 %v1882, %v1882
        %v1885 = vmul.f32 %v1883, %v1883
        %v1886 = vmul.f32 %v1884, %v1884
        %v1887 = vmax.f32 %v1812, 0.0
        %v1888 = vmax.f32 %v1813, 0.0
        %v1889 = vmul.f32 %v1887, 0.3
        %v1890 = vmul.f32 %v1888, 0.3
        %v1891 = vadd.f32 %v1889, 0.5
        %v1892 = vadd.f32 %v1890, 0.5
        %v1893 = vmul.f32 %v1885, 0.2
        %v1894 = vmul.f32 %v1886, 0.2
        %v1895 = vadd.f32 %v1891, %v1893
        %v1896 = vadd.f32 %v1892, %v1894
        %s1897 = scalar_lea.vmem %s245, 288 [#allocation9]
        %1898 = vst [vmem:[%s1897] sm:$0xff] %v1765
        %1899 = vst [vmem:[%s1897 + $0x8] sm:$0xff] %v1766
        %s1900 = scalar_lea.vmem %s245, 304 [#allocation9]
        %1901 = vst [vmem:[%s1900] sm:$0xff] %v1767
        %1902 = vst [vmem:[%s1900 + $0x8] sm:$0xff] %v1768
        %s1903 = scalar_lea.vmem %s245, 320 [#allocation9]
        %1904 = vst [vmem:[%s1903] sm:$0xff] %v1773
        %1905 = vst [vmem:[%s1903 + $0x8] sm:$0xff] %v1774
        %v1906 = vpack.c.bf16 %v1896, %v1895
        %v1908 = vunpack.c.l.b16 %v1906
        %v1909 = vunpack.c.h.b16 %v1906
        %v1910 = vpack.c.b16 %v1908, %v1908
        %v1911 = vpack.c.b16 %v1909, %v1909
        %s1914 = scalar_lea.vmem %s252, 48 [#allocation10]
        %1915 = vst [vmem:[%s1914] sm:$0xf] %v1910
        %1916 = vst [vmem:[%s1914 + $0x4] sm:$0xf] %v1911
        %s1917 = sadd.s32 %s524, 7
        %s1918 = smul.u32 %s1917, 9
        %s1919 = sld [smem:[#allocation6 + %s1918]]
        %s1920 = sadd.s32 %s1918, 1
        %s1921 = sld [smem:[#allocation6 + %s1920]]
        %s1922 = sadd.s32 %s1918, 2
        %s1923 = sld [smem:[#allocation6 + %s1922]]
        %s1924 = sadd.s32 %s1918, 3
        %s1925 = sld [smem:[#allocation6 + %s1924]]
        %s1926 = sadd.s32 %s1918, 4
        %s1927 = sld [smem:[#allocation6 + %s1926]]
        %s1928 = sadd.s32 %s1918, 5
        %s1929 = sld [smem:[#allocation6 + %s1928]]
        %s1930 = sadd.s32 %s1918, 6
        %s1931 = sld [smem:[#allocation6 + %s1930]]
        %s1932 = sadd.s32 %s1918, 7
        %s1933 = sld [smem:[#allocation6 + %s1932]]
        %s1934 = sadd.s32 %s1918, 8
        %s1935 = sld [smem:[#allocation6 + %s1934]]
        %s1936 = sld [smem:[#allocation7 + %s1918]]
        %s1937 = sld [smem:[#allocation7 + %s1920]]
        %s1938 = sld [smem:[#allocation7 + %s1922]]
        %s1939 = sld [smem:[#allocation7 + %s1924]]
        %s1940 = sld [smem:[#allocation7 + %s1926]]
        %s1941 = sld [smem:[#allocation7 + %s1928]]
        %s1942 = sld [smem:[#allocation7 + %s1930]]
        %s1943 = sld [smem:[#allocation7 + %s1932]]
        %s1944 = sld [smem:[#allocation7 + %s1934]]
        %v1945 = vstv %s1919
        %v1946 = vmul.f32 %v258, %v1945
        %v1947 = vmul.f32 %v259, %v1945
        %v1948 = vstv %s1925
        %v1949 = vmul.f32 %v261, %v1948
        %v1950 = vmul.f32 %v262, %v1948
        %v1951 = vadd.f32 %v1946, %v1949
        %v1952 = vadd.f32 %v1947, %v1950
        %v1953 = vstv %s1931
        %v1954 = vmul.f32 %v264, %v1953
        %v1955 = vmul.f32 %v265, %v1953
        %v1956 = vadd.f32 %v1951, %v1954
        %v1957 = vadd.f32 %v1952, %v1955
        %v1958 = vstv %s1936
        %v1959 = vadd.f32 %v1956, %v1958
        %v1960 = vadd.f32 %v1957, %v1958
        %v1961 = vstv %s1921
        %v1962 = vmul.f32 %v258, %v1961
        %v1963 = vmul.f32 %v259, %v1961
        %v1964 = vstv %s1927
        %v1965 = vmul.f32 %v261, %v1964
        %v1966 = vmul.f32 %v262, %v1964
        %v1967 = vadd.f32 %v1962, %v1965
        %v1968 = vadd.f32 %v1963, %v1966
        %v1969 = vstv %s1933
        %v1970 = vmul.f32 %v264, %v1969
        %v1971 = vmul.f32 %v265, %v1969
        %v1972 = vadd.f32 %v1967, %v1970
        %v1973 = vadd.f32 %v1968, %v1971
        %v1974 = vstv %s1937
        %v1975 = vadd.f32 %v1972, %v1974
        %v1976 = vadd.f32 %v1973, %v1974
        %v1977 = vstv %s1923
        %v1978 = vmul.f32 %v258, %v1977
        %v1979 = vmul.f32 %v259, %v1977
        %v1980 = vstv %s1929
        %v1981 = vmul.f32 %v261, %v1980
        %v1982 = vmul.f32 %v262, %v1980
        %v1983 = vadd.f32 %v1978, %v1981
        %v1984 = vadd.f32 %v1979, %v1982
        %v1985 = vstv %s1935
        %v1986 = vmul.f32 %v264, %v1985
        %v1987 = vmul.f32 %v265, %v1985
        %v1988 = vadd.f32 %v1983, %v1986
        %v1989 = vadd.f32 %v1984, %v1987
        %v1990 = vstv %s1938
        %v1991 = vadd.f32 %v1988, %v1990
        %v1992 = vadd.f32 %v1989, %v1990
        %v1993 = vrcp.pop %v1991
        %v1994 = vrcp.pop %v1992
        %v1995 = vmul.f32 %v1993, 1.7320508
        %v1996 = vmul.f32 %v1994, 1.7320508
        %v1997 = vmul.f32 %v1959, %v1995
        %v1998 = vmul.f32 %v1960, %v1996
        %v1999 = vmul.f32 %v1975, %v1995
        %v2000 = vmul.f32 %v1976, %v1996
        %v2001 = vrcp.pop %v1991
        %v2002 = vmul.f32 -1.010101, %v2001
        %v2003 = vrcp.pop %v1992
        %v2004 = vmul.f32 -1.010101, %v2003
        %v2005 = vadd.f32 %v2002, 1.010101
        %v2006 = vadd.f32 %v2004, 1.010101
        %v2007 = vstv %s1942
        %v2008 = vsub.f32 %v2007, %v258
        %v2009 = vsub.f32 %v2007, %v259
        %v2010 = vstv %s1943
        %v2011 = vsub.f32 %v2010, %v261
        %v2012 = vsub.f32 %v2010, %v262
        %v2013 = vstv %s1944
        %v2014 = vsub.f32 %v2013, %v264
        %v2015 = vsub.f32 %v2013, %v265
        %v2016 = vmul.f32 %v2008, %v2008
        %v2017 = vmul.f32 %v2009, %v2009
        %v2018 = vmul.f32 %v2011, %v2011
        %v2019 = vmul.f32 %v2012, %v2012
        %v2020 = vadd.f32 %v2016, %v2018
        %v2021 = vadd.f32 %v2017, %v2019
        %v2022 = vmul.f32 %v2014, %v2014
        %v2023 = vmul.f32 %v2015, %v2015
        %v2024 = vadd.f32 %v2020, %v2022
        %v2025 = vadd.f32 %v2021, %v2023
        %v2026 = vadd.f32 %v2024, 1e-12
        %v2027 = vadd.f32 %v2025, 1e-12
        %v2028 = vrsqrt.pop %v2026
        %v2029 = vrsqrt.pop %v2027
        %v2030 = vmul.f32 %v2008, %v2028
        %v2031 = vmul.f32 %v2009, %v2029
        %v2032 = vmul.f32 %v2011, %v2028
        %v2033 = vmul.f32 %v2012, %v2029
        %v2034 = vmul.f32 %v2014, %v2028
        %v2035 = vmul.f32 %v2015, %v2029
        %v2036 = vmul.f32 %v289, %v2030
        %v2037 = vmul.f32 %v290, %v2031
        %v2038 = vmul.f32 %v291, %v2032
        %v2039 = vmul.f32 %v292, %v2033
        %v2040 = vadd.f32 %v2036, %v2038
        %v2041 = vadd.f32 %v2037, %v2039
        %v2042 = vmul.f32 %v293, %v2034
        %v2043 = vmul.f32 %v294, %v2035
        %v2044 = vadd.f32 %v2040, %v2042
        %v2045 = vadd.f32 %v2041, %v2043
        %v2046 = vstv %s1939
        %v2047 = vsub.f32 %v2046, %v258
        %v2048 = vsub.f32 %v2046, %v259
        %v2049 = vstv %s1940
        %v2050 = vsub.f32 %v2049, %v261
        %v2051 = vsub.f32 %v2049, %v262
        %v2052 = vstv %s1941
        %v2053 = vsub.f32 %v2052, %v264
        %v2054 = vsub.f32 %v2052, %v265
        %v2055 = vmul.f32 %v2047, %v2047
        %v2056 = vmul.f32 %v2048, %v2048
        %v2057 = vmul.f32 %v2050, %v2050
        %v2058 = vmul.f32 %v2051, %v2051
        %v2059 = vadd.f32 %v2055, %v2057
        %v2060 = vadd.f32 %v2056, %v2058
        %v2061 = vmul.f32 %v2053, %v2053
        %v2062 = vmul.f32 %v2054, %v2054
        %v2063 = vadd.f32 %v2059, %v2061
        %v2064 = vadd.f32 %v2060, %v2062
        %v2065 = vadd.f32 %v2063, 1e-12
        %v2066 = vadd.f32 %v2064, 1e-12
        %v2067 = vrsqrt.pop %v2065
        %v2068 = vrsqrt.pop %v2066
        %v2069 = vmul.f32 %v2047, %v2067
        %v2070 = vmul.f32 %v2048, %v2068
        %v2071 = vmul.f32 %v2050, %v2067
        %v2072 = vmul.f32 %v2051, %v2068
        %v2073 = vmul.f32 %v2053, %v2067
        %v2074 = vmul.f32 %v2054, %v2068
        %v2075 = vmul.f32 %v289, %v2069
        %v2076 = vmul.f32 %v290, %v2070
        %v2077 = vmul.f32 %v291, %v2071
        %v2078 = vmul.f32 %v292, %v2072
        %v2079 = vadd.f32 %v2075, %v2077
        %v2080 = vadd.f32 %v2076, %v2078
        %v2081 = vmul.f32 %v293, %v2073
        %v2082 = vmul.f32 %v294, %v2074
        %v2083 = vadd.f32 %v2079, %v2081
        %v2084 = vadd.f32 %v2080, %v2082
        %v2085 = vmul.f32 %v2030, %v2069
        %v2086 = vmul.f32 %v2031, %v2070
        %v2087 = vmul.f32 %v2032, %v2071
        %v2088 = vmul.f32 %v2033, %v2072
        %v2089 = vadd.f32 %v2085, %v2087
        %v2090 = vadd.f32 %v2086, %v2088
        %v2091 = vmul.f32 %v2034, %v2073
        %v2092 = vmul.f32 %v2035, %v2074
        %v2093 = vadd.f32 %v2089, %v2091
        %v2094 = vadd.f32 %v2090, %v2092
        %v2095 = vmul.f32 %v2044, 2.0
        %v2096 = vmul.f32 %v2045, 2.0
        %v2097 = vmul.f32 %v2095, %v2083
        %v2098 = vmul.f32 %v2096, %v2084
        %v2099 = vsub.f32 %v2097, %v2093
        %v2100 = vsub.f32 %v2098, %v2094
        %v2101 = vmax.f32 %v2099, 0.0
        %v2102 = vmax.f32 %v2100, 0.0
        %vm2103 = vcmp.gt.f32.partialorder %v2044, 0.0
        %vm2104 = vcmp.gt.f32.partialorder %v2045, 0.0
        %v2105 = vsel %vm2103, %v2101, 0.0
        %v2106 = vsel %vm2104, %v2102, 0.0
        %v2107 = vmul.f32 %v2105, %v2105
        %v2108 = vmul.f32 %v2106, %v2106
        %v2109 = vmul.f32 %v2107, %v2107
        %v2110 = vmul.f32 %v2108, %v2108
        %v2111 = vmul.f32 %v2109, %v2109
        %v2112 = vmul.f32 %v2110, %v2110
        %v2113 = vmul.f32 %v2111, %v2111
        %v2114 = vmul.f32 %v2112, %v2112
        %v2115 = vmul.f32 %v2113, %v2113
        %v2116 = vmul.f32 %v2114, %v2114
        %v2117 = vmul.f32 %v2115, %v2115
        %v2118 = vmul.f32 %v2116, %v2116
        %v2119 = vmax.f32 %v2044, 0.0
        %v2120 = vmax.f32 %v2045, 0.0
        %v2121 = vmul.f32 %v2119, 0.3
        %v2122 = vmul.f32 %v2120, 0.3
        %v2123 = vadd.f32 %v2121, 0.5
        %v2124 = vadd.f32 %v2122, 0.5
        %v2125 = vmul.f32 %v2117, 0.2
        %v2126 = vmul.f32 %v2118, 0.2
        %v2127 = vadd.f32 %v2123, %v2125
        %v2128 = vadd.f32 %v2124, %v2126
        %s2129 = scalar_lea.vmem %s245, 336 [#allocation9]
        %2130 = vst [vmem:[%s2129] sm:$0xff] %v1997
        %2131 = vst [vmem:[%s2129 + $0x8] sm:$0xff] %v1998
        %s2132 = scalar_lea.vmem %s245, 352 [#allocation9]
        %2133 = vst [vmem:[%s2132] sm:$0xff] %v1999
        %2134 = vst [vmem:[%s2132 + $0x8] sm:$0xff] %v2000
        %s2135 = scalar_lea.vmem %s245, 368 [#allocation9]
        %2136 = vst [vmem:[%s2135] sm:$0xff] %v2005
        %2137 = vst [vmem:[%s2135 + $0x8] sm:$0xff] %v2006
        %v2138 = vpack.c.bf16 %v2128, %v2127
        %v2140 = vunpack.c.l.b16 %v2138
        %v2141 = vunpack.c.h.b16 %v2138
        %v2142 = vpack.c.b16 %v2140, %v2140
        %v2143 = vpack.c.b16 %v2141, %v2141
        %s2146 = scalar_lea.vmem %s252, 56 [#allocation10]
        %2147 = vst [vmem:[%s2146] sm:$0xf] %v2142
        %2148 = vst [vmem:[%s2146 + $0x4] sm:$0xf] %v2143
        %s2149 = sadd.s32 %s524, 8
        %s2150 = smul.u32 %s2149, 9
        %s2151 = sld [smem:[#allocation6 + %s2150]]
        %s2152 = sadd.s32 %s2150, 1
        %s2153 = sld [smem:[#allocation6 + %s2152]]
        %s2154 = sadd.s32 %s2150, 2
        %s2155 = sld [smem:[#allocation6 + %s2154]]
        %s2156 = sadd.s32 %s2150, 3
        %s2157 = sld [smem:[#allocation6 + %s2156]]
        %s2158 = sadd.s32 %s2150, 4
        %s2159 = sld [smem:[#allocation6 + %s2158]]
        %s2160 = sadd.s32 %s2150, 5
        %s2161 = sld [smem:[#allocation6 + %s2160]]
        %s2162 = sadd.s32 %s2150, 6
        %s2163 = sld [smem:[#allocation6 + %s2162]]
        %s2164 = sadd.s32 %s2150, 7
        %s2165 = sld [smem:[#allocation6 + %s2164]]
        %s2166 = sadd.s32 %s2150, 8
        %s2167 = sld [smem:[#allocation6 + %s2166]]
        %s2168 = sld [smem:[#allocation7 + %s2150]]
        %s2169 = sld [smem:[#allocation7 + %s2152]]
        %s2170 = sld [smem:[#allocation7 + %s2154]]
        %s2171 = sld [smem:[#allocation7 + %s2156]]
        %s2172 = sld [smem:[#allocation7 + %s2158]]
        %s2173 = sld [smem:[#allocation7 + %s2160]]
        %s2174 = sld [smem:[#allocation7 + %s2162]]
        %s2175 = sld [smem:[#allocation7 + %s2164]]
        %s2176 = sld [smem:[#allocation7 + %s2166]]
        %v2177 = vstv %s2151
        %v2178 = vmul.f32 %v258, %v2177
        %v2179 = vmul.f32 %v259, %v2177
        %v2180 = vstv %s2157
        %v2181 = vmul.f32 %v261, %v2180
        %v2182 = vmul.f32 %v262, %v2180
        %v2183 = vadd.f32 %v2178, %v2181
        %v2184 = vadd.f32 %v2179, %v2182
        %v2185 = vstv %s2163
        %v2186 = vmul.f32 %v264, %v2185
        %v2187 = vmul.f32 %v265, %v2185
        %v2188 = vadd.f32 %v2183, %v2186
        %v2189 = vadd.f32 %v2184, %v2187
        %v2190 = vstv %s2168
        %v2191 = vadd.f32 %v2188, %v2190
        %v2192 = vadd.f32 %v2189, %v2190
        %v2193 = vstv %s2153
        %v2194 = vmul.f32 %v258, %v2193
        %v2195 = vmul.f32 %v259, %v2193
        %v2196 = vstv %s2159
        %v2197 = vmul.f32 %v261, %v2196
        %v2198 = vmul.f32 %v262, %v2196
        %v2199 = vadd.f32 %v2194, %v2197
        %v2200 = vadd.f32 %v2195, %v2198
        %v2201 = vstv %s2165
        %v2202 = vmul.f32 %v264, %v2201
        %v2203 = vmul.f32 %v265, %v2201
        %v2204 = vadd.f32 %v2199, %v2202
        %v2205 = vadd.f32 %v2200, %v2203
        %v2206 = vstv %s2169
        %v2207 = vadd.f32 %v2204, %v2206
        %v2208 = vadd.f32 %v2205, %v2206
        %v2209 = vstv %s2155
        %v2210 = vmul.f32 %v258, %v2209
        %v2211 = vmul.f32 %v259, %v2209
        %v2212 = vstv %s2161
        %v2213 = vmul.f32 %v261, %v2212
        %v2214 = vmul.f32 %v262, %v2212
        %v2215 = vadd.f32 %v2210, %v2213
        %v2216 = vadd.f32 %v2211, %v2214
        %v2217 = vstv %s2167
        %v2218 = vmul.f32 %v264, %v2217
        %v2219 = vmul.f32 %v265, %v2217
        %v2220 = vadd.f32 %v2215, %v2218
        %v2221 = vadd.f32 %v2216, %v2219
        %v2222 = vstv %s2170
        %v2223 = vadd.f32 %v2220, %v2222
        %v2224 = vadd.f32 %v2221, %v2222
        %v2225 = vrcp.pop %v2223
        %v2226 = vrcp.pop %v2224
        %v2227 = vmul.f32 %v2225, 1.7320508
        %v2228 = vmul.f32 %v2226, 1.7320508
        %v2229 = vmul.f32 %v2191, %v2227
        %v2230 = vmul.f32 %v2192, %v2228
        %v2231 = vmul.f32 %v2207, %v2227
        %v2232 = vmul.f32 %v2208, %v2228
        %v2233 = vrcp.pop %v2223
        %v2234 = vmul.f32 -1.010101, %v2233
        %v2235 = vrcp.pop %v2224
        %v2236 = vmul.f32 -1.010101, %v2235
        %v2237 = vadd.f32 %v2234, 1.010101
        %v2238 = vadd.f32 %v2236, 1.010101
        %v2239 = vstv %s2174
        %v2240 = vsub.f32 %v2239, %v258
        %v2241 = vsub.f32 %v2239, %v259
        %v2242 = vstv %s2175
        %v2243 = vsub.f32 %v2242, %v261
        %v2244 = vsub.f32 %v2242, %v262
        %v2245 = vstv %s2176
        %v2246 = vsub.f32 %v2245, %v264
        %v2247 = vsub.f32 %v2245, %v265
        %v2248 = vmul.f32 %v2240, %v2240
        %v2249 = vmul.f32 %v2241, %v2241
        %v2250 = vmul.f32 %v2243, %v2243
        %v2251 = vmul.f32 %v2244, %v2244
        %v2252 = vadd.f32 %v2248, %v2250
        %v2253 = vadd.f32 %v2249, %v2251
        %v2254 = vmul.f32 %v2246, %v2246
        %v2255 = vmul.f32 %v2247, %v2247
        %v2256 = vadd.f32 %v2252, %v2254
        %v2257 = vadd.f32 %v2253, %v2255
        %v2258 = vadd.f32 %v2256, 1e-12
        %v2259 = vadd.f32 %v2257, 1e-12
        %v2260 = vrsqrt.pop %v2258
        %v2261 = vrsqrt.pop %v2259
        %v2262 = vmul.f32 %v2240, %v2260
        %v2263 = vmul.f32 %v2241, %v2261
        %v2264 = vmul.f32 %v2243, %v2260
        %v2265 = vmul.f32 %v2244, %v2261
        %v2266 = vmul.f32 %v2246, %v2260
        %v2267 = vmul.f32 %v2247, %v2261
        %v2268 = vmul.f32 %v289, %v2262
        %v2269 = vmul.f32 %v290, %v2263
        %v2270 = vmul.f32 %v291, %v2264
        %v2271 = vmul.f32 %v292, %v2265
        %v2272 = vadd.f32 %v2268, %v2270
        %v2273 = vadd.f32 %v2269, %v2271
        %v2274 = vmul.f32 %v293, %v2266
        %v2275 = vmul.f32 %v294, %v2267
        %v2276 = vadd.f32 %v2272, %v2274
        %v2277 = vadd.f32 %v2273, %v2275
        %v2278 = vstv %s2171
        %v2279 = vsub.f32 %v2278, %v258
        %v2280 = vsub.f32 %v2278, %v259
        %v2281 = vstv %s2172
        %v2282 = vsub.f32 %v2281, %v261
        %v2283 = vsub.f32 %v2281, %v262
        %v2284 = vstv %s2173
        %v2285 = vsub.f32 %v2284, %v264
        %v2286 = vsub.f32 %v2284, %v265
        %v2287 = vmul.f32 %v2279, %v2279
        %v2288 = vmul.f32 %v2280, %v2280
        %v2289 = vmul.f32 %v2282, %v2282
        %v2290 = vmul.f32 %v2283, %v2283
        %v2291 = vadd.f32 %v2287, %v2289
        %v2292 = vadd.f32 %v2288, %v2290
        %v2293 = vmul.f32 %v2285, %v2285
        %v2294 = vmul.f32 %v2286, %v2286
        %v2295 = vadd.f32 %v2291, %v2293
        %v2296 = vadd.f32 %v2292, %v2294
        %v2297 = vadd.f32 %v2295, 1e-12
        %v2298 = vadd.f32 %v2296, 1e-12
        %v2299 = vrsqrt.pop %v2297
        %v2300 = vrsqrt.pop %v2298
        %v2301 = vmul.f32 %v2279, %v2299
        %v2302 = vmul.f32 %v2280, %v2300
        %v2303 = vmul.f32 %v2282, %v2299
        %v2304 = vmul.f32 %v2283, %v2300
        %v2305 = vmul.f32 %v2285, %v2299
        %v2306 = vmul.f32 %v2286, %v2300
        %v2307 = vmul.f32 %v289, %v2301
        %v2308 = vmul.f32 %v290, %v2302
        %v2309 = vmul.f32 %v291, %v2303
        %v2310 = vmul.f32 %v292, %v2304
        %v2311 = vadd.f32 %v2307, %v2309
        %v2312 = vadd.f32 %v2308, %v2310
        %v2313 = vmul.f32 %v293, %v2305
        %v2314 = vmul.f32 %v294, %v2306
        %v2315 = vadd.f32 %v2311, %v2313
        %v2316 = vadd.f32 %v2312, %v2314
        %v2317 = vmul.f32 %v2262, %v2301
        %v2318 = vmul.f32 %v2263, %v2302
        %v2319 = vmul.f32 %v2264, %v2303
        %v2320 = vmul.f32 %v2265, %v2304
        %v2321 = vadd.f32 %v2317, %v2319
        %v2322 = vadd.f32 %v2318, %v2320
        %v2323 = vmul.f32 %v2266, %v2305
        %v2324 = vmul.f32 %v2267, %v2306
        %v2325 = vadd.f32 %v2321, %v2323
        %v2326 = vadd.f32 %v2322, %v2324
        %v2327 = vmul.f32 %v2276, 2.0
        %v2328 = vmul.f32 %v2277, 2.0
        %v2329 = vmul.f32 %v2327, %v2315
        %v2330 = vmul.f32 %v2328, %v2316
        %v2331 = vsub.f32 %v2329, %v2325
        %v2332 = vsub.f32 %v2330, %v2326
        %v2333 = vmax.f32 %v2331, 0.0
        %v2334 = vmax.f32 %v2332, 0.0
        %vm2335 = vcmp.gt.f32.partialorder %v2276, 0.0
        %vm2336 = vcmp.gt.f32.partialorder %v2277, 0.0
        %v2337 = vsel %vm2335, %v2333, 0.0
        %v2338 = vsel %vm2336, %v2334, 0.0
        %v2339 = vmul.f32 %v2337, %v2337
        %v2340 = vmul.f32 %v2338, %v2338
        %v2341 = vmul.f32 %v2339, %v2339
        %v2342 = vmul.f32 %v2340, %v2340
        %v2343 = vmul.f32 %v2341, %v2341
        %v2344 = vmul.f32 %v2342, %v2342
        %v2345 = vmul.f32 %v2343, %v2343
        %v2346 = vmul.f32 %v2344, %v2344
        %v2347 = vmul.f32 %v2345, %v2345
        %v2348 = vmul.f32 %v2346, %v2346
        %v2349 = vmul.f32 %v2347, %v2347
        %v2350 = vmul.f32 %v2348, %v2348
        %v2351 = vmax.f32 %v2276, 0.0
        %v2352 = vmax.f32 %v2277, 0.0
        %v2353 = vmul.f32 %v2351, 0.3
        %v2354 = vmul.f32 %v2352, 0.3
        %v2355 = vadd.f32 %v2353, 0.5
        %v2356 = vadd.f32 %v2354, 0.5
        %v2357 = vmul.f32 %v2349, 0.2
        %v2358 = vmul.f32 %v2350, 0.2
        %v2359 = vadd.f32 %v2355, %v2357
        %v2360 = vadd.f32 %v2356, %v2358
        %s2361 = scalar_lea.vmem %s245, 384 [#allocation9]
        %2362 = vst [vmem:[%s2361] sm:$0xff] %v2229
        %2363 = vst [vmem:[%s2361 + $0x8] sm:$0xff] %v2230
        %s2364 = scalar_lea.vmem %s245, 400 [#allocation9]
        %2365 = vst [vmem:[%s2364] sm:$0xff] %v2231
        %2366 = vst [vmem:[%s2364 + $0x8] sm:$0xff] %v2232
        %s2367 = scalar_lea.vmem %s245, 416 [#allocation9]
        %2368 = vst [vmem:[%s2367] sm:$0xff] %v2237
        %2369 = vst [vmem:[%s2367 + $0x8] sm:$0xff] %v2238
        %v2370 = vpack.c.bf16 %v2360, %v2359
        %v2372 = vunpack.c.l.b16 %v2370
        %v2373 = vunpack.c.h.b16 %v2370
        %v2374 = vpack.c.b16 %v2372, %v2372
        %v2375 = vpack.c.b16 %v2373, %v2373
        %s2378 = scalar_lea.vmem %s252, 64 [#allocation10]
        %2379 = vst [vmem:[%s2378] sm:$0xf] %v2374
        %2380 = vst [vmem:[%s2378 + $0x4] sm:$0xf] %v2375
        %s2381 = sadd.s32 %s524, 9
        %s2382 = smul.u32 %s2381, 9
        %s2383 = sld [smem:[#allocation6 + %s2382]]
        %s2384 = sadd.s32 %s2382, 1
        %s2385 = sld [smem:[#allocation6 + %s2384]]
        %s2386 = sadd.s32 %s2382, 2
        %s2387 = sld [smem:[#allocation6 + %s2386]]
        %s2388 = sadd.s32 %s2382, 3
        %s2389 = sld [smem:[#allocation6 + %s2388]]
        %s2390 = sadd.s32 %s2382, 4
        %s2391 = sld [smem:[#allocation6 + %s2390]]
        %s2392 = sadd.s32 %s2382, 5
        %s2393 = sld [smem:[#allocation6 + %s2392]]
        %s2394 = sadd.s32 %s2382, 6
        %s2395 = sld [smem:[#allocation6 + %s2394]]
        %s2396 = sadd.s32 %s2382, 7
        %s2397 = sld [smem:[#allocation6 + %s2396]]
        %s2398 = sadd.s32 %s2382, 8
        %s2399 = sld [smem:[#allocation6 + %s2398]]
        %s2400 = sld [smem:[#allocation7 + %s2382]]
        %s2401 = sld [smem:[#allocation7 + %s2384]]
        %s2402 = sld [smem:[#allocation7 + %s2386]]
        %s2403 = sld [smem:[#allocation7 + %s2388]]
        %s2404 = sld [smem:[#allocation7 + %s2390]]
        %s2405 = sld [smem:[#allocation7 + %s2392]]
        %s2406 = sld [smem:[#allocation7 + %s2394]]
        %s2407 = sld [smem:[#allocation7 + %s2396]]
        %s2408 = sld [smem:[#allocation7 + %s2398]]
        %v2409 = vstv %s2383
        %v2410 = vmul.f32 %v258, %v2409
        %v2411 = vmul.f32 %v259, %v2409
        %v2412 = vstv %s2389
        %v2413 = vmul.f32 %v261, %v2412
        %v2414 = vmul.f32 %v262, %v2412
        %v2415 = vadd.f32 %v2410, %v2413
        %v2416 = vadd.f32 %v2411, %v2414
        %v2417 = vstv %s2395
        %v2418 = vmul.f32 %v264, %v2417
        %v2419 = vmul.f32 %v265, %v2417
        %v2420 = vadd.f32 %v2415, %v2418
        %v2421 = vadd.f32 %v2416, %v2419
        %v2422 = vstv %s2400
        %v2423 = vadd.f32 %v2420, %v2422
        %v2424 = vadd.f32 %v2421, %v2422
        %v2425 = vstv %s2385
        %v2426 = vmul.f32 %v258, %v2425
        %v2427 = vmul.f32 %v259, %v2425
        %v2428 = vstv %s2391
        %v2429 = vmul.f32 %v261, %v2428
        %v2430 = vmul.f32 %v262, %v2428
        %v2431 = vadd.f32 %v2426, %v2429
        %v2432 = vadd.f32 %v2427, %v2430
        %v2433 = vstv %s2397
        %v2434 = vmul.f32 %v264, %v2433
        %v2435 = vmul.f32 %v265, %v2433
        %v2436 = vadd.f32 %v2431, %v2434
        %v2437 = vadd.f32 %v2432, %v2435
        %v2438 = vstv %s2401
        %v2439 = vadd.f32 %v2436, %v2438
        %v2440 = vadd.f32 %v2437, %v2438
        %v2441 = vstv %s2387
        %v2442 = vmul.f32 %v258, %v2441
        %v2443 = vmul.f32 %v259, %v2441
        %v2444 = vstv %s2393
        %v2445 = vmul.f32 %v261, %v2444
        %v2446 = vmul.f32 %v262, %v2444
        %v2447 = vadd.f32 %v2442, %v2445
        %v2448 = vadd.f32 %v2443, %v2446
        %v2449 = vstv %s2399
        %v2450 = vmul.f32 %v264, %v2449
        %v2451 = vmul.f32 %v265, %v2449
        %v2452 = vadd.f32 %v2447, %v2450
        %v2453 = vadd.f32 %v2448, %v2451
        %v2454 = vstv %s2402
        %v2455 = vadd.f32 %v2452, %v2454
        %v2456 = vadd.f32 %v2453, %v2454
        %v2457 = vrcp.pop %v2455
        %v2458 = vrcp.pop %v2456
        %v2459 = vmul.f32 %v2457, 1.7320508
        %v2460 = vmul.f32 %v2458, 1.7320508
        %v2461 = vmul.f32 %v2423, %v2459
        %v2462 = vmul.f32 %v2424, %v2460
        %v2463 = vmul.f32 %v2439, %v2459
        %v2464 = vmul.f32 %v2440, %v2460
        %v2465 = vrcp.pop %v2455
        %v2466 = vmul.f32 -1.010101, %v2465
        %v2467 = vrcp.pop %v2456
        %v2468 = vmul.f32 -1.010101, %v2467
        %v2469 = vadd.f32 %v2466, 1.010101
        %v2470 = vadd.f32 %v2468, 1.010101
        %v2471 = vstv %s2406
        %v2472 = vsub.f32 %v2471, %v258
        %v2473 = vsub.f32 %v2471, %v259
        %v2474 = vstv %s2407
        %v2475 = vsub.f32 %v2474, %v261
        %v2476 = vsub.f32 %v2474, %v262
        %v2477 = vstv %s2408
        %v2478 = vsub.f32 %v2477, %v264
        %v2479 = vsub.f32 %v2477, %v265
        %v2480 = vmul.f32 %v2472, %v2472
        %v2481 = vmul.f32 %v2473, %v2473
        %v2482 = vmul.f32 %v2475, %v2475
        %v2483 = vmul.f32 %v2476, %v2476
        %v2484 = vadd.f32 %v2480, %v2482
        %v2485 = vadd.f32 %v2481, %v2483
        %v2486 = vmul.f32 %v2478, %v2478
        %v2487 = vmul.f32 %v2479, %v2479
        %v2488 = vadd.f32 %v2484, %v2486
        %v2489 = vadd.f32 %v2485, %v2487
        %v2490 = vadd.f32 %v2488, 1e-12
        %v2491 = vadd.f32 %v2489, 1e-12
        %v2492 = vrsqrt.pop %v2490
        %v2493 = vrsqrt.pop %v2491
        %v2494 = vmul.f32 %v2472, %v2492
        %v2495 = vmul.f32 %v2473, %v2493
        %v2496 = vmul.f32 %v2475, %v2492
        %v2497 = vmul.f32 %v2476, %v2493
        %v2498 = vmul.f32 %v2478, %v2492
        %v2499 = vmul.f32 %v2479, %v2493
        %v2500 = vmul.f32 %v289, %v2494
        %v2501 = vmul.f32 %v290, %v2495
        %v2502 = vmul.f32 %v291, %v2496
        %v2503 = vmul.f32 %v292, %v2497
        %v2504 = vadd.f32 %v2500, %v2502
        %v2505 = vadd.f32 %v2501, %v2503
        %v2506 = vmul.f32 %v293, %v2498
        %v2507 = vmul.f32 %v294, %v2499
        %v2508 = vadd.f32 %v2504, %v2506
        %v2509 = vadd.f32 %v2505, %v2507
        %v2510 = vstv %s2403
        %v2511 = vsub.f32 %v2510, %v258
        %v2512 = vsub.f32 %v2510, %v259
        %v2513 = vstv %s2404
        %v2514 = vsub.f32 %v2513, %v261
        %v2515 = vsub.f32 %v2513, %v262
        %v2516 = vstv %s2405
        %v2517 = vsub.f32 %v2516, %v264
        %v2518 = vsub.f32 %v2516, %v265
        %v2519 = vmul.f32 %v2511, %v2511
        %v2520 = vmul.f32 %v2512, %v2512
        %v2521 = vmul.f32 %v2514, %v2514
        %v2522 = vmul.f32 %v2515, %v2515
        %v2523 = vadd.f32 %v2519, %v2521
        %v2524 = vadd.f32 %v2520, %v2522
        %v2525 = vmul.f32 %v2517, %v2517
        %v2526 = vmul.f32 %v2518, %v2518
        %v2527 = vadd.f32 %v2523, %v2525
        %v2528 = vadd.f32 %v2524, %v2526
        %v2529 = vadd.f32 %v2527, 1e-12
        %v2530 = vadd.f32 %v2528, 1e-12
        %v2531 = vrsqrt.pop %v2529
        %v2532 = vrsqrt.pop %v2530
        %v2533 = vmul.f32 %v2511, %v2531
        %v2534 = vmul.f32 %v2512, %v2532
        %v2535 = vmul.f32 %v2514, %v2531
        %v2536 = vmul.f32 %v2515, %v2532
        %v2537 = vmul.f32 %v2517, %v2531
        %v2538 = vmul.f32 %v2518, %v2532
        %v2539 = vmul.f32 %v289, %v2533
        %v2540 = vmul.f32 %v290, %v2534
        %v2541 = vmul.f32 %v291, %v2535
        %v2542 = vmul.f32 %v292, %v2536
        %v2543 = vadd.f32 %v2539, %v2541
        %v2544 = vadd.f32 %v2540, %v2542
        %v2545 = vmul.f32 %v293, %v2537
        %v2546 = vmul.f32 %v294, %v2538
        %v2547 = vadd.f32 %v2543, %v2545
        %v2548 = vadd.f32 %v2544, %v2546
        %v2549 = vmul.f32 %v2494, %v2533
        %v2550 = vmul.f32 %v2495, %v2534
        %v2551 = vmul.f32 %v2496, %v2535
        %v2552 = vmul.f32 %v2497, %v2536
        %v2553 = vadd.f32 %v2549, %v2551
        %v2554 = vadd.f32 %v2550, %v2552
        %v2555 = vmul.f32 %v2498, %v2537
        %v2556 = vmul.f32 %v2499, %v2538
        %v2557 = vadd.f32 %v2553, %v2555
        %v2558 = vadd.f32 %v2554, %v2556
        %v2559 = vmul.f32 %v2508, 2.0
        %v2560 = vmul.f32 %v2509, 2.0
        %v2561 = vmul.f32 %v2559, %v2547
        %v2562 = vmul.f32 %v2560, %v2548
        %v2563 = vsub.f32 %v2561, %v2557
        %v2564 = vsub.f32 %v2562, %v2558
        %v2565 = vmax.f32 %v2563, 0.0
        %v2566 = vmax.f32 %v2564, 0.0
        %vm2567 = vcmp.gt.f32.partialorder %v2508, 0.0
        %vm2568 = vcmp.gt.f32.partialorder %v2509, 0.0
        %v2569 = vsel %vm2567, %v2565, 0.0
        %v2570 = vsel %vm2568, %v2566, 0.0
        %v2571 = vmul.f32 %v2569, %v2569
        %v2572 = vmul.f32 %v2570, %v2570
        %v2573 = vmul.f32 %v2571, %v2571
        %v2574 = vmul.f32 %v2572, %v2572
        %v2575 = vmul.f32 %v2573, %v2573
        %v2576 = vmul.f32 %v2574, %v2574
        %v2577 = vmul.f32 %v2575, %v2575
        %v2578 = vmul.f32 %v2576, %v2576
        %v2579 = vmul.f32 %v2577, %v2577
        %v2580 = vmul.f32 %v2578, %v2578
        %v2581 = vmul.f32 %v2579, %v2579
        %v2582 = vmul.f32 %v2580, %v2580
        %v2583 = vmax.f32 %v2508, 0.0
        %v2584 = vmax.f32 %v2509, 0.0
        %v2585 = vmul.f32 %v2583, 0.3
        %v2586 = vmul.f32 %v2584, 0.3
        %v2587 = vadd.f32 %v2585, 0.5
        %v2588 = vadd.f32 %v2586, 0.5
        %v2589 = vmul.f32 %v2581, 0.2
        %v2590 = vmul.f32 %v2582, 0.2
        %v2591 = vadd.f32 %v2587, %v2589
        %v2592 = vadd.f32 %v2588, %v2590
        %s2593 = scalar_lea.vmem %s245, 432 [#allocation9]
        %2594 = vst [vmem:[%s2593] sm:$0xff] %v2461
        %2595 = vst [vmem:[%s2593 + $0x8] sm:$0xff] %v2462
        %s2596 = scalar_lea.vmem %s245, 448 [#allocation9]
        %2597 = vst [vmem:[%s2596] sm:$0xff] %v2463
        %2598 = vst [vmem:[%s2596 + $0x8] sm:$0xff] %v2464
        %s2599 = scalar_lea.vmem %s245, 464 [#allocation9]
        %2600 = vst [vmem:[%s2599] sm:$0xff] %v2469
        %2601 = vst [vmem:[%s2599 + $0x8] sm:$0xff] %v2470
        %v2602 = vpack.c.bf16 %v2592, %v2591
        %v2604 = vunpack.c.l.b16 %v2602
        %v2605 = vunpack.c.h.b16 %v2602
        %v2606 = vpack.c.b16 %v2604, %v2604
        %v2607 = vpack.c.b16 %v2605, %v2605
        %s2610 = scalar_lea.vmem %s252, 72 [#allocation10]
        %2611 = vst [vmem:[%s2610] sm:$0xf] %v2606
        %2612 = vst [vmem:[%s2610 + $0x4] sm:$0xf] %v2607
        %s2613 = sadd.s32 %s524, 10
        %s2614 = smul.u32 %s2613, 9
        %s2615 = sld [smem:[#allocation6 + %s2614]]
        %s2616 = sadd.s32 %s2614, 1
        %s2617 = sld [smem:[#allocation6 + %s2616]]
        %s2618 = sadd.s32 %s2614, 2
        %s2619 = sld [smem:[#allocation6 + %s2618]]
        %s2620 = sadd.s32 %s2614, 3
        %s2621 = sld [smem:[#allocation6 + %s2620]]
        %s2622 = sadd.s32 %s2614, 4
        %s2623 = sld [smem:[#allocation6 + %s2622]]
        %s2624 = sadd.s32 %s2614, 5
        %s2625 = sld [smem:[#allocation6 + %s2624]]
        %s2626 = sadd.s32 %s2614, 6
        %s2627 = sld [smem:[#allocation6 + %s2626]]
        %s2628 = sadd.s32 %s2614, 7
        %s2629 = sld [smem:[#allocation6 + %s2628]]
        %s2630 = sadd.s32 %s2614, 8
        %s2631 = sld [smem:[#allocation6 + %s2630]]
        %s2632 = sld [smem:[#allocation7 + %s2614]]
        %s2633 = sld [smem:[#allocation7 + %s2616]]
        %s2634 = sld [smem:[#allocation7 + %s2618]]
        %s2635 = sld [smem:[#allocation7 + %s2620]]
        %s2636 = sld [smem:[#allocation7 + %s2622]]
        %s2637 = sld [smem:[#allocation7 + %s2624]]
        %s2638 = sld [smem:[#allocation7 + %s2626]]
        %s2639 = sld [smem:[#allocation7 + %s2628]]
        %s2640 = sld [smem:[#allocation7 + %s2630]]
        %v2641 = vstv %s2615
        %v2642 = vmul.f32 %v258, %v2641
        %v2643 = vmul.f32 %v259, %v2641
        %v2644 = vstv %s2621
        %v2645 = vmul.f32 %v261, %v2644
        %v2646 = vmul.f32 %v262, %v2644
        %v2647 = vadd.f32 %v2642, %v2645
        %v2648 = vadd.f32 %v2643, %v2646
        %v2649 = vstv %s2627
        %v2650 = vmul.f32 %v264, %v2649
        %v2651 = vmul.f32 %v265, %v2649
        %v2652 = vadd.f32 %v2647, %v2650
        %v2653 = vadd.f32 %v2648, %v2651
        %v2654 = vstv %s2632
        %v2655 = vadd.f32 %v2652, %v2654
        %v2656 = vadd.f32 %v2653, %v2654
        %v2657 = vstv %s2617
        %v2658 = vmul.f32 %v258, %v2657
        %v2659 = vmul.f32 %v259, %v2657
        %v2660 = vstv %s2623
        %v2661 = vmul.f32 %v261, %v2660
        %v2662 = vmul.f32 %v262, %v2660
        %v2663 = vadd.f32 %v2658, %v2661
        %v2664 = vadd.f32 %v2659, %v2662
        %v2665 = vstv %s2629
        %v2666 = vmul.f32 %v264, %v2665
        %v2667 = vmul.f32 %v265, %v2665
        %v2668 = vadd.f32 %v2663, %v2666
        %v2669 = vadd.f32 %v2664, %v2667
        %v2670 = vstv %s2633
        %v2671 = vadd.f32 %v2668, %v2670
        %v2672 = vadd.f32 %v2669, %v2670
        %v2673 = vstv %s2619
        %v2674 = vmul.f32 %v258, %v2673
        %v2675 = vmul.f32 %v259, %v2673
        %v2676 = vstv %s2625
        %v2677 = vmul.f32 %v261, %v2676
        %v2678 = vmul.f32 %v262, %v2676
        %v2679 = vadd.f32 %v2674, %v2677
        %v2680 = vadd.f32 %v2675, %v2678
        %v2681 = vstv %s2631
        %v2682 = vmul.f32 %v264, %v2681
        %v2683 = vmul.f32 %v265, %v2681
        %v2684 = vadd.f32 %v2679, %v2682
        %v2685 = vadd.f32 %v2680, %v2683
        %v2686 = vstv %s2634
        %v2687 = vadd.f32 %v2684, %v2686
        %v2688 = vadd.f32 %v2685, %v2686
        %v2689 = vrcp.pop %v2687
        %v2690 = vrcp.pop %v2688
        %v2691 = vmul.f32 %v2689, 1.7320508
        %v2692 = vmul.f32 %v2690, 1.7320508
        %v2693 = vmul.f32 %v2655, %v2691
        %v2694 = vmul.f32 %v2656, %v2692
        %v2695 = vmul.f32 %v2671, %v2691
        %v2696 = vmul.f32 %v2672, %v2692
        %v2697 = vrcp.pop %v2687
        %v2698 = vmul.f32 -1.010101, %v2697
        %v2699 = vrcp.pop %v2688
        %v2700 = vmul.f32 -1.010101, %v2699
        %v2701 = vadd.f32 %v2698, 1.010101
        %v2702 = vadd.f32 %v2700, 1.010101
        %v2703 = vstv %s2638
        %v2704 = vsub.f32 %v2703, %v258
        %v2705 = vsub.f32 %v2703, %v259
        %v2706 = vstv %s2639
        %v2707 = vsub.f32 %v2706, %v261
        %v2708 = vsub.f32 %v2706, %v262
        %v2709 = vstv %s2640
        %v2710 = vsub.f32 %v2709, %v264
        %v2711 = vsub.f32 %v2709, %v265
        %v2712 = vmul.f32 %v2704, %v2704
        %v2713 = vmul.f32 %v2705, %v2705
        %v2714 = vmul.f32 %v2707, %v2707
        %v2715 = vmul.f32 %v2708, %v2708
        %v2716 = vadd.f32 %v2712, %v2714
        %v2717 = vadd.f32 %v2713, %v2715
        %v2718 = vmul.f32 %v2710, %v2710
        %v2719 = vmul.f32 %v2711, %v2711
        %v2720 = vadd.f32 %v2716, %v2718
        %v2721 = vadd.f32 %v2717, %v2719
        %v2722 = vadd.f32 %v2720, 1e-12
        %v2723 = vadd.f32 %v2721, 1e-12
        %v2724 = vrsqrt.pop %v2722
        %v2725 = vrsqrt.pop %v2723
        %v2726 = vmul.f32 %v2704, %v2724
        %v2727 = vmul.f32 %v2705, %v2725
        %v2728 = vmul.f32 %v2707, %v2724
        %v2729 = vmul.f32 %v2708, %v2725
        %v2730 = vmul.f32 %v2710, %v2724
        %v2731 = vmul.f32 %v2711, %v2725
        %v2732 = vmul.f32 %v289, %v2726
        %v2733 = vmul.f32 %v290, %v2727
        %v2734 = vmul.f32 %v291, %v2728
        %v2735 = vmul.f32 %v292, %v2729
        %v2736 = vadd.f32 %v2732, %v2734
        %v2737 = vadd.f32 %v2733, %v2735
        %v2738 = vmul.f32 %v293, %v2730
        %v2739 = vmul.f32 %v294, %v2731
        %v2740 = vadd.f32 %v2736, %v2738
        %v2741 = vadd.f32 %v2737, %v2739
        %v2742 = vstv %s2635
        %v2743 = vsub.f32 %v2742, %v258
        %v2744 = vsub.f32 %v2742, %v259
        %v2745 = vstv %s2636
        %v2746 = vsub.f32 %v2745, %v261
        %v2747 = vsub.f32 %v2745, %v262
        %v2748 = vstv %s2637
        %v2749 = vsub.f32 %v2748, %v264
        %v2750 = vsub.f32 %v2748, %v265
        %v2751 = vmul.f32 %v2743, %v2743
        %v2752 = vmul.f32 %v2744, %v2744
        %v2753 = vmul.f32 %v2746, %v2746
        %v2754 = vmul.f32 %v2747, %v2747
        %v2755 = vadd.f32 %v2751, %v2753
        %v2756 = vadd.f32 %v2752, %v2754
        %v2757 = vmul.f32 %v2749, %v2749
        %v2758 = vmul.f32 %v2750, %v2750
        %v2759 = vadd.f32 %v2755, %v2757
        %v2760 = vadd.f32 %v2756, %v2758
        %v2761 = vadd.f32 %v2759, 1e-12
        %v2762 = vadd.f32 %v2760, 1e-12
        %v2763 = vrsqrt.pop %v2761
        %v2764 = vrsqrt.pop %v2762
        %v2765 = vmul.f32 %v2743, %v2763
        %v2766 = vmul.f32 %v2744, %v2764
        %v2767 = vmul.f32 %v2746, %v2763
        %v2768 = vmul.f32 %v2747, %v2764
        %v2769 = vmul.f32 %v2749, %v2763
        %v2770 = vmul.f32 %v2750, %v2764
        %v2771 = vmul.f32 %v289, %v2765
        %v2772 = vmul.f32 %v290, %v2766
        %v2773 = vmul.f32 %v291, %v2767
        %v2774 = vmul.f32 %v292, %v2768
        %v2775 = vadd.f32 %v2771, %v2773
        %v2776 = vadd.f32 %v2772, %v2774
        %v2777 = vmul.f32 %v293, %v2769
        %v2778 = vmul.f32 %v294, %v2770
        %v2779 = vadd.f32 %v2775, %v2777
        %v2780 = vadd.f32 %v2776, %v2778
        %v2781 = vmul.f32 %v2726, %v2765
        %v2782 = vmul.f32 %v2727, %v2766
        %v2783 = vmul.f32 %v2728, %v2767
        %v2784 = vmul.f32 %v2729, %v2768
        %v2785 = vadd.f32 %v2781, %v2783
        %v2786 = vadd.f32 %v2782, %v2784
        %v2787 = vmul.f32 %v2730, %v2769
        %v2788 = vmul.f32 %v2731, %v2770
        %v2789 = vadd.f32 %v2785, %v2787
        %v2790 = vadd.f32 %v2786, %v2788
        %v2791 = vmul.f32 %v2740, 2.0
        %v2792 = vmul.f32 %v2741, 2.0
        %v2793 = vmul.f32 %v2791, %v2779
        %v2794 = vmul.f32 %v2792, %v2780
        %v2795 = vsub.f32 %v2793, %v2789
        %v2796 = vsub.f32 %v2794, %v2790
        %v2797 = vmax.f32 %v2795, 0.0
        %v2798 = vmax.f32 %v2796, 0.0
        %vm2799 = vcmp.gt.f32.partialorder %v2740, 0.0
        %vm2800 = vcmp.gt.f32.partialorder %v2741, 0.0
        %v2801 = vsel %vm2799, %v2797, 0.0
        %v2802 = vsel %vm2800, %v2798, 0.0
        %v2803 = vmul.f32 %v2801, %v2801
        %v2804 = vmul.f32 %v2802, %v2802
        %v2805 = vmul.f32 %v2803, %v2803
        %v2806 = vmul.f32 %v2804, %v2804
        %v2807 = vmul.f32 %v2805, %v2805
        %v2808 = vmul.f32 %v2806, %v2806
        %v2809 = vmul.f32 %v2807, %v2807
        %v2810 = vmul.f32 %v2808, %v2808
        %v2811 = vmul.f32 %v2809, %v2809
        %v2812 = vmul.f32 %v2810, %v2810
        %v2813 = vmul.f32 %v2811, %v2811
        %v2814 = vmul.f32 %v2812, %v2812
        %v2815 = vmax.f32 %v2740, 0.0
        %v2816 = vmax.f32 %v2741, 0.0
        %v2817 = vmul.f32 %v2815, 0.3
        %v2818 = vmul.f32 %v2816, 0.3
        %v2819 = vadd.f32 %v2817, 0.5
        %v2820 = vadd.f32 %v2818, 0.5
        %v2821 = vmul.f32 %v2813, 0.2
        %v2822 = vmul.f32 %v2814, 0.2
        %v2823 = vadd.f32 %v2819, %v2821
        %v2824 = vadd.f32 %v2820, %v2822
        %s2825 = scalar_lea.vmem %s245, 480 [#allocation9]
        %2826 = vst [vmem:[%s2825] sm:$0xff] %v2693
        %2827 = vst [vmem:[%s2825 + $0x8] sm:$0xff] %v2694
        %s2828 = scalar_lea.vmem %s245, 496 [#allocation9]
        %2829 = vst [vmem:[%s2828] sm:$0xff] %v2695
        %2830 = vst [vmem:[%s2828 + $0x8] sm:$0xff] %v2696
        %s2831 = scalar_lea.vmem %s245, 512 [#allocation9]
        %2832 = vst [vmem:[%s2831] sm:$0xff] %v2701
        %2833 = vst [vmem:[%s2831 + $0x8] sm:$0xff] %v2702
        %v2834 = vpack.c.bf16 %v2824, %v2823
        %v2836 = vunpack.c.l.b16 %v2834
        %v2837 = vunpack.c.h.b16 %v2834
        %v2838 = vpack.c.b16 %v2836, %v2836
        %v2839 = vpack.c.b16 %v2837, %v2837
        %s2842 = scalar_lea.vmem %s252, 80 [#allocation10]
        %2843 = vst [vmem:[%s2842] sm:$0xf] %v2838
        %2844 = vst [vmem:[%s2842 + $0x4] sm:$0xf] %v2839
        %s2845 = sadd.s32 %s524, 11
        %s2846 = smul.u32 %s2845, 9
        %s2847 = sld [smem:[#allocation6 + %s2846]]
        %s2848 = sadd.s32 %s2846, 1
        %s2849 = sld [smem:[#allocation6 + %s2848]]
        %s2850 = sadd.s32 %s2846, 2
        %s2851 = sld [smem:[#allocation6 + %s2850]]
        %s2852 = sadd.s32 %s2846, 3
        %s2853 = sld [smem:[#allocation6 + %s2852]]
        %s2854 = sadd.s32 %s2846, 4
        %s2855 = sld [smem:[#allocation6 + %s2854]]
        %s2856 = sadd.s32 %s2846, 5
        %s2857 = sld [smem:[#allocation6 + %s2856]]
        %s2858 = sadd.s32 %s2846, 6
        %s2859 = sld [smem:[#allocation6 + %s2858]]
        %s2860 = sadd.s32 %s2846, 7
        %s2861 = sld [smem:[#allocation6 + %s2860]]
        %s2862 = sadd.s32 %s2846, 8
        %s2863 = sld [smem:[#allocation6 + %s2862]]
        %s2864 = sld [smem:[#allocation7 + %s2846]]
        %s2865 = sld [smem:[#allocation7 + %s2848]]
        %s2866 = sld [smem:[#allocation7 + %s2850]]
        %s2867 = sld [smem:[#allocation7 + %s2852]]
        %s2868 = sld [smem:[#allocation7 + %s2854]]
        %s2869 = sld [smem:[#allocation7 + %s2856]]
        %s2870 = sld [smem:[#allocation7 + %s2858]]
        %s2871 = sld [smem:[#allocation7 + %s2860]]
        %s2872 = sld [smem:[#allocation7 + %s2862]]
        %v2873 = vstv %s2847
        %v2874 = vmul.f32 %v258, %v2873
        %v2875 = vmul.f32 %v259, %v2873
        %v2876 = vstv %s2853
        %v2877 = vmul.f32 %v261, %v2876
        %v2878 = vmul.f32 %v262, %v2876
        %v2879 = vadd.f32 %v2874, %v2877
        %v2880 = vadd.f32 %v2875, %v2878
        %v2881 = vstv %s2859
        %v2882 = vmul.f32 %v264, %v2881
        %v2883 = vmul.f32 %v265, %v2881
        %v2884 = vadd.f32 %v2879, %v2882
        %v2885 = vadd.f32 %v2880, %v2883
        %v2886 = vstv %s2864
        %v2887 = vadd.f32 %v2884, %v2886
        %v2888 = vadd.f32 %v2885, %v2886
        %v2889 = vstv %s2849
        %v2890 = vmul.f32 %v258, %v2889
        %v2891 = vmul.f32 %v259, %v2889
        %v2892 = vstv %s2855
        %v2893 = vmul.f32 %v261, %v2892
        %v2894 = vmul.f32 %v262, %v2892
        %v2895 = vadd.f32 %v2890, %v2893
        %v2896 = vadd.f32 %v2891, %v2894
        %v2897 = vstv %s2861
        %v2898 = vmul.f32 %v264, %v2897
        %v2899 = vmul.f32 %v265, %v2897
        %v2900 = vadd.f32 %v2895, %v2898
        %v2901 = vadd.f32 %v2896, %v2899
        %v2902 = vstv %s2865
        %v2903 = vadd.f32 %v2900, %v2902
        %v2904 = vadd.f32 %v2901, %v2902
        %v2905 = vstv %s2851
        %v2906 = vmul.f32 %v258, %v2905
        %v2907 = vmul.f32 %v259, %v2905
        %v2908 = vstv %s2857
        %v2909 = vmul.f32 %v261, %v2908
        %v2910 = vmul.f32 %v262, %v2908
        %v2911 = vadd.f32 %v2906, %v2909
        %v2912 = vadd.f32 %v2907, %v2910
        %v2913 = vstv %s2863
        %v2914 = vmul.f32 %v264, %v2913
        %v2915 = vmul.f32 %v265, %v2913
        %v2916 = vadd.f32 %v2911, %v2914
        %v2917 = vadd.f32 %v2912, %v2915
        %v2918 = vstv %s2866
        %v2919 = vadd.f32 %v2916, %v2918
        %v2920 = vadd.f32 %v2917, %v2918
        %v2921 = vrcp.pop %v2919
        %v2922 = vrcp.pop %v2920
        %v2923 = vmul.f32 %v2921, 1.7320508
        %v2924 = vmul.f32 %v2922, 1.7320508
        %v2925 = vmul.f32 %v2887, %v2923
        %v2926 = vmul.f32 %v2888, %v2924
        %v2927 = vmul.f32 %v2903, %v2923
        %v2928 = vmul.f32 %v2904, %v2924
        %v2929 = vrcp.pop %v2919
        %v2930 = vmul.f32 -1.010101, %v2929
        %v2931 = vrcp.pop %v2920
        %v2932 = vmul.f32 -1.010101, %v2931
        %v2933 = vadd.f32 %v2930, 1.010101
        %v2934 = vadd.f32 %v2932, 1.010101
        %v2935 = vstv %s2870
        %v2936 = vsub.f32 %v2935, %v258
        %v2937 = vsub.f32 %v2935, %v259
        %v2938 = vstv %s2871
        %v2939 = vsub.f32 %v2938, %v261
        %v2940 = vsub.f32 %v2938, %v262
        %v2941 = vstv %s2872
        %v2942 = vsub.f32 %v2941, %v264
        %v2943 = vsub.f32 %v2941, %v265
        %v2944 = vmul.f32 %v2936, %v2936
        %v2945 = vmul.f32 %v2937, %v2937
        %v2946 = vmul.f32 %v2939, %v2939
        %v2947 = vmul.f32 %v2940, %v2940
        %v2948 = vadd.f32 %v2944, %v2946
        %v2949 = vadd.f32 %v2945, %v2947
        %v2950 = vmul.f32 %v2942, %v2942
        %v2951 = vmul.f32 %v2943, %v2943
        %v2952 = vadd.f32 %v2948, %v2950
        %v2953 = vadd.f32 %v2949, %v2951
        %v2954 = vadd.f32 %v2952, 1e-12
        %v2955 = vadd.f32 %v2953, 1e-12
        %v2956 = vrsqrt.pop %v2954
        %v2957 = vrsqrt.pop %v2955
        %v2958 = vmul.f32 %v2936, %v2956
        %v2959 = vmul.f32 %v2937, %v2957
        %v2960 = vmul.f32 %v2939, %v2956
        %v2961 = vmul.f32 %v2940, %v2957
        %v2962 = vmul.f32 %v2942, %v2956
        %v2963 = vmul.f32 %v2943, %v2957
        %v2964 = vmul.f32 %v289, %v2958
        %v2965 = vmul.f32 %v290, %v2959
        %v2966 = vmul.f32 %v291, %v2960
        %v2967 = vmul.f32 %v292, %v2961
        %v2968 = vadd.f32 %v2964, %v2966
        %v2969 = vadd.f32 %v2965, %v2967
        %v2970 = vmul.f32 %v293, %v2962
        %v2971 = vmul.f32 %v294, %v2963
        %v2972 = vadd.f32 %v2968, %v2970
        %v2973 = vadd.f32 %v2969, %v2971
        %v2974 = vstv %s2867
        %v2975 = vsub.f32 %v2974, %v258
        %v2976 = vsub.f32 %v2974, %v259
        %v2977 = vstv %s2868
        %v2978 = vsub.f32 %v2977, %v261
        %v2979 = vsub.f32 %v2977, %v262
        %v2980 = vstv %s2869
        %v2981 = vsub.f32 %v2980, %v264
        %v2982 = vsub.f32 %v2980, %v265
        %v2983 = vmul.f32 %v2975, %v2975
        %v2984 = vmul.f32 %v2976, %v2976
        %v2985 = vmul.f32 %v2978, %v2978
        %v2986 = vmul.f32 %v2979, %v2979
        %v2987 = vadd.f32 %v2983, %v2985
        %v2988 = vadd.f32 %v2984, %v2986
        %v2989 = vmul.f32 %v2981, %v2981
        %v2990 = vmul.f32 %v2982, %v2982
        %v2991 = vadd.f32 %v2987, %v2989
        %v2992 = vadd.f32 %v2988, %v2990
        %v2993 = vadd.f32 %v2991, 1e-12
        %v2994 = vadd.f32 %v2992, 1e-12
        %v2995 = vrsqrt.pop %v2993
        %v2996 = vrsqrt.pop %v2994
        %v2997 = vmul.f32 %v2975, %v2995
        %v2998 = vmul.f32 %v2976, %v2996
        %v2999 = vmul.f32 %v2978, %v2995
        %v3000 = vmul.f32 %v2979, %v2996
        %v3001 = vmul.f32 %v2981, %v2995
        %v3002 = vmul.f32 %v2982, %v2996
        %v3003 = vmul.f32 %v289, %v2997
        %v3004 = vmul.f32 %v290, %v2998
        %v3005 = vmul.f32 %v291, %v2999
        %v3006 = vmul.f32 %v292, %v3000
        %v3007 = vadd.f32 %v3003, %v3005
        %v3008 = vadd.f32 %v3004, %v3006
        %v3009 = vmul.f32 %v293, %v3001
        %v3010 = vmul.f32 %v294, %v3002
        %v3011 = vadd.f32 %v3007, %v3009
        %v3012 = vadd.f32 %v3008, %v3010
        %v3013 = vmul.f32 %v2958, %v2997
        %v3014 = vmul.f32 %v2959, %v2998
        %v3015 = vmul.f32 %v2960, %v2999
        %v3016 = vmul.f32 %v2961, %v3000
        %v3017 = vadd.f32 %v3013, %v3015
        %v3018 = vadd.f32 %v3014, %v3016
        %v3019 = vmul.f32 %v2962, %v3001
        %v3020 = vmul.f32 %v2963, %v3002
        %v3021 = vadd.f32 %v3017, %v3019
        %v3022 = vadd.f32 %v3018, %v3020
        %v3023 = vmul.f32 %v2972, 2.0
        %v3024 = vmul.f32 %v2973, 2.0
        %v3025 = vmul.f32 %v3023, %v3011
        %v3026 = vmul.f32 %v3024, %v3012
        %v3027 = vsub.f32 %v3025, %v3021
        %v3028 = vsub.f32 %v3026, %v3022
        %v3029 = vmax.f32 %v3027, 0.0
        %v3030 = vmax.f32 %v3028, 0.0
        %vm3031 = vcmp.gt.f32.partialorder %v2972, 0.0
        %vm3032 = vcmp.gt.f32.partialorder %v2973, 0.0
        %v3033 = vsel %vm3031, %v3029, 0.0
        %v3034 = vsel %vm3032, %v3030, 0.0
        %v3035 = vmul.f32 %v3033, %v3033
        %v3036 = vmul.f32 %v3034, %v3034
        %v3037 = vmul.f32 %v3035, %v3035
        %v3038 = vmul.f32 %v3036, %v3036
        %v3039 = vmul.f32 %v3037, %v3037
        %v3040 = vmul.f32 %v3038, %v3038
        %v3041 = vmul.f32 %v3039, %v3039
        %v3042 = vmul.f32 %v3040, %v3040
        %v3043 = vmul.f32 %v3041, %v3041
        %v3044 = vmul.f32 %v3042, %v3042
        %v3045 = vmul.f32 %v3043, %v3043
        %v3046 = vmul.f32 %v3044, %v3044
        %v3047 = vmax.f32 %v2972, 0.0
        %v3048 = vmax.f32 %v2973, 0.0
        %v3049 = vmul.f32 %v3047, 0.3
        %v3050 = vmul.f32 %v3048, 0.3
        %v3051 = vadd.f32 %v3049, 0.5
        %v3052 = vadd.f32 %v3050, 0.5
        %v3053 = vmul.f32 %v3045, 0.2
        %v3054 = vmul.f32 %v3046, 0.2
        %v3055 = vadd.f32 %v3051, %v3053
        %v3056 = vadd.f32 %v3052, %v3054
        %s3057 = scalar_lea.vmem %s245, 528 [#allocation9]
        %3058 = vst [vmem:[%s3057] sm:$0xff] %v2925
        %3059 = vst [vmem:[%s3057 + $0x8] sm:$0xff] %v2926
        %s3060 = scalar_lea.vmem %s245, 544 [#allocation9]
        %3061 = vst [vmem:[%s3060] sm:$0xff] %v2927
        %3062 = vst [vmem:[%s3060 + $0x8] sm:$0xff] %v2928
        %s3063 = scalar_lea.vmem %s245, 560 [#allocation9]
        %3064 = vst [vmem:[%s3063] sm:$0xff] %v2933
        %3065 = vst [vmem:[%s3063 + $0x8] sm:$0xff] %v2934
        %v3066 = vpack.c.bf16 %v3056, %v3055
        %v3068 = vunpack.c.l.b16 %v3066
        %v3069 = vunpack.c.h.b16 %v3066
        %v3070 = vpack.c.b16 %v3068, %v3068
        %v3071 = vpack.c.b16 %v3069, %v3069
        %s3074 = scalar_lea.vmem %s252, 88 [#allocation10]
        %3075 = vst [vmem:[%s3074] sm:$0xf] %v3070
        %3076 = vst [vmem:[%s3074 + $0x4] sm:$0xf] %v3071
        %s3077 = sadd.s32 %s524, 12
        %s3078 = smul.u32 %s3077, 9
        %s3079 = sld [smem:[#allocation6 + %s3078]]
        %s3080 = sadd.s32 %s3078, 1
        %s3081 = sld [smem:[#allocation6 + %s3080]]
        %s3082 = sadd.s32 %s3078, 2
        %s3083 = sld [smem:[#allocation6 + %s3082]]
        %s3084 = sadd.s32 %s3078, 3
        %s3085 = sld [smem:[#allocation6 + %s3084]]
        %s3086 = sadd.s32 %s3078, 4
        %s3087 = sld [smem:[#allocation6 + %s3086]]
        %s3088 = sadd.s32 %s3078, 5
        %s3089 = sld [smem:[#allocation6 + %s3088]]
        %s3090 = sadd.s32 %s3078, 6
        %s3091 = sld [smem:[#allocation6 + %s3090]]
        %s3092 = sadd.s32 %s3078, 7
        %s3093 = sld [smem:[#allocation6 + %s3092]]
        %s3094 = sadd.s32 %s3078, 8
        %s3095 = sld [smem:[#allocation6 + %s3094]]
        %s3096 = sld [smem:[#allocation7 + %s3078]]
        %s3097 = sld [smem:[#allocation7 + %s3080]]
        %s3098 = sld [smem:[#allocation7 + %s3082]]
        %s3099 = sld [smem:[#allocation7 + %s3084]]
        %s3100 = sld [smem:[#allocation7 + %s3086]]
        %s3101 = sld [smem:[#allocation7 + %s3088]]
        %s3102 = sld [smem:[#allocation7 + %s3090]]
        %s3103 = sld [smem:[#allocation7 + %s3092]]
        %s3104 = sld [smem:[#allocation7 + %s3094]]
        %v3105 = vstv %s3079
        %v3106 = vmul.f32 %v258, %v3105
        %v3107 = vmul.f32 %v259, %v3105
        %v3108 = vstv %s3085
        %v3109 = vmul.f32 %v261, %v3108
        %v3110 = vmul.f32 %v262, %v3108
        %v3111 = vadd.f32 %v3106, %v3109
        %v3112 = vadd.f32 %v3107, %v3110
        %v3113 = vstv %s3091
        %v3114 = vmul.f32 %v264, %v3113
        %v3115 = vmul.f32 %v265, %v3113
        %v3116 = vadd.f32 %v3111, %v3114
        %v3117 = vadd.f32 %v3112, %v3115
        %v3118 = vstv %s3096
        %v3119 = vadd.f32 %v3116, %v3118
        %v3120 = vadd.f32 %v3117, %v3118
        %v3121 = vstv %s3081
        %v3122 = vmul.f32 %v258, %v3121
        %v3123 = vmul.f32 %v259, %v3121
        %v3124 = vstv %s3087
        %v3125 = vmul.f32 %v261, %v3124
        %v3126 = vmul.f32 %v262, %v3124
        %v3127 = vadd.f32 %v3122, %v3125
        %v3128 = vadd.f32 %v3123, %v3126
        %v3129 = vstv %s3093
        %v3130 = vmul.f32 %v264, %v3129
        %v3131 = vmul.f32 %v265, %v3129
        %v3132 = vadd.f32 %v3127, %v3130
        %v3133 = vadd.f32 %v3128, %v3131
        %v3134 = vstv %s3097
        %v3135 = vadd.f32 %v3132, %v3134
        %v3136 = vadd.f32 %v3133, %v3134
        %v3137 = vstv %s3083
        %v3138 = vmul.f32 %v258, %v3137
        %v3139 = vmul.f32 %v259, %v3137
        %v3140 = vstv %s3089
        %v3141 = vmul.f32 %v261, %v3140
        %v3142 = vmul.f32 %v262, %v3140
        %v3143 = vadd.f32 %v3138, %v3141
        %v3144 = vadd.f32 %v3139, %v3142
        %v3145 = vstv %s3095
        %v3146 = vmul.f32 %v264, %v3145
        %v3147 = vmul.f32 %v265, %v3145
        %v3148 = vadd.f32 %v3143, %v3146
        %v3149 = vadd.f32 %v3144, %v3147
        %v3150 = vstv %s3098
        %v3151 = vadd.f32 %v3148, %v3150
        %v3152 = vadd.f32 %v3149, %v3150
        %v3153 = vrcp.pop %v3151
        %v3154 = vrcp.pop %v3152
        %v3155 = vmul.f32 %v3153, 1.7320508
        %v3156 = vmul.f32 %v3154, 1.7320508
        %v3157 = vmul.f32 %v3119, %v3155
        %v3158 = vmul.f32 %v3120, %v3156
        %v3159 = vmul.f32 %v3135, %v3155
        %v3160 = vmul.f32 %v3136, %v3156
        %v3161 = vrcp.pop %v3151
        %v3162 = vmul.f32 -1.010101, %v3161
        %v3163 = vrcp.pop %v3152
        %v3164 = vmul.f32 -1.010101, %v3163
        %v3165 = vadd.f32 %v3162, 1.010101
        %v3166 = vadd.f32 %v3164, 1.010101
        %v3167 = vstv %s3102
        %v3168 = vsub.f32 %v3167, %v258
        %v3169 = vsub.f32 %v3167, %v259
        %v3170 = vstv %s3103
        %v3171 = vsub.f32 %v3170, %v261
        %v3172 = vsub.f32 %v3170, %v262
        %v3173 = vstv %s3104
        %v3174 = vsub.f32 %v3173, %v264
        %v3175 = vsub.f32 %v3173, %v265
        %v3176 = vmul.f32 %v3168, %v3168
        %v3177 = vmul.f32 %v3169, %v3169
        %v3178 = vmul.f32 %v3171, %v3171
        %v3179 = vmul.f32 %v3172, %v3172
        %v3180 = vadd.f32 %v3176, %v3178
        %v3181 = vadd.f32 %v3177, %v3179
        %v3182 = vmul.f32 %v3174, %v3174
        %v3183 = vmul.f32 %v3175, %v3175
        %v3184 = vadd.f32 %v3180, %v3182
        %v3185 = vadd.f32 %v3181, %v3183
        %v3186 = vadd.f32 %v3184, 1e-12
        %v3187 = vadd.f32 %v3185, 1e-12
        %v3188 = vrsqrt.pop %v3186
        %v3189 = vrsqrt.pop %v3187
        %v3190 = vmul.f32 %v3168, %v3188
        %v3191 = vmul.f32 %v3169, %v3189
        %v3192 = vmul.f32 %v3171, %v3188
        %v3193 = vmul.f32 %v3172, %v3189
        %v3194 = vmul.f32 %v3174, %v3188
        %v3195 = vmul.f32 %v3175, %v3189
        %v3196 = vmul.f32 %v289, %v3190
        %v3197 = vmul.f32 %v290, %v3191
        %v3198 = vmul.f32 %v291, %v3192
        %v3199 = vmul.f32 %v292, %v3193
        %v3200 = vadd.f32 %v3196, %v3198
        %v3201 = vadd.f32 %v3197, %v3199
        %v3202 = vmul.f32 %v293, %v3194
        %v3203 = vmul.f32 %v294, %v3195
        %v3204 = vadd.f32 %v3200, %v3202
        %v3205 = vadd.f32 %v3201, %v3203
        %v3206 = vstv %s3099
        %v3207 = vsub.f32 %v3206, %v258
        %v3208 = vsub.f32 %v3206, %v259
        %v3209 = vstv %s3100
        %v3210 = vsub.f32 %v3209, %v261
        %v3211 = vsub.f32 %v3209, %v262
        %v3212 = vstv %s3101
        %v3213 = vsub.f32 %v3212, %v264
        %v3214 = vsub.f32 %v3212, %v265
        %v3215 = vmul.f32 %v3207, %v3207
        %v3216 = vmul.f32 %v3208, %v3208
        %v3217 = vmul.f32 %v3210, %v3210
        %v3218 = vmul.f32 %v3211, %v3211
        %v3219 = vadd.f32 %v3215, %v3217
        %v3220 = vadd.f32 %v3216, %v3218
        %v3221 = vmul.f32 %v3213, %v3213
        %v3222 = vmul.f32 %v3214, %v3214
        %v3223 = vadd.f32 %v3219, %v3221
        %v3224 = vadd.f32 %v3220, %v3222
        %v3225 = vadd.f32 %v3223, 1e-12
        %v3226 = vadd.f32 %v3224, 1e-12
        %v3227 = vrsqrt.pop %v3225
        %v3228 = vrsqrt.pop %v3226
        %v3229 = vmul.f32 %v3207, %v3227
        %v3230 = vmul.f32 %v3208, %v3228
        %v3231 = vmul.f32 %v3210, %v3227
        %v3232 = vmul.f32 %v3211, %v3228
        %v3233 = vmul.f32 %v3213, %v3227
        %v3234 = vmul.f32 %v3214, %v3228
        %v3235 = vmul.f32 %v289, %v3229
        %v3236 = vmul.f32 %v290, %v3230
        %v3237 = vmul.f32 %v291, %v3231
        %v3238 = vmul.f32 %v292, %v3232
        %v3239 = vadd.f32 %v3235, %v3237
        %v3240 = vadd.f32 %v3236, %v3238
        %v3241 = vmul.f32 %v293, %v3233
        %v3242 = vmul.f32 %v294, %v3234
        %v3243 = vadd.f32 %v3239, %v3241
        %v3244 = vadd.f32 %v3240, %v3242
        %v3245 = vmul.f32 %v3190, %v3229
        %v3246 = vmul.f32 %v3191, %v3230
        %v3247 = vmul.f32 %v3192, %v3231
        %v3248 = vmul.f32 %v3193, %v3232
        %v3249 = vadd.f32 %v3245, %v3247
        %v3250 = vadd.f32 %v3246, %v3248
        %v3251 = vmul.f32 %v3194, %v3233
        %v3252 = vmul.f32 %v3195, %v3234
        %v3253 = vadd.f32 %v3249, %v3251
        %v3254 = vadd.f32 %v3250, %v3252
        %v3255 = vmul.f32 %v3204, 2.0
        %v3256 = vmul.f32 %v3205, 2.0
        %v3257 = vmul.f32 %v3255, %v3243
        %v3258 = vmul.f32 %v3256, %v3244
        %v3259 = vsub.f32 %v3257, %v3253
        %v3260 = vsub.f32 %v3258, %v3254
        %v3261 = vmax.f32 %v3259, 0.0
        %v3262 = vmax.f32 %v3260, 0.0
        %vm3263 = vcmp.gt.f32.partialorder %v3204, 0.0
        %vm3264 = vcmp.gt.f32.partialorder %v3205, 0.0
        %v3265 = vsel %vm3263, %v3261, 0.0
        %v3266 = vsel %vm3264, %v3262, 0.0
        %v3267 = vmul.f32 %v3265, %v3265
        %v3268 = vmul.f32 %v3266, %v3266
        %v3269 = vmul.f32 %v3267, %v3267
        %v3270 = vmul.f32 %v3268, %v3268
        %v3271 = vmul.f32 %v3269, %v3269
        %v3272 = vmul.f32 %v3270, %v3270
        %v3273 = vmul.f32 %v3271, %v3271
        %v3274 = vmul.f32 %v3272, %v3272
        %v3275 = vmul.f32 %v3273, %v3273
        %v3276 = vmul.f32 %v3274, %v3274
        %v3277 = vmul.f32 %v3275, %v3275
        %v3278 = vmul.f32 %v3276, %v3276
        %v3279 = vmax.f32 %v3204, 0.0
        %v3280 = vmax.f32 %v3205, 0.0
        %v3281 = vmul.f32 %v3279, 0.3
        %v3282 = vmul.f32 %v3280, 0.3
        %v3283 = vadd.f32 %v3281, 0.5
        %v3284 = vadd.f32 %v3282, 0.5
        %v3285 = vmul.f32 %v3277, 0.2
        %v3286 = vmul.f32 %v3278, 0.2
        %v3287 = vadd.f32 %v3283, %v3285
        %v3288 = vadd.f32 %v3284, %v3286
        %s3289 = scalar_lea.vmem %s245, 576 [#allocation9]
        %3290 = vst [vmem:[%s3289] sm:$0xff] %v3157
        %3291 = vst [vmem:[%s3289 + $0x8] sm:$0xff] %v3158
        %s3292 = scalar_lea.vmem %s245, 592 [#allocation9]
        %3293 = vst [vmem:[%s3292] sm:$0xff] %v3159
        %3294 = vst [vmem:[%s3292 + $0x8] sm:$0xff] %v3160
        %s3295 = scalar_lea.vmem %s245, 608 [#allocation9]
        %3296 = vst [vmem:[%s3295] sm:$0xff] %v3165
        %3297 = vst [vmem:[%s3295 + $0x8] sm:$0xff] %v3166
        %v3298 = vpack.c.bf16 %v3288, %v3287
        %v3300 = vunpack.c.l.b16 %v3298
        %v3301 = vunpack.c.h.b16 %v3298
        %v3302 = vpack.c.b16 %v3300, %v3300
        %v3303 = vpack.c.b16 %v3301, %v3301
        %s3306 = scalar_lea.vmem %s252, 96 [#allocation10]
        %3307 = vst [vmem:[%s3306] sm:$0xf] %v3302
        %3308 = vst [vmem:[%s3306 + $0x4] sm:$0xf] %v3303
        %s3309 = sadd.s32 %s524, 13
        %s3310 = smul.u32 %s3309, 9
        %s3311 = sld [smem:[#allocation6 + %s3310]]
        %s3312 = sadd.s32 %s3310, 1
        %s3313 = sld [smem:[#allocation6 + %s3312]]
        %s3314 = sadd.s32 %s3310, 2
        %s3315 = sld [smem:[#allocation6 + %s3314]]
        %s3316 = sadd.s32 %s3310, 3
        %s3317 = sld [smem:[#allocation6 + %s3316]]
        %s3318 = sadd.s32 %s3310, 4
        %s3319 = sld [smem:[#allocation6 + %s3318]]
        %s3320 = sadd.s32 %s3310, 5
        %s3321 = sld [smem:[#allocation6 + %s3320]]
        %s3322 = sadd.s32 %s3310, 6
        %s3323 = sld [smem:[#allocation6 + %s3322]]
        %s3324 = sadd.s32 %s3310, 7
        %s3325 = sld [smem:[#allocation6 + %s3324]]
        %s3326 = sadd.s32 %s3310, 8
        %s3327 = sld [smem:[#allocation6 + %s3326]]
        %s3328 = sld [smem:[#allocation7 + %s3310]]
        %s3329 = sld [smem:[#allocation7 + %s3312]]
        %s3330 = sld [smem:[#allocation7 + %s3314]]
        %s3331 = sld [smem:[#allocation7 + %s3316]]
        %s3332 = sld [smem:[#allocation7 + %s3318]]
        %s3333 = sld [smem:[#allocation7 + %s3320]]
        %s3334 = sld [smem:[#allocation7 + %s3322]]
        %s3335 = sld [smem:[#allocation7 + %s3324]]
        %s3336 = sld [smem:[#allocation7 + %s3326]]
        %v3337 = vstv %s3311
        %v3338 = vmul.f32 %v258, %v3337
        %v3339 = vmul.f32 %v259, %v3337
        %v3340 = vstv %s3317
        %v3341 = vmul.f32 %v261, %v3340
        %v3342 = vmul.f32 %v262, %v3340
        %v3343 = vadd.f32 %v3338, %v3341
        %v3344 = vadd.f32 %v3339, %v3342
        %v3345 = vstv %s3323
        %v3346 = vmul.f32 %v264, %v3345
        %v3347 = vmul.f32 %v265, %v3345
        %v3348 = vadd.f32 %v3343, %v3346
        %v3349 = vadd.f32 %v3344, %v3347
        %v3350 = vstv %s3328
        %v3351 = vadd.f32 %v3348, %v3350
        %v3352 = vadd.f32 %v3349, %v3350
        %v3353 = vstv %s3313
        %v3354 = vmul.f32 %v258, %v3353
        %v3355 = vmul.f32 %v259, %v3353
        %v3356 = vstv %s3319
        %v3357 = vmul.f32 %v261, %v3356
        %v3358 = vmul.f32 %v262, %v3356
        %v3359 = vadd.f32 %v3354, %v3357
        %v3360 = vadd.f32 %v3355, %v3358
        %v3361 = vstv %s3325
        %v3362 = vmul.f32 %v264, %v3361
        %v3363 = vmul.f32 %v265, %v3361
        %v3364 = vadd.f32 %v3359, %v3362
        %v3365 = vadd.f32 %v3360, %v3363
        %v3366 = vstv %s3329
        %v3367 = vadd.f32 %v3364, %v3366
        %v3368 = vadd.f32 %v3365, %v3366
        %v3369 = vstv %s3315
        %v3370 = vmul.f32 %v258, %v3369
        %v3371 = vmul.f32 %v259, %v3369
        %v3372 = vstv %s3321
        %v3373 = vmul.f32 %v261, %v3372
        %v3374 = vmul.f32 %v262, %v3372
        %v3375 = vadd.f32 %v3370, %v3373
        %v3376 = vadd.f32 %v3371, %v3374
        %v3377 = vstv %s3327
        %v3378 = vmul.f32 %v264, %v3377
        %v3379 = vmul.f32 %v265, %v3377
        %v3380 = vadd.f32 %v3375, %v3378
        %v3381 = vadd.f32 %v3376, %v3379
        %v3382 = vstv %s3330
        %v3383 = vadd.f32 %v3380, %v3382
        %v3384 = vadd.f32 %v3381, %v3382
        %v3385 = vrcp.pop %v3383
        %v3386 = vrcp.pop %v3384
        %v3387 = vmul.f32 %v3385, 1.7320508
        %v3388 = vmul.f32 %v3386, 1.7320508
        %v3389 = vmul.f32 %v3351, %v3387
        %v3390 = vmul.f32 %v3352, %v3388
        %v3391 = vmul.f32 %v3367, %v3387
        %v3392 = vmul.f32 %v3368, %v3388
        %v3393 = vrcp.pop %v3383
        %v3394 = vmul.f32 -1.010101, %v3393
        %v3395 = vrcp.pop %v3384
        %v3396 = vmul.f32 -1.010101, %v3395
        %v3397 = vadd.f32 %v3394, 1.010101
        %v3398 = vadd.f32 %v3396, 1.010101
        %v3399 = vstv %s3334
        %v3400 = vsub.f32 %v3399, %v258
        %v3401 = vsub.f32 %v3399, %v259
        %v3402 = vstv %s3335
        %v3403 = vsub.f32 %v3402, %v261
        %v3404 = vsub.f32 %v3402, %v262
        %v3405 = vstv %s3336
        %v3406 = vsub.f32 %v3405, %v264
        %v3407 = vsub.f32 %v3405, %v265
        %v3408 = vmul.f32 %v3400, %v3400
        %v3409 = vmul.f32 %v3401, %v3401
        %v3410 = vmul.f32 %v3403, %v3403
        %v3411 = vmul.f32 %v3404, %v3404
        %v3412 = vadd.f32 %v3408, %v3410
        %v3413 = vadd.f32 %v3409, %v3411
        %v3414 = vmul.f32 %v3406, %v3406
        %v3415 = vmul.f32 %v3407, %v3407
        %v3416 = vadd.f32 %v3412, %v3414
        %v3417 = vadd.f32 %v3413, %v3415
        %v3418 = vadd.f32 %v3416, 1e-12
        %v3419 = vadd.f32 %v3417, 1e-12
        %v3420 = vrsqrt.pop %v3418
        %v3421 = vrsqrt.pop %v3419
        %v3422 = vmul.f32 %v3400, %v3420
        %v3423 = vmul.f32 %v3401, %v3421
        %v3424 = vmul.f32 %v3403, %v3420
        %v3425 = vmul.f32 %v3404, %v3421
        %v3426 = vmul.f32 %v3406, %v3420
        %v3427 = vmul.f32 %v3407, %v3421
        %v3428 = vmul.f32 %v289, %v3422
        %v3429 = vmul.f32 %v290, %v3423
        %v3430 = vmul.f32 %v291, %v3424
        %v3431 = vmul.f32 %v292, %v3425
        %v3432 = vadd.f32 %v3428, %v3430
        %v3433 = vadd.f32 %v3429, %v3431
        %v3434 = vmul.f32 %v293, %v3426
        %v3435 = vmul.f32 %v294, %v3427
        %v3436 = vadd.f32 %v3432, %v3434
        %v3437 = vadd.f32 %v3433, %v3435
        %v3438 = vstv %s3331
        %v3439 = vsub.f32 %v3438, %v258
        %v3440 = vsub.f32 %v3438, %v259
        %v3441 = vstv %s3332
        %v3442 = vsub.f32 %v3441, %v261
        %v3443 = vsub.f32 %v3441, %v262
        %v3444 = vstv %s3333
        %v3445 = vsub.f32 %v3444, %v264
        %v3446 = vsub.f32 %v3444, %v265
        %v3447 = vmul.f32 %v3439, %v3439
        %v3448 = vmul.f32 %v3440, %v3440
        %v3449 = vmul.f32 %v3442, %v3442
        %v3450 = vmul.f32 %v3443, %v3443
        %v3451 = vadd.f32 %v3447, %v3449
        %v3452 = vadd.f32 %v3448, %v3450
        %v3453 = vmul.f32 %v3445, %v3445
        %v3454 = vmul.f32 %v3446, %v3446
        %v3455 = vadd.f32 %v3451, %v3453
        %v3456 = vadd.f32 %v3452, %v3454
        %v3457 = vadd.f32 %v3455, 1e-12
        %v3458 = vadd.f32 %v3456, 1e-12
        %v3459 = vrsqrt.pop %v3457
        %v3460 = vrsqrt.pop %v3458
        %v3461 = vmul.f32 %v3439, %v3459
        %v3462 = vmul.f32 %v3440, %v3460
        %v3463 = vmul.f32 %v3442, %v3459
        %v3464 = vmul.f32 %v3443, %v3460
        %v3465 = vmul.f32 %v3445, %v3459
        %v3466 = vmul.f32 %v3446, %v3460
        %v3467 = vmul.f32 %v289, %v3461
        %v3468 = vmul.f32 %v290, %v3462
        %v3469 = vmul.f32 %v291, %v3463
        %v3470 = vmul.f32 %v292, %v3464
        %v3471 = vadd.f32 %v3467, %v3469
        %v3472 = vadd.f32 %v3468, %v3470
        %v3473 = vmul.f32 %v293, %v3465
        %v3474 = vmul.f32 %v294, %v3466
        %v3475 = vadd.f32 %v3471, %v3473
        %v3476 = vadd.f32 %v3472, %v3474
        %v3477 = vmul.f32 %v3422, %v3461
        %v3478 = vmul.f32 %v3423, %v3462
        %v3479 = vmul.f32 %v3424, %v3463
        %v3480 = vmul.f32 %v3425, %v3464
        %v3481 = vadd.f32 %v3477, %v3479
        %v3482 = vadd.f32 %v3478, %v3480
        %v3483 = vmul.f32 %v3426, %v3465
        %v3484 = vmul.f32 %v3427, %v3466
        %v3485 = vadd.f32 %v3481, %v3483
        %v3486 = vadd.f32 %v3482, %v3484
        %v3487 = vmul.f32 %v3436, 2.0
        %v3488 = vmul.f32 %v3437, 2.0
        %v3489 = vmul.f32 %v3487, %v3475
        %v3490 = vmul.f32 %v3488, %v3476
        %v3491 = vsub.f32 %v3489, %v3485
        %v3492 = vsub.f32 %v3490, %v3486
        %v3493 = vmax.f32 %v3491, 0.0
        %v3494 = vmax.f32 %v3492, 0.0
        %vm3495 = vcmp.gt.f32.partialorder %v3436, 0.0
        %vm3496 = vcmp.gt.f32.partialorder %v3437, 0.0
        %v3497 = vsel %vm3495, %v3493, 0.0
        %v3498 = vsel %vm3496, %v3494, 0.0
        %v3499 = vmul.f32 %v3497, %v3497
        %v3500 = vmul.f32 %v3498, %v3498
        %v3501 = vmul.f32 %v3499, %v3499
        %v3502 = vmul.f32 %v3500, %v3500
        %v3503 = vmul.f32 %v3501, %v3501
        %v3504 = vmul.f32 %v3502, %v3502
        %v3505 = vmul.f32 %v3503, %v3503
        %v3506 = vmul.f32 %v3504, %v3504
        %v3507 = vmul.f32 %v3505, %v3505
        %v3508 = vmul.f32 %v3506, %v3506
        %v3509 = vmul.f32 %v3507, %v3507
        %v3510 = vmul.f32 %v3508, %v3508
        %v3511 = vmax.f32 %v3436, 0.0
        %v3512 = vmax.f32 %v3437, 0.0
        %v3513 = vmul.f32 %v3511, 0.3
        %v3514 = vmul.f32 %v3512, 0.3
        %v3515 = vadd.f32 %v3513, 0.5
        %v3516 = vadd.f32 %v3514, 0.5
        %v3517 = vmul.f32 %v3509, 0.2
        %v3518 = vmul.f32 %v3510, 0.2
        %v3519 = vadd.f32 %v3515, %v3517
        %v3520 = vadd.f32 %v3516, %v3518
        %s3521 = scalar_lea.vmem %s245, 624 [#allocation9]
        %3522 = vst [vmem:[%s3521] sm:$0xff] %v3389
        %3523 = vst [vmem:[%s3521 + $0x8] sm:$0xff] %v3390
        %s3524 = scalar_lea.vmem %s245, 640 [#allocation9]
        %3525 = vst [vmem:[%s3524] sm:$0xff] %v3391
        %3526 = vst [vmem:[%s3524 + $0x8] sm:$0xff] %v3392
        %s3527 = scalar_lea.vmem %s245, 656 [#allocation9]
        %3528 = vst [vmem:[%s3527] sm:$0xff] %v3397
        %3529 = vst [vmem:[%s3527 + $0x8] sm:$0xff] %v3398
        %v3530 = vpack.c.bf16 %v3520, %v3519
        %v3532 = vunpack.c.l.b16 %v3530
        %v3533 = vunpack.c.h.b16 %v3530
        %v3534 = vpack.c.b16 %v3532, %v3532
        %v3535 = vpack.c.b16 %v3533, %v3533
        %s3538 = scalar_lea.vmem %s252, 104 [#allocation10]
        %3539 = vst [vmem:[%s3538] sm:$0xf] %v3534
        %3540 = vst [vmem:[%s3538 + $0x4] sm:$0xf] %v3535
        %s3541 = sand.u32 %s115, 1
        %s3542 = scalar_lea.sflag [#allocation4], %s3541
        %s3543 = sand.u32 %s115, 1
        %s3544 = smul.addr %s3543, 672
        %s3545 = scalar_lea.vmem [#allocation9], %s3544
        %s3546 = sand.u32 %s143, 1
        %s3547 = scalar_lea.sflag [#allocation11], %s3546
        %s3548 = sand.u32 %s143, 1
        %s3549 = smul.addr %s3548, 112
        %s3550 = scalar_lea.vmem [#allocation10], %s3549
        // Predicated region
        $region45: #{tpu_custom_call.1} parent=31 // pred_check
          %p3551 = pneg %p125
        $region46: #{tpu_custom_call.1} parent=31 // pred_check_branch
          %3553 = sbr.rel (%p3551) target = $region48
        $region47: #{tpu_custom_call.1} parent=31 // pred_region
          %s3554 = smul.u32 14, %s29
          %s3555 = smul.u32 2, %s30
          %s3557 = ssub.s32 10752, 10752
          %3558 = vsyncadd %s3542, %s3557
          %s3559 = smul.addr %s3554, 6
          %s3560 = sadd.s32 %s3555, %s3559
          %s3561 = smul.addr %s3560, 128
          %s3562 = scalar_lea.hbm %s3, %s3561
          %s3563 = sshll.u32 %s3545, 4
          %s3564 = int_to_ptr.vmem [resolvable:$true] %s3563
          %3569 = dma.vmem_to_hbm [thread:$0]  %s3564, 10752, %s3562, %s3542, 128, 128, 8
        $region48: #{tpu_custom_call.1} parent=31 // pred_fallthru
          _
        // Predicated region
        $region49: #{tpu_custom_call.1} parent=31 // pred_check
          %p3570 = pneg %p153
        $region50: #{tpu_custom_call.1} parent=31 // pred_check_branch
          %3572 = sbr.rel (%p3570) target = $region52
        $region51: #{tpu_custom_call.1} parent=31 // pred_region
          %s3573 = smul.u32 14, %s29
          %s3574 = smul.u32 2, %s30
          %s3576 = ssub.s32 1792, 1792
          %3577 = vsyncadd %s3547, %s3576
          %s3578 = smul.addr %s3573, 2
          %s3579 = sadd.s32 %s3574, %s3578
          %s3580 = smul.addr %s3579, 64
          %s3581 = scalar_lea.hbm %s4, %s3580
          %s3582 = sshll.u32 %s3550, 4
          %s3583 = int_to_ptr.vmem [resolvable:$true] %s3582
          %3588 = dma.vmem_to_hbm [thread:$0]  %s3583, 1792, %s3581, %s3547, 64, 64, 4
        $region52: #{tpu_custom_call.1} parent=31 // pred_fallthru
          _
      $region32: #{tpu_custom_call.1} parent=5 // pred_fallthru
        _
      %p3589 = scmp.le.s32.totalorder 2, %s20
      // Predicated region
      $region53: #{tpu_custom_call.1} parent=5 // pred_check
        %p3590 = pneg %p3589
      $region54: #{tpu_custom_call.1} parent=5 // pred_check_branch
        %3592 = sbr.rel (%p3590) target = $region56
      $region55: #{tpu_custom_call.1} parent=5 // pred_region
        %s3593 = ssub.s32 %s20, 2
        // Predicated region
        $region57: #{tpu_custom_call.1} parent=55 // pred_check
          %p3594 = pneg %p131
        $region58: #{tpu_custom_call.1} parent=55 // pred_check_branch
          %3596 = sbr.rel (%p3594) target = $region60
        $region59: #{tpu_custom_call.1} parent=55 // pred_region
          %s3597 = sand.u32 %s116, 1
          %s3598 = scalar_lea.sflag [#allocation4], %s3597
          %s3599 = sand.u32 %s116, 1
          %s3600 = smul.addr %s3599, 672
          %s3601 = scalar_lea.vmem [#allocation9], %s3600
          %3602 = dma.done %s3598, 10752
        $region60: #{tpu_custom_call.1} parent=55 // pred_fallthru
          _
        // Predicated region
        $region61: #{tpu_custom_call.1} parent=55 // pred_check
          %p3603 = pneg %p159
        $region62: #{tpu_custom_call.1} parent=55 // pred_check_branch
          %3605 = sbr.rel (%p3603) target = $region64
        $region63: #{tpu_custom_call.1} parent=55 // pred_region
          %s3606 = sand.u32 %s144, 1
          %s3607 = scalar_lea.sflag [#allocation11], %s3606
          %s3608 = sand.u32 %s144, 1
          %s3609 = smul.addr %s3608, 112
          %s3610 = scalar_lea.vmem [#allocation10], %s3609
          %3611 = dma.done %s3607, 1792
        $region64: #{tpu_custom_call.1} parent=55 // pred_fallthru
          _
      $region56: #{tpu_custom_call.1} parent=5 // pred_fallthru
        _
    $region6: #{tpu_custom_call.1} parent=1 // loop_footer
      %s24 = sadd.s32 1, %s20
    $region7: #{tpu_custom_call.1} parent=1 // loop_footer_branch
      %19 = sbr.rel target = $region3
    $region8: #{tpu_custom_call.1} parent=1 // loop_exit
      _
    %3612 = vsyncpa [#allocation3], 1
    %s3613 = scalar_lea.sflag [#allocation3], 1
    %3614 = vsyncpa %s3613, 1
    %3615 = vsyncpa [#allocation4], 1
    %s3616 = scalar_lea.sflag [#allocation4], 1
    %3617 = vsyncpa %s3616, 1
    %3618 = vsyncpa [#allocation11], 1
    %s3619 = scalar_lea.sflag [#allocation11], 1
    %3620 = vsyncpa %s3619, 1
    %3621 = vsyncpa [#allocation5], 1
    %s3622 = scalar_lea.sflag [#allocation5], 1
    %3623 = vsyncpa %s3622, 1
    %3624 = vsyncpa [#allocation8], 1

</llo_original>
